<compile_context>
chip_gen: v7x
topology: tpu7x:2x2x1
jax: 0.10.0
libtpu: 0.0.40
codegen_flags: <defaults>
</compile_context>

<pallas_src>
import functools

import jax
import jax.numpy as jnp
from jax import lax
from jax.experimental import pallas as pl
from jax.experimental.pallas import tpu as pltpu

_BN_EPS = 1e-5


# ----------------------------------------------------------------------------
# Small helpers
# ----------------------------------------------------------------------------
def _round_up(n, m):
    return ((n + m - 1) // m) * m


def _pad_cols(x, n):
    pad = n - x.shape[-1]
    if pad == 0:
        return x
    return jnp.pad(x, [(0, 0)] * (x.ndim - 1) + [(0, pad)])


def _largest_pow2_divisor_leq(n, cap, start=1):
    t = start if (start <= cap and n % start == 0) else 1
    while t * 2 <= cap and n % (t * 2) == 0:
        t *= 2
    return t


def _mm_col_tile(Np, K):
    """Column tile (multiple of 128) keeping the double-buffered bf16 B tile
    under ~4 MiB. Np is always a multiple of 128 here."""
    cap = max(128, ((4 << 20) // (2 * K)) // 128 * 128)
    t = min(Np, cap)
    while Np % t != 0:
        t -= 128
    return t


def _mm_row_tile(M, K, tn):
    """Row tile: bf16 A tile <= ~3 MiB, bf16 out tile <= ~2 MiB, and >=2
    blocks along this parallel axis when possible (v7x megacore)."""
    cap = max(8, min((3 << 20) // (2 * K), (2 << 20) // (2 * tn)))
    if M // 2 >= 8:
        cap = min(cap, M // 2)
    t = _largest_pow2_divisor_leq(M, cap, start=8 if M % 8 == 0 else 1)
    if t < 8 or M % t != 0:
        return M
    return t


# ----------------------------------------------------------------------------
# Pallas kernel 1: matmul + bias + fused BatchNorm partial statistics
# ----------------------------------------------------------------------------
def _matmul_bias_stats_kernel(a_ref, b_ref, bias_ref, o_ref, psum_ref, psq_ref):
    # y = a @ b + bias (bf16 operands, f32 MXU accumulation).
    y = jnp.dot(a_ref[...], b_ref[...], preferred_element_type=jnp.float32)
    y = y + bias_ref[...]
    # Activation stored in bf16 (halves HBM traffic on both sides); BN partial
    # sums are taken from the f32 accumulator so statistics keep full precision.
    o_ref[...] = y.astype(o_ref.dtype)
    psum_ref[...] = jnp.sum(y, axis=0)[None, None, :]
    psq_ref[...] = jnp.sum(y * y, axis=0)[None, None, :]


def matmul_bias_stats(a, b, bias):
    """(M,K)bf16 @ (K,Np)bf16 + bias(1,Np)f32 -> y(M,Np)bf16 plus per-row-tile
    partial channel sums / sums-of-squares of shape (ni, 1, Np) f32."""
    M, K = a.shape
    K2, Np = b.shape
    assert K == K2 and Np % 128 == 0
    tn = _mm_col_tile(Np, K)
    tm = _mm_row_tile(M, K, tn)
    ni, nj = M // tm, Np // tn

    return pl.pallas_call(
        _matmul_bias_stats_kernel,
        out_shape=(
            jax.ShapeDtypeStruct((M, Np), jnp.bfloat16),
            jax.ShapeDtypeStruct((ni, 1, Np), jnp.float32),
            jax.ShapeDtypeStruct((ni, 1, Np), jnp.float32),
        ),
        grid_spec=pltpu.PrefetchScalarGridSpec(
            num_scalar_prefetch=0,
            grid=(ni, nj),
            in_specs=[
                pl.BlockSpec((tm, K), lambda i, j: (i, 0)),
                pl.BlockSpec((K, tn), lambda i, j: (0, j)),
                pl.BlockSpec((1, tn), lambda i, j: (0, j)),
            ],
            out_specs=[
                pl.BlockSpec((tm, tn), lambda i, j: (i, j)),
                pl.BlockSpec((1, 1, tn), lambda i, j: (i, 0, j)),
                pl.BlockSpec((1, 1, tn), lambda i, j: (i, 0, j)),
            ],
        ),
        compiler_params=pltpu.CompilerParams(
            dimension_semantics=("parallel", "parallel")
        ),
    )(a, b, bias)


# ----------------------------------------------------------------------------
# Pallas kernel 2: fully fused mean/logvar heads
#   Linear(flat_dim->2048) -> BN1d(train) -> ReLU -> Linear(2048->oc)
# Hidden activation stays resident in VMEM; grid = (head, K-tile).
# ----------------------------------------------------------------------------
def _fused_head_kernel(a_ref, w1_ref, b1_ref, g1_ref, be1_ref,
                       w2_ref, b2_ref, o_ref, h_acc):
    k = pl.program_id(1)

    @pl.when(k == 0)
    def _():
        h_acc[...] = jnp.zeros_like(h_acc)

    h_acc[...] += jnp.dot(a_ref[...], w1_ref[0],
                          preferred_element_type=jnp.float32)

    @pl.when(k == pl.num_programs(1) - 1)
    def _():
        h = h_acc[...] + b1_ref[0]                       # (B, hidden) f32
        # Exact training-mode BN1d over the whole batch (centered variance).
        mu = jnp.mean(h, axis=0, keepdims=True)
        d = h - mu
        var = jnp.mean(d * d, axis=0, keepdims=True)
        scale = g1_ref[0] * lax.rsqrt(var + _BN_EPS)
        shift = be1_ref[0] - mu * scale
        hact = jnp.maximum(h * scale + shift, 0.0).astype(jnp.bfloat16)
        out = jnp.dot(hact, w2_ref[0], preferred_element_type=jnp.float32)
        o_ref[0] = out + b2_ref[0]


def fused_heads(flat, mean_p, logvar_p):
    """flat: (B, flat_dim) bf16 -> (mean, logvar), each (B, oc) f32."""
    w1m, b1m, g1m, be1m, w2m, b2m = mean_p
    w1l, b1l, g1l, be1l, w2l, b2l = logvar_p
    B, Kd = flat.shape
    hidden = w1m.shape[1]
    oc = w2m.shape[1]
    OCp = _round_up(oc, 128)

    w1 = jnp.stack([w1m, w1l]).astype(jnp.bfloat16)                  # (2,Kd,H)
    b1 = jnp.stack([b1m, b1l]).reshape(2, 1, hidden).astype(jnp.float32)
    g1 = jnp.stack([g1m, g1l]).reshape(2, 1, hidden).astype(jnp.float32)
    be1 = jnp.stack([be1m, be1l]).reshape(2, 1, hidden).astype(jnp.float32)
    w2 = jnp.stack([_pad_cols(w2m, OCp),
                    _pad_cols(w2l, OCp)]).astype(jnp.bfloat16)       # (2,H,OCp)
    b2 = jnp.stack([_pad_cols(b2m.reshape(1, oc), OCp),
                    _pad_cols(b2l.reshape(1, oc), OCp)]).astype(jnp.float32)

    # Stream w1 in ~2 MiB bf16 K-tiles (v5e-safe: ~5 MiB total scoped VMEM).
    tk = _largest_pow2_divisor_leq(Kd, max(128, (2 << 20) // (2 * hidden)),
                                   start=128 if Kd % 128 == 0 else 1)
    if tk < 128 or Kd % tk != 0:
        tk = Kd
    kt = Kd // tk

    out = pl.pallas_call(
        _fused_head_kernel,
        out_shape=jax.ShapeDtypeStruct((2, B, OCp), jnp.float32),
        grid_spec=pltpu.PrefetchScalarGridSpec(
            num_scalar_prefetch=0,
            grid=(2, kt),
            in_specs=[
                pl.BlockSpec((B, tk), lambda h, k: (0, k)),
                pl.BlockSpec((1, tk, hidden), lambda h, k: (h, k, 0)),
                pl.BlockSpec((1, 1, hidden), lambda h, k: (h, 0, 0)),
                pl.BlockSpec((1, 1, hidden), lambda h, k: (h, 0, 0)),
                pl.BlockSpec((1, 1, hidden), lambda h, k: (h, 0, 0)),
                pl.BlockSpec((1, hidden, OCp), lambda h, k: (h, 0, 0)),
                pl.BlockSpec((1, 1, OCp), lambda h, k: (h, 0, 0)),
            ],
            out_specs=pl.BlockSpec((1, B, OCp), lambda h, k: (h, 0, 0)),
            scratch_shapes=[pltpu.VMEM((B, hidden), jnp.float32)],
        ),
        compiler_params=pltpu.CompilerParams(
            dimension_semantics=("parallel", "arbitrary")
        ),
    )(flat, w1, b1, g1, be1, w2, b2)

    return out[0, :, :oc], out[1, :, :oc]


# ----------------------------------------------------------------------------
# Glue: im2col, BN finalize, folded BN-affine + ReLU
# ----------------------------------------------------------------------------
def _im2col(x_nhwc, kh, kw, stride, pad):
    # TODO(synk): fully fused stride-2 conv (in-kernel tap accumulation instead
    # of materializing im2col patches in HBM) is left for a future revision.
    N, H, W, C = x_nhwc.shape
    Ho = (H + 2 * pad - kh) // stride + 1
    Wo = (W + 2 * pad - kw) // stride + 1
    xp = jnp.pad(x_nhwc.astype(jnp.bfloat16),
                 ((0, 0), (pad, pad), (pad, pad), (0, 0)))
    cols = []
    for i in range(kh):
        for j in range(kw):
            cols.append(xp[:, i:i + stride * Ho:stride,
                           j:j + stride * Wo:stride, :])
    # patch ordering: (kh, kw, cin) -- must match weight reshape below
    patches = jnp.stack(cols, axis=3)                    # (N, Ho, Wo, kh*kw, C)
    return patches.reshape(N * Ho * Wo, kh * kw * C), Ho, Wo


def _bn_finalize(psum, psq, count, gamma, beta, eps=_BN_EPS):
    # Training-mode BatchNorm statistics (biased variance) from fused partial
    # sums; tiny per-channel reduction stays in plain JAX glue.
    s = jnp.sum(psum, axis=(0, 1))
    sq = jnp.sum(psq, axis=(0, 1))
    mu = s / count
    var = jnp.maximum(sq / count - mu * mu, 0.0)
    scale = gamma.astype(jnp.float32) * lax.rsqrt(var + eps)
    shift = beta.astype(jnp.float32) - mu * scale
    return scale, shift


def _affine_relu_bf16(y, scale, shift, cout):
    # Folded BN affine + ReLU, applied lazily in the consumer's glue (XLA fuses
    # it into the im2col gather / flatten) -> no extra HBM round trip.
    yc = y[..., :cout].astype(jnp.float32)
    return jnp.maximum(yc * scale[:cout] + shift[:cout], 0.0).astype(jnp.bfloat16)


# ----------------------------------------------------------------------------
# Layers
# ----------------------------------------------------------------------------
def conv_raw(x_nhwc, w, b, gamma, beta, stride=2, pad=2):
    """Conv2d(5x5, stride, pad) + bias via Pallas matmul; returns the raw
    (pre-BN) bf16 activation plus folded BN scale/shift for the consumer."""
    Cout, Cin, KH, KW = w.shape
    patches, Ho, Wo = _im2col(x_nhwc, KH, KW, stride, pad)          # bf16 (M,K)
    wmat = jnp.transpose(w, (2, 3, 1, 0)).reshape(KH * KW * Cin, Cout)

    Cp = _round_up(Cout, 128)                                       # lane-dense
    wmat_p = _pad_cols(wmat, Cp).astype(jnp.bfloat16)
    bias_p = _pad_cols(b.reshape(1, Cout), Cp).astype(jnp.float32)

    y, psum, psq = matmul_bias_stats(patches, wmat_p, bias_p)
    scale, shift = _bn_finalize(psum, psq, y.shape[0],
                                _pad_cols(gamma, Cp), _pad_cols(beta, Cp))

    N = x_nhwc.shape[0]
    return y.reshape(N, Ho, Wo, Cp), scale, shift, Cout


# ----------------------------------------------------------------------------
# Encoder forward
# ----------------------------------------------------------------------------
def encoder_forward(x_nchw, params):
    x = jnp.transpose(x_nchw, (0, 2, 3, 1)).astype(jnp.bfloat16)    # NCHW->NHWC

    y, s, sh, c = conv_raw(x, *params["conv1"])
    x = _affine_relu_bf16(y, s, sh, c)
    y, s, sh, c = conv_raw(x, *params["conv2"])
    x = _affine_relu_bf16(y, s, sh, c)
    y, s, sh, c = conv_raw(x, *params["conv3"])
    x = _affine_relu_bf16(y, s, sh, c)                              # (N,8,8,C3)

    N = x.shape[0]
    # match PyTorch .view(batch, -1) on an NCHW tensor: flatten in (C,H,W) order
    flat = jnp.transpose(x, (0, 3, 1, 2)).reshape(N, -1)            # bf16
    return fused_heads(flat, params["mean"], params["logvar"])


# ----------------------------------------------------------------------------
# Deterministic synthetic parameters (shapes follow Encoder.__init__)
# ----------------------------------------------------------------------------
def init_params(key, input_channels, output_channels, rep):
    hidden = 2048
    flat_dim = rep * 4 * 8 * 8
    ks = iter(jax.random.split(key, 32))

    def conv_p(cin, cout):
        w = 0.05 * jax.random.normal(next(ks), (cout, cin, 5, 5), jnp.float32)
        b = 0.01 * jax.random.normal(next(ks), (cout,), jnp.float32)
        g = 1.0 + 0.1 * jax.random.normal(next(ks), (cout,), jnp.float32)
        be = 0.05 * jax.random.normal(next(ks), (cout,), jnp.float32)
        return (w, b, g, be)

    def head_p():
        w1 = 0.02 * jax.random.normal(next(ks), (flat_dim, hidden), jnp.float32)
        b1 = 0.01 * jax.random.normal(next(ks), (hidden,), jnp.float32)
        g1 = 1.0 + 0.1 * jax.random.normal(next(ks), (hidden,), jnp.float32)
        be1 = 0.05 * jax.random.normal(next(ks), (hidden,), jnp.float32)
        w2 = 0.02 * jax.random.normal(next(ks), (hidden, output_channels), jnp.float32)
        b2 = 0.01 * jax.random.normal(next(ks), (output_channels,), jnp.float32)
        return (w1, b1, g1, be1, w2, b2)

    return {
        "conv1": conv_p(input_channels, rep),
        "conv2": conv_p(rep, rep * 2),
        "conv3": conv_p(rep * 2, rep * 4),
        "mean": head_p(),
        "logvar": head_p(),
    }


if __name__ == "__main__":
    # The conv stack (3x stride-2) must end at 8x8 spatial -> 64x64 input.
    # representation_size is shrunk 64 -> 8 to keep the example small.
    batch, in_ch, out_ch, rep, H = 2, 3, 32, 8, 64

    key = jax.random.PRNGKey(0)
    kx, kp = jax.random.split(key)
    x = jax.random.normal(kx, (batch, in_ch, H, H), jnp.float32)
    params = init_params(kp, in_ch, out_ch, rep)

    fwd = jax.jit(functools.partial(encoder_forward, params=params))
    mean, logvar = fwd(x)
    jax.block_until_ready((mean, logvar))

    assert mean.shape == (batch, out_ch) and logvar.shape == (batch, out_ch)
    assert jnp.all(jnp.isfinite(mean)) and jnp.all(jnp.isfinite(logvar))
    print("KERNEL_OK")
</pallas_src>

<mosaic_0001>
module attributes {stable_mosaic.version = 11 : i64} {
  func.func @_matmul_bias_stats_kernel(%arg0: i32, %arg1: i32, %arg2: memref<1024x75xbf16, #tpu.memory_space<vmem>>, %arg3: memref<75x128xbf16, #tpu.memory_space<vmem>>, %arg4: memref<1x128xf32, #tpu.memory_space<vmem>>, %arg5: memref<1024x128xbf16, #tpu.memory_space<vmem>>, %arg6: memref<1x1x128xf32, #tpu.memory_space<vmem>>, %arg7: memref<1x1x128xf32, #tpu.memory_space<vmem>>) attributes {dimension_semantics = [#tpu.dimension_semantics<parallel>, #tpu.dimension_semantics<parallel>], iteration_bounds = array<i64: 2, 1>, scalar_prefetch = 0 : i64, scratch_operands = 0 : i64, tpu.core_type = #tpu.core_type<tc>, window_params = [{transform_indices = @transform_0, window_bounds = array<i64: 1024, 75>}, {transform_indices = @transform_1, window_bounds = array<i64: 75, 128>}, {transform_indices = @transform_2, window_bounds = array<i64: 1, 128>}, {transform_indices = @transform_3, window_bounds = array<i64: 1024, 128>}, {transform_indices = @transform_4, window_bounds = array<i64: 1, 1, 128>}, {transform_indices = @transform_5, window_bounds = array<i64: 1, 1, 128>}]} {
    %c0 = arith.constant 0 : index
    %c0_0 = arith.constant 0 : index
    %0 = vector.load %arg2[%c0, %c0_0] : memref<1024x75xbf16, #tpu.memory_space<vmem>>, vector<1024x75xbf16>
    %c0_1 = arith.constant 0 : index
    %c0_2 = arith.constant 0 : index
    %1 = vector.load %arg3[%c0_1, %c0_2] : memref<75x128xbf16, #tpu.memory_space<vmem>>, vector<75x128xbf16>
    %cst = arith.constant dense<0.000000e+00> : vector<1024x128xf32>
    %2 = tpu.matmul %0, %1, %cst {dimension_numbers = #tpu.dot_dimension_numbers<[1], [0], [0], [1], [0, 0, 1, 1], [], []>} : vector<1024x75xbf16>, vector<75x128xbf16>, vector<1024x128xf32> -> vector<1024x128xf32>
    %c0_3 = arith.constant 0 : index
    %c0_4 = arith.constant 0 : index
    %3 = vector.load %arg4[%c0_3, %c0_4] : memref<1x128xf32, #tpu.memory_space<vmem>>, vector<1x128xf32>
    %4 = vector.broadcast %3 : vector<1x128xf32> to vector<1024x128xf32>
    %5 = arith.addf %2, %4 : vector<1024x128xf32>
    %6 = arith.truncf %5 : vector<1024x128xf32> to vector<1024x128xbf16>
    %c0_5 = arith.constant 0 : index
    %c0_6 = arith.constant 0 : index
    %7 = vector.load %arg5[%c0_5, %c0_6] : memref<1024x128xbf16, #tpu.memory_space<vmem>>, vector<1024x128xbf16>
    tpu.vector_store %arg5[%c0_5, %c0_6], %6 {strides = array<i32>} : memref<1024x128xbf16, #tpu.memory_space<vmem>>, vector<1024x128xbf16>,
    %cst_7 = arith.constant dense<0.000000e+00> : vector<128xf32>
    %8 = vector.multi_reduction <add>, %5, %cst_7 [0] : vector<1024x128xf32> to vector<128xf32>
    %9 = vector.shape_cast %8 : vector<128xf32> to vector<1x1x128xf32>
    %c0_8 = arith.constant 0 : index
    %c0_9 = arith.constant 0 : index
    %c0_10 = arith.constant 0 : index
    %10 = vector.load %arg6[%c0_8, %c0_9, %c0_10] : memref<1x1x128xf32, #tpu.memory_space<vmem>>, vector<1x1x128xf32>
    tpu.vector_store %arg6[%c0_8, %c0_9, %c0_10], %9 {strides = array<i32>} : memref<1x1x128xf32, #tpu.memory_space<vmem>>, vector<1x1x128xf32>,
    %11 = arith.mulf %5, %5 : vector<1024x128xf32>
    %cst_11 = arith.constant dense<0.000000e+00> : vector<128xf32>
    %12 = vector.multi_reduction <add>, %11, %cst_11 [0] : vector<1024x128xf32> to vector<128xf32>
    %13 = vector.shape_cast %12 : vector<128xf32> to vector<1x1x128xf32>
    %c0_12 = arith.constant 0 : index
    %c0_13 = arith.constant 0 : index
    %c0_14 = arith.constant 0 : index
    %14 = vector.load %arg7[%c0_12, %c0_13, %c0_14] : memref<1x1x128xf32, #tpu.memory_space<vmem>>, vector<1x1x128xf32>
    tpu.vector_store %arg7[%c0_12, %c0_13, %c0_14], %13 {strides = array<i32>} : memref<1x1x128xf32, #tpu.memory_space<vmem>>, vector<1x1x128xf32>,
    return
  }
  func.func @transform_0(%arg0: i32, %arg1: i32) -> (i32, i32) {
    %c0_i32 = arith.constant 0 : i32
    %c0_i32_0 = arith.constant 0 : i32
    return %arg0, %c0_i32 : i32, i32
  }
  func.func @transform_1(%arg0: i32, %arg1: i32) -> (i32, i32) {
    %c0_i32 = arith.constant 0 : i32
    %c0_i32_0 = arith.constant 0 : i32
    return %c0_i32, %arg1 : i32, i32
  }
  func.func @transform_2(%arg0: i32, %arg1: i32) -> (i32, i32) {
    %c0_i32 = arith.constant 0 : i32
    %c0_i32_0 = arith.constant 0 : i32
    return %c0_i32, %arg1 : i32, i32
  }
  func.func @transform_3(%arg0: i32, %arg1: i32) -> (i32, i32) {
    %c0_i32 = arith.constant 0 : i32
    return %arg0, %arg1 : i32, i32
  }
  func.func @transform_4(%arg0: i32, %arg1: i32) -> (i32, i32, i32) {
    %c0_i32 = arith.constant 0 : i32
    %c0_i32_0 = arith.constant 0 : i32
    return %arg0, %c0_i32, %arg1 : i32, i32, i32
  }
  func.func @transform_5(%arg0: i32, %arg1: i32) -> (i32, i32, i32) {
    %c0_i32 = arith.constant 0 : i32
    %c0_i32_0 = arith.constant 0 : i32
    return %arg0, %c0_i32, %arg1 : i32, i32, i32
  }
}

module attributes {stable_mosaic.version = 11 : i64} {
  func.func @_matmul_bias_stats_kernel(%arg0: i32, %arg1: i32, %arg2: memref<256x200xbf16, #tpu.memory_space<vmem>>, %arg3: memref<200x128xbf16, #tpu.memory_space<vmem>>, %arg4: memref<1x128xf32, #tpu.memory_space<vmem>>, %arg5: memref<256x128xbf16, #tpu.memory_space<vmem>>, %arg6: memref<1x1x128xf32, #tpu.memory_space<vmem>>, %arg7: memref<1x1x128xf32, #tpu.memory_space<vmem>>) attributes {dimension_semantics = [#tpu.dimension_semantics<parallel>, #tpu.dimension_semantics<parallel>], iteration_bounds = array<i64: 2, 1>, scalar_prefetch = 0 : i64, scratch_operands = 0 : i64, tpu.core_type = #tpu.core_type<tc>, window_params = [{transform_indices = @transform_0, window_bounds = array<i64: 256, 200>}, {transform_indices = @transform_1, window_bounds = array<i64: 200, 128>}, {transform_indices = @transform_2, window_bounds = array<i64: 1, 128>}, {transform_indices = @transform_3, window_bounds = array<i64: 256, 128>}, {transform_indices = @transform_4, window_bounds = array<i64: 1, 1, 128>}, {transform_indices = @transform_5, window_bounds = array<i64: 1, 1, 128>}]} {
    %c0 = arith.constant 0 : index
    %c0_0 = arith.constant 0 : index
    %0 = vector.load %arg2[%c0, %c0_0] : memref<256x200xbf16, #tpu.memory_space<vmem>>, vector<256x200xbf16>
    %c0_1 = arith.constant 0 : index
    %c0_2 = arith.constant 0 : index
    %1 = vector.load %arg3[%c0_1, %c0_2] : memref<200x128xbf16, #tpu.memory_space<vmem>>, vector<200x128xbf16>
    %cst = arith.constant dense<0.000000e+00> : vector<256x128xf32>
    %2 = tpu.matmul %0, %1, %cst {dimension_numbers = #tpu.dot_dimension_numbers<[1], [0], [0], [1], [0, 0, 1, 1], [], []>} : vector<256x200xbf16>, vector<200x128xbf16>, vector<256x128xf32> -> vector<256x128xf32>
    %c0_3 = arith.constant 0 : index
    %c0_4 = arith.constant 0 : index
    %3 = vector.load %arg4[%c0_3, %c0_4] : memref<1x128xf32, #tpu.memory_space<vmem>>, vector<1x128xf32>
    %4 = vector.broadcast %3 : vector<1x128xf32> to vector<256x128xf32>
    %5 = arith.addf %2, %4 : vector<256x128xf32>
    %6 = arith.truncf %5 : vector<256x128xf32> to vector<256x128xbf16>
    %c0_5 = arith.constant 0 : index
    %c0_6 = arith.constant 0 : index
    %7 = vector.load %arg5[%c0_5, %c0_6] : memref<256x128xbf16, #tpu.memory_space<vmem>>, vector<256x128xbf16>
    tpu.vector_store %arg5[%c0_5, %c0_6], %6 {strides = array<i32>} : memref<256x128xbf16, #tpu.memory_space<vmem>>, vector<256x128xbf16>,
    %cst_7 = arith.constant dense<0.000000e+00> : vector<128xf32>
    %8 = vector.multi_reduction <add>, %5, %cst_7 [0] : vector<256x128xf32> to vector<128xf32>
    %9 = vector.shape_cast %8 : vector<128xf32> to vector<1x1x128xf32>
    %c0_8 = arith.constant 0 : index
    %c0_9 = arith.constant 0 : index
    %c0_10 = arith.constant 0 : index
    %10 = vector.load %arg6[%c0_8, %c0_9, %c0_10] : memref<1x1x128xf32, #tpu.memory_space<vmem>>, vector<1x1x128xf32>
    tpu.vector_store %arg6[%c0_8, %c0_9, %c0_10], %9 {strides = array<i32>} : memref<1x1x128xf32, #tpu.memory_space<vmem>>, vector<1x1x128xf32>,
    %11 = arith.mulf %5, %5 : vector<256x128xf32>
    %cst_11 = arith.constant dense<0.000000e+00> : vector<128xf32>
    %12 = vector.multi_reduction <add>, %11, %cst_11 [0] : vector<256x128xf32> to vector<128xf32>
    %13 = vector.shape_cast %12 : vector<128xf32> to vector<1x1x128xf32>
    %c0_12 = arith.constant 0 : index
    %c0_13 = arith.constant 0 : index
    %c0_14 = arith.constant 0 : index
    %14 = vector.load %arg7[%c0_12, %c0_13, %c0_14] : memref<1x1x128xf32, #tpu.memory_space<vmem>>, vector<1x1x128xf32>
    tpu.vector_store %arg7[%c0_12, %c0_13, %c0_14], %13 {strides = array<i32>} : memref<1x1x128xf32, #tpu.memory_space<vmem>>, vector<1x1x128xf32>,
    return
  }
  func.func @transform_0(%arg0: i32, %arg1: i32) -> (i32, i32) {
    %c0_i32 = arith.constant 0 : i32
    %c0_i32_0 = arith.constant 0 : i32
    return %arg0, %c0_i32 : i32, i32
  }
  func.func @transform_1(%arg0: i32, %arg1: i32) -> (i32, i32) {
    %c0_i32 = arith.constant 0 : i32
    %c0_i32_0 = arith.constant 0 : i32
    return %c0_i32, %arg1 : i32, i32
  }
  func.func @transform_2(%arg0: i32, %arg1: i32) -> (i32, i32) {
    %c0_i32 = arith.constant 0 : i32
    %c0_i32_0 = arith.constant 0 : i32
    return %c0_i32, %arg1 : i32, i32
  }
  func.func @transform_3(%arg0: i32, %arg1: i32) -> (i32, i32) {
    %c0_i32 = arith.constant 0 : i32
    return %arg0, %arg1 : i32, i32
  }
  func.func @transform_4(%arg0: i32, %arg1: i32) -> (i32, i32, i32) {
    %c0_i32 = arith.constant 0 : i32
    %c0_i32_0 = arith.constant 0 : i32
    return %arg0, %c0_i32, %arg1 : i32, i32, i32
  }
  func.func @transform_5(%arg0: i32, %arg1: i32) -> (i32, i32, i32) {
    %c0_i32 = arith.constant 0 : i32
    %c0_i32_0 = arith.constant 0 : i32
    return %arg0, %c0_i32, %arg1 : i32, i32, i32
  }
}

module attributes {stable_mosaic.version = 11 : i64} {
  func.func @_matmul_bias_stats_kernel(%arg0: i32, %arg1: i32, %arg2: memref<64x400xbf16, #tpu.memory_space<vmem>>, %arg3: memref<400x128xbf16, #tpu.memory_space<vmem>>, %arg4: memref<1x128xf32, #tpu.memory_space<vmem>>, %arg5: memref<64x128xbf16, #tpu.memory_space<vmem>>, %arg6: memref<1x1x128xf32, #tpu.memory_space<vmem>>, %arg7: memref<1x1x128xf32, #tpu.memory_space<vmem>>) attributes {dimension_semantics = [#tpu.dimension_semantics<parallel>, #tpu.dimension_semantics<parallel>], iteration_bounds = array<i64: 2, 1>, scalar_prefetch = 0 : i64, scratch_operands = 0 : i64, tpu.core_type = #tpu.core_type<tc>, window_params = [{transform_indices = @transform_0, window_bounds = array<i64: 64, 400>}, {transform_indices = @transform_1, window_bounds = array<i64: 400, 128>}, {transform_indices = @transform_2, window_bounds = array<i64: 1, 128>}, {transform_indices = @transform_3, window_bounds = array<i64: 64, 128>}, {transform_indices = @transform_4, window_bounds = array<i64: 1, 1, 128>}, {transform_indices = @transform_5, window_bounds = array<i64: 1, 1, 128>}]} {
    %c0 = arith.constant 0 : index
    %c0_0 = arith.constant 0 : index
    %0 = vector.load %arg2[%c0, %c0_0] : memref<64x400xbf16, #tpu.memory_space<vmem>>, vector<64x400xbf16>
    %c0_1 = arith.constant 0 : index
    %c0_2 = arith.constant 0 : index
    %1 = vector.load %arg3[%c0_1, %c0_2] : memref<400x128xbf16, #tpu.memory_space<vmem>>, vector<400x128xbf16>
    %cst = arith.constant dense<0.000000e+00> : vector<64x128xf32>
    %2 = tpu.matmul %0, %1, %cst {dimension_numbers = #tpu.dot_dimension_numbers<[1], [0], [0], [1], [0, 0, 1, 1], [], []>} : vector<64x400xbf16>, vector<400x128xbf16>, vector<64x128xf32> -> vector<64x128xf32>
    %c0_3 = arith.constant 0 : index
    %c0_4 = arith.constant 0 : index
    %3 = vector.load %arg4[%c0_3, %c0_4] : memref<1x128xf32, #tpu.memory_space<vmem>>, vector<1x128xf32>
    %4 = vector.broadcast %3 : vector<1x128xf32> to vector<64x128xf32>
    %5 = arith.addf %2, %4 : vector<64x128xf32>
    %6 = arith.truncf %5 : vector<64x128xf32> to vector<64x128xbf16>
    %c0_5 = arith.constant 0 : index
    %c0_6 = arith.constant 0 : index
    %7 = vector.load %arg5[%c0_5, %c0_6] : memref<64x128xbf16, #tpu.memory_space<vmem>>, vector<64x128xbf16>
    tpu.vector_store %arg5[%c0_5, %c0_6], %6 {strides = array<i32>} : memref<64x128xbf16, #tpu.memory_space<vmem>>, vector<64x128xbf16>,
    %cst_7 = arith.constant dense<0.000000e+00> : vector<128xf32>
    %8 = vector.multi_reduction <add>, %5, %cst_7 [0] : vector<64x128xf32> to vector<128xf32>
    %9 = vector.shape_cast %8 : vector<128xf32> to vector<1x1x128xf32>
    %c0_8 = arith.constant 0 : index
    %c0_9 = arith.constant 0 : index
    %c0_10 = arith.constant 0 : index
    %10 = vector.load %arg6[%c0_8, %c0_9, %c0_10] : memref<1x1x128xf32, #tpu.memory_space<vmem>>, vector<1x1x128xf32>
    tpu.vector_store %arg6[%c0_8, %c0_9, %c0_10], %9 {strides = array<i32>} : memref<1x1x128xf32, #tpu.memory_space<vmem>>, vector<1x1x128xf32>,
    %11 = arith.mulf %5, %5 : vector<64x128xf32>
    %cst_11 = arith.constant dense<0.000000e+00> : vector<128xf32>
    %12 = vector.multi_reduction <add>, %11, %cst_11 [0] : vector<64x128xf32> to vector<128xf32>
    %13 = vector.shape_cast %12 : vector<128xf32> to vector<1x1x128xf32>
    %c0_12 = arith.constant 0 : index
    %c0_13 = arith.constant 0 : index
    %c0_14 = arith.constant 0 : index
    %14 = vector.load %arg7[%c0_12, %c0_13, %c0_14] : memref<1x1x128xf32, #tpu.memory_space<vmem>>, vector<1x1x128xf32>
    tpu.vector_store %arg7[%c0_12, %c0_13, %c0_14], %13 {strides = array<i32>} : memref<1x1x128xf32, #tpu.memory_space<vmem>>, vector<1x1x128xf32>,
    return
  }
  func.func @transform_0(%arg0: i32, %arg1: i32) -> (i32, i32) {
    %c0_i32 = arith.constant 0 : i32
    %c0_i32_0 = arith.constant 0 : i32
    return %arg0, %c0_i32 : i32, i32
  }
  func.func @transform_1(%arg0: i32, %arg1: i32) -> (i32, i32) {
    %c0_i32 = arith.constant 0 : i32
    %c0_i32_0 = arith.constant 0 : i32
    return %c0_i32, %arg1 : i32, i32
  }
  func.func @transform_2(%arg0: i32, %arg1: i32) -> (i32, i32) {
    %c0_i32 = arith.constant 0 : i32
    %c0_i32_0 = arith.constant 0 : i32
    return %c0_i32, %arg1 : i32, i32
  }
  func.func @transform_3(%arg0: i32, %arg1: i32) -> (i32, i32) {
    %c0_i32 = arith.constant 0 : i32
    return %arg0, %arg1 : i32, i32
  }
  func.func @transform_4(%arg0: i32, %arg1: i32) -> (i32, i32, i32) {
    %c0_i32 = arith.constant 0 : i32
    %c0_i32_0 = arith.constant 0 : i32
    return %arg0, %c0_i32, %arg1 : i32, i32, i32
  }
  func.func @transform_5(%arg0: i32, %arg1: i32) -> (i32, i32, i32) {
    %c0_i32 = arith.constant 0 : i32
    %c0_i32_0 = arith.constant 0 : i32
    return %arg0, %c0_i32, %arg1 : i32, i32, i32
  }
}

module attributes {stable_mosaic.version = 11 : i64} {
  func.func @_fused_head_kernel(%arg0: i32, %arg1: i32, %arg2: memref<2x512xbf16, #tpu.memory_space<vmem>>, %arg3: memref<1x512x2048xbf16, #tpu.memory_space<vmem>>, %arg4: memref<1x1x2048xf32, #tpu.memory_space<vmem>>, %arg5: memref<1x1x2048xf32, #tpu.memory_space<vmem>>, %arg6: memref<1x1x2048xf32, #tpu.memory_space<vmem>>, %arg7: memref<1x2048x128xbf16, #tpu.memory_space<vmem>>, %arg8: memref<1x1x128xf32, #tpu.memory_space<vmem>>, %arg9: memref<1x2x128xf32, #tpu.memory_space<vmem>>, %arg10: memref<2x2048xf32, #tpu.memory_space<vmem>>) attributes {dimension_semantics = [#tpu.dimension_semantics<parallel>, #tpu.dimension_semantics<arbitrary>], iteration_bounds = array<i64: 2, 4>, scalar_prefetch = 0 : i64, scratch_operands = 1 : i64, tpu.core_type = #tpu.core_type<tc>, window_params = [{transform_indices = @transform_0, window_bounds = array<i64: 2, 512>}, {transform_indices = @transform_1, window_bounds = array<i64: 1, 512, 2048>}, {transform_indices = @transform_2, window_bounds = array<i64: 1, 1, 2048>}, {transform_indices = @transform_3, window_bounds = array<i64: 1, 1, 2048>}, {transform_indices = @transform_4, window_bounds = array<i64: 1, 1, 2048>}, {transform_indices = @transform_5, window_bounds = array<i64: 1, 2048, 128>}, {transform_indices = @transform_6, window_bounds = array<i64: 1, 1, 128>}, {transform_indices = @transform_7, window_bounds = array<i64: 1, 2, 128>}]} {
    %c0_i32 = arith.constant 0 : i32
    %0 = arith.cmpi eq, %arg1, %c0_i32 : i32
    %1 = arith.extui %0 : i1 to i32
    %c0_i32_0 = arith.constant 0 : i32
    %2 = arith.cmpi ne, %1, %c0_i32_0 : i32
    scf.if %2 {
      %cst_10 = arith.constant 0.000000e+00 : f32
      %13 = vector.broadcast %cst_10 : f32 to vector<2x2048xf32>
      %c0_11 = arith.constant 0 : index
      %c0_12 = arith.constant 0 : index
      %14 = vector.load %arg10[%c0_11, %c0_12] : memref<2x2048xf32, #tpu.memory_space<vmem>>, vector<2x2048xf32>
      tpu.vector_store %arg10[%c0_11, %c0_12], %13 {strides = array<i32>} : memref<2x2048xf32, #tpu.memory_space<vmem>>, vector<2x2048xf32>,
    } else {
    }
    %c0 = arith.constant 0 : index
    %c0_1 = arith.constant 0 : index
    %3 = vector.load %arg10[%c0, %c0_1] : memref<2x2048xf32, #tpu.memory_space<vmem>>, vector<2x2048xf32>
    %c0_2 = arith.constant 0 : index
    %c0_3 = arith.constant 0 : index
    %4 = vector.load %arg2[%c0_2, %c0_3] : memref<2x512xbf16, #tpu.memory_space<vmem>>, vector<2x512xbf16>
    %c0_4 = arith.constant 0 : index
    %c0_5 = arith.constant 0 : index
    %c0_6 = arith.constant 0 : index
    %5 = vector.load %arg3[%c0_4, %c0_5, %c0_6] : memref<1x512x2048xbf16, #tpu.memory_space<vmem>>, vector<1x512x2048xbf16>
    %6 = vector.shape_cast %5 : vector<1x512x2048xbf16> to vector<512x2048xbf16>
    %cst = arith.constant dense<0.000000e+00> : vector<2x2048xf32>
    %7 = tpu.matmul %4, %6, %cst {dimension_numbers = #tpu.dot_dimension_numbers<[1], [0], [0], [1], [0, 0, 1, 1], [], []>} : vector<2x512xbf16>, vector<512x2048xbf16>, vector<2x2048xf32> -> vector<2x2048xf32>
    %8 = arith.addf %3, %7 : vector<2x2048xf32>
    %c0_7 = arith.constant 0 : index
    %c0_8 = arith.constant 0 : index
    %9 = vector.load %arg10[%c0_7, %c0_8] : memref<2x2048xf32, #tpu.memory_space<vmem>>, vector<2x2048xf32>
    tpu.vector_store %arg10[%c0_7, %c0_8], %8 {strides = array<i32>} : memref<2x2048xf32, #tpu.memory_space<vmem>>, vector<2x2048xf32>,
    %c3_i32 = arith.constant 3 : i32
    %10 = arith.cmpi eq, %arg1, %c3_i32 : i32
    %11 = arith.extui %10 : i1 to i32
    %c0_i32_9 = arith.constant 0 : i32
    %12 = arith.cmpi ne, %11, %c0_i32_9 : i32
    scf.if %12 {
      %c0_10 = arith.constant 0 : index
      %c0_11 = arith.constant 0 : index
      %13 = vector.load %arg10[%c0_10, %c0_11] : memref<2x2048xf32, #tpu.memory_space<vmem>>, vector<2x2048xf32>
      %c0_12 = arith.constant 0 : index
      %c0_13 = arith.constant 0 : index
      %c0_14 = arith.constant 0 : index
      %14 = vector.load %arg4[%c0_12, %c0_13, %c0_14] : memref<1x1x2048xf32, #tpu.memory_space<vmem>>, vector<1x1x2048xf32>
      %15 = vector.shape_cast %14 : vector<1x1x2048xf32> to vector<1x2048xf32>
      %16 = vector.broadcast %15 : vector<1x2048xf32> to vector<2x2048xf32>
      %17 = arith.addf %13, %16 : vector<2x2048xf32>
      %cst_15 = arith.constant dense<0.000000e+00> : vector<2048xf32>
      %18 = vector.multi_reduction <add>, %17, %cst_15 [0] : vector<2x2048xf32> to vector<2048xf32>
      %19 = vector.shape_cast %18 : vector<2048xf32> to vector<1x2048xf32>
      %cst_16 = arith.constant 2.000000e+00 : f32
      %20 = vector.broadcast %cst_16 : f32 to vector<1x2048xf32>
      %21 = arith.divf %19, %20 : vector<1x2048xf32>
      %22 = vector.broadcast %21 : vector<1x2048xf32> to vector<2x2048xf32>
      %23 = arith.subf %17, %22 : vector<2x2048xf32>
      %24 = arith.mulf %23, %23 : vector<2x2048xf32>
      %cst_17 = arith.constant dense<0.000000e+00> : vector<2048xf32>
      %25 = vector.multi_reduction <add>, %24, %cst_17 [0] : vector<2x2048xf32> to vector<2048xf32>
      %26 = vector.shape_cast %25 : vector<2048xf32> to vector<1x2048xf32>
      %cst_18 = arith.constant 2.000000e+00 : f32
      %27 = vector.broadcast %cst_18 : f32 to vector<1x2048xf32>
      %28 = arith.divf %26, %27 : vector<1x2048xf32>
      %c0_19 = arith.constant 0 : index
      %c0_20 = arith.constant 0 : index
      %c0_21 = arith.constant 0 : index
      %29 = vector.load %arg5[%c0_19, %c0_20, %c0_21] : memref<1x1x2048xf32, #tpu.memory_space<vmem>>, vector<1x1x2048xf32>
      %30 = vector.shape_cast %29 : vector<1x1x2048xf32> to vector<1x2048xf32>
      %cst_22 = arith.constant 9.99999974E-6 : f32
      %31 = vector.broadcast %cst_22 : f32 to vector<1x2048xf32>
      %32 = arith.addf %28, %31 : vector<1x2048xf32>
      %33 = math.rsqrt %32 : vector<1x2048xf32>
      %34 = arith.mulf %30, %33 : vector<1x2048xf32>
      %c0_23 = arith.constant 0 : index
      %c0_24 = arith.constant 0 : index
      %c0_25 = arith.constant 0 : index
      %35 = vector.load %arg6[%c0_23, %c0_24, %c0_25] : memref<1x1x2048xf32, #tpu.memory_space<vmem>>, vector<1x1x2048xf32>
      %36 = vector.shape_cast %35 : vector<1x1x2048xf32> to vector<1x2048xf32>
      %37 = arith.mulf %21, %34 : vector<1x2048xf32>
      %38 = arith.subf %36, %37 : vector<1x2048xf32>
      %39 = vector.broadcast %34 : vector<1x2048xf32> to vector<2x2048xf32>
      %40 = arith.mulf %17, %39 : vector<2x2048xf32>
      %41 = vector.broadcast %38 : vector<1x2048xf32> to vector<2x2048xf32>
      %42 = arith.addf %40, %41 : vector<2x2048xf32>
      %cst_26 = arith.constant 0.000000e+00 : f32
      %43 = vector.broadcast %cst_26 : f32 to vector<2x2048xf32>
      %44 = arith.maximumf %42, %43 : vector<2x2048xf32>
      %45 = arith.truncf %44 : vector<2x2048xf32> to vector<2x2048xbf16>
      %c0_27 = arith.constant 0 : index
      %c0_28 = arith.constant 0 : index
      %c0_29 = arith.constant 0 : index
      %46 = vector.load %arg7[%c0_27, %c0_28, %c0_29] : memref<1x2048x128xbf16, #tpu.memory_space<vmem>>, vector<1x2048x128xbf16>
      %47 = vector.shape_cast %46 : vector<1x2048x128xbf16> to vector<2048x128xbf16>
      %cst_30 = arith.constant dense<0.000000e+00> : vector<2x128xf32>
      %48 = tpu.matmul %45, %47, %cst_30 {dimension_numbers = #tpu.dot_dimension_numbers<[1], [0], [0], [1], [0, 0, 1, 1], [], []>} : vector<2x2048xbf16>, vector<2048x128xbf16>, vector<2x128xf32> -> vector<2x128xf32>
      %c0_31 = arith.constant 0 : index
      %c0_32 = arith.constant 0 : index
      %c0_33 = arith.constant 0 : index
      %49 = vector.load %arg8[%c0_31, %c0_32, %c0_33] : memref<1x1x128xf32, #tpu.memory_space<vmem>>, vector<1x1x128xf32>
      %50 = vector.shape_cast %49 : vector<1x1x128xf32> to vector<1x128xf32>
      %51 = vector.broadcast %50 : vector<1x128xf32> to vector<2x128xf32>
      %52 = arith.addf %48, %51 : vector<2x128xf32>
      %c0_34 = arith.constant 0 : index
      %c0_35 = arith.constant 0 : index
      %c0_36 = arith.constant 0 : index
      %53 = vector.load %arg9[%c0_34, %c0_35, %c0_36] : memref<1x2x128xf32, #tpu.memory_space<vmem>>, vector<1x2x128xf32>
      %54 = vector.shape_cast %53 : vector<1x2x128xf32> to vector<2x128xf32>
      %55 = vector.shape_cast %52 : vector<2x128xf32> to vector<1x2x128xf32>
      tpu.vector_store %arg9[%c0_34, %c0_35, %c0_36], %55 {strides = array<i32>} : memref<1x2x128xf32, #tpu.memory_space<vmem>>, vector<1x2x128xf32>,
    } else {
    }
    return
  }
  func.func @transform_0(%arg0: i32, %arg1: i32) -> (i32, i32) {
    %c0_i32 = arith.constant 0 : i32
    %c0_i32_0 = arith.constant 0 : i32
    return %c0_i32, %arg1 : i32, i32
  }
  func.func @transform_1(%arg0: i32, %arg1: i32) -> (i32, i32, i32) {
    %c0_i32 = arith.constant 0 : i32
    %c0_i32_0 = arith.constant 0 : i32
    return %arg0, %arg1, %c0_i32 : i32, i32, i32
  }
  func.func @transform_2(%arg0: i32, %arg1: i32) -> (i32, i32, i32) {
    %c0_i32 = arith.constant 0 : i32
    %c0_i32_0 = arith.constant 0 : i32
    %c0_i32_1 = arith.constant 0 : i32
    return %arg0, %c0_i32, %c0_i32_0 : i32, i32, i32
  }
  func.func @transform_3(%arg0: i32, %arg1: i32) -> (i32, i32, i32) {
    %c0_i32 = arith.constant 0 : i32
    %c0_i32_0 = arith.constant 0 : i32
    %c0_i32_1 = arith.constant 0 : i32
    return %arg0, %c0_i32, %c0_i32_0 : i32, i32, i32
  }
  func.func @transform_4(%arg0: i32, %arg1: i32) -> (i32, i32, i32) {
    %c0_i32 = arith.constant 0 : i32
    %c0_i32_0 = arith.constant 0 : i32
    %c0_i32_1 = arith.constant 0 : i32
    return %arg0, %c0_i32, %c0_i32_0 : i32, i32, i32
  }
  func.func @transform_5(%arg0: i32, %arg1: i32) -> (i32, i32, i32) {
    %c0_i32 = arith.constant 0 : i32
    %c0_i32_0 = arith.constant 0 : i32
    %c0_i32_1 = arith.constant 0 : i32
    return %arg0, %c0_i32, %c0_i32_0 : i32, i32, i32
  }
  func.func @transform_6(%arg0: i32, %arg1: i32) -> (i32, i32, i32) {
    %c0_i32 = arith.constant 0 : i32
    %c0_i32_0 = arith.constant 0 : i32
    %c0_i32_1 = arith.constant 0 : i32
    return %arg0, %c0_i32, %c0_i32_0 : i32, i32, i32
  }
  func.func @transform_7(%arg0: i32, %arg1: i32) -> (i32, i32, i32) {
    %c0_i32 = arith.constant 0 : i32
    %c0_i32_0 = arith.constant 0 : i32
    %c0_i32_1 = arith.constant 0 : i32
    return %arg0, %c0_i32, %c0_i32_0 : i32, i32, i32
  }
}

</mosaic_0001>

<llo_original>
// kernel: encoder_forward.4
$region0: #{encoder_forward.4}
  #allocation0 [shape = 'u32[]', space=smem, size = 0x4, offset = 0x4, fixed_abs, tag = 'smem constant byte address 0x4 - core index']
  #allocation1 [shape = 'u32[144,128]{1,0:T(1,128)}', space=vmem, size = 0x12000, scoped, tag = 'internal scratch']
  %s0 = inlined_call_operand.vmem [shape: bf16[2048,75], index: 0, kind: input, shape index: {}]
  %s1 = inlined_call_operand.vmem [shape: bf16[75,128], index: 1, kind: input, shape index: {}]
  %s2 = inlined_call_operand.vmem [shape: f32[1,128], index: 2, kind: input, shape index: {}]
  %s3 = inlined_call_operand.vmem [shape: bf16[2048,128], index: 3, kind: output, shape index: {0}]
  %s4 = inlined_call_operand.vmem [shape: f32[2,1,128], index: 4, kind: output, shape index: {1}]
  %s5 = inlined_call_operand.vmem [shape: f32[2,1,128], index: 5, kind: output, shape index: {2}]
  %6 = xla_tuple %s3, %s4, %s5
  %s7 = sld [smem:[#allocation0]]
  $region61: #{encoder_forward.4} parent=0
    _
  %s9 = ssub.s32 1, %s7
  %s10 = scalar_select 0, %s9, %s7
  loop: start=0, step=1, limit=4
  $region2: #{encoder_forward.4} parent=0 // loop_pre_header
    _
  $region3: #{encoder_forward.4} parent=0 // loop_header
    %s12 = sphi 0, %s16
    %p13 = scmp.ge.s32.totalorder %s12, 4
    %s19 = sphi 0, %s31
    %s20 = sphi 0, %s27
    %s21 = sphi 0, %s19
    %s22 = sphi 0, %s20
    %s23 = sphi 0, %s21
    %s24 = sphi 0, %s22
    %s34 = sphi 0, %s36
    %s37 = sphi 0, %s34
    %s38 = sphi 0, %s37
    %s54 = sphi 0, %s38
    %s60 = sphi 0, %s62
    %s63 = sphi 0, %s60
    %s64 = sphi 0, %s63
    %s80 = sphi 0, %s64
    %s86 = sphi 0, %s88
    %s89 = sphi 0, %s86
    %s90 = sphi 0, %s89
    %s106 = sphi 0, %s90
    %s114 = sphi 0, %s116
    %s117 = sphi 0, %s114
    %s118 = sphi 0, %s117
    %s134 = sphi 0, %s118
    %s142 = sphi 0, %s144
    %s145 = sphi 0, %s142
    %s146 = sphi 0, %s145
    %s162 = sphi 0, %s146
    %s170 = sphi 0, %s172
    %s173 = sphi 0, %s170
    %s174 = sphi 0, %s173
    %s190 = sphi 0, %s174
  $region4: #{encoder_forward.4} parent=0 // loop_header_branch
    %15 = sbr.rel (%p13) target = $region8
  $region5: #{encoder_forward.4} parent=0 // loop_body
    %s17 = ssub.s32 %s12, 1
    %s18 = ssub.s32 %s12, 2
    %s25 = sadd.s32 1, %s20
    %p26 = scmp.ge.s32.totalorder %s25, 1
    %s27 = scalar_select %p26, 0, %s25
    %s28 = sadd.s32 1, %s19
    %s29 = scalar_select %p26, %s28, %s19
    %p30 = scmp.ge.s32.totalorder %s29, 2
    %s31 = scalar_select %p30, 0, %s29
    %s32 = ssub.s32 %s19, %s31
    %p33 = scmp.eq.s32.totalorder %s32, 0
    %s35 = sadd.s32 %s34, 1
    %s36 = scalar_select %p33, %s34, %s35
    %p39 = pneg %p33
    %p40 = scmp.eq.s32.totalorder %s12, 1
    %p41 = por %p39, %p40
    %p42 = scmp.ne.s32.totalorder %s34, %s37
    %p43 = scmp.eq.s32.totalorder %s12, 0
    %p44 = por %p42, %p43
    %p45 = scmp.ne.s32.totalorder %s34, %s37
    %p46 = scmp.eq.s32.totalorder %s17, 1
    %p47 = por %p45, %p46
    %p48 = scmp.ne.s32.totalorder %s37, %s38
    %p49 = scmp.eq.s32.totalorder %s17, 0
    %p50 = por %p48, %p49
    %p51 = scmp.ne.s32.totalorder %s37, %s38
    %p52 = scmp.eq.s32.totalorder %s18, 1
    %p53 = por %p51, %p52
    %p55 = scmp.ne.s32.totalorder %s38, %s54
    %p56 = scmp.eq.s32.totalorder %s18, 0
    %p57 = por %p55, %p56
    %s58 = ssub.s32 %s20, %s27
    %p59 = scmp.eq.s32.totalorder %s58, 0
    %s61 = sadd.s32 %s60, 1
    %s62 = scalar_select %p59, %s60, %s61
    %p65 = pneg %p59
    %p66 = scmp.eq.s32.totalorder %s12, 1
    %p67 = por %p65, %p66
    %p68 = scmp.ne.s32.totalorder %s60, %s63
    %p69 = scmp.eq.s32.totalorder %s12, 0
    %p70 = por %p68, %p69
    %p71 = scmp.ne.s32.totalorder %s60, %s63
    %p72 = scmp.eq.s32.totalorder %s17, 1
    %p73 = por %p71, %p72
    %p74 = scmp.ne.s32.totalorder %s63, %s64
    %p75 = scmp.eq.s32.totalorder %s17, 0
    %p76 = por %p74, %p75
    %p77 = scmp.ne.s32.totalorder %s63, %s64
    %p78 = scmp.eq.s32.totalorder %s18, 1
    %p79 = por %p77, %p78
    %p81 = scmp.ne.s32.totalorder %s64, %s80
    %p82 = scmp.eq.s32.totalorder %s18, 0
    %p83 = por %p81, %p82
    %s84 = ssub.s32 %s20, %s27
    %p85 = scmp.eq.s32.totalorder %s84, 0
    %s87 = sadd.s32 %s86, 1
    %s88 = scalar_select %p85, %s86, %s87
    %p91 = pneg %p85
    %p92 = scmp.eq.s32.totalorder %s12, 1
    %p93 = por %p91, %p92
    %p94 = scmp.ne.s32.totalorder %s86, %s89
    %p95 = scmp.eq.s32.totalorder %s12, 0
    %p96 = por %p94, %p95
    %p97 = scmp.ne.s32.totalorder %s86, %s89
    %p98 = scmp.eq.s32.totalorder %s17, 1
    %p99 = por %p97, %p98
    %p100 = scmp.ne.s32.totalorder %s89, %s90
    %p101 = scmp.eq.s32.totalorder %s17, 0
    %p102 = por %p100, %p101
    %p103 = scmp.ne.s32.totalorder %s89, %s90
    %p104 = scmp.eq.s32.totalorder %s18, 1
    %p105 = por %p103, %p104
    %p107 = scmp.ne.s32.totalorder %s90, %s106
    %p108 = scmp.eq.s32.totalorder %s18, 0
    %p109 = por %p107, %p108
    %s110 = ssub.s32 %s19, %s31
    %s111 = ssub.s32 %s20, %s27
    %s112 = sor.u32 %s110, %s111
    %p113 = scmp.eq.s32.totalorder %s112, 0
    %s115 = sadd.s32 %s114, 1
    %s116 = scalar_select %p113, %s114, %s115
    %p119 = pneg %p113
    %p120 = scmp.eq.s32.totalorder %s12, 1
    %p121 = por %p119, %p120
    %p122 = scmp.ne.s32.totalorder %s114, %s117
    %p123 = scmp.eq.s32.totalorder %s12, 0
    %p124 = por %p122, %p123
    %p125 = scmp.ne.s32.totalorder %s114, %s117
    %p126 = scmp.eq.s32.totalorder %s17, 1
    %p127 = por %p125, %p126
    %p128 = scmp.ne.s32.totalorder %s117, %s118
    %p129 = scmp.eq.s32.totalorder %s17, 0
    %p130 = por %p128, %p129
    %p131 = scmp.ne.s32.totalorder %s117, %s118
    %p132 = scmp.eq.s32.totalorder %s18, 1
    %p133 = por %p131, %p132
    %p135 = scmp.ne.s32.totalorder %s118, %s134
    %p136 = scmp.eq.s32.totalorder %s18, 0
    %p137 = por %p135, %p136
    %s138 = ssub.s32 %s19, %s31
    %s139 = ssub.s32 %s20, %s27
    %s140 = sor.u32 %s138, %s139
    %p141 = scmp.eq.s32.totalorder %s140, 0
    %s143 = sadd.s32 %s142, 1
    %s144 = scalar_select %p141, %s142, %s143
    %p147 = pneg %p141
    %p148 = scmp.eq.s32.totalorder %s12, 1
    %p149 = por %p147, %p148
    %p150 = scmp.ne.s32.totalorder %s142, %s145
    %p151 = scmp.eq.s32.totalorder %s12, 0
    %p152 = por %p150, %p151
    %p153 = scmp.ne.s32.totalorder %s142, %s145
    %p154 = scmp.eq.s32.totalorder %s17, 1
    %p155 = por %p153, %p154
    %p156 = scmp.ne.s32.totalorder %s145, %s146
    %p157 = scmp.eq.s32.totalorder %s17, 0
    %p158 = por %p156, %p157
    %p159 = scmp.ne.s32.totalorder %s145, %s146
    %p160 = scmp.eq.s32.totalorder %s18, 1
    %p161 = por %p159, %p160
    %p163 = scmp.ne.s32.totalorder %s146, %s162
    %p164 = scmp.eq.s32.totalorder %s18, 0
    %p165 = por %p163, %p164
    %s166 = ssub.s32 %s19, %s31
    %s167 = ssub.s32 %s20, %s27
    %s168 = sor.u32 %s166, %s167
    %p169 = scmp.eq.s32.totalorder %s168, 0
    %s171 = sadd.s32 %s170, 1
    %s172 = scalar_select %p169, %s170, %s171
    %p175 = pneg %p169
    %p176 = scmp.eq.s32.totalorder %s12, 1
    %p177 = por %p175, %p176
    %p178 = scmp.ne.s32.totalorder %s170, %s173
    %p179 = scmp.eq.s32.totalorder %s12, 0
    %p180 = por %p178, %p179
    %p181 = scmp.ne.s32.totalorder %s170, %s173
    %p182 = scmp.eq.s32.totalorder %s17, 1
    %p183 = por %p181, %p182
    %p184 = scmp.ne.s32.totalorder %s173, %s174
    %p185 = scmp.eq.s32.totalorder %s17, 0
    %p186 = por %p184, %p185
    %p187 = scmp.ne.s32.totalorder %s173, %s174
    %p188 = scmp.eq.s32.totalorder %s18, 1
    %p189 = por %p187, %p188
    %p191 = scmp.ne.s32.totalorder %s174, %s190
    %p192 = scmp.eq.s32.totalorder %s18, 0
    %p193 = por %p191, %p192
    %p194 = scmp.le.s32.totalorder 1, %s12
    %p195 = scmp.lt.s32.totalorder %s12, 3
    %p196 = pnand %p194, %p195
    %p197 = pneg %p196
    // Predicated region
    $region9: #{encoder_forward.4} parent=5 // pred_check
      _
    $region10: #{encoder_forward.4} parent=5 // pred_check_branch
      %199 = sbr.rel (%p196) target = $region12
    $region11: #{encoder_forward.4} parent=5 // pred_region
      %s200 = ssub.s32 %s12, 1
      // Predicated region
      $region13: #{encoder_forward.4} parent=11 // pred_check
        %p201 = pneg %p76
      $region14: #{encoder_forward.4} parent=11 // pred_check_branch
        %203 = sbr.rel (%p201) target = $region16
      $region15: #{encoder_forward.4} parent=11 // pred_region
        %p204 = scmp.lt.s32.totalorder %s22, 0
        %s205 = scalar_select %p204, %s22, 0
        %s206 = smul.addr %s205, 4
        %s207 = scalar_lea.vmem %s1, %s206
      $region16: #{encoder_forward.4} parent=11 // pred_fallthru
        _
      // Predicated region
      $region17: #{encoder_forward.4} parent=11 // pred_check
        %p208 = pneg %p102
      $region18: #{encoder_forward.4} parent=11 // pred_check_branch
        %210 = sbr.rel (%p208) target = $region20
      $region19: #{encoder_forward.4} parent=11 // pred_region
        %p211 = scmp.lt.s32.totalorder %s22, 0
        %s212 = scalar_select %p211, %s22, 0
        %s213 = scalar_lea.vmem %s2, %s212
      $region20: #{encoder_forward.4} parent=11 // pred_fallthru
        _
    $region12: #{encoder_forward.4} parent=5 // pred_fallthru
      _
    %p214 = scmp.lt.s32.totalorder %s12, 2
    // Predicated region
    $region21: #{encoder_forward.4} parent=5 // pred_check
      %p215 = pneg %p214
    $region22: #{encoder_forward.4} parent=5 // pred_check_branch
      %217 = sbr.rel (%p215) target = $region24
    $region23: #{encoder_forward.4} parent=5 // pred_region
      // Predicated region
      $region25: #{encoder_forward.4} parent=23 // pred_check
        %p218 = pneg %p44
      $region26: #{encoder_forward.4} parent=23 // pred_check_branch
        %220 = sbr.rel (%p218) target = $region28
      $region27: #{encoder_forward.4} parent=23 // pred_region
        %s221 = smul.u32 128, %s19
        %p222 = scmp.lt.s32.totalorder %s221, 255
        %s223 = scalar_select %p222, %s221, 255
        %s224 = smul.addr %s223, 4
        %s225 = scalar_lea.vmem %s0, %s224
        %s226 = smul.u32 128, %s19
      $region28: #{encoder_forward.4} parent=23 // pred_fallthru
        _
    $region24: #{encoder_forward.4} parent=5 // pred_fallthru
      _
    %p227 = scmp.le.s32.totalorder 1, %s12
    %p228 = scmp.lt.s32.totalorder %s12, 3
    %p229 = pnand %p227, %p228
    %p230 = pneg %p229
    // Predicated region
    $region29: #{encoder_forward.4} parent=5 // pred_check
      _
    $region30: #{encoder_forward.4} parent=5 // pred_check_branch
      %232 = sbr.rel (%p229) target = $region32
    $region31: #{encoder_forward.4} parent=5 // pred_region
      %s233 = ssub.s32 %s12, 1
      %s234 = smul.u32 128, %s21
      %p235 = scmp.lt.s32.totalorder %s234, 255
      %s236 = scalar_select %p235, %s234, 255
      %s237 = smul.addr %s236, 4
      %s238 = scalar_lea.vmem %s0, %s237
      %p239 = pneg %p50
      %p240 = pneg %p47
      %p241 = scmp.lt.s32.totalorder %s22, 0
      %s242 = scalar_select %p241, %s22, 0
      %s243 = smul.addr %s242, 4
      %s244 = scalar_lea.vmem %s1, %s243
      %p245 = pneg %p76
      %p246 = pneg %p73
      %p247 = scmp.lt.s32.totalorder %s22, 0
      %s248 = scalar_select %p247, %s22, 0
      %s249 = scalar_lea.vmem %s2, %s248
      %p250 = pneg %p102
      %p251 = pneg %p99
      %p252 = pneg %p130
      %p253 = pneg %p127
      %s254 = smul.u32 128, %s21
      %p255 = scmp.lt.s32.totalorder %s254, 255
      %s256 = scalar_select %p255, %s254, 255
      %p257 = scmp.lt.s32.totalorder %s22, 0
      %s258 = scalar_select %p257, %s22, 0
      %s259 = sadd.s32 %s258, %s256
      %s260 = smul.addr %s259, 4
      %s261 = scalar_lea.vmem %s3, %s260
      %p262 = pneg %p158
      %p263 = pneg %p155
      %p264 = scmp.lt.s32.totalorder %s21, 1
      %s265 = scalar_select %p264, %s21, 1
      %p266 = scmp.lt.s32.totalorder %s22, 0
      %s267 = scalar_select %p266, %s22, 0
      %s268 = sadd.s32 %s267, %s265
      %s269 = scalar_lea.vmem %s4, %s268
      %p270 = pneg %p186
      %p271 = pneg %p183
      %p272 = scmp.lt.s32.totalorder %s21, 1
      %s273 = scalar_select %p272, %s21, 1
      %p274 = scmp.lt.s32.totalorder %s22, 0
      %s275 = scalar_select %p274, %s22, 0
      %s276 = sadd.s32 %s275, %s273
      %s277 = scalar_lea.vmem %s5, %s276
      %s278 = smul.u32 128, %s21
      %p279 = scmp.lt.s32.totalorder %s278, 255
      %s280 = scalar_select %p279, %s278, 255
      %s281 = smul.addr %s280, 4
      %s282 = scalar_lea.vmem %s0, %s281
      %s283 = smul.u32 128, %s21
      %p284 = scmp.lt.s32.totalorder %s22, 0
      %s285 = scalar_select %p284, %s22, 0
      %s286 = smul.addr %s285, 4
      %s287 = scalar_lea.vmem %s1, %s286
      %p288 = scmp.lt.s32.totalorder %s22, 0
      %s289 = scalar_select %p288, %s22, 0
      %s290 = scalar_lea.vmem %s2, %s289
      %s291 = smul.u32 128, %s21
      %p292 = scmp.lt.s32.totalorder %s291, 255
      %s293 = scalar_select %p292, %s291, 255
      %p294 = scmp.lt.s32.totalorder %s22, 0
      %s295 = scalar_select %p294, %s22, 0
      %s296 = sadd.s32 %s295, %s293
      %s297 = smul.addr %s296, 4
      %s298 = scalar_lea.vmem %s3, %s297
      %s299 = smul.u32 128, %s21
      %p300 = scmp.lt.s32.totalorder %s21, 1
      %s301 = scalar_select %p300, %s21, 1
      %p302 = scmp.lt.s32.totalorder %s22, 0
      %s303 = scalar_select %p302, %s22, 0
      %s304 = sadd.s32 %s303, %s301
      %s305 = scalar_lea.vmem %s4, %s304
      %p306 = scmp.lt.s32.totalorder %s21, 1
      %s307 = scalar_select %p306, %s21, 1
      %p308 = scmp.lt.s32.totalorder %s22, 0
      %s309 = scalar_select %p308, %s22, 0
      %s310 = sadd.s32 %s309, %s307
      %s311 = scalar_lea.vmem %s5, %s310
      %v313 = vld [vmem:[%s282] sm:$0xf]
      %v314 = vld [vmem:[%s282 + $0x4] sm:$0xf]
      %v315 = vld [vmem:[%s282 + $0x8] sm:$0xf]
      %v316 = vld [vmem:[%s282 + $0xc] sm:$0xf]
      %v317 = vld [vmem:[%s282 + $0x10] sm:$0xf]
      %v318 = vld [vmem:[%s282 + $0x14] sm:$0xf]
      %v319 = vld [vmem:[%s282 + $0x18] sm:$0xf]
      %v320 = vld [vmem:[%s282 + $0x1c] sm:$0xf]
      %v321 = vld [vmem:[%s282 + $0x20] sm:$0xf]
      %v322 = vld [vmem:[%s282 + $0x24] sm:$0xf]
      %v323 = vld [vmem:[%s282 + $0x28] sm:$0xf]
      %v324 = vld [vmem:[%s282 + $0x2c] sm:$0xf]
      %v325 = vld [vmem:[%s282 + $0x30] sm:$0xf]
      %v326 = vld [vmem:[%s282 + $0x34] sm:$0xf]
      %v327 = vld [vmem:[%s282 + $0x38] sm:$0xf]
      %v328 = vld [vmem:[%s282 + $0x3c] sm:$0xf]
      %v329 = vld [vmem:[%s282 + $0x40] sm:$0xf]
      %v330 = vld [vmem:[%s282 + $0x44] sm:$0xf]
      %v331 = vld [vmem:[%s282 + $0x48] sm:$0xf]
      %v332 = vld [vmem:[%s282 + $0x4c] sm:$0xf]
      %v333 = vld [vmem:[%s282 + $0x50] sm:$0xf]
      %v334 = vld [vmem:[%s282 + $0x54] sm:$0xf]
      %v335 = vld [vmem:[%s282 + $0x58] sm:$0xf]
      %v336 = vld [vmem:[%s282 + $0x5c] sm:$0xf]
      %v337 = vld [vmem:[%s282 + $0x60] sm:$0xf]
      %v338 = vld [vmem:[%s282 + $0x64] sm:$0xf]
      %v339 = vld [vmem:[%s282 + $0x68] sm:$0xf]
      %v340 = vld [vmem:[%s282 + $0x6c] sm:$0xf]
      %v341 = vld [vmem:[%s282 + $0x70] sm:$0xf]
      %v342 = vld [vmem:[%s282 + $0x74] sm:$0xf]
      %v343 = vld [vmem:[%s282 + $0x78] sm:$0xf]
      %v344 = vld [vmem:[%s282 + $0x7c] sm:$0xf]
      %v345 = vld [vmem:[%s282 + $0x80] sm:$0xf]
      %v346 = vld [vmem:[%s282 + $0x84] sm:$0xf]
      %v347 = vld [vmem:[%s282 + $0x88] sm:$0xf]
      %v348 = vld [vmem:[%s282 + $0x8c] sm:$0xf]
      %v349 = vld [vmem:[%s282 + $0x90] sm:$0xf]
      %v350 = vld [vmem:[%s282 + $0x94] sm:$0xf]
      %v351 = vld [vmem:[%s282 + $0x98] sm:$0xf]
      %v352 = vld [vmem:[%s282 + $0x9c] sm:$0xf]
      %v353 = vld [vmem:[%s282 + $0xa0] sm:$0xf]
      %v354 = vld [vmem:[%s282 + $0xa4] sm:$0xf]
      %v355 = vld [vmem:[%s282 + $0xa8] sm:$0xf]
      %v356 = vld [vmem:[%s282 + $0xac] sm:$0xf]
      %v357 = vld [vmem:[%s282 + $0xb0] sm:$0xf]
      %v358 = vld [vmem:[%s282 + $0xb4] sm:$0xf]
      %v359 = vld [vmem:[%s282 + $0xb8] sm:$0xf]
      %v360 = vld [vmem:[%s282 + $0xbc] sm:$0xf]
      %v361 = vld [vmem:[%s282 + $0xc0] sm:$0xf]
      %v362 = vld [vmem:[%s282 + $0xc4] sm:$0xf]
      %v363 = vld [vmem:[%s282 + $0xc8] sm:$0xf]
      %v364 = vld [vmem:[%s282 + $0xcc] sm:$0xf]
      %v365 = vld [vmem:[%s282 + $0xd0] sm:$0xf]
      %v366 = vld [vmem:[%s282 + $0xd4] sm:$0xf]
      %v367 = vld [vmem:[%s282 + $0xd8] sm:$0xf]
      %v368 = vld [vmem:[%s282 + $0xdc] sm:$0xf]
      %v369 = vld [vmem:[%s282 + $0xe0] sm:$0xf]
      %v370 = vld [vmem:[%s282 + $0xe4] sm:$0xf]
      %v371 = vld [vmem:[%s282 + $0xe8] sm:$0xf]
      %v372 = vld [vmem:[%s282 + $0xec] sm:$0xf]
      %v373 = vld [vmem:[%s282 + $0xf0] sm:$0xf]
      %v374 = vld [vmem:[%s282 + $0xf4] sm:$0xf]
      %v375 = vld [vmem:[%s282 + $0xf8] sm:$0xf]
      %v376 = vld [vmem:[%s282 + $0xfc] sm:$0xf]
      %v377 = vld [vmem:[%s282 + $0x100] sm:$0xf]
      %v378 = vld [vmem:[%s282 + $0x104] sm:$0xf]
      %v379 = vld [vmem:[%s282 + $0x108] sm:$0xf]
      %v380 = vld [vmem:[%s282 + $0x10c] sm:$0xf]
      %v381 = vld [vmem:[%s282 + $0x110] sm:$0xf]
      %v382 = vld [vmem:[%s282 + $0x114] sm:$0xf]
      %v383 = vld [vmem:[%s282 + $0x118] sm:$0xf]
      %v384 = vld [vmem:[%s282 + $0x11c] sm:$0xf]
      %v385 = vld [vmem:[%s282 + $0x120] sm:$0xf]
      %v386 = vld [vmem:[%s282 + $0x124] sm:$0xf]
      %v387 = vld [vmem:[%s282 + $0x128] sm:$0xf]
      %v388 = vld [vmem:[%s282 + $0x12c] sm:$0xf]
      %v389 = vld [vmem:[%s282 + $0x130] sm:$0xf]
      %v390 = vld [vmem:[%s282 + $0x134] sm:$0xf]
      %v391 = vld [vmem:[%s282 + $0x138] sm:$0xf]
      %v392 = vld [vmem:[%s282 + $0x13c] sm:$0xf]
      %v393 = vld [vmem:[%s282 + $0x140] sm:$0xf]
      %v394 = vld [vmem:[%s282 + $0x144] sm:$0xf]
      %v395 = vld [vmem:[%s282 + $0x148] sm:$0xf]
      %v396 = vld [vmem:[%s282 + $0x14c] sm:$0xf]
      %v397 = vld [vmem:[%s282 + $0x150] sm:$0xf]
      %v398 = vld [vmem:[%s282 + $0x154] sm:$0xf]
      %v399 = vld [vmem:[%s282 + $0x158] sm:$0xf]
      %v400 = vld [vmem:[%s282 + $0x15c] sm:$0xf]
      %v401 = vld [vmem:[%s282 + $0x160] sm:$0xf]
      %v402 = vld [vmem:[%s282 + $0x164] sm:$0xf]
      %v403 = vld [vmem:[%s282 + $0x168] sm:$0xf]
      %v404 = vld [vmem:[%s282 + $0x16c] sm:$0xf]
      %v405 = vld [vmem:[%s282 + $0x170] sm:$0xf]
      %v406 = vld [vmem:[%s282 + $0x174] sm:$0xf]
      %v407 = vld [vmem:[%s282 + $0x178] sm:$0xf]
      %v408 = vld [vmem:[%s282 + $0x17c] sm:$0xf]
      %v409 = vld [vmem:[%s282 + $0x180] sm:$0xf]
      %v410 = vld [vmem:[%s282 + $0x184] sm:$0xf]
      %v411 = vld [vmem:[%s282 + $0x188] sm:$0xf]
      %v412 = vld [vmem:[%s282 + $0x18c] sm:$0xf]
      %v413 = vld [vmem:[%s282 + $0x190] sm:$0xf]
      %v414 = vld [vmem:[%s282 + $0x194] sm:$0xf]
      %v415 = vld [vmem:[%s282 + $0x198] sm:$0xf]
      %v416 = vld [vmem:[%s282 + $0x19c] sm:$0xf]
      %v417 = vld [vmem:[%s282 + $0x1a0] sm:$0xf]
      %v418 = vld [vmem:[%s282 + $0x1a4] sm:$0xf]
      %v419 = vld [vmem:[%s282 + $0x1a8] sm:$0xf]
      %v420 = vld [vmem:[%s282 + $0x1ac] sm:$0xf]
      %v421 = vld [vmem:[%s282 + $0x1b0] sm:$0xf]
      %v422 = vld [vmem:[%s282 + $0x1b4] sm:$0xf]
      %v423 = vld [vmem:[%s282 + $0x1b8] sm:$0xf]
      %v424 = vld [vmem:[%s282 + $0x1bc] sm:$0xf]
      %v425 = vld [vmem:[%s282 + $0x1c0] sm:$0xf]
      %v426 = vld [vmem:[%s282 + $0x1c4] sm:$0xf]
      %v427 = vld [vmem:[%s282 + $0x1c8] sm:$0xf]
      %v428 = vld [vmem:[%s282 + $0x1cc] sm:$0xf]
      %v429 = vld [vmem:[%s282 + $0x1d0] sm:$0xf]
      %v430 = vld [vmem:[%s282 + $0x1d4] sm:$0xf]
      %v431 = vld [vmem:[%s282 + $0x1d8] sm:$0xf]
      %v432 = vld [vmem:[%s282 + $0x1dc] sm:$0xf]
      %v433 = vld [vmem:[%s282 + $0x1e0] sm:$0xf]
      %v434 = vld [vmem:[%s282 + $0x1e4] sm:$0xf]
      %v435 = vld [vmem:[%s282 + $0x1e8] sm:$0xf]
      %v436 = vld [vmem:[%s282 + $0x1ec] sm:$0xf]
      %v437 = vld [vmem:[%s282 + $0x1f0] sm:$0xf]
      %v438 = vld [vmem:[%s282 + $0x1f4] sm:$0xf]
      %v439 = vld [vmem:[%s282 + $0x1f8] sm:$0xf]
      %v440 = vld [vmem:[%s282 + $0x1fc] sm:$0xf]
      %v441 = vld [vmem:[%s287] sm:$0xf]
      %v442 = vld [vmem:[%s287 + $0x4] sm:$0xf]
      %v443 = vld [vmem:[%s287 + $0x8] sm:$0xf]
      %v444 = vld [vmem:[%s287 + $0xc] sm:$0xf]
      %v445 = vld [vmem:[%s287 + $0x10] sm:$0xf]
      %v446 = vld [vmem:[%s287 + $0x14] sm:$0xf]
      %v447 = vld [vmem:[%s287 + $0x18] sm:$0xf]
      %v448 = vld [vmem:[%s287 + $0x1c] sm:$0xf]
      %v449 = vld [vmem:[%s287 + $0x20] sm:$0xf]
      %v450 = vld [vmem:[%s287 + $0x24] sm:$0x3]
      %v451 = vld [vmem:[%s290] sm:$0x1]
      %v453 = vlaneseq
      %v454 = vshrl.u32 %v453, 7
      %v455 = vsub.s32 0, %v454
      %v456 = vrot.slane %v451, %v455
      %v586 = vunpack.c.l.b16 %v313
      %v587 = vunpack.c.l.b16 %v314
      %v588 = vunpack.c.l.b16 %v315
      %v589 = vunpack.c.l.b16 %v316
      %v590 = vunpack.c.l.b16 %v317
      %v591 = vunpack.c.l.b16 %v318
      %v592 = vunpack.c.l.b16 %v319
      %v593 = vunpack.c.l.b16 %v320
      %v594 = vunpack.c.l.b16 %v321
      %v595 = vunpack.c.l.b16 %v322
      %v596 = vunpack.c.l.b16 %v323
      %v597 = vunpack.c.l.b16 %v324
      %v598 = vunpack.c.l.b16 %v325
      %v599 = vunpack.c.l.b16 %v326
      %v600 = vunpack.c.l.b16 %v327
      %v601 = vunpack.c.l.b16 %v328
      %v602 = vunpack.c.l.b16 %v329
      %v603 = vunpack.c.l.b16 %v330
      %v604 = vunpack.c.l.b16 %v331
      %v605 = vunpack.c.l.b16 %v332
      %v606 = vunpack.c.l.b16 %v333
      %v607 = vunpack.c.l.b16 %v334
      %v608 = vunpack.c.l.b16 %v335
      %v609 = vunpack.c.l.b16 %v336
      %v610 = vunpack.c.l.b16 %v337
      %v611 = vunpack.c.l.b16 %v338
      %v612 = vunpack.c.l.b16 %v339
      %v613 = vunpack.c.l.b16 %v340
      %v614 = vunpack.c.l.b16 %v341
      %v615 = vunpack.c.l.b16 %v342
      %v616 = vunpack.c.l.b16 %v343
      %v617 = vunpack.c.l.b16 %v344
      %v618 = vunpack.c.l.b16 %v345
      %v619 = vunpack.c.l.b16 %v346
      %v620 = vunpack.c.l.b16 %v347
      %v621 = vunpack.c.l.b16 %v348
      %v622 = vunpack.c.l.b16 %v349
      %v623 = vunpack.c.l.b16 %v350
      %v624 = vunpack.c.l.b16 %v351
      %v625 = vunpack.c.l.b16 %v352
      %v626 = vunpack.c.l.b16 %v353
      %v627 = vunpack.c.l.b16 %v354
      %v628 = vunpack.c.l.b16 %v355
      %v629 = vunpack.c.l.b16 %v356
      %v630 = vunpack.c.l.b16 %v357
      %v631 = vunpack.c.l.b16 %v358
      %v632 = vunpack.c.l.b16 %v359
      %v633 = vunpack.c.l.b16 %v360
      %v634 = vunpack.c.l.b16 %v361
      %v635 = vunpack.c.l.b16 %v362
      %v636 = vunpack.c.l.b16 %v363
      %v637 = vunpack.c.l.b16 %v364
      %v638 = vunpack.c.l.b16 %v365
      %v639 = vunpack.c.l.b16 %v366
      %v640 = vunpack.c.l.b16 %v367
      %v641 = vunpack.c.l.b16 %v368
      %v642 = vunpack.c.l.b16 %v369
      %v643 = vunpack.c.l.b16 %v370
      %v644 = vunpack.c.l.b16 %v371
      %v645 = vunpack.c.l.b16 %v372
      %v646 = vunpack.c.l.b16 %v373
      %v647 = vunpack.c.l.b16 %v374
      %v648 = vunpack.c.l.b16 %v375
      %v649 = vunpack.c.l.b16 %v376
      %v650 = vunpack.c.l.b16 %v377
      %v651 = vunpack.c.l.b16 %v378
      %v652 = vunpack.c.l.b16 %v379
      %v653 = vunpack.c.l.b16 %v380
      %v654 = vunpack.c.l.b16 %v381
      %v655 = vunpack.c.l.b16 %v382
      %v656 = vunpack.c.l.b16 %v383
      %v657 = vunpack.c.l.b16 %v384
      %v658 = vunpack.c.l.b16 %v385
      %v659 = vunpack.c.l.b16 %v386
      %v660 = vunpack.c.l.b16 %v387
      %v661 = vunpack.c.l.b16 %v388
      %v662 = vunpack.c.l.b16 %v389
      %v663 = vunpack.c.l.b16 %v390
      %v664 = vunpack.c.l.b16 %v391
      %v665 = vunpack.c.l.b16 %v392
      %v666 = vunpack.c.l.b16 %v393
      %v667 = vunpack.c.l.b16 %v394
      %v668 = vunpack.c.l.b16 %v395
      %v669 = vunpack.c.l.b16 %v396
      %v670 = vunpack.c.l.b16 %v397
      %v671 = vunpack.c.l.b16 %v398
      %v672 = vunpack.c.l.b16 %v399
      %v673 = vunpack.c.l.b16 %v400
      %v674 = vunpack.c.l.b16 %v401
      %v675 = vunpack.c.l.b16 %v402
      %v676 = vunpack.c.l.b16 %v403
      %v677 = vunpack.c.l.b16 %v404
      %v678 = vunpack.c.l.b16 %v405
      %v679 = vunpack.c.l.b16 %v406
      %v680 = vunpack.c.l.b16 %v407
      %v681 = vunpack.c.l.b16 %v408
      %v682 = vunpack.c.l.b16 %v409
      %v683 = vunpack.c.l.b16 %v410
      %v684 = vunpack.c.l.b16 %v411
      %v685 = vunpack.c.l.b16 %v412
      %v686 = vunpack.c.l.b16 %v413
      %v687 = vunpack.c.l.b16 %v414
      %v688 = vunpack.c.l.b16 %v415
      %v689 = vunpack.c.l.b16 %v416
      %v690 = vunpack.c.l.b16 %v417
      %v691 = vunpack.c.l.b16 %v418
      %v692 = vunpack.c.l.b16 %v419
      %v693 = vunpack.c.l.b16 %v420
      %v694 = vunpack.c.l.b16 %v421
      %v695 = vunpack.c.l.b16 %v422
      %v696 = vunpack.c.l.b16 %v423
      %v697 = vunpack.c.l.b16 %v424
      %v698 = vunpack.c.l.b16 %v425
      %v699 = vunpack.c.l.b16 %v426
      %v700 = vunpack.c.l.b16 %v427
      %v701 = vunpack.c.l.b16 %v428
      %v702 = vunpack.c.l.b16 %v429
      %v703 = vunpack.c.l.b16 %v430
      %v704 = vunpack.c.l.b16 %v431
      %v705 = vunpack.c.l.b16 %v432
      %v706 = vunpack.c.l.b16 %v433
      %v707 = vunpack.c.l.b16 %v434
      %v708 = vunpack.c.l.b16 %v435
      %v709 = vunpack.c.l.b16 %v436
      %v710 = vunpack.c.l.b16 %v437
      %v711 = vunpack.c.l.b16 %v438
      %v712 = vunpack.c.l.b16 %v439
      %v713 = vunpack.c.l.b16 %v440
      %v714 = vpack.c.b16 %v587, %v586
      %v715 = vpack.c.b16 %v589, %v588
      %v716 = vpack.c.b16 %v591, %v590
      %v717 = vpack.c.b16 %v593, %v592
      %v718 = vpack.c.b16 %v595, %v594
      %v719 = vpack.c.b16 %v597, %v596
      %v720 = vpack.c.b16 %v599, %v598
      %v721 = vpack.c.b16 %v601, %v600
      %v722 = vpack.c.b16 %v603, %v602
      %v723 = vpack.c.b16 %v605, %v604
      %v724 = vpack.c.b16 %v607, %v606
      %v725 = vpack.c.b16 %v609, %v608
      %v726 = vpack.c.b16 %v611, %v610
      %v727 = vpack.c.b16 %v613, %v612
      %v728 = vpack.c.b16 %v615, %v614
      %v729 = vpack.c.b16 %v617, %v616
      %v730 = vpack.c.b16 %v619, %v618
      %v731 = vpack.c.b16 %v621, %v620
      %v732 = vpack.c.b16 %v623, %v622
      %v733 = vpack.c.b16 %v625, %v624
      %v734 = vpack.c.b16 %v627, %v626
      %v735 = vpack.c.b16 %v629, %v628
      %v736 = vpack.c.b16 %v631, %v630
      %v737 = vpack.c.b16 %v633, %v632
      %v738 = vpack.c.b16 %v635, %v634
      %v739 = vpack.c.b16 %v637, %v636
      %v740 = vpack.c.b16 %v639, %v638
      %v741 = vpack.c.b16 %v641, %v640
      %v742 = vpack.c.b16 %v643, %v642
      %v743 = vpack.c.b16 %v645, %v644
      %v744 = vpack.c.b16 %v647, %v646
      %v745 = vpack.c.b16 %v649, %v648
      %v746 = vpack.c.b16 %v651, %v650
      %v747 = vpack.c.b16 %v653, %v652
      %v748 = vpack.c.b16 %v655, %v654
      %v749 = vpack.c.b16 %v657, %v656
      %v750 = vpack.c.b16 %v659, %v658
      %v751 = vpack.c.b16 %v661, %v660
      %v752 = vpack.c.b16 %v663, %v662
      %v753 = vpack.c.b16 %v665, %v664
      %v754 = vpack.c.b16 %v667, %v666
      %v755 = vpack.c.b16 %v669, %v668
      %v756 = vpack.c.b16 %v671, %v670
      %v757 = vpack.c.b16 %v673, %v672
      %v758 = vpack.c.b16 %v675, %v674
      %v759 = vpack.c.b16 %v677, %v676
      %v760 = vpack.c.b16 %v679, %v678
      %v761 = vpack.c.b16 %v681, %v680
      %v762 = vpack.c.b16 %v683, %v682
      %v763 = vpack.c.b16 %v685, %v684
      %v764 = vpack.c.b16 %v687, %v686
      %v765 = vpack.c.b16 %v689, %v688
      %v766 = vpack.c.b16 %v691, %v690
      %v767 = vpack.c.b16 %v693, %v692
      %v768 = vpack.c.b16 %v695, %v694
      %v769 = vpack.c.b16 %v697, %v696
      %v770 = vpack.c.b16 %v699, %v698
      %v771 = vpack.c.b16 %v701, %v700
      %v772 = vpack.c.b16 %v703, %v702
      %v773 = vpack.c.b16 %v705, %v704
      %v774 = vpack.c.b16 %v707, %v706
      %v775 = vpack.c.b16 %v709, %v708
      %v776 = vpack.c.b16 %v711, %v710
      %v777 = vpack.c.b16 %v713, %v712
      %v788 = vunpack.c.l.b16 %v441
      %v789 = vunpack.c.l.b16 %v442
      %v790 = vunpack.c.l.b16 %v443
      %v791 = vunpack.c.l.b16 %v444
      %v792 = vunpack.c.l.b16 %v445
      %v793 = vunpack.c.l.b16 %v446
      %v794 = vunpack.c.l.b16 %v447
      %v795 = vunpack.c.l.b16 %v448
      %v796 = vunpack.c.l.b16 %v449
      %v797 = vunpack.c.l.b16 %v450
      %v798 = vpack.c.b16 %v789, %v788
      %v799 = vpack.c.b16 %v791, %v790
      %v800 = vpack.c.b16 %v793, %v792
      %v801 = vpack.c.b16 %v795, %v794
      %v802 = vpack.c.b16 %v797, %v796
      %vm807 = vcmask 613376
      %v809 = vsel %vm807, %v714, 0
      %v812 = vsel %vm807, %v715, 0
      %v815 = vsel %vm807, %v716, 0
      %v818 = vsel %vm807, %v717, 0
      %v821 = vsel %vm807, %v718, 0
      %v824 = vsel %vm807, %v719, 0
      %v827 = vsel %vm807, %v720, 0
      %v830 = vsel %vm807, %v721, 0
      %v833 = vsel %vm807, %v722, 0
      %v836 = vsel %vm807, %v723, 0
      %v839 = vsel %vm807, %v724, 0
      %v842 = vsel %vm807, %v725, 0
      %v845 = vsel %vm807, %v726, 0
      %v848 = vsel %vm807, %v727, 0
      %v851 = vsel %vm807, %v728, 0
      %v854 = vsel %vm807, %v729, 0
      %v857 = vsel %vm807, %v730, 0
      %v860 = vsel %vm807, %v731, 0
      %v863 = vsel %vm807, %v732, 0
      %v866 = vsel %vm807, %v733, 0
      %v869 = vsel %vm807, %v734, 0
      %v872 = vsel %vm807, %v735, 0
      %v875 = vsel %vm807, %v736, 0
      %v878 = vsel %vm807, %v737, 0
      %v881 = vsel %vm807, %v738, 0
      %v884 = vsel %vm807, %v739, 0
      %v887 = vsel %vm807, %v740, 0
      %v890 = vsel %vm807, %v741, 0
      %v893 = vsel %vm807, %v742, 0
      %v896 = vsel %vm807, %v743, 0
      %v899 = vsel %vm807, %v744, 0
      %v902 = vsel %vm807, %v745, 0
      %v905 = vsel %vm807, %v746, 0
      %v908 = vsel %vm807, %v747, 0
      %v911 = vsel %vm807, %v748, 0
      %v914 = vsel %vm807, %v749, 0
      %v917 = vsel %vm807, %v750, 0
      %v920 = vsel %vm807, %v751, 0
      %v923 = vsel %vm807, %v752, 0
      %v926 = vsel %vm807, %v753, 0
      %v929 = vsel %vm807, %v754, 0
      %v932 = vsel %vm807, %v755, 0
      %v935 = vsel %vm807, %v756, 0
      %v938 = vsel %vm807, %v757, 0
      %v941 = vsel %vm807, %v758, 0
      %v944 = vsel %vm807, %v759, 0
      %v947 = vsel %vm807, %v760, 0
      %v950 = vsel %vm807, %v761, 0
      %v953 = vsel %vm807, %v762, 0
      %v956 = vsel %vm807, %v763, 0
      %v959 = vsel %vm807, %v764, 0
      %v962 = vsel %vm807, %v765, 0
      %v965 = vsel %vm807, %v766, 0
      %v968 = vsel %vm807, %v767, 0
      %v971 = vsel %vm807, %v768, 0
      %v974 = vsel %vm807, %v769, 0
      %v977 = vsel %vm807, %v770, 0
      %v980 = vsel %vm807, %v771, 0
      %v983 = vsel %vm807, %v772, 0
      %v986 = vsel %vm807, %v773, 0
      %v989 = vsel %vm807, %v774, 0
      %v992 = vsel %vm807, %v775, 0
      %v995 = vsel %vm807, %v776, 0
      %v998 = vsel %vm807, %v777, 0
      %vm1000 = vcmask 1044480
      %vm1001 = vcmask 1045504
      %v1002 = vsel %vm1000, 4294967295, 65535
      %v1003 = vsel %vm1001, %v1002, 0
      %v1005 = vand.u32 %v802, %v1003
      %1007 = vmatprep.subr.bf16.mxu0 0
      %1008 = vmatpush1.bf16.msra.mxu0 %v798
      %1009 = vmatprep.subr.bf16.mxu0 0
      %1010 = vmatpush1.bf16.msra.mxu0 %v799
      %1011 = vmatprep.subr.bf16.mxu0 0
      %1012 = vmatpush1.bf16.msra.mxu0 %v800
      %1013 = vmatprep.subr.bf16.mxu0 0
      %1014 = vmatpush1.bf16.msra.mxu0 %v801
      %1015 = vmatprep.subr.bf16.mxu0 0
      %1016 = vmatpush1.bf16.msra.mxu0 %v1005
      %1017 = vmatprep.subr.bf16.mxu0 0
      %1018 = vmatpush1.bf16.msra.mxu0 0
      %1019 = vmatprep.subr.bf16.mxu0 0
      %1020 = vmatpush1.bf16.msra.mxu0 0
      %1021 = vmatprep.subr.bf16.mxu0 0
      %1022 = vmatpush1.bf16.msra.mxu0 0
      %1023 = vmatprep.subr.bf16.mxu0 0
      %1024 = vmatpush1.bf16.msra.mxu0 0
      %1025 = vmatprep.subr.bf16.mxu0 0
      %1026 = vmatpush1.bf16.msra.mxu0 0
      %1027 = vmatprep.subr.bf16.mxu0 0
      %1028 = vmatpush1.bf16.msra.mxu0 0
      %1029 = vmatprep.subr.bf16.mxu0 0
      %1030 = vmatpush1.bf16.msra.mxu0 0
      %1031 = vmatprep.subr.bf16.mxu0 0
      %1032 = vmatpush1.bf16.msra.mxu0 0
      %1033 = vmatprep.subr.bf16.mxu0 0
      %1034 = vmatpush1.bf16.msra.mxu0 0
      %1035 = vmatprep.subr.bf16.mxu0 0
      %1036 = vmatpush1.bf16.msra.mxu0 0
      %1037 = vmatprep.subr.bf16.mxu0 0
      %1038 = vmatpush1.bf16.msra.mxu0 0
      %1039 = vmatprep.mubr.bf16.mxu0 0
      %1040 = vmatmul.mubr.bf16.gmra.mrb[0].mxu0 %v809
      %v1041 = vpop.f32.mrb[0].mxu0
      %v1042 = vadd.f32 %v456, %v1041
      %v1043 = vpop.f32.mrb[0].mxu0
      %v1044 = vpop.f32.mrb[0].mxu0
      %v1045 = vadd.f32 %v456, %v1044
      %v1046 = vpop.f32.mrb[0].mxu0
      %1047 = vmatprep.mubr.bf16.mxu0 0
      %1048 = vmatmul.mubr.bf16.gmra.mrb[0].mxu0 %v812
      %v1049 = vpop.f32.mrb[0].mxu0
      %v1050 = vadd.f32 %v456, %v1049
      %v1051 = vpop.f32.mrb[0].mxu0
      %v1052 = vpop.f32.mrb[0].mxu0
      %v1053 = vadd.f32 %v456, %v1052
      %v1054 = vpop.f32.mrb[0].mxu0
      %1055 = vmatprep.mubr.bf16.mxu0 0
      %1056 = vmatmul.mubr.bf16.gmra.mrb[0].mxu0 %v815
      %v1057 = vpop.f32.mrb[0].mxu0
      %v1058 = vadd.f32 %v456, %v1057
      %v1059 = vpop.f32.mrb[0].mxu0
      %v1060 = vpop.f32.mrb[0].mxu0
      %v1061 = vadd.f32 %v456, %v1060
      %v1062 = vpop.f32.mrb[0].mxu0
      %1063 = vmatprep.mubr.bf16.mxu0 0
      %1064 = vmatmul.mubr.bf16.gmra.mrb[0].mxu0 %v818
      %v1065 = vpop.f32.mrb[0].mxu0
      %v1066 = vadd.f32 %v456, %v1065
      %v1067 = vpop.f32.mrb[0].mxu0
      %v1068 = vpop.f32.mrb[0].mxu0
      %v1069 = vadd.f32 %v456, %v1068
      %v1070 = vpop.f32.mrb[0].mxu0
      %1071 = vmatprep.mubr.bf16.mxu0 0
      %1072 = vmatmul.mubr.bf16.gmra.mrb[0].mxu0 %v821
      %v1073 = vpop.f32.mrb[0].mxu0
      %v1074 = vadd.f32 %v456, %v1073
      %v1075 = vpop.f32.mrb[0].mxu0
      %v1076 = vpop.f32.mrb[0].mxu0
      %v1077 = vadd.f32 %v456, %v1076
      %v1078 = vpop.f32.mrb[0].mxu0
      %1079 = vmatprep.mubr.bf16.mxu0 0
      %1080 = vmatmul.mubr.bf16.gmra.mrb[0].mxu0 %v824
      %v1081 = vpop.f32.mrb[0].mxu0
      %v1082 = vadd.f32 %v456, %v1081
      %v1083 = vpop.f32.mrb[0].mxu0
      %v1084 = vpop.f32.mrb[0].mxu0
      %v1085 = vadd.f32 %v456, %v1084
      %v1086 = vpop.f32.mrb[0].mxu0
      %1087 = vmatprep.mubr.bf16.mxu0 0
      %1088 = vmatmul.mubr.bf16.gmra.mrb[0].mxu0 %v827
      %v1089 = vpop.f32.mrb[0].mxu0
      %v1090 = vadd.f32 %v456, %v1089
      %v1091 = vpop.f32.mrb[0].mxu0
      %v1092 = vpop.f32.mrb[0].mxu0
      %v1093 = vadd.f32 %v456, %v1092
      %v1094 = vpop.f32.mrb[0].mxu0
      %1095 = vmatprep.mubr.bf16.mxu0 0
      %1096 = vmatmul.mubr.bf16.gmra.mrb[0].mxu0 %v830
      %v1097 = vpop.f32.mrb[0].mxu0
      %v1098 = vadd.f32 %v456, %v1097
      %v1099 = vpop.f32.mrb[0].mxu0
      %v1100 = vpop.f32.mrb[0].mxu0
      %v1101 = vadd.f32 %v456, %v1100
      %v1102 = vpop.f32.mrb[0].mxu0
      %1103 = vmatprep.mubr.bf16.mxu0 0
      %1104 = vmatmul.mubr.bf16.gmra.mrb[0].mxu0 %v833
      %v1105 = vpop.f32.mrb[0].mxu0
      %v1106 = vadd.f32 %v456, %v1105
      %v1107 = vpop.f32.mrb[0].mxu0
      %v1108 = vpop.f32.mrb[0].mxu0
      %v1109 = vadd.f32 %v456, %v1108
      %v1110 = vpop.f32.mrb[0].mxu0
      %1111 = vmatprep.mubr.bf16.mxu0 0
      %1112 = vmatmul.mubr.bf16.gmra.mrb[0].mxu0 %v836
      %v1113 = vpop.f32.mrb[0].mxu0
      %v1114 = vadd.f32 %v456, %v1113
      %v1115 = vpop.f32.mrb[0].mxu0
      %v1116 = vpop.f32.mrb[0].mxu0
      %v1117 = vadd.f32 %v456, %v1116
      %v1118 = vpop.f32.mrb[0].mxu0
      %1119 = vmatprep.mubr.bf16.mxu0 0
      %1120 = vmatmul.mubr.bf16.gmra.mrb[0].mxu0 %v839
      %v1121 = vpop.f32.mrb[0].mxu0
      %v1122 = vadd.f32 %v456, %v1121
      %v1123 = vpop.f32.mrb[0].mxu0
      %v1124 = vpop.f32.mrb[0].mxu0
      %v1125 = vadd.f32 %v456, %v1124
      %v1126 = vpop.f32.mrb[0].mxu0
      %1127 = vmatprep.mubr.bf16.mxu0 0
      %1128 = vmatmul.mubr.bf16.gmra.mrb[0].mxu0 %v842
      %v1129 = vpop.f32.mrb[0].mxu0
      %v1130 = vadd.f32 %v456, %v1129
      %v1131 = vpop.f32.mrb[0].mxu0
      %v1132 = vpop.f32.mrb[0].mxu0
      %v1133 = vadd.f32 %v456, %v1132
      %v1134 = vpop.f32.mrb[0].mxu0
      %1135 = vmatprep.mubr.bf16.mxu0 0
      %1136 = vmatmul.mubr.bf16.gmra.mrb[0].mxu0 %v845
      %v1137 = vpop.f32.mrb[0].mxu0
      %v1138 = vadd.f32 %v456, %v1137
      %v1139 = vpop.f32.mrb[0].mxu0
      %v1140 = vpop.f32.mrb[0].mxu0
      %v1141 = vadd.f32 %v456, %v1140
      %v1142 = vpop.f32.mrb[0].mxu0
      %1143 = vmatprep.mubr.bf16.mxu0 0
      %1144 = vmatmul.mubr.bf16.gmra.mrb[0].mxu0 %v848
      %v1145 = vpop.f32.mrb[0].mxu0
      %v1146 = vadd.f32 %v456, %v1145
      %v1147 = vpop.f32.mrb[0].mxu0
      %v1148 = vpop.f32.mrb[0].mxu0
      %v1149 = vadd.f32 %v456, %v1148
      %v1150 = vpop.f32.mrb[0].mxu0
      %1151 = vmatprep.mubr.bf16.mxu0 0
      %1152 = vmatmul.mubr.bf16.gmra.mrb[0].mxu0 %v851
      %v1153 = vpop.f32.mrb[0].mxu0
      %v1154 = vadd.f32 %v456, %v1153
      %v1155 = vpop.f32.mrb[0].mxu0
      %v1156 = vpop.f32.mrb[0].mxu0
      %v1157 = vadd.f32 %v456, %v1156
      %v1158 = vpop.f32.mrb[0].mxu0
      %1159 = vmatprep.mubr.bf16.mxu0 0
      %1160 = vmatmul.mubr.bf16.gmra.mrb[0].mxu0 %v854
      %v1161 = vpop.f32.mrb[0].mxu0
      %v1162 = vadd.f32 %v456, %v1161
      %v1163 = vpop.f32.mrb[0].mxu0
      %v1164 = vpop.f32.mrb[0].mxu0
      %v1165 = vadd.f32 %v456, %v1164
      %v1166 = vpop.f32.mrb[0].mxu0
      %1167 = vmatprep.mubr.bf16.mxu0 0
      %1168 = vmatmul.mubr.bf16.gmra.mrb[0].mxu0 %v857
      %v1169 = vpop.f32.mrb[0].mxu0
      %v1170 = vadd.f32 %v456, %v1169
      %v1171 = vpop.f32.mrb[0].mxu0
      %v1172 = vpop.f32.mrb[0].mxu0
      %v1173 = vadd.f32 %v456, %v1172
      %v1174 = vpop.f32.mrb[0].mxu0
      %1175 = vmatprep.mubr.bf16.mxu0 0
      %1176 = vmatmul.mubr.bf16.gmra.mrb[0].mxu0 %v860
      %v1177 = vpop.f32.mrb[0].mxu0
      %v1178 = vadd.f32 %v456, %v1177
      %v1179 = vpop.f32.mrb[0].mxu0
      %v1180 = vpop.f32.mrb[0].mxu0
      %v1181 = vadd.f32 %v456, %v1180
      %v1182 = vpop.f32.mrb[0].mxu0
      %1183 = vmatprep.mubr.bf16.mxu0 0
      %1184 = vmatmul.mubr.bf16.gmra.mrb[0].mxu0 %v863
      %v1185 = vpop.f32.mrb[0].mxu0
      %v1186 = vadd.f32 %v456, %v1185
      %v1187 = vpop.f32.mrb[0].mxu0
      %v1188 = vpop.f32.mrb[0].mxu0
      %v1189 = vadd.f32 %v456, %v1188
      %v1190 = vpop.f32.mrb[0].mxu0
      %1191 = vmatprep.mubr.bf16.mxu0 0
      %1192 = vmatmul.mubr.bf16.gmra.mrb[0].mxu0 %v866
      %v1193 = vpop.f32.mrb[0].mxu0
      %v1194 = vadd.f32 %v456, %v1193
      %v1195 = vpop.f32.mrb[0].mxu0
      %v1196 = vpop.f32.mrb[0].mxu0
      %v1197 = vadd.f32 %v456, %v1196
      %v1198 = vpop.f32.mrb[0].mxu0
      %1199 = vmatprep.mubr.bf16.mxu0 0
      %1200 = vmatmul.mubr.bf16.gmra.mrb[0].mxu0 %v869
      %v1201 = vpop.f32.mrb[0].mxu0
      %v1202 = vadd.f32 %v456, %v1201
      %v1203 = vpop.f32.mrb[0].mxu0
      %v1204 = vpop.f32.mrb[0].mxu0
      %v1205 = vadd.f32 %v456, %v1204
      %v1206 = vpop.f32.mrb[0].mxu0
      %1207 = vmatprep.mubr.bf16.mxu0 0
      %1208 = vmatmul.mubr.bf16.gmra.mrb[0].mxu0 %v872
      %v1209 = vpop.f32.mrb[0].mxu0
      %v1210 = vadd.f32 %v456, %v1209
      %v1211 = vpop.f32.mrb[0].mxu0
      %v1212 = vpop.f32.mrb[0].mxu0
      %v1213 = vadd.f32 %v456, %v1212
      %v1214 = vpop.f32.mrb[0].mxu0
      %1215 = vmatprep.mubr.bf16.mxu0 0
      %1216 = vmatmul.mubr.bf16.gmra.mrb[0].mxu0 %v875
      %v1217 = vpop.f32.mrb[0].mxu0
      %v1218 = vadd.f32 %v456, %v1217
      %v1219 = vpop.f32.mrb[0].mxu0
      %v1220 = vpop.f32.mrb[0].mxu0
      %v1221 = vadd.f32 %v456, %v1220
      %v1222 = vpop.f32.mrb[0].mxu0
      %1223 = vmatprep.mubr.bf16.mxu0 0
      %1224 = vmatmul.mubr.bf16.gmra.mrb[0].mxu0 %v878
      %v1225 = vpop.f32.mrb[0].mxu0
      %v1226 = vadd.f32 %v456, %v1225
      %v1227 = vpop.f32.mrb[0].mxu0
      %v1228 = vpop.f32.mrb[0].mxu0
      %v1229 = vadd.f32 %v456, %v1228
      %v1230 = vpop.f32.mrb[0].mxu0
      %1231 = vmatprep.mubr.bf16.mxu0 0
      %1232 = vmatmul.mubr.bf16.gmra.mrb[0].mxu0 %v881
      %v1233 = vpop.f32.mrb[0].mxu0
      %v1234 = vadd.f32 %v456, %v1233
      %v1235 = vpop.f32.mrb[0].mxu0
      %v1236 = vpop.f32.mrb[0].mxu0
      %v1237 = vadd.f32 %v456, %v1236
      %v1238 = vpop.f32.mrb[0].mxu0
      %1239 = vmatprep.mubr.bf16.mxu0 0
      %1240 = vmatmul.mubr.bf16.gmra.mrb[0].mxu0 %v884
      %v1241 = vpop.f32.mrb[0].mxu0
      %v1242 = vadd.f32 %v456, %v1241
      %v1243 = vpop.f32.mrb[0].mxu0
      %v1244 = vpop.f32.mrb[0].mxu0
      %v1245 = vadd.f32 %v456, %v1244
      %v1246 = vpop.f32.mrb[0].mxu0
      %1247 = vmatprep.mubr.bf16.mxu0 0
      %1248 = vmatmul.mubr.bf16.gmra.mrb[0].mxu0 %v887
      %v1249 = vpop.f32.mrb[0].mxu0
      %v1250 = vadd.f32 %v456, %v1249
      %v1251 = vpop.f32.mrb[0].mxu0
      %v1252 = vpop.f32.mrb[0].mxu0
      %v1253 = vadd.f32 %v456, %v1252
      %v1254 = vpop.f32.mrb[0].mxu0
      %1255 = vmatprep.mubr.bf16.mxu0 0
      %1256 = vmatmul.mubr.bf16.gmra.mrb[0].mxu0 %v890
      %v1257 = vpop.f32.mrb[0].mxu0
      %v1258 = vadd.f32 %v456, %v1257
      %v1259 = vpop.f32.mrb[0].mxu0
      %v1260 = vpop.f32.mrb[0].mxu0
      %v1261 = vadd.f32 %v456, %v1260
      %v1262 = vpop.f32.mrb[0].mxu0
      %1263 = vmatprep.mubr.bf16.mxu0 0
      %1264 = vmatmul.mubr.bf16.gmra.mrb[0].mxu0 %v893
      %v1265 = vpop.f32.mrb[0].mxu0
      %v1266 = vadd.f32 %v456, %v1265
      %v1267 = vpop.f32.mrb[0].mxu0
      %v1268 = vpop.f32.mrb[0].mxu0
      %v1269 = vadd.f32 %v456, %v1268
      %v1270 = vpop.f32.mrb[0].mxu0
      %1271 = vmatprep.mubr.bf16.mxu0 0
      %1272 = vmatmul.mubr.bf16.gmra.mrb[0].mxu0 %v896
      %v1273 = vpop.f32.mrb[0].mxu0
      %v1274 = vadd.f32 %v456, %v1273
      %v1275 = vpop.f32.mrb[0].mxu0
      %v1276 = vpop.f32.mrb[0].mxu0
      %v1277 = vadd.f32 %v456, %v1276
      %v1278 = vpop.f32.mrb[0].mxu0
      %1279 = vmatprep.mubr.bf16.mxu0 0
      %1280 = vmatmul.mubr.bf16.gmra.mrb[0].mxu0 %v899
      %v1281 = vpop.f32.mrb[0].mxu0
      %v1282 = vadd.f32 %v456, %v1281
      %v1283 = vpop.f32.mrb[0].mxu0
      %v1284 = vpop.f32.mrb[0].mxu0
      %v1285 = vadd.f32 %v456, %v1284
      %v1286 = vpop.f32.mrb[0].mxu0
      %1287 = vmatprep.mubr.bf16.mxu0 0
      %1288 = vmatmul.mubr.bf16.gmra.mrb[0].mxu0 %v902
      %v1289 = vpop.f32.mrb[0].mxu0
      %v1290 = vadd.f32 %v456, %v1289
      %v1291 = vpop.f32.mrb[0].mxu0
      %v1292 = vpop.f32.mrb[0].mxu0
      %v1293 = vadd.f32 %v456, %v1292
      %v1294 = vpop.f32.mrb[0].mxu0
      %1295 = vmatprep.mubr.bf16.mxu0 0
      %1296 = vmatmul.mubr.bf16.gmra.mrb[0].mxu0 %v905
      %v1297 = vpop.f32.mrb[0].mxu0
      %v1298 = vadd.f32 %v456, %v1297
      %v1299 = vpop.f32.mrb[0].mxu0
      %v1300 = vpop.f32.mrb[0].mxu0
      %v1301 = vadd.f32 %v456, %v1300
      %v1302 = vpop.f32.mrb[0].mxu0
      %1303 = vmatprep.mubr.bf16.mxu0 0
      %1304 = vmatmul.mubr.bf16.gmra.mrb[0].mxu0 %v908
      %v1305 = vpop.f32.mrb[0].mxu0
      %v1306 = vadd.f32 %v456, %v1305
      %v1307 = vpop.f32.mrb[0].mxu0
      %v1308 = vpop.f32.mrb[0].mxu0
      %v1309 = vadd.f32 %v456, %v1308
      %v1310 = vpop.f32.mrb[0].mxu0
      %1311 = vmatprep.mubr.bf16.mxu0 0
      %1312 = vmatmul.mubr.bf16.gmra.mrb[0].mxu0 %v911
      %v1313 = vpop.f32.mrb[0].mxu0
      %v1314 = vadd.f32 %v456, %v1313
      %v1315 = vpop.f32.mrb[0].mxu0
      %v1316 = vpop.f32.mrb[0].mxu0
      %v1317 = vadd.f32 %v456, %v1316
      %v1318 = vpop.f32.mrb[0].mxu0
      %1319 = vmatprep.mubr.bf16.mxu0 0
      %1320 = vmatmul.mubr.bf16.gmra.mrb[0].mxu0 %v914
      %v1321 = vpop.f32.mrb[0].mxu0
      %v1322 = vadd.f32 %v456, %v1321
      %v1323 = vpop.f32.mrb[0].mxu0
      %v1324 = vpop.f32.mrb[0].mxu0
      %v1325 = vadd.f32 %v456, %v1324
      %v1326 = vpop.f32.mrb[0].mxu0
      %1327 = vmatprep.mubr.bf16.mxu0 0
      %1328 = vmatmul.mubr.bf16.gmra.mrb[0].mxu0 %v917
      %v1329 = vpop.f32.mrb[0].mxu0
      %v1330 = vadd.f32 %v456, %v1329
      %v1331 = vpop.f32.mrb[0].mxu0
      %v1332 = vpop.f32.mrb[0].mxu0
      %v1333 = vadd.f32 %v456, %v1332
      %v1334 = vpop.f32.mrb[0].mxu0
      %1335 = vmatprep.mubr.bf16.mxu0 0
      %1336 = vmatmul.mubr.bf16.gmra.mrb[0].mxu0 %v920
      %v1337 = vpop.f32.mrb[0].mxu0
      %v1338 = vadd.f32 %v456, %v1337
      %v1339 = vpop.f32.mrb[0].mxu0
      %v1340 = vpop.f32.mrb[0].mxu0
      %v1341 = vadd.f32 %v456, %v1340
      %v1342 = vpop.f32.mrb[0].mxu0
      %1343 = vmatprep.mubr.bf16.mxu0 0
      %1344 = vmatmul.mubr.bf16.gmra.mrb[0].mxu0 %v923
      %v1345 = vpop.f32.mrb[0].mxu0
      %v1346 = vadd.f32 %v456, %v1345
      %v1347 = vpop.f32.mrb[0].mxu0
      %v1348 = vpop.f32.mrb[0].mxu0
      %v1349 = vadd.f32 %v456, %v1348
      %v1350 = vpop.f32.mrb[0].mxu0
      %1351 = vmatprep.mubr.bf16.mxu0 0
      %1352 = vmatmul.mubr.bf16.gmra.mrb[0].mxu0 %v926
      %v1353 = vpop.f32.mrb[0].mxu0
      %v1354 = vadd.f32 %v456, %v1353
      %v1355 = vpop.f32.mrb[0].mxu0
      %v1356 = vpop.f32.mrb[0].mxu0
      %v1357 = vadd.f32 %v456, %v1356
      %v1358 = vpop.f32.mrb[0].mxu0
      %1359 = vmatprep.mubr.bf16.mxu0 0
      %1360 = vmatmul.mubr.bf16.gmra.mrb[0].mxu0 %v929
      %v1361 = vpop.f32.mrb[0].mxu0
      %v1362 = vadd.f32 %v456, %v1361
      %v1363 = vpop.f32.mrb[0].mxu0
      %v1364 = vpop.f32.mrb[0].mxu0
      %v1365 = vadd.f32 %v456, %v1364
      %v1366 = vpop.f32.mrb[0].mxu0
      %1367 = vmatprep.mubr.bf16.mxu0 0
      %1368 = vmatmul.mubr.bf16.gmra.mrb[0].mxu0 %v932
      %v1369 = vpop.f32.mrb[0].mxu0
      %v1370 = vadd.f32 %v456, %v1369
      %v1371 = vpop.f32.mrb[0].mxu0
      %v1372 = vpop.f32.mrb[0].mxu0
      %v1373 = vadd.f32 %v456, %v1372
      %v1374 = vpop.f32.mrb[0].mxu0
      %1375 = vmatprep.mubr.bf16.mxu0 0
      %1376 = vmatmul.mubr.bf16.gmra.mrb[0].mxu0 %v935
      %v1377 = vpop.f32.mrb[0].mxu0
      %v1378 = vadd.f32 %v456, %v1377
      %v1379 = vpop.f32.mrb[0].mxu0
      %v1380 = vpop.f32.mrb[0].mxu0
      %v1381 = vadd.f32 %v456, %v1380
      %v1382 = vpop.f32.mrb[0].mxu0
      %1383 = vmatprep.mubr.bf16.mxu0 0
      %1384 = vmatmul.mubr.bf16.gmra.mrb[0].mxu0 %v938
      %v1385 = vpop.f32.mrb[0].mxu0
      %v1386 = vadd.f32 %v456, %v1385
      %v1387 = vpop.f32.mrb[0].mxu0
      %v1388 = vpop.f32.mrb[0].mxu0
      %v1389 = vadd.f32 %v456, %v1388
      %v1390 = vpop.f32.mrb[0].mxu0
      %1391 = vmatprep.mubr.bf16.mxu0 0
      %1392 = vmatmul.mubr.bf16.gmra.mrb[0].mxu0 %v941
      %v1393 = vpop.f32.mrb[0].mxu0
      %v1394 = vadd.f32 %v456, %v1393
      %v1395 = vpop.f32.mrb[0].mxu0
      %v1396 = vpop.f32.mrb[0].mxu0
      %v1397 = vadd.f32 %v456, %v1396
      %v1398 = vpop.f32.mrb[0].mxu0
      %1399 = vmatprep.mubr.bf16.mxu0 0
      %1400 = vmatmul.mubr.bf16.gmra.mrb[0].mxu0 %v944
      %v1401 = vpop.f32.mrb[0].mxu0
      %v1402 = vadd.f32 %v456, %v1401
      %v1403 = vpop.f32.mrb[0].mxu0
      %v1404 = vpop.f32.mrb[0].mxu0
      %v1405 = vadd.f32 %v456, %v1404
      %v1406 = vpop.f32.mrb[0].mxu0
      %1407 = vmatprep.mubr.bf16.mxu0 0
      %1408 = vmatmul.mubr.bf16.gmra.mrb[0].mxu0 %v947
      %v1409 = vpop.f32.mrb[0].mxu0
      %v1410 = vadd.f32 %v456, %v1409
      %v1411 = vpop.f32.mrb[0].mxu0
      %v1412 = vpop.f32.mrb[0].mxu0
      %v1413 = vadd.f32 %v456, %v1412
      %v1414 = vpop.f32.mrb[0].mxu0
      %1415 = vmatprep.mubr.bf16.mxu0 0
      %1416 = vmatmul.mubr.bf16.gmra.mrb[0].mxu0 %v950
      %v1417 = vpop.f32.mrb[0].mxu0
      %v1418 = vadd.f32 %v456, %v1417
      %v1419 = vpop.f32.mrb[0].mxu0
      %v1420 = vpop.f32.mrb[0].mxu0
      %v1421 = vadd.f32 %v456, %v1420
      %v1422 = vpop.f32.mrb[0].mxu0
      %1423 = vmatprep.mubr.bf16.mxu0 0
      %1424 = vmatmul.mubr.bf16.gmra.mrb[0].mxu0 %v953
      %v1425 = vpop.f32.mrb[0].mxu0
      %v1426 = vadd.f32 %v456, %v1425
      %v1427 = vpop.f32.mrb[0].mxu0
      %v1428 = vpop.f32.mrb[0].mxu0
      %v1429 = vadd.f32 %v456, %v1428
      %v1430 = vpop.f32.mrb[0].mxu0
      %1431 = vmatprep.mubr.bf16.mxu0 0
      %1432 = vmatmul.mubr.bf16.gmra.mrb[0].mxu0 %v956
      %v1433 = vpop.f32.mrb[0].mxu0
      %v1434 = vadd.f32 %v456, %v1433
      %v1435 = vpop.f32.mrb[0].mxu0
      %v1436 = vpop.f32.mrb[0].mxu0
      %v1437 = vadd.f32 %v456, %v1436
      %v1438 = vpop.f32.mrb[0].mxu0
      %1439 = vmatprep.mubr.bf16.mxu0 0
      %1440 = vmatmul.mubr.bf16.gmra.mrb[0].mxu0 %v959
      %v1441 = vpop.f32.mrb[0].mxu0
      %v1442 = vadd.f32 %v456, %v1441
      %v1443 = vpop.f32.mrb[0].mxu0
      %v1444 = vpop.f32.mrb[0].mxu0
      %v1445 = vadd.f32 %v456, %v1444
      %v1446 = vpop.f32.mrb[0].mxu0
      %1447 = vmatprep.mubr.bf16.mxu0 0
      %1448 = vmatmul.mubr.bf16.gmra.mrb[0].mxu0 %v962
      %v1449 = vpop.f32.mrb[0].mxu0
      %v1450 = vadd.f32 %v456, %v1449
      %v1451 = vpop.f32.mrb[0].mxu0
      %v1452 = vpop.f32.mrb[0].mxu0
      %v1453 = vadd.f32 %v456, %v1452
      %v1454 = vpop.f32.mrb[0].mxu0
      %1455 = vmatprep.mubr.bf16.mxu0 0
      %1456 = vmatmul.mubr.bf16.gmra.mrb[0].mxu0 %v965
      %v1457 = vpop.f32.mrb[0].mxu0
      %v1458 = vadd.f32 %v456, %v1457
      %v1459 = vpop.f32.mrb[0].mxu0
      %v1460 = vpop.f32.mrb[0].mxu0
      %v1461 = vadd.f32 %v456, %v1460
      %v1462 = vpop.f32.mrb[0].mxu0
      %1463 = vmatprep.mubr.bf16.mxu0 0
      %1464 = vmatmul.mubr.bf16.gmra.mrb[0].mxu0 %v968
      %v1465 = vpop.f32.mrb[0].mxu0
      %v1466 = vadd.f32 %v456, %v1465
      %v1467 = vpop.f32.mrb[0].mxu0
      %v1468 = vpop.f32.mrb[0].mxu0
      %v1469 = vadd.f32 %v456, %v1468
      %v1470 = vpop.f32.mrb[0].mxu0
      %1471 = vmatprep.mubr.bf16.mxu0 0
      %1472 = vmatmul.mubr.bf16.gmra.mrb[0].mxu0 %v971
      %v1473 = vpop.f32.mrb[0].mxu0
      %v1474 = vadd.f32 %v456, %v1473
      %v1475 = vpop.f32.mrb[0].mxu0
      %v1476 = vpop.f32.mrb[0].mxu0
      %v1477 = vadd.f32 %v456, %v1476
      %v1478 = vpop.f32.mrb[0].mxu0
      %1479 = vmatprep.mubr.bf16.mxu0 0
      %1480 = vmatmul.mubr.bf16.gmra.mrb[0].mxu0 %v974
      %v1481 = vpop.f32.mrb[0].mxu0
      %v1482 = vadd.f32 %v456, %v1481
      %v1483 = vpop.f32.mrb[0].mxu0
      %v1484 = vpop.f32.mrb[0].mxu0
      %v1485 = vadd.f32 %v456, %v1484
      %v1486 = vpop.f32.mrb[0].mxu0
      %1487 = vmatprep.mubr.bf16.mxu0 0
      %1488 = vmatmul.mubr.bf16.gmra.mrb[0].mxu0 %v977
      %v1489 = vpop.f32.mrb[0].mxu0
      %v1490 = vadd.f32 %v456, %v1489
      %v1491 = vpop.f32.mrb[0].mxu0
      %v1492 = vpop.f32.mrb[0].mxu0
      %v1493 = vadd.f32 %v456, %v1492
      %v1494 = vpop.f32.mrb[0].mxu0
      %1495 = vmatprep.mubr.bf16.mxu0 0
      %1496 = vmatmul.mubr.bf16.gmra.mrb[0].mxu0 %v980
      %v1497 = vpop.f32.mrb[0].mxu0
      %v1498 = vadd.f32 %v456, %v1497
      %v1499 = vpop.f32.mrb[0].mxu0
      %v1500 = vpop.f32.mrb[0].mxu0
      %v1501 = vadd.f32 %v456, %v1500
      %v1502 = vpop.f32.mrb[0].mxu0
      %1503 = vmatprep.mubr.bf16.mxu0 0
      %1504 = vmatmul.mubr.bf16.gmra.mrb[0].mxu0 %v983
      %v1505 = vpop.f32.mrb[0].mxu0
      %v1506 = vadd.f32 %v456, %v1505
      %v1507 = vpop.f32.mrb[0].mxu0
      %v1508 = vpop.f32.mrb[0].mxu0
      %v1509 = vadd.f32 %v456, %v1508
      %v1510 = vpop.f32.mrb[0].mxu0
      %1511 = vmatprep.mubr.bf16.mxu0 0
      %1512 = vmatmul.mubr.bf16.gmra.mrb[0].mxu0 %v986
      %v1513 = vpop.f32.mrb[0].mxu0
      %v1514 = vadd.f32 %v456, %v1513
      %v1515 = vpop.f32.mrb[0].mxu0
      %v1516 = vpop.f32.mrb[0].mxu0
      %v1517 = vadd.f32 %v456, %v1516
      %v1518 = vpop.f32.mrb[0].mxu0
      %1519 = vmatprep.mubr.bf16.mxu0 0
      %1520 = vmatmul.mubr.bf16.gmra.mrb[0].mxu0 %v989
      %v1521 = vpop.f32.mrb[0].mxu0
      %v1522 = vadd.f32 %v456, %v1521
      %v1523 = vpop.f32.mrb[0].mxu0
      %v1524 = vpop.f32.mrb[0].mxu0
      %v1525 = vadd.f32 %v456, %v1524
      %v1526 = vpop.f32.mrb[0].mxu0
      %1527 = vmatprep.mubr.bf16.mxu0 0
      %1528 = vmatmul.mubr.bf16.gmra.mrb[0].mxu0 %v992
      %v1529 = vpop.f32.mrb[0].mxu0
      %v1530 = vadd.f32 %v456, %v1529
      %v1531 = vpop.f32.mrb[0].mxu0
      %v1532 = vpop.f32.mrb[0].mxu0
      %v1533 = vadd.f32 %v456, %v1532
      %v1534 = vpop.f32.mrb[0].mxu0
      %1535 = vmatprep.mubr.bf16.mxu0 0
      %1536 = vmatmul.mubr.bf16.gmra.mrb[0].mxu0 %v995
      %v1537 = vpop.f32.mrb[0].mxu0
      %v1538 = vadd.f32 %v456, %v1537
      %v1539 = vpop.f32.mrb[0].mxu0
      %v1540 = vpop.f32.mrb[0].mxu0
      %v1541 = vadd.f32 %v456, %v1540
      %v1542 = vpop.f32.mrb[0].mxu0
      %1543 = vmatprep.mubr.bf16.mxu0 0
      %1544 = vmatmul.mubr.bf16.gmra.mrb[0].mxu0 %v998
      %v1545 = vpop.f32.mrb[0].mxu0
      %v1546 = vadd.f32 %v456, %v1545
      %v1547 = vpop.f32.mrb[0].mxu0
      %v1548 = vpop.f32.mrb[0].mxu0
      %v1549 = vadd.f32 %v456, %v1548
      %v1550 = vpop.f32.mrb[0].mxu0
      %1551 = vdwg.mxu0
      %v1552 = vpack.c.bf16 %v1045, %v1042
      %v1553 = vpack.c.bf16 %v1053, %v1050
      %v1554 = vpack.c.bf16 %v1061, %v1058
      %v1555 = vpack.c.bf16 %v1069, %v1066
      %v1556 = vpack.c.bf16 %v1077, %v1074
      %v1557 = vpack.c.bf16 %v1085, %v1082
      %v1558 = vpack.c.bf16 %v1093, %v1090
      %v1559 = vpack.c.bf16 %v1101, %v1098
      %v1560 = vpack.c.bf16 %v1109, %v1106
      %v1561 = vpack.c.bf16 %v1117, %v1114
      %v1562 = vpack.c.bf16 %v1125, %v1122
      %v1563 = vpack.c.bf16 %v1133, %v1130
      %v1564 = vpack.c.bf16 %v1141, %v1138
      %v1565 = vpack.c.bf16 %v1149, %v1146
      %v1566 = vpack.c.bf16 %v1157, %v1154
      %v1567 = vpack.c.bf16 %v1165, %v1162
      %v1568 = vpack.c.bf16 %v1173, %v1170
      %v1569 = vpack.c.bf16 %v1181, %v1178
      %v1570 = vpack.c.bf16 %v1189, %v1186
      %v1571 = vpack.c.bf16 %v1197, %v1194
      %v1572 = vpack.c.bf16 %v1205, %v1202
      %v1573 = vpack.c.bf16 %v1213, %v1210
      %v1574 = vpack.c.bf16 %v1221, %v1218
      %v1575 = vpack.c.bf16 %v1229, %v1226
      %v1576 = vpack.c.bf16 %v1237, %v1234
      %v1577 = vpack.c.bf16 %v1245, %v1242
      %v1578 = vpack.c.bf16 %v1253, %v1250
      %v1579 = vpack.c.bf16 %v1261, %v1258
      %v1580 = vpack.c.bf16 %v1269, %v1266
      %v1581 = vpack.c.bf16 %v1277, %v1274
      %v1582 = vpack.c.bf16 %v1285, %v1282
      %v1583 = vpack.c.bf16 %v1293, %v1290
      %v1584 = vpack.c.bf16 %v1301, %v1298
      %v1585 = vpack.c.bf16 %v1309, %v1306
      %v1586 = vpack.c.bf16 %v1317, %v1314
      %v1587 = vpack.c.bf16 %v1325, %v1322
      %v1588 = vpack.c.bf16 %v1333, %v1330
      %v1589 = vpack.c.bf16 %v1341, %v1338
      %v1590 = vpack.c.bf16 %v1349, %v1346
      %v1591 = vpack.c.bf16 %v1357, %v1354
      %v1592 = vpack.c.bf16 %v1365, %v1362
      %v1593 = vpack.c.bf16 %v1373, %v1370
      %v1594 = vpack.c.bf16 %v1381, %v1378
      %v1595 = vpack.c.bf16 %v1389, %v1386
      %v1596 = vpack.c.bf16 %v1397, %v1394
      %v1597 = vpack.c.bf16 %v1405, %v1402
      %v1598 = vpack.c.bf16 %v1413, %v1410
      %v1599 = vpack.c.bf16 %v1421, %v1418
      %v1600 = vpack.c.bf16 %v1429, %v1426
      %v1601 = vpack.c.bf16 %v1437, %v1434
      %v1602 = vpack.c.bf16 %v1445, %v1442
      %v1603 = vpack.c.bf16 %v1453, %v1450
      %v1604 = vpack.c.bf16 %v1461, %v1458
      %v1605 = vpack.c.bf16 %v1469, %v1466
      %v1606 = vpack.c.bf16 %v1477, %v1474
      %v1607 = vpack.c.bf16 %v1485, %v1482
      %v1608 = vpack.c.bf16 %v1493, %v1490
      %v1609 = vpack.c.bf16 %v1501, %v1498
      %v1610 = vpack.c.bf16 %v1509, %v1506
      %v1611 = vpack.c.bf16 %v1517, %v1514
      %v1612 = vpack.c.bf16 %v1525, %v1522
      %v1613 = vpack.c.bf16 %v1533, %v1530
      %v1614 = vpack.c.bf16 %v1541, %v1538
      %v1615 = vpack.c.bf16 %v1549, %v1546
      %v1680 = vunpack.c.l.b16 %v1552
      %v1681 = vunpack.c.h.b16 %v1552
      %v1682 = vunpack.c.l.b16 %v1553
      %v1683 = vunpack.c.h.b16 %v1553
      %v1684 = vunpack.c.l.b16 %v1554
      %v1685 = vunpack.c.h.b16 %v1554
      %v1686 = vunpack.c.l.b16 %v1555
      %v1687 = vunpack.c.h.b16 %v1555
      %v1688 = vunpack.c.l.b16 %v1556
      %v1689 = vunpack.c.h.b16 %v1556
      %v1690 = vunpack.c.l.b16 %v1557
      %v1691 = vunpack.c.h.b16 %v1557
      %v1692 = vunpack.c.l.b16 %v1558
      %v1693 = vunpack.c.h.b16 %v1558
      %v1694 = vunpack.c.l.b16 %v1559
      %v1695 = vunpack.c.h.b16 %v1559
      %v1696 = vunpack.c.l.b16 %v1560
      %v1697 = vunpack.c.h.b16 %v1560
      %v1698 = vunpack.c.l.b16 %v1561
      %v1699 = vunpack.c.h.b16 %v1561
      %v1700 = vunpack.c.l.b16 %v1562
      %v1701 = vunpack.c.h.b16 %v1562
      %v1702 = vunpack.c.l.b16 %v1563
      %v1703 = vunpack.c.h.b16 %v1563
      %v1704 = vunpack.c.l.b16 %v1564
      %v1705 = vunpack.c.h.b16 %v1564
      %v1706 = vunpack.c.l.b16 %v1565
      %v1707 = vunpack.c.h.b16 %v1565
      %v1708 = vunpack.c.l.b16 %v1566
      %v1709 = vunpack.c.h.b16 %v1566
      %v1710 = vunpack.c.l.b16 %v1567
      %v1711 = vunpack.c.h.b16 %v1567
      %v1712 = vunpack.c.l.b16 %v1568
      %v1713 = vunpack.c.h.b16 %v1568
      %v1714 = vunpack.c.l.b16 %v1569
      %v1715 = vunpack.c.h.b16 %v1569
      %v1716 = vunpack.c.l.b16 %v1570
      %v1717 = vunpack.c.h.b16 %v1570
      %v1718 = vunpack.c.l.b16 %v1571
      %v1719 = vunpack.c.h.b16 %v1571
      %v1720 = vunpack.c.l.b16 %v1572
      %v1721 = vunpack.c.h.b16 %v1572
      %v1722 = vunpack.c.l.b16 %v1573
      %v1723 = vunpack.c.h.b16 %v1573
      %v1724 = vunpack.c.l.b16 %v1574
      %v1725 = vunpack.c.h.b16 %v1574
      %v1726 = vunpack.c.l.b16 %v1575
      %v1727 = vunpack.c.h.b16 %v1575
      %v1728 = vunpack.c.l.b16 %v1576
      %v1729 = vunpack.c.h.b16 %v1576
      %v1730 = vunpack.c.l.b16 %v1577
      %v1731 = vunpack.c.h.b16 %v1577
      %v1732 = vunpack.c.l.b16 %v1578
      %v1733 = vunpack.c.h.b16 %v1578
      %v1734 = vunpack.c.l.b16 %v1579
      %v1735 = vunpack.c.h.b16 %v1579
      %v1736 = vunpack.c.l.b16 %v1580
      %v1737 = vunpack.c.h.b16 %v1580
      %v1738 = vunpack.c.l.b16 %v1581
      %v1739 = vunpack.c.h.b16 %v1581
      %v1740 = vunpack.c.l.b16 %v1582
      %v1741 = vunpack.c.h.b16 %v1582
      %v1742 = vunpack.c.l.b16 %v1583
      %v1743 = vunpack.c.h.b16 %v1583
      %v1744 = vunpack.c.l.b16 %v1584
      %v1745 = vunpack.c.h.b16 %v1584
      %v1746 = vunpack.c.l.b16 %v1585
      %v1747 = vunpack.c.h.b16 %v1585
      %v1748 = vunpack.c.l.b16 %v1586
      %v1749 = vunpack.c.h.b16 %v1586
      %v1750 = vunpack.c.l.b16 %v1587
      %v1751 = vunpack.c.h.b16 %v1587
      %v1752 = vunpack.c.l.b16 %v1588
      %v1753 = vunpack.c.h.b16 %v1588
      %v1754 = vunpack.c.l.b16 %v1589
      %v1755 = vunpack.c.h.b16 %v1589
      %v1756 = vunpack.c.l.b16 %v1590
      %v1757 = vunpack.c.h.b16 %v1590
      %v1758 = vunpack.c.l.b16 %v1591
      %v1759 = vunpack.c.h.b16 %v1591
      %v1760 = vunpack.c.l.b16 %v1592
      %v1761 = vunpack.c.h.b16 %v1592
      %v1762 = vunpack.c.l.b16 %v1593
      %v1763 = vunpack.c.h.b16 %v1593
      %v1764 = vunpack.c.l.b16 %v1594
      %v1765 = vunpack.c.h.b16 %v1594
      %v1766 = vunpack.c.l.b16 %v1595
      %v1767 = vunpack.c.h.b16 %v1595
      %v1768 = vunpack.c.l.b16 %v1596
      %v1769 = vunpack.c.h.b16 %v1596
      %v1770 = vunpack.c.l.b16 %v1597
      %v1771 = vunpack.c.h.b16 %v1597
      %v1772 = vunpack.c.l.b16 %v1598
      %v1773 = vunpack.c.h.b16 %v1598
      %v1774 = vunpack.c.l.b16 %v1599
      %v1775 = vunpack.c.h.b16 %v1599
      %v1776 = vunpack.c.l.b16 %v1600
      %v1777 = vunpack.c.h.b16 %v1600
      %v1778 = vunpack.c.l.b16 %v1601
      %v1779 = vunpack.c.h.b16 %v1601
      %v1780 = vunpack.c.l.b16 %v1602
      %v1781 = vunpack.c.h.b16 %v1602
      %v1782 = vunpack.c.l.b16 %v1603
      %v1783 = vunpack.c.h.b16 %v1603
      %v1784 = vunpack.c.l.b16 %v1604
      %v1785 = vunpack.c.h.b16 %v1604
      %v1786 = vunpack.c.l.b16 %v1605
      %v1787 = vunpack.c.h.b16 %v1605
      %v1788 = vunpack.c.l.b16 %v1606
      %v1789 = vunpack.c.h.b16 %v1606
      %v1790 = vunpack.c.l.b16 %v1607
      %v1791 = vunpack.c.h.b16 %v1607
      %v1792 = vunpack.c.l.b16 %v1608
      %v1793 = vunpack.c.h.b16 %v1608
      %v1794 = vunpack.c.l.b16 %v1609
      %v1795 = vunpack.c.h.b16 %v1609
      %v1796 = vunpack.c.l.b16 %v1610
      %v1797 = vunpack.c.h.b16 %v1610
      %v1798 = vunpack.c.l.b16 %v1611
      %v1799 = vunpack.c.h.b16 %v1611
      %v1800 = vunpack.c.l.b16 %v1612
      %v1801 = vunpack.c.h.b16 %v1612
      %v1802 = vunpack.c.l.b16 %v1613
      %v1803 = vunpack.c.h.b16 %v1613
      %v1804 = vunpack.c.l.b16 %v1614
      %v1805 = vunpack.c.h.b16 %v1614
      %v1806 = vunpack.c.l.b16 %v1615
      %v1807 = vunpack.c.h.b16 %v1615
      %v1808 = vpack.c.b16 %v1680, %v1680
      %v1809 = vpack.c.b16 %v1681, %v1681
      %v1810 = vpack.c.b16 %v1682, %v1682
      %v1811 = vpack.c.b16 %v1683, %v1683
      %v1812 = vpack.c.b16 %v1684, %v1684
      %v1813 = vpack.c.b16 %v1685, %v1685
      %v1814 = vpack.c.b16 %v1686, %v1686
      %v1815 = vpack.c.b16 %v1687, %v1687
      %v1816 = vpack.c.b16 %v1688, %v1688
      %v1817 = vpack.c.b16 %v1689, %v1689
      %v1818 = vpack.c.b16 %v1690, %v1690
      %v1819 = vpack.c.b16 %v1691, %v1691
      %v1820 = vpack.c.b16 %v1692, %v1692
      %v1821 = vpack.c.b16 %v1693, %v1693
      %v1822 = vpack.c.b16 %v1694, %v1694
      %v1823 = vpack.c.b16 %v1695, %v1695
      %v1824 = vpack.c.b16 %v1696, %v1696
      %v1825 = vpack.c.b16 %v1697, %v1697
      %v1826 = vpack.c.b16 %v1698, %v1698
      %v1827 = vpack.c.b16 %v1699, %v1699
      %v1828 = vpack.c.b16 %v1700, %v1700
      %v1829 = vpack.c.b16 %v1701, %v1701
      %v1830 = vpack.c.b16 %v1702, %v1702
      %v1831 = vpack.c.b16 %v1703, %v1703
      %v1832 = vpack.c.b16 %v1704, %v1704
      %v1833 = vpack.c.b16 %v1705, %v1705
      %v1834 = vpack.c.b16 %v1706, %v1706
      %v1835 = vpack.c.b16 %v1707, %v1707
      %v1836 = vpack.c.b16 %v1708, %v1708
      %v1837 = vpack.c.b16 %v1709, %v1709
      %v1838 = vpack.c.b16 %v1710, %v1710
      %v1839 = vpack.c.b16 %v1711, %v1711
      %v1840 = vpack.c.b16 %v1712, %v1712
      %v1841 = vpack.c.b16 %v1713, %v1713
      %v1842 = vpack.c.b16 %v1714, %v1714
      %v1843 = vpack.c.b16 %v1715, %v1715
      %v1844 = vpack.c.b16 %v1716, %v1716
      %v1845 = vpack.c.b16 %v1717, %v1717
      %v1846 = vpack.c.b16 %v1718, %v1718
      %v1847 = vpack.c.b16 %v1719, %v1719
      %v1848 = vpack.c.b16 %v1720, %v1720
      %v1849 = vpack.c.b16 %v1721, %v1721
      %v1850 = vpack.c.b16 %v1722, %v1722
      %v1851 = vpack.c.b16 %v1723, %v1723
      %v1852 = vpack.c.b16 %v1724, %v1724
      %v1853 = vpack.c.b16 %v1725, %v1725
      %v1854 = vpack.c.b16 %v1726, %v1726
      %v1855 = vpack.c.b16 %v1727, %v1727
      %v1856 = vpack.c.b16 %v1728, %v1728
      %v1857 = vpack.c.b16 %v1729, %v1729
      %v1858 = vpack.c.b16 %v1730, %v1730
      %v1859 = vpack.c.b16 %v1731, %v1731
      %v1860 = vpack.c.b16 %v1732, %v1732
      %v1861 = vpack.c.b16 %v1733, %v1733
      %v1862 = vpack.c.b16 %v1734, %v1734
      %v1863 = vpack.c.b16 %v1735, %v1735
      %v1864 = vpack.c.b16 %v1736, %v1736
      %v1865 = vpack.c.b16 %v1737, %v1737
      %v1866 = vpack.c.b16 %v1738, %v1738
      %v1867 = vpack.c.b16 %v1739, %v1739
      %v1868 = vpack.c.b16 %v1740, %v1740
      %v1869 = vpack.c.b16 %v1741, %v1741
      %v1870 = vpack.c.b16 %v1742, %v1742
      %v1871 = vpack.c.b16 %v1743, %v1743
      %v1872 = vpack.c.b16 %v1744, %v1744
      %v1873 = vpack.c.b16 %v1745, %v1745
      %v1874 = vpack.c.b16 %v1746, %v1746
      %v1875 = vpack.c.b16 %v1747, %v1747
      %v1876 = vpack.c.b16 %v1748, %v1748
      %v1877 = vpack.c.b16 %v1749, %v1749
      %v1878 = vpack.c.b16 %v1750, %v1750
      %v1879 = vpack.c.b16 %v1751, %v1751
      %v1880 = vpack.c.b16 %v1752, %v1752
      %v1881 = vpack.c.b16 %v1753, %v1753
      %v1882 = vpack.c.b16 %v1754, %v1754
      %v1883 = vpack.c.b16 %v1755, %v1755
      %v1884 = vpack.c.b16 %v1756, %v1756
      %v1885 = vpack.c.b16 %v1757, %v1757
      %v1886 = vpack.c.b16 %v1758, %v1758
      %v1887 = vpack.c.b16 %v1759, %v1759
      %v1888 = vpack.c.b16 %v1760, %v1760
      %v1889 = vpack.c.b16 %v1761, %v1761
      %v1890 = vpack.c.b16 %v1762, %v1762
      %v1891 = vpack.c.b16 %v1763, %v1763
      %v1892 = vpack.c.b16 %v1764, %v1764
      %v1893 = vpack.c.b16 %v1765, %v1765
      %v1894 = vpack.c.b16 %v1766, %v1766
      %v1895 = vpack.c.b16 %v1767, %v1767
      %v1896 = vpack.c.b16 %v1768, %v1768
      %v1897 = vpack.c.b16 %v1769, %v1769
      %v1898 = vpack.c.b16 %v1770, %v1770
      %v1899 = vpack.c.b16 %v1771, %v1771
      %v1900 = vpack.c.b16 %v1772, %v1772
      %v1901 = vpack.c.b16 %v1773, %v1773
      %v1902 = vpack.c.b16 %v1774, %v1774
      %v1903 = vpack.c.b16 %v1775, %v1775
      %v1904 = vpack.c.b16 %v1776, %v1776
      %v1905 = vpack.c.b16 %v1777, %v1777
      %v1906 = vpack.c.b16 %v1778, %v1778
      %v1907 = vpack.c.b16 %v1779, %v1779
      %v1908 = vpack.c.b16 %v1780, %v1780
      %v1909 = vpack.c.b16 %v1781, %v1781
      %v1910 = vpack.c.b16 %v1782, %v1782
      %v1911 = vpack.c.b16 %v1783, %v1783
      %v1912 = vpack.c.b16 %v1784, %v1784
      %v1913 = vpack.c.b16 %v1785, %v1785
      %v1914 = vpack.c.b16 %v1786, %v1786
      %v1915 = vpack.c.b16 %v1787, %v1787
      %v1916 = vpack.c.b16 %v1788, %v1788
      %v1917 = vpack.c.b16 %v1789, %v1789
      %v1918 = vpack.c.b16 %v1790, %v1790
      %v1919 = vpack.c.b16 %v1791, %v1791
      %v1920 = vpack.c.b16 %v1792, %v1792
      %v1921 = vpack.c.b16 %v1793, %v1793
      %v1922 = vpack.c.b16 %v1794, %v1794
      %v1923 = vpack.c.b16 %v1795, %v1795
      %v1924 = vpack.c.b16 %v1796, %v1796
      %v1925 = vpack.c.b16 %v1797, %v1797
      %v1926 = vpack.c.b16 %v1798, %v1798
      %v1927 = vpack.c.b16 %v1799, %v1799
      %v1928 = vpack.c.b16 %v1800, %v1800
      %v1929 = vpack.c.b16 %v1801, %v1801
      %v1930 = vpack.c.b16 %v1802, %v1802
      %v1931 = vpack.c.b16 %v1803, %v1803
      %v1932 = vpack.c.b16 %v1804, %v1804
      %v1933 = vpack.c.b16 %v1805, %v1805
      %v1934 = vpack.c.b16 %v1806, %v1806
      %v1935 = vpack.c.b16 %v1807, %v1807
      %2064 = vst [vmem:[%s298] sm:$0xf] %v1808
      %2065 = vst [vmem:[%s298 + $0x4] sm:$0xf] %v1809
      %2066 = vst [vmem:[%s298 + $0x8] sm:$0xf] %v1810
      %2067 = vst [vmem:[%s298 + $0xc] sm:$0xf] %v1811
      %2068 = vst [vmem:[%s298 + $0x10] sm:$0xf] %v1812
      %2069 = vst [vmem:[%s298 + $0x14] sm:$0xf] %v1813
      %2070 = vst [vmem:[%s298 + $0x18] sm:$0xf] %v1814
      %2071 = vst [vmem:[%s298 + $0x1c] sm:$0xf] %v1815
      %2072 = vst [vmem:[%s298 + $0x20] sm:$0xf] %v1816
      %2073 = vst [vmem:[%s298 + $0x24] sm:$0xf] %v1817
      %2074 = vst [vmem:[%s298 + $0x28] sm:$0xf] %v1818
      %2075 = vst [vmem:[%s298 + $0x2c] sm:$0xf] %v1819
      %2076 = vst [vmem:[%s298 + $0x30] sm:$0xf] %v1820
      %2077 = vst [vmem:[%s298 + $0x34] sm:$0xf] %v1821
      %2078 = vst [vmem:[%s298 + $0x38] sm:$0xf] %v1822
      %2079 = vst [vmem:[%s298 + $0x3c] sm:$0xf] %v1823
      %2080 = vst [vmem:[%s298 + $0x40] sm:$0xf] %v1824
      %2081 = vst [vmem:[%s298 + $0x44] sm:$0xf] %v1825
      %2082 = vst [vmem:[%s298 + $0x48] sm:$0xf] %v1826
      %2083 = vst [vmem:[%s298 + $0x4c] sm:$0xf] %v1827
      %2084 = vst [vmem:[%s298 + $0x50] sm:$0xf] %v1828
      %2085 = vst [vmem:[%s298 + $0x54] sm:$0xf] %v1829
      %2086 = vst [vmem:[%s298 + $0x58] sm:$0xf] %v1830
      %2087 = vst [vmem:[%s298 + $0x5c] sm:$0xf] %v1831
      %2088 = vst [vmem:[%s298 + $0x60] sm:$0xf] %v1832
      %2089 = vst [vmem:[%s298 + $0x64] sm:$0xf] %v1833
      %2090 = vst [vmem:[%s298 + $0x68] sm:$0xf] %v1834
      %2091 = vst [vmem:[%s298 + $0x6c] sm:$0xf] %v1835
      %2092 = vst [vmem:[%s298 + $0x70] sm:$0xf] %v1836
      %2093 = vst [vmem:[%s298 + $0x74] sm:$0xf] %v1837
      %2094 = vst [vmem:[%s298 + $0x78] sm:$0xf] %v1838
      %2095 = vst [vmem:[%s298 + $0x7c] sm:$0xf] %v1839
      %2096 = vst [vmem:[%s298 + $0x80] sm:$0xf] %v1840
      %2097 = vst [vmem:[%s298 + $0x84] sm:$0xf] %v1841
      %2098 = vst [vmem:[%s298 + $0x88] sm:$0xf] %v1842
      %2099 = vst [vmem:[%s298 + $0x8c] sm:$0xf] %v1843
      %2100 = vst [vmem:[%s298 + $0x90] sm:$0xf] %v1844
      %2101 = vst [vmem:[%s298 + $0x94] sm:$0xf] %v1845
      %2102 = vst [vmem:[%s298 + $0x98] sm:$0xf] %v1846
      %2103 = vst [vmem:[%s298 + $0x9c] sm:$0xf] %v1847
      %2104 = vst [vmem:[%s298 + $0xa0] sm:$0xf] %v1848
      %2105 = vst [vmem:[%s298 + $0xa4] sm:$0xf] %v1849
      %2106 = vst [vmem:[%s298 + $0xa8] sm:$0xf] %v1850
      %2107 = vst [vmem:[%s298 + $0xac] sm:$0xf] %v1851
      %2108 = vst [vmem:[%s298 + $0xb0] sm:$0xf] %v1852
      %2109 = vst [vmem:[%s298 + $0xb4] sm:$0xf] %v1853
      %2110 = vst [vmem:[%s298 + $0xb8] sm:$0xf] %v1854
      %2111 = vst [vmem:[%s298 + $0xbc] sm:$0xf] %v1855
      %2112 = vst [vmem:[%s298 + $0xc0] sm:$0xf] %v1856
      %2113 = vst [vmem:[%s298 + $0xc4] sm:$0xf] %v1857
      %2114 = vst [vmem:[%s298 + $0xc8] sm:$0xf] %v1858
      %2115 = vst [vmem:[%s298 + $0xcc] sm:$0xf] %v1859
      %2116 = vst [vmem:[%s298 + $0xd0] sm:$0xf] %v1860
      %2117 = vst [vmem:[%s298 + $0xd4] sm:$0xf] %v1861
      %2118 = vst [vmem:[%s298 + $0xd8] sm:$0xf] %v1862
      %2119 = vst [vmem:[%s298 + $0xdc] sm:$0xf] %v1863
      %2120 = vst [vmem:[%s298 + $0xe0] sm:$0xf] %v1864
      %2121 = vst [vmem:[%s298 + $0xe4] sm:$0xf] %v1865
      %2122 = vst [vmem:[%s298 + $0xe8] sm:$0xf] %v1866
      %2123 = vst [vmem:[%s298 + $0xec] sm:$0xf] %v1867
      %2124 = vst [vmem:[%s298 + $0xf0] sm:$0xf] %v1868
      %2125 = vst [vmem:[%s298 + $0xf4] sm:$0xf] %v1869
      %2126 = vst [vmem:[%s298 + $0xf8] sm:$0xf] %v1870
      %2127 = vst [vmem:[%s298 + $0xfc] sm:$0xf] %v1871
      %2128 = vst [vmem:[%s298 + $0x100] sm:$0xf] %v1872
      %2129 = vst [vmem:[%s298 + $0x104] sm:$0xf] %v1873
      %2130 = vst [vmem:[%s298 + $0x108] sm:$0xf] %v1874
      %2131 = vst [vmem:[%s298 + $0x10c] sm:$0xf] %v1875
      %2132 = vst [vmem:[%s298 + $0x110] sm:$0xf] %v1876
      %2133 = vst [vmem:[%s298 + $0x114] sm:$0xf] %v1877
      %2134 = vst [vmem:[%s298 + $0x118] sm:$0xf] %v1878
      %2135 = vst [vmem:[%s298 + $0x11c] sm:$0xf] %v1879
      %2136 = vst [vmem:[%s298 + $0x120] sm:$0xf] %v1880
      %2137 = vst [vmem:[%s298 + $0x124] sm:$0xf] %v1881
      %2138 = vst [vmem:[%s298 + $0x128] sm:$0xf] %v1882
      %2139 = vst [vmem:[%s298 + $0x12c] sm:$0xf] %v1883
      %2140 = vst [vmem:[%s298 + $0x130] sm:$0xf] %v1884
      %2141 = vst [vmem:[%s298 + $0x134] sm:$0xf] %v1885
      %2142 = vst [vmem:[%s298 + $0x138] sm:$0xf] %v1886
      %2143 = vst [vmem:[%s298 + $0x13c] sm:$0xf] %v1887
      %2144 = vst [vmem:[%s298 + $0x140] sm:$0xf] %v1888
      %2145 = vst [vmem:[%s298 + $0x144] sm:$0xf] %v1889
      %2146 = vst [vmem:[%s298 + $0x148] sm:$0xf] %v1890
      %2147 = vst [vmem:[%s298 + $0x14c] sm:$0xf] %v1891
      %2148 = vst [vmem:[%s298 + $0x150] sm:$0xf] %v1892
      %2149 = vst [vmem:[%s298 + $0x154] sm:$0xf] %v1893
      %2150 = vst [vmem:[%s298 + $0x158] sm:$0xf] %v1894
      %2151 = vst [vmem:[%s298 + $0x15c] sm:$0xf] %v1895
      %2152 = vst [vmem:[%s298 + $0x160] sm:$0xf] %v1896
      %2153 = vst [vmem:[%s298 + $0x164] sm:$0xf] %v1897
      %2154 = vst [vmem:[%s298 + $0x168] sm:$0xf] %v1898
      %2155 = vst [vmem:[%s298 + $0x16c] sm:$0xf] %v1899
      %2156 = vst [vmem:[%s298 + $0x170] sm:$0xf] %v1900
      %2157 = vst [vmem:[%s298 + $0x174] sm:$0xf] %v1901
      %2158 = vst [vmem:[%s298 + $0x178] sm:$0xf] %v1902
      %2159 = vst [vmem:[%s298 + $0x17c] sm:$0xf] %v1903
      %2160 = vst [vmem:[%s298 + $0x180] sm:$0xf] %v1904
      %2161 = vst [vmem:[%s298 + $0x184] sm:$0xf] %v1905
      %2162 = vst [vmem:[%s298 + $0x188] sm:$0xf] %v1906
      %2163 = vst [vmem:[%s298 + $0x18c] sm:$0xf] %v1907
      %2164 = vst [vmem:[%s298 + $0x190] sm:$0xf] %v1908
      %2165 = vst [vmem:[%s298 + $0x194] sm:$0xf] %v1909
      %2166 = vst [vmem:[%s298 + $0x198] sm:$0xf] %v1910
      %2167 = vst [vmem:[%s298 + $0x19c] sm:$0xf] %v1911
      %2168 = vst [vmem:[%s298 + $0x1a0] sm:$0xf] %v1912
      %2169 = vst [vmem:[%s298 + $0x1a4] sm:$0xf] %v1913
      %2170 = vst [vmem:[%s298 + $0x1a8] sm:$0xf] %v1914
      %2171 = vst [vmem:[%s298 + $0x1ac] sm:$0xf] %v1915
      %2172 = vst [vmem:[%s298 + $0x1b0] sm:$0xf] %v1916
      %2173 = vst [vmem:[%s298 + $0x1b4] sm:$0xf] %v1917
      %2174 = vst [vmem:[%s298 + $0x1b8] sm:$0xf] %v1918
      %2175 = vst [vmem:[%s298 + $0x1bc] sm:$0xf] %v1919
      %2176 = vst [vmem:[%s298 + $0x1c0] sm:$0xf] %v1920
      %2177 = vst [vmem:[%s298 + $0x1c4] sm:$0xf] %v1921
      %2178 = vst [vmem:[%s298 + $0x1c8] sm:$0xf] %v1922
      %2179 = vst [vmem:[%s298 + $0x1cc] sm:$0xf] %v1923
      %2180 = vst [vmem:[%s298 + $0x1d0] sm:$0xf] %v1924
      %2181 = vst [vmem:[%s298 + $0x1d4] sm:$0xf] %v1925
      %2182 = vst [vmem:[%s298 + $0x1d8] sm:$0xf] %v1926
      %2183 = vst [vmem:[%s298 + $0x1dc] sm:$0xf] %v1927
      %2184 = vst [vmem:[%s298 + $0x1e0] sm:$0xf] %v1928
      %2185 = vst [vmem:[%s298 + $0x1e4] sm:$0xf] %v1929
      %2186 = vst [vmem:[%s298 + $0x1e8] sm:$0xf] %v1930
      %2187 = vst [vmem:[%s298 + $0x1ec] sm:$0xf] %v1931
      %2188 = vst [vmem:[%s298 + $0x1f0] sm:$0xf] %v1932
      %2189 = vst [vmem:[%s298 + $0x1f4] sm:$0xf] %v1933
      %2190 = vst [vmem:[%s298 + $0x1f8] sm:$0xf] %v1934
      %2191 = vst [vmem:[%s298 + $0x1fc] sm:$0xf] %v1935
      %v2192 = vadd.f32 %v1042, %v1045
      %v2193 = vadd.f32 %v2192, %v1050
      %v2194 = vadd.f32 %v2193, %v1053
      %v2195 = vadd.f32 %v2194, %v1058
      %v2196 = vadd.f32 %v2195, %v1061
      %v2197 = vadd.f32 %v2196, %v1066
      %v2198 = vadd.f32 %v2197, %v1069
      %v2199 = vadd.f32 %v2198, %v1074
      %v2200 = vadd.f32 %v2199, %v1077
      %v2201 = vadd.f32 %v2200, %v1082
      %v2202 = vadd.f32 %v2201, %v1085
      %v2203 = vadd.f32 %v2202, %v1090
      %v2204 = vadd.f32 %v2203, %v1093
      %v2205 = vadd.f32 %v2204, %v1098
      %v2206 = vadd.f32 %v2205, %v1101
      %v2207 = vadd.f32 %v2206, %v1106
      %v2208 = vadd.f32 %v2207, %v1109
      %v2209 = vadd.f32 %v2208, %v1114
      %v2210 = vadd.f32 %v2209, %v1117
      %v2211 = vadd.f32 %v2210, %v1122
      %v2212 = vadd.f32 %v2211, %v1125
      %v2213 = vadd.f32 %v2212, %v1130
      %v2214 = vadd.f32 %v2213, %v1133
      %v2215 = vadd.f32 %v2214, %v1138
      %v2216 = vadd.f32 %v2215, %v1141
      %v2217 = vadd.f32 %v2216, %v1146
      %v2218 = vadd.f32 %v2217, %v1149
      %v2219 = vadd.f32 %v2218, %v1154
      %v2220 = vadd.f32 %v2219, %v1157
      %v2221 = vadd.f32 %v2220, %v1162
      %v2222 = vadd.f32 %v2221, %v1165
      %v2223 = vadd.f32 %v2222, %v1170
      %v2224 = vadd.f32 %v2223, %v1173
      %v2225 = vadd.f32 %v2224, %v1178
      %v2226 = vadd.f32 %v2225, %v1181
      %v2227 = vadd.f32 %v2226, %v1186
      %v2228 = vadd.f32 %v2227, %v1189
      %v2229 = vadd.f32 %v2228, %v1194
      %v2230 = vadd.f32 %v2229, %v1197
      %v2231 = vadd.f32 %v2230, %v1202
      %v2232 = vadd.f32 %v2231, %v1205
      %v2233 = vadd.f32 %v2232, %v1210
      %v2234 = vadd.f32 %v2233, %v1213
      %v2235 = vadd.f32 %v2234, %v1218
      %v2236 = vadd.f32 %v2235, %v1221
      %v2237 = vadd.f32 %v2236, %v1226
      %v2238 = vadd.f32 %v2237, %v1229
      %v2239 = vadd.f32 %v2238, %v1234
      %v2240 = vadd.f32 %v2239, %v1237
      %v2241 = vadd.f32 %v2240, %v1242
      %v2242 = vadd.f32 %v2241, %v1245
      %v2243 = vadd.f32 %v2242, %v1250
      %v2244 = vadd.f32 %v2243, %v1253
      %v2245 = vadd.f32 %v2244, %v1258
      %v2246 = vadd.f32 %v2245, %v1261
      %v2247 = vadd.f32 %v2246, %v1266
      %v2248 = vadd.f32 %v2247, %v1269
      %v2249 = vadd.f32 %v2248, %v1274
      %v2250 = vadd.f32 %v2249, %v1277
      %v2251 = vadd.f32 %v2250, %v1282
      %v2252 = vadd.f32 %v2251, %v1285
      %v2253 = vadd.f32 %v2252, %v1290
      %v2254 = vadd.f32 %v2253, %v1293
      %v2255 = vadd.f32 %v2254, %v1298
      %v2256 = vadd.f32 %v2255, %v1301
      %v2257 = vadd.f32 %v2256, %v1306
      %v2258 = vadd.f32 %v2257, %v1309
      %v2259 = vadd.f32 %v2258, %v1314
      %v2260 = vadd.f32 %v2259, %v1317
      %v2261 = vadd.f32 %v2260, %v1322
      %v2262 = vadd.f32 %v2261, %v1325
      %v2263 = vadd.f32 %v2262, %v1330
      %v2264 = vadd.f32 %v2263, %v1333
      %v2265 = vadd.f32 %v2264, %v1338
      %v2266 = vadd.f32 %v2265, %v1341
      %v2267 = vadd.f32 %v2266, %v1346
      %v2268 = vadd.f32 %v2267, %v1349
      %v2269 = vadd.f32 %v2268, %v1354
      %v2270 = vadd.f32 %v2269, %v1357
      %v2271 = vadd.f32 %v2270, %v1362
      %v2272 = vadd.f32 %v2271, %v1365
      %v2273 = vadd.f32 %v2272, %v1370
      %v2274 = vadd.f32 %v2273, %v1373
      %v2275 = vadd.f32 %v2274, %v1378
      %v2276 = vadd.f32 %v2275, %v1381
      %v2277 = vadd.f32 %v2276, %v1386
      %v2278 = vadd.f32 %v2277, %v1389
      %v2279 = vadd.f32 %v2278, %v1394
      %v2280 = vadd.f32 %v2279, %v1397
      %v2281 = vadd.f32 %v2280, %v1402
      %v2282 = vadd.f32 %v2281, %v1405
      %v2283 = vadd.f32 %v2282, %v1410
      %v2284 = vadd.f32 %v2283, %v1413
      %v2285 = vadd.f32 %v2284, %v1418
      %v2286 = vadd.f32 %v2285, %v1421
      %v2287 = vadd.f32 %v2286, %v1426
      %v2288 = vadd.f32 %v2287, %v1429
      %v2289 = vadd.f32 %v2288, %v1434
      %v2290 = vadd.f32 %v2289, %v1437
      %v2291 = vadd.f32 %v2290, %v1442
      %v2292 = vadd.f32 %v2291, %v1445
      %v2293 = vadd.f32 %v2292, %v1450
      %v2294 = vadd.f32 %v2293, %v1453
      %v2295 = vadd.f32 %v2294, %v1458
      %v2296 = vadd.f32 %v2295, %v1461
      %v2297 = vadd.f32 %v2296, %v1466
      %v2298 = vadd.f32 %v2297, %v1469
      %v2299 = vadd.f32 %v2298, %v1474
      %v2300 = vadd.f32 %v2299, %v1477
      %v2301 = vadd.f32 %v2300, %v1482
      %v2302 = vadd.f32 %v2301, %v1485
      %v2303 = vadd.f32 %v2302, %v1490
      %v2304 = vadd.f32 %v2303, %v1493
      %v2305 = vadd.f32 %v2304, %v1498
      %v2306 = vadd.f32 %v2305, %v1501
      %v2307 = vadd.f32 %v2306, %v1506
      %v2308 = vadd.f32 %v2307, %v1509
      %v2309 = vadd.f32 %v2308, %v1514
      %v2310 = vadd.f32 %v2309, %v1517
      %v2311 = vadd.f32 %v2310, %v1522
      %v2312 = vadd.f32 %v2311, %v1525
      %v2313 = vadd.f32 %v2312, %v1530
      %v2314 = vadd.f32 %v2313, %v1533
      %v2315 = vadd.f32 %v2314, %v1538
      %v2316 = vadd.f32 %v2315, %v1541
      %v2317 = vadd.f32 %v2316, %v1546
      %v2318 = vadd.f32 %v2317, %v1549
      %v2319 = vrot.slane %v2318, 4
      %v2320 = vadd.f32 %v2318, %v2319
      %v2321 = vrot.slane %v2320, 2
      %v2322 = vadd.f32 %v2320, %v2321
      %v2323 = vrot.slane %v2322, 1
      %v2324 = vadd.f32 %v2322, %v2323
      %2325 = vst [vmem:[%s305] sm:$0x1] %v2324
      %v2326 = vmul.f32 %v1042, %v1042
      %v2327 = vmul.f32 %v1045, %v1045
      %v2328 = vmul.f32 %v1050, %v1050
      %v2329 = vmul.f32 %v1053, %v1053
      %v2330 = vmul.f32 %v1058, %v1058
      %v2331 = vmul.f32 %v1061, %v1061
      %v2332 = vmul.f32 %v1066, %v1066
      %v2333 = vmul.f32 %v1069, %v1069
      %v2334 = vmul.f32 %v1074, %v1074
      %v2335 = vmul.f32 %v1077, %v1077
      %v2336 = vmul.f32 %v1082, %v1082
      %v2337 = vmul.f32 %v1085, %v1085
      %v2338 = vmul.f32 %v1090, %v1090
      %v2339 = vmul.f32 %v1093, %v1093
      %v2340 = vmul.f32 %v1098, %v1098
      %v2341 = vmul.f32 %v1101, %v1101
      %v2342 = vmul.f32 %v1106, %v1106
      %v2343 = vmul.f32 %v1109, %v1109
      %v2344 = vmul.f32 %v1114, %v1114
      %v2345 = vmul.f32 %v1117, %v1117
      %v2346 = vmul.f32 %v1122, %v1122
      %v2347 = vmul.f32 %v1125, %v1125
      %v2348 = vmul.f32 %v1130, %v1130
      %v2349 = vmul.f32 %v1133, %v1133
      %v2350 = vmul.f32 %v1138, %v1138
      %v2351 = vmul.f32 %v1141, %v1141
      %v2352 = vmul.f32 %v1146, %v1146
      %v2353 = vmul.f32 %v1149, %v1149
      %v2354 = vmul.f32 %v1154, %v1154
      %v2355 = vmul.f32 %v1157, %v1157
      %v2356 = vmul.f32 %v1162, %v1162
      %v2357 = vmul.f32 %v1165, %v1165
      %v2358 = vmul.f32 %v1170, %v1170
      %v2359 = vmul.f32 %v1173, %v1173
      %v2360 = vmul.f32 %v1178, %v1178
      %v2361 = vmul.f32 %v1181, %v1181
      %v2362 = vmul.f32 %v1186, %v1186
      %v2363 = vmul.f32 %v1189, %v1189
      %v2364 = vmul.f32 %v1194, %v1194
      %v2365 = vmul.f32 %v1197, %v1197
      %v2366 = vmul.f32 %v1202, %v1202
      %v2367 = vmul.f32 %v1205, %v1205
      %v2368 = vmul.f32 %v1210, %v1210
      %v2369 = vmul.f32 %v1213, %v1213
      %v2370 = vmul.f32 %v1218, %v1218
      %v2371 = vmul.f32 %v1221, %v1221
      %v2372 = vmul.f32 %v1226, %v1226
      %v2373 = vmul.f32 %v1229, %v1229
      %v2374 = vmul.f32 %v1234, %v1234
      %v2375 = vmul.f32 %v1237, %v1237
      %v2376 = vmul.f32 %v1242, %v1242
      %v2377 = vmul.f32 %v1245, %v1245
      %v2378 = vmul.f32 %v1250, %v1250
      %v2379 = vmul.f32 %v1253, %v1253
      %v2380 = vmul.f32 %v1258, %v1258
      %v2381 = vmul.f32 %v1261, %v1261
      %v2382 = vmul.f32 %v1266, %v1266
      %v2383 = vmul.f32 %v1269, %v1269
      %v2384 = vmul.f32 %v1274, %v1274
      %v2385 = vmul.f32 %v1277, %v1277
      %v2386 = vmul.f32 %v1282, %v1282
      %v2387 = vmul.f32 %v1285, %v1285
      %v2388 = vmul.f32 %v1290, %v1290
      %v2389 = vmul.f32 %v1293, %v1293
      %v2390 = vmul.f32 %v1298, %v1298
      %v2391 = vmul.f32 %v1301, %v1301
      %v2392 = vmul.f32 %v1306, %v1306
      %v2393 = vmul.f32 %v1309, %v1309
      %v2394 = vmul.f32 %v1314, %v1314
      %v2395 = vmul.f32 %v1317, %v1317
      %v2396 = vmul.f32 %v1322, %v1322
      %v2397 = vmul.f32 %v1325, %v1325
      %v2398 = vmul.f32 %v1330, %v1330
      %v2399 = vmul.f32 %v1333, %v1333
      %v2400 = vmul.f32 %v1338, %v1338
      %v2401 = vmul.f32 %v1341, %v1341
      %v2402 = vmul.f32 %v1346, %v1346
      %v2403 = vmul.f32 %v1349, %v1349
      %v2404 = vmul.f32 %v1354, %v1354
      %v2405 = vmul.f32 %v1357, %v1357
      %v2406 = vmul.f32 %v1362, %v1362
      %v2407 = vmul.f32 %v1365, %v1365
      %v2408 = vmul.f32 %v1370, %v1370
      %v2409 = vmul.f32 %v1373, %v1373
      %v2410 = vmul.f32 %v1378, %v1378
      %v2411 = vmul.f32 %v1381, %v1381
      %v2412 = vmul.f32 %v1386, %v1386
      %v2413 = vmul.f32 %v1389, %v1389
      %v2414 = vmul.f32 %v1394, %v1394
      %v2415 = vmul.f32 %v1397, %v1397
      %v2416 = vmul.f32 %v1402, %v1402
      %v2417 = vmul.f32 %v1405, %v1405
      %v2418 = vmul.f32 %v1410, %v1410
      %v2419 = vmul.f32 %v1413, %v1413
      %v2420 = vmul.f32 %v1418, %v1418
      %v2421 = vmul.f32 %v1421, %v1421
      %v2422 = vmul.f32 %v1426, %v1426
      %v2423 = vmul.f32 %v1429, %v1429
      %v2424 = vmul.f32 %v1434, %v1434
      %v2425 = vmul.f32 %v1437, %v1437
      %v2426 = vmul.f32 %v1442, %v1442
      %v2427 = vmul.f32 %v1445, %v1445
      %v2428 = vmul.f32 %v1450, %v1450
      %v2429 = vmul.f32 %v1453, %v1453
      %v2430 = vmul.f32 %v1458, %v1458
      %v2431 = vmul.f32 %v1461, %v1461
      %v2432 = vmul.f32 %v1466, %v1466
      %v2433 = vmul.f32 %v1469, %v1469
      %v2434 = vmul.f32 %v1474, %v1474
      %v2435 = vmul.f32 %v1477, %v1477
      %v2436 = vmul.f32 %v1482, %v1482
      %v2437 = vmul.f32 %v1485, %v1485
      %v2438 = vmul.f32 %v1490, %v1490
      %v2439 = vmul.f32 %v1493, %v1493
      %v2440 = vmul.f32 %v1498, %v1498
      %v2441 = vmul.f32 %v1501, %v1501
      %v2442 = vmul.f32 %v1506, %v1506
      %v2443 = vmul.f32 %v1509, %v1509
      %v2444 = vmul.f32 %v1514, %v1514
      %v2445 = vmul.f32 %v1517, %v1517
      %v2446 = vmul.f32 %v1522, %v1522
      %v2447 = vmul.f32 %v1525, %v1525
      %v2448 = vmul.f32 %v1530, %v1530
      %v2449 = vmul.f32 %v1533, %v1533
      %v2450 = vmul.f32 %v1538, %v1538
      %v2451 = vmul.f32 %v1541, %v1541
      %v2452 = vmul.f32 %v1546, %v1546
      %v2453 = vmul.f32 %v1549, %v1549
      %v2454 = vadd.f32 %v2326, %v2327
      %v2455 = vadd.f32 %v2454, %v2328
      %v2456 = vadd.f32 %v2455, %v2329
      %v2457 = vadd.f32 %v2456, %v2330
      %v2458 = vadd.f32 %v2457, %v2331
      %v2459 = vadd.f32 %v2458, %v2332
      %v2460 = vadd.f32 %v2459, %v2333
      %v2461 = vadd.f32 %v2460, %v2334
      %v2462 = vadd.f32 %v2461, %v2335
      %v2463 = vadd.f32 %v2462, %v2336
      %v2464 = vadd.f32 %v2463, %v2337
      %v2465 = vadd.f32 %v2464, %v2338
      %v2466 = vadd.f32 %v2465, %v2339
      %v2467 = vadd.f32 %v2466, %v2340
      %v2468 = vadd.f32 %v2467, %v2341
      %v2469 = vadd.f32 %v2468, %v2342
      %v2470 = vadd.f32 %v2469, %v2343
      %v2471 = vadd.f32 %v2470, %v2344
      %v2472 = vadd.f32 %v2471, %v2345
      %v2473 = vadd.f32 %v2472, %v2346
      %v2474 = vadd.f32 %v2473, %v2347
      %v2475 = vadd.f32 %v2474, %v2348
      %v2476 = vadd.f32 %v2475, %v2349
      %v2477 = vadd.f32 %v2476, %v2350
      %v2478 = vadd.f32 %v2477, %v2351
      %v2479 = vadd.f32 %v2478, %v2352
      %v2480 = vadd.f32 %v2479, %v2353
      %v2481 = vadd.f32 %v2480, %v2354
      %v2482 = vadd.f32 %v2481, %v2355
      %v2483 = vadd.f32 %v2482, %v2356
      %v2484 = vadd.f32 %v2483, %v2357
      %v2485 = vadd.f32 %v2484, %v2358
      %v2486 = vadd.f32 %v2485, %v2359
      %v2487 = vadd.f32 %v2486, %v2360
      %v2488 = vadd.f32 %v2487, %v2361
      %v2489 = vadd.f32 %v2488, %v2362
      %v2490 = vadd.f32 %v2489, %v2363
      %v2491 = vadd.f32 %v2490, %v2364
      %v2492 = vadd.f32 %v2491, %v2365
      %v2493 = vadd.f32 %v2492, %v2366
      %v2494 = vadd.f32 %v2493, %v2367
      %v2495 = vadd.f32 %v2494, %v2368
      %v2496 = vadd.f32 %v2495, %v2369
      %v2497 = vadd.f32 %v2496, %v2370
      %v2498 = vadd.f32 %v2497, %v2371
      %v2499 = vadd.f32 %v2498, %v2372
      %v2500 = vadd.f32 %v2499, %v2373
      %v2501 = vadd.f32 %v2500, %v2374
      %v2502 = vadd.f32 %v2501, %v2375
      %v2503 = vadd.f32 %v2502, %v2376
      %v2504 = vadd.f32 %v2503, %v2377
      %v2505 = vadd.f32 %v2504, %v2378
      %v2506 = vadd.f32 %v2505, %v2379
      %v2507 = vadd.f32 %v2506, %v2380
      %v2508 = vadd.f32 %v2507, %v2381
      %v2509 = vadd.f32 %v2508, %v2382
      %v2510 = vadd.f32 %v2509, %v2383
      %v2511 = vadd.f32 %v2510, %v2384
      %v2512 = vadd.f32 %v2511, %v2385
      %v2513 = vadd.f32 %v2512, %v2386
      %v2514 = vadd.f32 %v2513, %v2387
      %v2515 = vadd.f32 %v2514, %v2388
      %v2516 = vadd.f32 %v2515, %v2389
      %v2517 = vadd.f32 %v2516, %v2390
      %v2518 = vadd.f32 %v2517, %v2391
      %v2519 = vadd.f32 %v2518, %v2392
      %v2520 = vadd.f32 %v2519, %v2393
      %v2521 = vadd.f32 %v2520, %v2394
      %v2522 = vadd.f32 %v2521, %v2395
      %v2523 = vadd.f32 %v2522, %v2396
      %v2524 = vadd.f32 %v2523, %v2397
      %v2525 = vadd.f32 %v2524, %v2398
      %v2526 = vadd.f32 %v2525, %v2399
      %v2527 = vadd.f32 %v2526, %v2400
      %v2528 = vadd.f32 %v2527, %v2401
      %v2529 = vadd.f32 %v2528, %v2402
      %v2530 = vadd.f32 %v2529, %v2403
      %v2531 = vadd.f32 %v2530, %v2404
      %v2532 = vadd.f32 %v2531, %v2405
      %v2533 = vadd.f32 %v2532, %v2406
      %v2534 = vadd.f32 %v2533, %v2407
      %v2535 = vadd.f32 %v2534, %v2408
      %v2536 = vadd.f32 %v2535, %v2409
      %v2537 = vadd.f32 %v2536, %v2410
      %v2538 = vadd.f32 %v2537, %v2411
      %v2539 = vadd.f32 %v2538, %v2412
      %v2540 = vadd.f32 %v2539, %v2413
      %v2541 = vadd.f32 %v2540, %v2414
      %v2542 = vadd.f32 %v2541, %v2415
      %v2543 = vadd.f32 %v2542, %v2416
      %v2544 = vadd.f32 %v2543, %v2417
      %v2545 = vadd.f32 %v2544, %v2418
      %v2546 = vadd.f32 %v2545, %v2419
      %v2547 = vadd.f32 %v2546, %v2420
      %v2548 = vadd.f32 %v2547, %v2421
      %v2549 = vadd.f32 %v2548, %v2422
      %v2550 = vadd.f32 %v2549, %v2423
      %v2551 = vadd.f32 %v2550, %v2424
      %v2552 = vadd.f32 %v2551, %v2425
      %v2553 = vadd.f32 %v2552, %v2426
      %v2554 = vadd.f32 %v2553, %v2427
      %v2555 = vadd.f32 %v2554, %v2428
      %v2556 = vadd.f32 %v2555, %v2429
      %v2557 = vadd.f32 %v2556, %v2430
      %v2558 = vadd.f32 %v2557, %v2431
      %v2559 = vadd.f32 %v2558, %v2432
      %v2560 = vadd.f32 %v2559, %v2433
      %v2561 = vadd.f32 %v2560, %v2434
      %v2562 = vadd.f32 %v2561, %v2435
      %v2563 = vadd.f32 %v2562, %v2436
      %v2564 = vadd.f32 %v2563, %v2437
      %v2565 = vadd.f32 %v2564, %v2438
      %v2566 = vadd.f32 %v2565, %v2439
      %v2567 = vadd.f32 %v2566, %v2440
      %v2568 = vadd.f32 %v2567, %v2441
      %v2569 = vadd.f32 %v2568, %v2442
      %v2570 = vadd.f32 %v2569, %v2443
      %v2571 = vadd.f32 %v2570, %v2444
      %v2572 = vadd.f32 %v2571, %v2445
      %v2573 = vadd.f32 %v2572, %v2446
      %v2574 = vadd.f32 %v2573, %v2447
      %v2575 = vadd.f32 %v2574, %v2448
      %v2576 = vadd.f32 %v2575, %v2449
      %v2577 = vadd.f32 %v2576, %v2450
      %v2578 = vadd.f32 %v2577, %v2451
      %v2579 = vadd.f32 %v2578, %v2452
      %v2580 = vadd.f32 %v2579, %v2453
      %v2581 = vrot.slane %v2580, 4
      %v2582 = vadd.f32 %v2580, %v2581
      %v2583 = vrot.slane %v2582, 2
      %v2584 = vadd.f32 %v2582, %v2583
      %v2585 = vrot.slane %v2584, 1
      %v2586 = vadd.f32 %v2584, %v2585
      %2587 = vst [vmem:[%s311] sm:$0x1] %v2586
      %s2588 = smul.u32 128, %s21
      %p2589 = scmp.lt.s32.totalorder %s2588, 255
      %s2590 = scalar_select %p2589, %s2588, 255
      %p2591 = scmp.lt.s32.totalorder %s22, 0
      %s2592 = scalar_select %p2591, %s22, 0
      %s2593 = sadd.s32 %s2592, %s2590
      %s2594 = smul.addr %s2593, 4
      %s2595 = scalar_lea.vmem %s3, %s2594
      %p2596 = scmp.lt.s32.totalorder %s21, 1
      %s2597 = scalar_select %p2596, %s21, 1
      %p2598 = scmp.lt.s32.totalorder %s22, 0
      %s2599 = scalar_select %p2598, %s22, 0
      %s2600 = sadd.s32 %s2599, %s2597
      %s2601 = scalar_lea.vmem %s4, %s2600
      %p2602 = scmp.lt.s32.totalorder %s21, 1
      %s2603 = scalar_select %p2602, %s21, 1
      %p2604 = scmp.lt.s32.totalorder %s22, 0
      %s2605 = scalar_select %p2604, %s22, 0
      %s2606 = sadd.s32 %s2605, %s2603
      %s2607 = scalar_lea.vmem %s5, %s2606
      // Predicated region
      $region33: #{encoder_forward.4} parent=31 // pred_check
        %p2608 = pneg %p127
      $region34: #{encoder_forward.4} parent=31 // pred_check_branch
        %2610 = sbr.rel (%p2608) target = $region36
      $region35: #{encoder_forward.4} parent=31 // pred_region
        %s2611 = smul.u32 128, %s21
      $region36: #{encoder_forward.4} parent=31 // pred_fallthru
        _
      // Predicated region
      $region37: #{encoder_forward.4} parent=31 // pred_check
        %p2612 = pneg %p155
      $region38: #{encoder_forward.4} parent=31 // pred_check_branch
        %2614 = sbr.rel (%p2612) target = $region40
      $region39: #{encoder_forward.4} parent=31 // pred_region
        _
      $region40: #{encoder_forward.4} parent=31 // pred_fallthru
        _
      // Predicated region
      $region41: #{encoder_forward.4} parent=31 // pred_check
        %p2615 = pneg %p183
      $region42: #{encoder_forward.4} parent=31 // pred_check_branch
        %2617 = sbr.rel (%p2615) target = $region44
      $region43: #{encoder_forward.4} parent=31 // pred_region
        _
      $region44: #{encoder_forward.4} parent=31 // pred_fallthru
        _
    $region32: #{encoder_forward.4} parent=5 // pred_fallthru
      _
    %p2618 = scmp.le.s32.totalorder 2, %s12
    // Predicated region
    $region45: #{encoder_forward.4} parent=5 // pred_check
      %p2619 = pneg %p2618
    $region46: #{encoder_forward.4} parent=5 // pred_check_branch
      %2621 = sbr.rel (%p2619) target = $region48
    $region47: #{encoder_forward.4} parent=5 // pred_region
      %s2622 = ssub.s32 %s12, 2
      // Predicated region
      $region49: #{encoder_forward.4} parent=47 // pred_check
        %p2623 = pneg %p133
      $region50: #{encoder_forward.4} parent=47 // pred_check_branch
        %2625 = sbr.rel (%p2623) target = $region52
      $region51: #{encoder_forward.4} parent=47 // pred_region
        %s2626 = smul.u32 128, %s23
        %p2627 = scmp.lt.s32.totalorder %s2626, 255
        %s2628 = scalar_select %p2627, %s2626, 255
        %p2629 = scmp.lt.s32.totalorder %s24, 0
        %s2630 = scalar_select %p2629, %s24, 0
        %s2631 = sadd.s32 %s2630, %s2628
        %s2632 = smul.addr %s2631, 4
        %s2633 = scalar_lea.vmem %s3, %s2632
      $region52: #{encoder_forward.4} parent=47 // pred_fallthru
        _
      // Predicated region
      $region53: #{encoder_forward.4} parent=47 // pred_check
        %p2634 = pneg %p161
      $region54: #{encoder_forward.4} parent=47 // pred_check_branch
        %2636 = sbr.rel (%p2634) target = $region56
      $region55: #{encoder_forward.4} parent=47 // pred_region
        %p2637 = scmp.lt.s32.totalorder %s23, 1
        %s2638 = scalar_select %p2637, %s23, 1
        %p2639 = scmp.lt.s32.totalorder %s24, 0
        %s2640 = scalar_select %p2639, %s24, 0
        %s2641 = sadd.s32 %s2640, %s2638
        %s2642 = scalar_lea.vmem %s4, %s2641
      $region56: #{encoder_forward.4} parent=47 // pred_fallthru
        _
      // Predicated region
      $region57: #{encoder_forward.4} parent=47 // pred_check
        %p2643 = pneg %p189
      $region58: #{encoder_forward.4} parent=47 // pred_check_branch
        %2645 = sbr.rel (%p2643) target = $region60
      $region59: #{encoder_forward.4} parent=47 // pred_region
        %p2646 = scmp.lt.s32.totalorder %s23, 1
        %s2647 = scalar_select %p2646, %s23, 1
        %p2648 = scmp.lt.s32.totalorder %s24, 0
        %s2649 = scalar_select %p2648, %s24, 0
        %s2650 = sadd.s32 %s2649, %s2647
        %s2651 = scalar_lea.vmem %s5, %s2650
      $region60: #{encoder_forward.4} parent=47 // pred_fallthru
        _
    $region48: #{encoder_forward.4} parent=5 // pred_fallthru
      _
  $region6: #{encoder_forward.4} parent=0 // loop_footer
    %s16 = sadd.s32 1, %s12
  $region7: #{encoder_forward.4} parent=0 // loop_footer_branch
    %11 = sbr.rel target = $region3
  $region8: #{encoder_forward.4} parent=0 // loop_exit
    _

// kernel: encoder_forward.5
$region0: #{encoder_forward.5}
  #allocation0 [shape = 'u32[]', space=smem, size = 0x4, offset = 0x4, fixed_abs, tag = 'smem constant byte address 0x4 - core index']
  #allocation1 [shape = 'u32[144,128]{1,0:T(1,128)}', space=vmem, size = 0x12000, scoped, tag = 'internal scratch']
  %s0 = inlined_call_operand.vmem [shape: bf16[512,200], index: 0, kind: input, shape index: {}]
  %s1 = inlined_call_operand.vmem [shape: bf16[200,128], index: 1, kind: input, shape index: {}]
  %s2 = inlined_call_operand.vmem [shape: f32[1,128], index: 2, kind: input, shape index: {}]
  %s3 = inlined_call_operand.vmem [shape: bf16[512,128], index: 3, kind: output, shape index: {0}]
  %s4 = inlined_call_operand.vmem [shape: f32[2,1,128], index: 4, kind: output, shape index: {1}]
  %s5 = inlined_call_operand.vmem [shape: f32[2,1,128], index: 5, kind: output, shape index: {2}]
  %6 = xla_tuple %s3, %s4, %s5
  %s7 = sld [smem:[#allocation0]]
  $region61: #{encoder_forward.5} parent=0
    _
  %s9 = ssub.s32 1, %s7
  %s10 = scalar_select 0, %s9, %s7
  loop: start=0, step=1, limit=4
  $region2: #{encoder_forward.5} parent=0 // loop_pre_header
    _
  $region3: #{encoder_forward.5} parent=0 // loop_header
    %s12 = sphi 0, %s16
    %p13 = scmp.ge.s32.totalorder %s12, 4
    %s19 = sphi 0, %s31
    %s20 = sphi 0, %s27
    %s21 = sphi 0, %s19
    %s22 = sphi 0, %s20
    %s23 = sphi 0, %s21
    %s24 = sphi 0, %s22
    %s34 = sphi 0, %s36
    %s37 = sphi 0, %s34
    %s38 = sphi 0, %s37
    %s54 = sphi 0, %s38
    %s60 = sphi 0, %s62
    %s63 = sphi 0, %s60
    %s64 = sphi 0, %s63
    %s80 = sphi 0, %s64
    %s86 = sphi 0, %s88
    %s89 = sphi 0, %s86
    %s90 = sphi 0, %s89
    %s106 = sphi 0, %s90
    %s114 = sphi 0, %s116
    %s117 = sphi 0, %s114
    %s118 = sphi 0, %s117
    %s134 = sphi 0, %s118
    %s142 = sphi 0, %s144
    %s145 = sphi 0, %s142
    %s146 = sphi 0, %s145
    %s162 = sphi 0, %s146
    %s170 = sphi 0, %s172
    %s173 = sphi 0, %s170
    %s174 = sphi 0, %s173
    %s190 = sphi 0, %s174
  $region4: #{encoder_forward.5} parent=0 // loop_header_branch
    %15 = sbr.rel (%p13) target = $region8
  $region5: #{encoder_forward.5} parent=0 // loop_body
    %s17 = ssub.s32 %s12, 1
    %s18 = ssub.s32 %s12, 2
    %s25 = sadd.s32 1, %s20
    %p26 = scmp.ge.s32.totalorder %s25, 1
    %s27 = scalar_select %p26, 0, %s25
    %s28 = sadd.s32 1, %s19
    %s29 = scalar_select %p26, %s28, %s19
    %p30 = scmp.ge.s32.totalorder %s29, 2
    %s31 = scalar_select %p30, 0, %s29
    %s32 = ssub.s32 %s19, %s31
    %p33 = scmp.eq.s32.totalorder %s32, 0
    %s35 = sadd.s32 %s34, 1
    %s36 = scalar_select %p33, %s34, %s35
    %p39 = pneg %p33
    %p40 = scmp.eq.s32.totalorder %s12, 1
    %p41 = por %p39, %p40
    %p42 = scmp.ne.s32.totalorder %s34, %s37
    %p43 = scmp.eq.s32.totalorder %s12, 0
    %p44 = por %p42, %p43
    %p45 = scmp.ne.s32.totalorder %s34, %s37
    %p46 = scmp.eq.s32.totalorder %s17, 1
    %p47 = por %p45, %p46
    %p48 = scmp.ne.s32.totalorder %s37, %s38
    %p49 = scmp.eq.s32.totalorder %s17, 0
    %p50 = por %p48, %p49
    %p51 = scmp.ne.s32.totalorder %s37, %s38
    %p52 = scmp.eq.s32.totalorder %s18, 1
    %p53 = por %p51, %p52
    %p55 = scmp.ne.s32.totalorder %s38, %s54
    %p56 = scmp.eq.s32.totalorder %s18, 0
    %p57 = por %p55, %p56
    %s58 = ssub.s32 %s20, %s27
    %p59 = scmp.eq.s32.totalorder %s58, 0
    %s61 = sadd.s32 %s60, 1
    %s62 = scalar_select %p59, %s60, %s61
    %p65 = pneg %p59
    %p66 = scmp.eq.s32.totalorder %s12, 1
    %p67 = por %p65, %p66
    %p68 = scmp.ne.s32.totalorder %s60, %s63
    %p69 = scmp.eq.s32.totalorder %s12, 0
    %p70 = por %p68, %p69
    %p71 = scmp.ne.s32.totalorder %s60, %s63
    %p72 = scmp.eq.s32.totalorder %s17, 1
    %p73 = por %p71, %p72
    %p74 = scmp.ne.s32.totalorder %s63, %s64
    %p75 = scmp.eq.s32.totalorder %s17, 0
    %p76 = por %p74, %p75
    %p77 = scmp.ne.s32.totalorder %s63, %s64
    %p78 = scmp.eq.s32.totalorder %s18, 1
    %p79 = por %p77, %p78
    %p81 = scmp.ne.s32.totalorder %s64, %s80
    %p82 = scmp.eq.s32.totalorder %s18, 0
    %p83 = por %p81, %p82
    %s84 = ssub.s32 %s20, %s27
    %p85 = scmp.eq.s32.totalorder %s84, 0
    %s87 = sadd.s32 %s86, 1
    %s88 = scalar_select %p85, %s86, %s87
    %p91 = pneg %p85
    %p92 = scmp.eq.s32.totalorder %s12, 1
    %p93 = por %p91, %p92
    %p94 = scmp.ne.s32.totalorder %s86, %s89
    %p95 = scmp.eq.s32.totalorder %s12, 0
    %p96 = por %p94, %p95
    %p97 = scmp.ne.s32.totalorder %s86, %s89
    %p98 = scmp.eq.s32.totalorder %s17, 1
    %p99 = por %p97, %p98
    %p100 = scmp.ne.s32.totalorder %s89, %s90
    %p101 = scmp.eq.s32.totalorder %s17, 0
    %p102 = por %p100, %p101
    %p103 = scmp.ne.s32.totalorder %s89, %s90
    %p104 = scmp.eq.s32.totalorder %s18, 1
    %p105 = por %p103, %p104
    %p107 = scmp.ne.s32.totalorder %s90, %s106
    %p108 = scmp.eq.s32.totalorder %s18, 0
    %p109 = por %p107, %p108
    %s110 = ssub.s32 %s19, %s31
    %s111 = ssub.s32 %s20, %s27
    %s112 = sor.u32 %s110, %s111
    %p113 = scmp.eq.s32.totalorder %s112, 0
    %s115 = sadd.s32 %s114, 1
    %s116 = scalar_select %p113, %s114, %s115
    %p119 = pneg %p113
    %p120 = scmp.eq.s32.totalorder %s12, 1
    %p121 = por %p119, %p120
    %p122 = scmp.ne.s32.totalorder %s114, %s117
    %p123 = scmp.eq.s32.totalorder %s12, 0
    %p124 = por %p122, %p123
    %p125 = scmp.ne.s32.totalorder %s114, %s117
    %p126 = scmp.eq.s32.totalorder %s17, 1
    %p127 = por %p125, %p126
    %p128 = scmp.ne.s32.totalorder %s117, %s118
    %p129 = scmp.eq.s32.totalorder %s17, 0
    %p130 = por %p128, %p129
    %p131 = scmp.ne.s32.totalorder %s117, %s118
    %p132 = scmp.eq.s32.totalorder %s18, 1
    %p133 = por %p131, %p132
    %p135 = scmp.ne.s32.totalorder %s118, %s134
    %p136 = scmp.eq.s32.totalorder %s18, 0
    %p137 = por %p135, %p136
    %s138 = ssub.s32 %s19, %s31
    %s139 = ssub.s32 %s20, %s27
    %s140 = sor.u32 %s138, %s139
    %p141 = scmp.eq.s32.totalorder %s140, 0
    %s143 = sadd.s32 %s142, 1
    %s144 = scalar_select %p141, %s142, %s143
    %p147 = pneg %p141
    %p148 = scmp.eq.s32.totalorder %s12, 1
    %p149 = por %p147, %p148
    %p150 = scmp.ne.s32.totalorder %s142, %s145
    %p151 = scmp.eq.s32.totalorder %s12, 0
    %p152 = por %p150, %p151
    %p153 = scmp.ne.s32.totalorder %s142, %s145
    %p154 = scmp.eq.s32.totalorder %s17, 1
    %p155 = por %p153, %p154
    %p156 = scmp.ne.s32.totalorder %s145, %s146
    %p157 = scmp.eq.s32.totalorder %s17, 0
    %p158 = por %p156, %p157
    %p159 = scmp.ne.s32.totalorder %s145, %s146
    %p160 = scmp.eq.s32.totalorder %s18, 1
    %p161 = por %p159, %p160
    %p163 = scmp.ne.s32.totalorder %s146, %s162
    %p164 = scmp.eq.s32.totalorder %s18, 0
    %p165 = por %p163, %p164
    %s166 = ssub.s32 %s19, %s31
    %s167 = ssub.s32 %s20, %s27
    %s168 = sor.u32 %s166, %s167
    %p169 = scmp.eq.s32.totalorder %s168, 0
    %s171 = sadd.s32 %s170, 1
    %s172 = scalar_select %p169, %s170, %s171
    %p175 = pneg %p169
    %p176 = scmp.eq.s32.totalorder %s12, 1
    %p177 = por %p175, %p176
    %p178 = scmp.ne.s32.totalorder %s170, %s173
    %p179 = scmp.eq.s32.totalorder %s12, 0
    %p180 = por %p178, %p179
    %p181 = scmp.ne.s32.totalorder %s170, %s173
    %p182 = scmp.eq.s32.totalorder %s17, 1
    %p183 = por %p181, %p182
    %p184 = scmp.ne.s32.totalorder %s173, %s174
    %p185 = scmp.eq.s32.totalorder %s17, 0
    %p186 = por %p184, %p185
    %p187 = scmp.ne.s32.totalorder %s173, %s174
    %p188 = scmp.eq.s32.totalorder %s18, 1
    %p189 = por %p187, %p188
    %p191 = scmp.ne.s32.totalorder %s174, %s190
    %p192 = scmp.eq.s32.totalorder %s18, 0
    %p193 = por %p191, %p192
    %p194 = scmp.le.s32.totalorder 1, %s12
    %p195 = scmp.lt.s32.totalorder %s12, 3
    %p196 = pnand %p194, %p195
    %p197 = pneg %p196
    // Predicated region
    $region9: #{encoder_forward.5} parent=5 // pred_check
      _
    $region10: #{encoder_forward.5} parent=5 // pred_check_branch
      %199 = sbr.rel (%p196) target = $region12
    $region11: #{encoder_forward.5} parent=5 // pred_region
      %s200 = ssub.s32 %s12, 1
      // Predicated region
      $region13: #{encoder_forward.5} parent=11 // pred_check
        %p201 = pneg %p76
      $region14: #{encoder_forward.5} parent=11 // pred_check_branch
        %203 = sbr.rel (%p201) target = $region16
      $region15: #{encoder_forward.5} parent=11 // pred_region
        %p204 = scmp.lt.s32.totalorder %s22, 0
        %s205 = scalar_select %p204, %s22, 0
        %s206 = smul.addr %s205, 4
        %s207 = scalar_lea.vmem %s1, %s206
      $region16: #{encoder_forward.5} parent=11 // pred_fallthru
        _
      // Predicated region
      $region17: #{encoder_forward.5} parent=11 // pred_check
        %p208 = pneg %p102
      $region18: #{encoder_forward.5} parent=11 // pred_check_branch
        %210 = sbr.rel (%p208) target = $region20
      $region19: #{encoder_forward.5} parent=11 // pred_region
        %p211 = scmp.lt.s32.totalorder %s22, 0
        %s212 = scalar_select %p211, %s22, 0
        %s213 = scalar_lea.vmem %s2, %s212
      $region20: #{encoder_forward.5} parent=11 // pred_fallthru
        _
    $region12: #{encoder_forward.5} parent=5 // pred_fallthru
      _
    %p214 = scmp.lt.s32.totalorder %s12, 2
    // Predicated region
    $region21: #{encoder_forward.5} parent=5 // pred_check
      %p215 = pneg %p214
    $region22: #{encoder_forward.5} parent=5 // pred_check_branch
      %217 = sbr.rel (%p215) target = $region24
    $region23: #{encoder_forward.5} parent=5 // pred_region
      // Predicated region
      $region25: #{encoder_forward.5} parent=23 // pred_check
        %p218 = pneg %p44
      $region26: #{encoder_forward.5} parent=23 // pred_check_branch
        %220 = sbr.rel (%p218) target = $region28
      $region27: #{encoder_forward.5} parent=23 // pred_region
        %s221 = smul.u32 32, %s19
        %p222 = scmp.lt.s32.totalorder %s221, 63
        %s223 = scalar_select %p222, %s221, 63
        %s224 = smul.addr %s223, 2
        %s225 = smul.addr %s224, 4
        %s226 = scalar_lea.vmem %s0, %s225
        %s227 = smul.u32 32, %s19
      $region28: #{encoder_forward.5} parent=23 // pred_fallthru
        _
    $region24: #{encoder_forward.5} parent=5 // pred_fallthru
      _
    %p228 = scmp.le.s32.totalorder 1, %s12
    %p229 = scmp.lt.s32.totalorder %s12, 3
    %p230 = pnand %p228, %p229
    %p231 = pneg %p230
    // Predicated region
    $region29: #{encoder_forward.5} parent=5 // pred_check
      _
    $region30: #{encoder_forward.5} parent=5 // pred_check_branch
      %233 = sbr.rel (%p230) target = $region32
    $region31: #{encoder_forward.5} parent=5 // pred_region
      %s234 = ssub.s32 %s12, 1
      %s235 = smul.u32 32, %s21
      %p236 = scmp.lt.s32.totalorder %s235, 63
      %s237 = scalar_select %p236, %s235, 63
      %s238 = smul.addr %s237, 2
      %s239 = smul.addr %s238, 4
      %s240 = scalar_lea.vmem %s0, %s239
      %p241 = pneg %p50
      %p242 = pneg %p47
      %p243 = scmp.lt.s32.totalorder %s22, 0
      %s244 = scalar_select %p243, %s22, 0
      %s245 = smul.addr %s244, 4
      %s246 = scalar_lea.vmem %s1, %s245
      %p247 = pneg %p76
      %p248 = pneg %p73
      %p249 = scmp.lt.s32.totalorder %s22, 0
      %s250 = scalar_select %p249, %s22, 0
      %s251 = scalar_lea.vmem %s2, %s250
      %p252 = pneg %p102
      %p253 = pneg %p99
      %p254 = pneg %p130
      %p255 = pneg %p127
      %s256 = smul.u32 32, %s21
      %p257 = scmp.lt.s32.totalorder %s256, 63
      %s258 = scalar_select %p257, %s256, 63
      %p259 = scmp.lt.s32.totalorder %s22, 0
      %s260 = scalar_select %p259, %s22, 0
      %s261 = sadd.s32 %s260, %s258
      %s262 = smul.addr %s261, 4
      %s263 = scalar_lea.vmem %s3, %s262
      %p264 = pneg %p158
      %p265 = pneg %p155
      %p266 = scmp.lt.s32.totalorder %s21, 1
      %s267 = scalar_select %p266, %s21, 1
      %p268 = scmp.lt.s32.totalorder %s22, 0
      %s269 = scalar_select %p268, %s22, 0
      %s270 = sadd.s32 %s269, %s267
      %s271 = scalar_lea.vmem %s4, %s270
      %p272 = pneg %p186
      %p273 = pneg %p183
      %p274 = scmp.lt.s32.totalorder %s21, 1
      %s275 = scalar_select %p274, %s21, 1
      %p276 = scmp.lt.s32.totalorder %s22, 0
      %s277 = scalar_select %p276, %s22, 0
      %s278 = sadd.s32 %s277, %s275
      %s279 = scalar_lea.vmem %s5, %s278
      %s280 = smul.u32 32, %s21
      %p281 = scmp.lt.s32.totalorder %s280, 63
      %s282 = scalar_select %p281, %s280, 63
      %s283 = smul.addr %s282, 2
      %s284 = smul.addr %s283, 4
      %s285 = scalar_lea.vmem %s0, %s284
      %s286 = smul.u32 32, %s21
      %p287 = scmp.lt.s32.totalorder %s22, 0
      %s288 = scalar_select %p287, %s22, 0
      %s289 = smul.addr %s288, 4
      %s290 = scalar_lea.vmem %s1, %s289
      %p291 = scmp.lt.s32.totalorder %s22, 0
      %s292 = scalar_select %p291, %s22, 0
      %s293 = scalar_lea.vmem %s2, %s292
      %s294 = smul.u32 32, %s21
      %p295 = scmp.lt.s32.totalorder %s294, 63
      %s296 = scalar_select %p295, %s294, 63
      %p297 = scmp.lt.s32.totalorder %s22, 0
      %s298 = scalar_select %p297, %s22, 0
      %s299 = sadd.s32 %s298, %s296
      %s300 = smul.addr %s299, 4
      %s301 = scalar_lea.vmem %s3, %s300
      %s302 = smul.u32 32, %s21
      %p303 = scmp.lt.s32.totalorder %s21, 1
      %s304 = scalar_select %p303, %s21, 1
      %p305 = scmp.lt.s32.totalorder %s22, 0
      %s306 = scalar_select %p305, %s22, 0
      %s307 = sadd.s32 %s306, %s304
      %s308 = scalar_lea.vmem %s4, %s307
      %p309 = scmp.lt.s32.totalorder %s21, 1
      %s310 = scalar_select %p309, %s21, 1
      %p311 = scmp.lt.s32.totalorder %s22, 0
      %s312 = scalar_select %p311, %s22, 0
      %s313 = sadd.s32 %s312, %s310
      %s314 = scalar_lea.vmem %s5, %s313
      %v316 = vld [vmem:[%s285] sm:$0xff]
      %v317 = vld [vmem:[%s285 + $0x8] sm:$0xff]
      %v318 = vld [vmem:[%s285 + $0x10] sm:$0xff]
      %v319 = vld [vmem:[%s285 + $0x18] sm:$0xff]
      %v320 = vld [vmem:[%s285 + $0x20] sm:$0xff]
      %v321 = vld [vmem:[%s285 + $0x28] sm:$0xff]
      %v322 = vld [vmem:[%s285 + $0x30] sm:$0xff]
      %v323 = vld [vmem:[%s285 + $0x38] sm:$0xff]
      %v324 = vld [vmem:[%s285 + $0x40] sm:$0xff]
      %v325 = vld [vmem:[%s285 + $0x48] sm:$0xff]
      %v326 = vld [vmem:[%s285 + $0x50] sm:$0xff]
      %v327 = vld [vmem:[%s285 + $0x58] sm:$0xff]
      %v328 = vld [vmem:[%s285 + $0x60] sm:$0xff]
      %v329 = vld [vmem:[%s285 + $0x68] sm:$0xff]
      %v330 = vld [vmem:[%s285 + $0x70] sm:$0xff]
      %v331 = vld [vmem:[%s285 + $0x78] sm:$0xff]
      %v332 = vld [vmem:[%s285 + $0x80] sm:$0xff]
      %v333 = vld [vmem:[%s285 + $0x88] sm:$0xff]
      %v334 = vld [vmem:[%s285 + $0x90] sm:$0xff]
      %v335 = vld [vmem:[%s285 + $0x98] sm:$0xff]
      %v336 = vld [vmem:[%s285 + $0xa0] sm:$0xff]
      %v337 = vld [vmem:[%s285 + $0xa8] sm:$0xff]
      %v338 = vld [vmem:[%s285 + $0xb0] sm:$0xff]
      %v339 = vld [vmem:[%s285 + $0xb8] sm:$0xff]
      %v340 = vld [vmem:[%s285 + $0xc0] sm:$0xff]
      %v341 = vld [vmem:[%s285 + $0xc8] sm:$0xff]
      %v342 = vld [vmem:[%s285 + $0xd0] sm:$0xff]
      %v343 = vld [vmem:[%s285 + $0xd8] sm:$0xff]
      %v344 = vld [vmem:[%s285 + $0xe0] sm:$0xff]
      %v345 = vld [vmem:[%s285 + $0xe8] sm:$0xff]
      %v346 = vld [vmem:[%s285 + $0xf0] sm:$0xff]
      %v347 = vld [vmem:[%s285 + $0xf8] sm:$0xff]
      %v348 = vld [vmem:[%s290] sm:$0xf]
      %v349 = vld [vmem:[%s290 + $0x4] sm:$0xf]
      %v350 = vld [vmem:[%s290 + $0x8] sm:$0xf]
      %v351 = vld [vmem:[%s290 + $0xc] sm:$0xf]
      %v352 = vld [vmem:[%s290 + $0x10] sm:$0xf]
      %v353 = vld [vmem:[%s290 + $0x14] sm:$0xf]
      %v354 = vld [vmem:[%s290 + $0x18] sm:$0xf]
      %v355 = vld [vmem:[%s290 + $0x1c] sm:$0xf]
      %v356 = vld [vmem:[%s290 + $0x20] sm:$0xf]
      %v357 = vld [vmem:[%s290 + $0x24] sm:$0xf]
      %v358 = vld [vmem:[%s290 + $0x28] sm:$0xf]
      %v359 = vld [vmem:[%s290 + $0x2c] sm:$0xf]
      %v360 = vld [vmem:[%s290 + $0x30] sm:$0xf]
      %v361 = vld [vmem:[%s290 + $0x34] sm:$0xf]
      %v362 = vld [vmem:[%s290 + $0x38] sm:$0xf]
      %v363 = vld [vmem:[%s290 + $0x3c] sm:$0xf]
      %v364 = vld [vmem:[%s290 + $0x40] sm:$0xf]
      %v365 = vld [vmem:[%s290 + $0x44] sm:$0xf]
      %v366 = vld [vmem:[%s290 + $0x48] sm:$0xf]
      %v367 = vld [vmem:[%s290 + $0x4c] sm:$0xf]
      %v368 = vld [vmem:[%s290 + $0x50] sm:$0xf]
      %v369 = vld [vmem:[%s290 + $0x54] sm:$0xf]
      %v370 = vld [vmem:[%s290 + $0x58] sm:$0xf]
      %v371 = vld [vmem:[%s290 + $0x5c] sm:$0xf]
      %v372 = vld [vmem:[%s290 + $0x60] sm:$0xf]
      %v373 = vld [vmem:[%s293] sm:$0x1]
      %v375 = vlaneseq
      %v376 = vshrl.u32 %v375, 7
      %v377 = vsub.s32 0, %v376
      %v378 = vrot.slane %v373, %v377
      %v412 = vunpack.c.l.b16 %v316
      %v413 = vunpack.c.h.b16 %v316
      %v414 = vunpack.c.l.b16 %v317
      %v415 = vunpack.c.h.b16 %v317
      %v416 = vunpack.c.l.b16 %v318
      %v417 = vunpack.c.h.b16 %v318
      %v418 = vunpack.c.l.b16 %v319
      %v419 = vunpack.c.h.b16 %v319
      %v420 = vunpack.c.l.b16 %v320
      %v421 = vunpack.c.h.b16 %v320
      %v422 = vunpack.c.l.b16 %v321
      %v423 = vunpack.c.h.b16 %v321
      %v424 = vunpack.c.l.b16 %v322
      %v425 = vunpack.c.h.b16 %v322
      %v426 = vunpack.c.l.b16 %v323
      %v427 = vunpack.c.h.b16 %v323
      %v428 = vunpack.c.l.b16 %v324
      %v429 = vunpack.c.h.b16 %v324
      %v430 = vunpack.c.l.b16 %v325
      %v431 = vunpack.c.h.b16 %v325
      %v432 = vunpack.c.l.b16 %v326
      %v433 = vunpack.c.h.b16 %v326
      %v434 = vunpack.c.l.b16 %v327
      %v435 = vunpack.c.h.b16 %v327
      %v436 = vunpack.c.l.b16 %v328
      %v437 = vunpack.c.h.b16 %v328
      %v438 = vunpack.c.l.b16 %v329
      %v439 = vunpack.c.h.b16 %v329
      %v440 = vunpack.c.l.b16 %v330
      %v441 = vunpack.c.h.b16 %v330
      %v442 = vunpack.c.l.b16 %v331
      %v443 = vunpack.c.h.b16 %v331
      %v444 = vunpack.c.l.b16 %v332
      %v445 = vunpack.c.h.b16 %v332
      %v446 = vunpack.c.l.b16 %v333
      %v447 = vunpack.c.h.b16 %v333
      %v448 = vunpack.c.l.b16 %v334
      %v449 = vunpack.c.h.b16 %v334
      %v450 = vunpack.c.l.b16 %v335
      %v451 = vunpack.c.h.b16 %v335
      %v452 = vunpack.c.l.b16 %v336
      %v453 = vunpack.c.h.b16 %v336
      %v454 = vunpack.c.l.b16 %v337
      %v455 = vunpack.c.h.b16 %v337
      %v456 = vunpack.c.l.b16 %v338
      %v457 = vunpack.c.h.b16 %v338
      %v458 = vunpack.c.l.b16 %v339
      %v459 = vunpack.c.h.b16 %v339
      %v460 = vunpack.c.l.b16 %v340
      %v461 = vunpack.c.h.b16 %v340
      %v462 = vunpack.c.l.b16 %v341
      %v463 = vunpack.c.h.b16 %v341
      %v464 = vunpack.c.l.b16 %v342
      %v465 = vunpack.c.h.b16 %v342
      %v466 = vunpack.c.l.b16 %v343
      %v467 = vunpack.c.h.b16 %v343
      %v468 = vunpack.c.l.b16 %v344
      %v469 = vunpack.c.h.b16 %v344
      %v470 = vunpack.c.l.b16 %v345
      %v471 = vunpack.c.h.b16 %v345
      %v472 = vunpack.c.l.b16 %v346
      %v473 = vunpack.c.h.b16 %v346
      %v474 = vunpack.c.l.b16 %v347
      %v475 = vunpack.c.h.b16 %v347
      %v476 = vpack.c.b16 %v414, %v412
      %v477 = vpack.c.b16 %v415, %v413
      %v478 = vpack.c.b16 %v418, %v416
      %v479 = vpack.c.b16 %v419, %v417
      %v480 = vpack.c.b16 %v422, %v420
      %v481 = vpack.c.b16 %v423, %v421
      %v482 = vpack.c.b16 %v426, %v424
      %v483 = vpack.c.b16 %v427, %v425
      %v484 = vpack.c.b16 %v430, %v428
      %v485 = vpack.c.b16 %v431, %v429
      %v486 = vpack.c.b16 %v434, %v432
      %v487 = vpack.c.b16 %v435, %v433
      %v488 = vpack.c.b16 %v438, %v436
      %v489 = vpack.c.b16 %v439, %v437
      %v490 = vpack.c.b16 %v442, %v440
      %v491 = vpack.c.b16 %v443, %v441
      %v492 = vpack.c.b16 %v446, %v444
      %v493 = vpack.c.b16 %v447, %v445
      %v494 = vpack.c.b16 %v450, %v448
      %v495 = vpack.c.b16 %v451, %v449
      %v496 = vpack.c.b16 %v454, %v452
      %v497 = vpack.c.b16 %v455, %v453
      %v498 = vpack.c.b16 %v458, %v456
      %v499 = vpack.c.b16 %v459, %v457
      %v500 = vpack.c.b16 %v462, %v460
      %v501 = vpack.c.b16 %v463, %v461
      %v502 = vpack.c.b16 %v466, %v464
      %v503 = vpack.c.b16 %v467, %v465
      %v504 = vpack.c.b16 %v470, %v468
      %v505 = vpack.c.b16 %v471, %v469
      %v506 = vpack.c.b16 %v474, %v472
      %v507 = vpack.c.b16 %v475, %v473
      %v549 = vunpack.c.l.b16 %v348
      %v550 = vunpack.c.l.b16 %v349
      %v551 = vunpack.c.l.b16 %v350
      %v552 = vunpack.c.l.b16 %v351
      %v553 = vunpack.c.l.b16 %v352
      %v554 = vunpack.c.l.b16 %v353
      %v555 = vunpack.c.l.b16 %v354
      %v556 = vunpack.c.l.b16 %v355
      %v557 = vunpack.c.l.b16 %v356
      %v558 = vunpack.c.l.b16 %v357
      %v559 = vunpack.c.l.b16 %v358
      %v560 = vunpack.c.l.b16 %v359
      %v561 = vunpack.c.l.b16 %v360
      %v562 = vunpack.c.l.b16 %v361
      %v563 = vunpack.c.l.b16 %v362
      %v564 = vunpack.c.l.b16 %v363
      %v565 = vunpack.c.l.b16 %v364
      %v566 = vunpack.c.l.b16 %v365
      %v567 = vunpack.c.l.b16 %v366
      %v568 = vunpack.c.l.b16 %v367
      %v569 = vunpack.c.l.b16 %v368
      %v570 = vunpack.c.l.b16 %v369
      %v571 = vunpack.c.l.b16 %v370
      %v572 = vunpack.c.l.b16 %v371
      %v573 = vunpack.c.l.b16 %v372
      %v574 = vpack.c.b16 %v550, %v549
      %v575 = vpack.c.b16 %v552, %v551
      %v576 = vpack.c.b16 %v554, %v553
      %v577 = vpack.c.b16 %v556, %v555
      %v578 = vpack.c.b16 %v558, %v557
      %v579 = vpack.c.b16 %v560, %v559
      %v580 = vpack.c.b16 %v562, %v561
      %v581 = vpack.c.b16 %v564, %v563
      %v582 = vpack.c.b16 %v566, %v565
      %v583 = vpack.c.b16 %v568, %v567
      %v584 = vpack.c.b16 %v570, %v569
      %v585 = vpack.c.b16 %v572, %v571
      %v586 = vpack.c.b16 %v573, %v573
      %vm599 = vcmask 588800
      %v601 = vsel %vm599, %v477, 0
      %v604 = vsel %vm599, %v479, 0
      %v607 = vsel %vm599, %v481, 0
      %v610 = vsel %vm599, %v483, 0
      %v613 = vsel %vm599, %v485, 0
      %v616 = vsel %vm599, %v487, 0
      %v619 = vsel %vm599, %v489, 0
      %v622 = vsel %vm599, %v491, 0
      %v625 = vsel %vm599, %v493, 0
      %v628 = vsel %vm599, %v495, 0
      %v631 = vsel %vm599, %v497, 0
      %v634 = vsel %vm599, %v499, 0
      %v637 = vsel %vm599, %v501, 0
      %v640 = vsel %vm599, %v503, 0
      %v643 = vsel %vm599, %v505, 0
      %v646 = vsel %vm599, %v507, 0
      %vm648 = vcmask 1043456
      %v650 = vsel %vm648, %v586, 0
      %652 = vmatprep.subr.bf16.mxu0 0
      %653 = vmatpush1.bf16.msra.mxu0 %v574
      %654 = vmatprep.subr.bf16.mxu0 0
      %655 = vmatpush1.bf16.msra.mxu0 %v575
      %656 = vmatprep.subr.bf16.mxu0 0
      %657 = vmatpush1.bf16.msra.mxu0 %v576
      %658 = vmatprep.subr.bf16.mxu0 0
      %659 = vmatpush1.bf16.msra.mxu0 %v577
      %660 = vmatprep.subr.bf16.mxu0 0
      %661 = vmatpush1.bf16.msra.mxu0 %v578
      %662 = vmatprep.subr.bf16.mxu0 0
      %663 = vmatpush1.bf16.msra.mxu0 %v579
      %664 = vmatprep.subr.bf16.mxu0 0
      %665 = vmatpush1.bf16.msra.mxu0 %v580
      %666 = vmatprep.subr.bf16.mxu0 0
      %667 = vmatpush1.bf16.msra.mxu0 %v581
      %668 = vmatprep.subr.bf16.mxu0 0
      %669 = vmatpush1.bf16.msra.mxu0 %v582
      %670 = vmatprep.subr.bf16.mxu0 0
      %671 = vmatpush1.bf16.msra.mxu0 %v583
      %672 = vmatprep.subr.bf16.mxu0 0
      %673 = vmatpush1.bf16.msra.mxu0 %v584
      %674 = vmatprep.subr.bf16.mxu0 0
      %675 = vmatpush1.bf16.msra.mxu0 %v585
      %676 = vmatprep.subr.bf16.mxu0 0
      %677 = vmatpush1.bf16.msra.mxu0 %v650
      %678 = vmatprep.subr.bf16.mxu0 0
      %679 = vmatpush1.bf16.msra.mxu0 0
      %680 = vmatprep.subr.bf16.mxu0 0
      %681 = vmatpush1.bf16.msra.mxu0 0
      %682 = vmatprep.subr.bf16.mxu0 0
      %683 = vmatpush1.bf16.msra.mxu0 0
      %684 = vmatprep.mubr.bf16.mxu0 %v601
      %685 = vmatmul.mubr.bf16.gmra.mrb[0].mxu0 %v476
      %v686 = vpop.f32.mrb[0].mxu0
      %v687 = vadd.f32 %v378, %v686
      %v688 = vpop.f32.mrb[0].mxu0
      %v689 = vpop.f32.mrb[0].mxu0
      %v690 = vadd.f32 %v378, %v689
      %v691 = vpop.f32.mrb[0].mxu0
      %692 = vmatprep.mubr.bf16.mxu0 %v604
      %693 = vmatmul.mubr.bf16.gmra.mrb[0].mxu0 %v478
      %v694 = vpop.f32.mrb[0].mxu0
      %v695 = vadd.f32 %v378, %v694
      %v696 = vpop.f32.mrb[0].mxu0
      %v697 = vpop.f32.mrb[0].mxu0
      %v698 = vadd.f32 %v378, %v697
      %v699 = vpop.f32.mrb[0].mxu0
      %700 = vmatprep.mubr.bf16.mxu0 %v607
      %701 = vmatmul.mubr.bf16.gmra.mrb[0].mxu0 %v480
      %v702 = vpop.f32.mrb[0].mxu0
      %v703 = vadd.f32 %v378, %v702
      %v704 = vpop.f32.mrb[0].mxu0
      %v705 = vpop.f32.mrb[0].mxu0
      %v706 = vadd.f32 %v378, %v705
      %v707 = vpop.f32.mrb[0].mxu0
      %708 = vmatprep.mubr.bf16.mxu0 %v610
      %709 = vmatmul.mubr.bf16.gmra.mrb[0].mxu0 %v482
      %v710 = vpop.f32.mrb[0].mxu0
      %v711 = vadd.f32 %v378, %v710
      %v712 = vpop.f32.mrb[0].mxu0
      %v713 = vpop.f32.mrb[0].mxu0
      %v714 = vadd.f32 %v378, %v713
      %v715 = vpop.f32.mrb[0].mxu0
      %716 = vmatprep.mubr.bf16.mxu0 %v613
      %717 = vmatmul.mubr.bf16.gmra.mrb[0].mxu0 %v484
      %v718 = vpop.f32.mrb[0].mxu0
      %v719 = vadd.f32 %v378, %v718
      %v720 = vpop.f32.mrb[0].mxu0
      %v721 = vpop.f32.mrb[0].mxu0
      %v722 = vadd.f32 %v378, %v721
      %v723 = vpop.f32.mrb[0].mxu0
      %724 = vmatprep.mubr.bf16.mxu0 %v616
      %725 = vmatmul.mubr.bf16.gmra.mrb[0].mxu0 %v486
      %v726 = vpop.f32.mrb[0].mxu0
      %v727 = vadd.f32 %v378, %v726
      %v728 = vpop.f32.mrb[0].mxu0
      %v729 = vpop.f32.mrb[0].mxu0
      %v730 = vadd.f32 %v378, %v729
      %v731 = vpop.f32.mrb[0].mxu0
      %732 = vmatprep.mubr.bf16.mxu0 %v619
      %733 = vmatmul.mubr.bf16.gmra.mrb[0].mxu0 %v488
      %v734 = vpop.f32.mrb[0].mxu0
      %v735 = vadd.f32 %v378, %v734
      %v736 = vpop.f32.mrb[0].mxu0
      %v737 = vpop.f32.mrb[0].mxu0
      %v738 = vadd.f32 %v378, %v737
      %v739 = vpop.f32.mrb[0].mxu0
      %740 = vmatprep.mubr.bf16.mxu0 %v622
      %741 = vmatmul.mubr.bf16.gmra.mrb[0].mxu0 %v490
      %v742 = vpop.f32.mrb[0].mxu0
      %v743 = vadd.f32 %v378, %v742
      %v744 = vpop.f32.mrb[0].mxu0
      %v745 = vpop.f32.mrb[0].mxu0
      %v746 = vadd.f32 %v378, %v745
      %v747 = vpop.f32.mrb[0].mxu0
      %748 = vmatprep.mubr.bf16.mxu0 %v625
      %749 = vmatmul.mubr.bf16.gmra.mrb[0].mxu0 %v492
      %v750 = vpop.f32.mrb[0].mxu0
      %v751 = vadd.f32 %v378, %v750
      %v752 = vpop.f32.mrb[0].mxu0
      %v753 = vpop.f32.mrb[0].mxu0
      %v754 = vadd.f32 %v378, %v753
      %v755 = vpop.f32.mrb[0].mxu0
      %756 = vmatprep.mubr.bf16.mxu0 %v628
      %757 = vmatmul.mubr.bf16.gmra.mrb[0].mxu0 %v494
      %v758 = vpop.f32.mrb[0].mxu0
      %v759 = vadd.f32 %v378, %v758
      %v760 = vpop.f32.mrb[0].mxu0
      %v761 = vpop.f32.mrb[0].mxu0
      %v762 = vadd.f32 %v378, %v761
      %v763 = vpop.f32.mrb[0].mxu0
      %764 = vmatprep.mubr.bf16.mxu0 %v631
      %765 = vmatmul.mubr.bf16.gmra.mrb[0].mxu0 %v496
      %v766 = vpop.f32.mrb[0].mxu0
      %v767 = vadd.f32 %v378, %v766
      %v768 = vpop.f32.mrb[0].mxu0
      %v769 = vpop.f32.mrb[0].mxu0
      %v770 = vadd.f32 %v378, %v769
      %v771 = vpop.f32.mrb[0].mxu0
      %772 = vmatprep.mubr.bf16.mxu0 %v634
      %773 = vmatmul.mubr.bf16.gmra.mrb[0].mxu0 %v498
      %v774 = vpop.f32.mrb[0].mxu0
      %v775 = vadd.f32 %v378, %v774
      %v776 = vpop.f32.mrb[0].mxu0
      %v777 = vpop.f32.mrb[0].mxu0
      %v778 = vadd.f32 %v378, %v777
      %v779 = vpop.f32.mrb[0].mxu0
      %780 = vmatprep.mubr.bf16.mxu0 %v637
      %781 = vmatmul.mubr.bf16.gmra.mrb[0].mxu0 %v500
      %v782 = vpop.f32.mrb[0].mxu0
      %v783 = vadd.f32 %v378, %v782
      %v784 = vpop.f32.mrb[0].mxu0
      %v785 = vpop.f32.mrb[0].mxu0
      %v786 = vadd.f32 %v378, %v785
      %v787 = vpop.f32.mrb[0].mxu0
      %788 = vmatprep.mubr.bf16.mxu0 %v640
      %789 = vmatmul.mubr.bf16.gmra.mrb[0].mxu0 %v502
      %v790 = vpop.f32.mrb[0].mxu0
      %v791 = vadd.f32 %v378, %v790
      %v792 = vpop.f32.mrb[0].mxu0
      %v793 = vpop.f32.mrb[0].mxu0
      %v794 = vadd.f32 %v378, %v793
      %v795 = vpop.f32.mrb[0].mxu0
      %796 = vmatprep.mubr.bf16.mxu0 %v643
      %797 = vmatmul.mubr.bf16.gmra.mrb[0].mxu0 %v504
      %v798 = vpop.f32.mrb[0].mxu0
      %v799 = vadd.f32 %v378, %v798
      %v800 = vpop.f32.mrb[0].mxu0
      %v801 = vpop.f32.mrb[0].mxu0
      %v802 = vadd.f32 %v378, %v801
      %v803 = vpop.f32.mrb[0].mxu0
      %804 = vmatprep.mubr.bf16.mxu0 %v646
      %805 = vmatmul.mubr.bf16.gmra.mrb[0].mxu0 %v506
      %v806 = vpop.f32.mrb[0].mxu0
      %v807 = vadd.f32 %v378, %v806
      %v808 = vpop.f32.mrb[0].mxu0
      %v809 = vpop.f32.mrb[0].mxu0
      %v810 = vadd.f32 %v378, %v809
      %v811 = vpop.f32.mrb[0].mxu0
      %812 = vdwg.mxu0
      %v813 = vpack.c.bf16 %v690, %v687
      %v814 = vpack.c.bf16 %v698, %v695
      %v815 = vpack.c.bf16 %v706, %v703
      %v816 = vpack.c.bf16 %v714, %v711
      %v817 = vpack.c.bf16 %v722, %v719
      %v818 = vpack.c.bf16 %v730, %v727
      %v819 = vpack.c.bf16 %v738, %v735
      %v820 = vpack.c.bf16 %v746, %v743
      %v821 = vpack.c.bf16 %v754, %v751
      %v822 = vpack.c.bf16 %v762, %v759
      %v823 = vpack.c.bf16 %v770, %v767
      %v824 = vpack.c.bf16 %v778, %v775
      %v825 = vpack.c.bf16 %v786, %v783
      %v826 = vpack.c.bf16 %v794, %v791
      %v827 = vpack.c.bf16 %v802, %v799
      %v828 = vpack.c.bf16 %v810, %v807
      %v845 = vunpack.c.l.b16 %v813
      %v846 = vunpack.c.h.b16 %v813
      %v847 = vunpack.c.l.b16 %v814
      %v848 = vunpack.c.h.b16 %v814
      %v849 = vunpack.c.l.b16 %v815
      %v850 = vunpack.c.h.b16 %v815
      %v851 = vunpack.c.l.b16 %v816
      %v852 = vunpack.c.h.b16 %v816
      %v853 = vunpack.c.l.b16 %v817
      %v854 = vunpack.c.h.b16 %v817
      %v855 = vunpack.c.l.b16 %v818
      %v856 = vunpack.c.h.b16 %v818
      %v857 = vunpack.c.l.b16 %v819
      %v858 = vunpack.c.h.b16 %v819
      %v859 = vunpack.c.l.b16 %v820
      %v860 = vunpack.c.h.b16 %v820
      %v861 = vunpack.c.l.b16 %v821
      %v862 = vunpack.c.h.b16 %v821
      %v863 = vunpack.c.l.b16 %v822
      %v864 = vunpack.c.h.b16 %v822
      %v865 = vunpack.c.l.b16 %v823
      %v866 = vunpack.c.h.b16 %v823
      %v867 = vunpack.c.l.b16 %v824
      %v868 = vunpack.c.h.b16 %v824
      %v869 = vunpack.c.l.b16 %v825
      %v870 = vunpack.c.h.b16 %v825
      %v871 = vunpack.c.l.b16 %v826
      %v872 = vunpack.c.h.b16 %v826
      %v873 = vunpack.c.l.b16 %v827
      %v874 = vunpack.c.h.b16 %v827
      %v875 = vunpack.c.l.b16 %v828
      %v876 = vunpack.c.h.b16 %v828
      %v877 = vpack.c.b16 %v845, %v845
      %v878 = vpack.c.b16 %v846, %v846
      %v879 = vpack.c.b16 %v847, %v847
      %v880 = vpack.c.b16 %v848, %v848
      %v881 = vpack.c.b16 %v849, %v849
      %v882 = vpack.c.b16 %v850, %v850
      %v883 = vpack.c.b16 %v851, %v851
      %v884 = vpack.c.b16 %v852, %v852
      %v885 = vpack.c.b16 %v853, %v853
      %v886 = vpack.c.b16 %v854, %v854
      %v887 = vpack.c.b16 %v855, %v855
      %v888 = vpack.c.b16 %v856, %v856
      %v889 = vpack.c.b16 %v857, %v857
      %v890 = vpack.c.b16 %v858, %v858
      %v891 = vpack.c.b16 %v859, %v859
      %v892 = vpack.c.b16 %v860, %v860
      %v893 = vpack.c.b16 %v861, %v861
      %v894 = vpack.c.b16 %v862, %v862
      %v895 = vpack.c.b16 %v863, %v863
      %v896 = vpack.c.b16 %v864, %v864
      %v897 = vpack.c.b16 %v865, %v865
      %v898 = vpack.c.b16 %v866, %v866
      %v899 = vpack.c.b16 %v867, %v867
      %v900 = vpack.c.b16 %v868, %v868
      %v901 = vpack.c.b16 %v869, %v869
      %v902 = vpack.c.b16 %v870, %v870
      %v903 = vpack.c.b16 %v871, %v871
      %v904 = vpack.c.b16 %v872, %v872
      %v905 = vpack.c.b16 %v873, %v873
      %v906 = vpack.c.b16 %v874, %v874
      %v907 = vpack.c.b16 %v875, %v875
      %v908 = vpack.c.b16 %v876, %v876
      %941 = vst [vmem:[%s301] sm:$0xf] %v877
      %942 = vst [vmem:[%s301 + $0x4] sm:$0xf] %v878
      %943 = vst [vmem:[%s301 + $0x8] sm:$0xf] %v879
      %944 = vst [vmem:[%s301 + $0xc] sm:$0xf] %v880
      %945 = vst [vmem:[%s301 + $0x10] sm:$0xf] %v881
      %946 = vst [vmem:[%s301 + $0x14] sm:$0xf] %v882
      %947 = vst [vmem:[%s301 + $0x18] sm:$0xf] %v883
      %948 = vst [vmem:[%s301 + $0x1c] sm:$0xf] %v884
      %949 = vst [vmem:[%s301 + $0x20] sm:$0xf] %v885
      %950 = vst [vmem:[%s301 + $0x24] sm:$0xf] %v886
      %951 = vst [vmem:[%s301 + $0x28] sm:$0xf] %v887
      %952 = vst [vmem:[%s301 + $0x2c] sm:$0xf] %v888
      %953 = vst [vmem:[%s301 + $0x30] sm:$0xf] %v889
      %954 = vst [vmem:[%s301 + $0x34] sm:$0xf] %v890
      %955 = vst [vmem:[%s301 + $0x38] sm:$0xf] %v891
      %956 = vst [vmem:[%s301 + $0x3c] sm:$0xf] %v892
      %957 = vst [vmem:[%s301 + $0x40] sm:$0xf] %v893
      %958 = vst [vmem:[%s301 + $0x44] sm:$0xf] %v894
      %959 = vst [vmem:[%s301 + $0x48] sm:$0xf] %v895
      %960 = vst [vmem:[%s301 + $0x4c] sm:$0xf] %v896
      %961 = vst [vmem:[%s301 + $0x50] sm:$0xf] %v897
      %962 = vst [vmem:[%s301 + $0x54] sm:$0xf] %v898
      %963 = vst [vmem:[%s301 + $0x58] sm:$0xf] %v899
      %964 = vst [vmem:[%s301 + $0x5c] sm:$0xf] %v900
      %965 = vst [vmem:[%s301 + $0x60] sm:$0xf] %v901
      %966 = vst [vmem:[%s301 + $0x64] sm:$0xf] %v902
      %967 = vst [vmem:[%s301 + $0x68] sm:$0xf] %v903
      %968 = vst [vmem:[%s301 + $0x6c] sm:$0xf] %v904
      %969 = vst [vmem:[%s301 + $0x70] sm:$0xf] %v905
      %970 = vst [vmem:[%s301 + $0x74] sm:$0xf] %v906
      %971 = vst [vmem:[%s301 + $0x78] sm:$0xf] %v907
      %972 = vst [vmem:[%s301 + $0x7c] sm:$0xf] %v908
      %v973 = vadd.f32 %v687, %v690
      %v974 = vadd.f32 %v973, %v695
      %v975 = vadd.f32 %v974, %v698
      %v976 = vadd.f32 %v975, %v703
      %v977 = vadd.f32 %v976, %v706
      %v978 = vadd.f32 %v977, %v711
      %v979 = vadd.f32 %v978, %v714
      %v980 = vadd.f32 %v979, %v719
      %v981 = vadd.f32 %v980, %v722
      %v982 = vadd.f32 %v981, %v727
      %v983 = vadd.f32 %v982, %v730
      %v984 = vadd.f32 %v983, %v735
      %v985 = vadd.f32 %v984, %v738
      %v986 = vadd.f32 %v985, %v743
      %v987 = vadd.f32 %v986, %v746
      %v988 = vadd.f32 %v987, %v751
      %v989 = vadd.f32 %v988, %v754
      %v990 = vadd.f32 %v989, %v759
      %v991 = vadd.f32 %v990, %v762
      %v992 = vadd.f32 %v991, %v767
      %v993 = vadd.f32 %v992, %v770
      %v994 = vadd.f32 %v993, %v775
      %v995 = vadd.f32 %v994, %v778
      %v996 = vadd.f32 %v995, %v783
      %v997 = vadd.f32 %v996, %v786
      %v998 = vadd.f32 %v997, %v791
      %v999 = vadd.f32 %v998, %v794
      %v1000 = vadd.f32 %v999, %v799
      %v1001 = vadd.f32 %v1000, %v802
      %v1002 = vadd.f32 %v1001, %v807
      %v1003 = vadd.f32 %v1002, %v810
      %v1004 = vrot.slane %v1003, 4
      %v1005 = vadd.f32 %v1003, %v1004
      %v1006 = vrot.slane %v1005, 2
      %v1007 = vadd.f32 %v1005, %v1006
      %v1008 = vrot.slane %v1007, 1
      %v1009 = vadd.f32 %v1007, %v1008
      %1010 = vst [vmem:[%s308] sm:$0x1] %v1009
      %v1011 = vmul.f32 %v687, %v687
      %v1012 = vmul.f32 %v690, %v690
      %v1013 = vmul.f32 %v695, %v695
      %v1014 = vmul.f32 %v698, %v698
      %v1015 = vmul.f32 %v703, %v703
      %v1016 = vmul.f32 %v706, %v706
      %v1017 = vmul.f32 %v711, %v711
      %v1018 = vmul.f32 %v714, %v714
      %v1019 = vmul.f32 %v719, %v719
      %v1020 = vmul.f32 %v722, %v722
      %v1021 = vmul.f32 %v727, %v727
      %v1022 = vmul.f32 %v730, %v730
      %v1023 = vmul.f32 %v735, %v735
      %v1024 = vmul.f32 %v738, %v738
      %v1025 = vmul.f32 %v743, %v743
      %v1026 = vmul.f32 %v746, %v746
      %v1027 = vmul.f32 %v751, %v751
      %v1028 = vmul.f32 %v754, %v754
      %v1029 = vmul.f32 %v759, %v759
      %v1030 = vmul.f32 %v762, %v762
      %v1031 = vmul.f32 %v767, %v767
      %v1032 = vmul.f32 %v770, %v770
      %v1033 = vmul.f32 %v775, %v775
      %v1034 = vmul.f32 %v778, %v778
      %v1035 = vmul.f32 %v783, %v783
      %v1036 = vmul.f32 %v786, %v786
      %v1037 = vmul.f32 %v791, %v791
      %v1038 = vmul.f32 %v794, %v794
      %v1039 = vmul.f32 %v799, %v799
      %v1040 = vmul.f32 %v802, %v802
      %v1041 = vmul.f32 %v807, %v807
      %v1042 = vmul.f32 %v810, %v810
      %v1043 = vadd.f32 %v1011, %v1012
      %v1044 = vadd.f32 %v1043, %v1013
      %v1045 = vadd.f32 %v1044, %v1014
      %v1046 = vadd.f32 %v1045, %v1015
      %v1047 = vadd.f32 %v1046, %v1016
      %v1048 = vadd.f32 %v1047, %v1017
      %v1049 = vadd.f32 %v1048, %v1018
      %v1050 = vadd.f32 %v1049, %v1019
      %v1051 = vadd.f32 %v1050, %v1020
      %v1052 = vadd.f32 %v1051, %v1021
      %v1053 = vadd.f32 %v1052, %v1022
      %v1054 = vadd.f32 %v1053, %v1023
      %v1055 = vadd.f32 %v1054, %v1024
      %v1056 = vadd.f32 %v1055, %v1025
      %v1057 = vadd.f32 %v1056, %v1026
      %v1058 = vadd.f32 %v1057, %v1027
      %v1059 = vadd.f32 %v1058, %v1028
      %v1060 = vadd.f32 %v1059, %v1029
      %v1061 = vadd.f32 %v1060, %v1030
      %v1062 = vadd.f32 %v1061, %v1031
      %v1063 = vadd.f32 %v1062, %v1032
      %v1064 = vadd.f32 %v1063, %v1033
      %v1065 = vadd.f32 %v1064, %v1034
      %v1066 = vadd.f32 %v1065, %v1035
      %v1067 = vadd.f32 %v1066, %v1036
      %v1068 = vadd.f32 %v1067, %v1037
      %v1069 = vadd.f32 %v1068, %v1038
      %v1070 = vadd.f32 %v1069, %v1039
      %v1071 = vadd.f32 %v1070, %v1040
      %v1072 = vadd.f32 %v1071, %v1041
      %v1073 = vadd.f32 %v1072, %v1042
      %v1074 = vrot.slane %v1073, 4
      %v1075 = vadd.f32 %v1073, %v1074
      %v1076 = vrot.slane %v1075, 2
      %v1077 = vadd.f32 %v1075, %v1076
      %v1078 = vrot.slane %v1077, 1
      %v1079 = vadd.f32 %v1077, %v1078
      %1080 = vst [vmem:[%s314] sm:$0x1] %v1079
      %s1081 = smul.u32 32, %s21
      %p1082 = scmp.lt.s32.totalorder %s1081, 63
      %s1083 = scalar_select %p1082, %s1081, 63
      %p1084 = scmp.lt.s32.totalorder %s22, 0
      %s1085 = scalar_select %p1084, %s22, 0
      %s1086 = sadd.s32 %s1085, %s1083
      %s1087 = smul.addr %s1086, 4
      %s1088 = scalar_lea.vmem %s3, %s1087
      %p1089 = scmp.lt.s32.totalorder %s21, 1
      %s1090 = scalar_select %p1089, %s21, 1
      %p1091 = scmp.lt.s32.totalorder %s22, 0
      %s1092 = scalar_select %p1091, %s22, 0
      %s1093 = sadd.s32 %s1092, %s1090
      %s1094 = scalar_lea.vmem %s4, %s1093
      %p1095 = scmp.lt.s32.totalorder %s21, 1
      %s1096 = scalar_select %p1095, %s21, 1
      %p1097 = scmp.lt.s32.totalorder %s22, 0
      %s1098 = scalar_select %p1097, %s22, 0
      %s1099 = sadd.s32 %s1098, %s1096
      %s1100 = scalar_lea.vmem %s5, %s1099
      // Predicated region
      $region33: #{encoder_forward.5} parent=31 // pred_check
        %p1101 = pneg %p127
      $region34: #{encoder_forward.5} parent=31 // pred_check_branch
        %1103 = sbr.rel (%p1101) target = $region36
      $region35: #{encoder_forward.5} parent=31 // pred_region
        %s1104 = smul.u32 32, %s21
      $region36: #{encoder_forward.5} parent=31 // pred_fallthru
        _
      // Predicated region
      $region37: #{encoder_forward.5} parent=31 // pred_check
        %p1105 = pneg %p155
      $region38: #{encoder_forward.5} parent=31 // pred_check_branch
        %1107 = sbr.rel (%p1105) target = $region40
      $region39: #{encoder_forward.5} parent=31 // pred_region
        _
      $region40: #{encoder_forward.5} parent=31 // pred_fallthru
        _
      // Predicated region
      $region41: #{encoder_forward.5} parent=31 // pred_check
        %p1108 = pneg %p183
      $region42: #{encoder_forward.5} parent=31 // pred_check_branch
        %1110 = sbr.rel (%p1108) target = $region44
      $region43: #{encoder_forward.5} parent=31 // pred_region
        _
      $region44: #{encoder_forward.5} parent=31 // pred_fallthru
        _
    $region32: #{encoder_forward.5} parent=5 // pred_fallthru
      _
    %p1111 = scmp.le.s32.totalorder 2, %s12
    // Predicated region
    $region45: #{encoder_forward.5} parent=5 // pred_check
      %p1112 = pneg %p1111
    $region46: #{encoder_forward.5} parent=5 // pred_check_branch
      %1114 = sbr.rel (%p1112) target = $region48
    $region47: #{encoder_forward.5} parent=5 // pred_region
      %s1115 = ssub.s32 %s12, 2
      // Predicated region
      $region49: #{encoder_forward.5} parent=47 // pred_check
        %p1116 = pneg %p133
      $region50: #{encoder_forward.5} parent=47 // pred_check_branch
        %1118 = sbr.rel (%p1116) target = $region52
      $region51: #{encoder_forward.5} parent=47 // pred_region
        %s1119 = smul.u32 32, %s23
        %p1120 = scmp.lt.s32.totalorder %s1119, 63
        %s1121 = scalar_select %p1120, %s1119, 63
        %p1122 = scmp.lt.s32.totalorder %s24, 0
        %s1123 = scalar_select %p1122, %s24, 0
        %s1124 = sadd.s32 %s1123, %s1121
        %s1125 = smul.addr %s1124, 4
        %s1126 = scalar_lea.vmem %s3, %s1125
      $region52: #{encoder_forward.5} parent=47 // pred_fallthru
        _
      // Predicated region
      $region53: #{encoder_forward.5} parent=47 // pred_check
        %p1127 = pneg %p161
      $region54: #{encoder_forward.5} parent=47 // pred_check_branch
        %1129 = sbr.rel (%p1127) target = $region56
      $region55: #{encoder_forward.5} parent=47 // pred_region
        %p1130 = scmp.lt.s32.totalorder %s23, 1
        %s1131 = scalar_select %p1130, %s23, 1
        %p1132 = scmp.lt.s32.totalorder %s24, 0
        %s1133 = scalar_select %p1132, %s24, 0
        %s1134 = sadd.s32 %s1133, %s1131
        %s1135 = scalar_lea.vmem %s4, %s1134
      $region56: #{encoder_forward.5} parent=47 // pred_fallthru
        _
      // Predicated region
      $region57: #{encoder_forward.5} parent=47 // pred_check
        %p1136 = pneg %p189
      $region58: #{encoder_forward.5} parent=47 // pred_check_branch
        %1138 = sbr.rel (%p1136) target = $region60
      $region59: #{encoder_forward.5} parent=47 // pred_region
        %p1139 = scmp.lt.s32.totalorder %s23, 1
        %s1140 = scalar_select %p1139, %s23, 1
        %p1141 = scmp.lt.s32.totalorder %s24, 0
        %s1142 = scalar_select %p1141, %s24, 0
        %s1143 = sadd.s32 %s1142, %s1140
        %s1144 = scalar_lea.vmem %s5, %s1143
      $region60: #{encoder_forward.5} parent=47 // pred_fallthru
        _
    $region48: #{encoder_forward.5} parent=5 // pred_fallthru
      _
  $region6: #{encoder_forward.5} parent=0 // loop_footer
    %s16 = sadd.s32 1, %s12
  $region7: #{encoder_forward.5} parent=0 // loop_footer_branch
    %11 = sbr.rel target = $region3
  $region8: #{encoder_forward.5} parent=0 // loop_exit
    _

// kernel: encoder_forward.6
$region0: #{encoder_forward.6}
  #allocation0 [shape = 'u32[]', space=smem, size = 0x4, offset = 0x4, fixed_abs, tag = 'smem constant byte address 0x4 - core index']
  #allocation1 [shape = 'u32[144,128]{1,0:T(1,128)}', space=vmem, size = 0x12000, scoped, tag = 'internal scratch']
  %s0 = inlined_call_operand.vmem [shape: bf16[128,400], index: 0, kind: input, shape index: {}]
  %s1 = inlined_call_operand.vmem [shape: bf16[400,128], index: 1, kind: input, shape index: {}]
  %s2 = inlined_call_operand.vmem [shape: f32[1,128], index: 2, kind: input, shape index: {}]
  %s3 = inlined_call_operand.vmem [shape: bf16[128,128], index: 3, kind: output, shape index: {0}]
  %s4 = inlined_call_operand.vmem [shape: f32[2,1,128], index: 4, kind: output, shape index: {1}]
  %s5 = inlined_call_operand.vmem [shape: f32[2,1,128], index: 5, kind: output, shape index: {2}]
  %6 = xla_tuple %s3, %s4, %s5
  %s7 = sld [smem:[#allocation0]]
  $region61: #{encoder_forward.6} parent=0
    _
  %s9 = ssub.s32 1, %s7
  %s10 = scalar_select 0, %s9, %s7
  loop: start=0, step=1, limit=4
  $region2: #{encoder_forward.6} parent=0 // loop_pre_header
    _
  $region3: #{encoder_forward.6} parent=0 // loop_header
    %s12 = sphi 0, %s16
    %p13 = scmp.ge.s32.totalorder %s12, 4
    %s19 = sphi 0, %s31
    %s20 = sphi 0, %s27
    %s21 = sphi 0, %s19
    %s22 = sphi 0, %s20
    %s23 = sphi 0, %s21
    %s24 = sphi 0, %s22
    %s34 = sphi 0, %s36
    %s37 = sphi 0, %s34
    %s38 = sphi 0, %s37
    %s54 = sphi 0, %s38
    %s60 = sphi 0, %s62
    %s63 = sphi 0, %s60
    %s64 = sphi 0, %s63
    %s80 = sphi 0, %s64
    %s86 = sphi 0, %s88
    %s89 = sphi 0, %s86
    %s90 = sphi 0, %s89
    %s106 = sphi 0, %s90
    %s114 = sphi 0, %s116
    %s117 = sphi 0, %s114
    %s118 = sphi 0, %s117
    %s134 = sphi 0, %s118
    %s142 = sphi 0, %s144
    %s145 = sphi 0, %s142
    %s146 = sphi 0, %s145
    %s162 = sphi 0, %s146
    %s170 = sphi 0, %s172
    %s173 = sphi 0, %s170
    %s174 = sphi 0, %s173
    %s190 = sphi 0, %s174
  $region4: #{encoder_forward.6} parent=0 // loop_header_branch
    %15 = sbr.rel (%p13) target = $region8
  $region5: #{encoder_forward.6} parent=0 // loop_body
    %s17 = ssub.s32 %s12, 1
    %s18 = ssub.s32 %s12, 2
    %s25 = sadd.s32 1, %s20
    %p26 = scmp.ge.s32.totalorder %s25, 1
    %s27 = scalar_select %p26, 0, %s25
    %s28 = sadd.s32 1, %s19
    %s29 = scalar_select %p26, %s28, %s19
    %p30 = scmp.ge.s32.totalorder %s29, 2
    %s31 = scalar_select %p30, 0, %s29
    %s32 = ssub.s32 %s19, %s31
    %p33 = scmp.eq.s32.totalorder %s32, 0
    %s35 = sadd.s32 %s34, 1
    %s36 = scalar_select %p33, %s34, %s35
    %p39 = pneg %p33
    %p40 = scmp.eq.s32.totalorder %s12, 1
    %p41 = por %p39, %p40
    %p42 = scmp.ne.s32.totalorder %s34, %s37
    %p43 = scmp.eq.s32.totalorder %s12, 0
    %p44 = por %p42, %p43
    %p45 = scmp.ne.s32.totalorder %s34, %s37
    %p46 = scmp.eq.s32.totalorder %s17, 1
    %p47 = por %p45, %p46
    %p48 = scmp.ne.s32.totalorder %s37, %s38
    %p49 = scmp.eq.s32.totalorder %s17, 0
    %p50 = por %p48, %p49
    %p51 = scmp.ne.s32.totalorder %s37, %s38
    %p52 = scmp.eq.s32.totalorder %s18, 1
    %p53 = por %p51, %p52
    %p55 = scmp.ne.s32.totalorder %s38, %s54
    %p56 = scmp.eq.s32.totalorder %s18, 0
    %p57 = por %p55, %p56
    %s58 = ssub.s32 %s20, %s27
    %p59 = scmp.eq.s32.totalorder %s58, 0
    %s61 = sadd.s32 %s60, 1
    %s62 = scalar_select %p59, %s60, %s61
    %p65 = pneg %p59
    %p66 = scmp.eq.s32.totalorder %s12, 1
    %p67 = por %p65, %p66
    %p68 = scmp.ne.s32.totalorder %s60, %s63
    %p69 = scmp.eq.s32.totalorder %s12, 0
    %p70 = por %p68, %p69
    %p71 = scmp.ne.s32.totalorder %s60, %s63
    %p72 = scmp.eq.s32.totalorder %s17, 1
    %p73 = por %p71, %p72
    %p74 = scmp.ne.s32.totalorder %s63, %s64
    %p75 = scmp.eq.s32.totalorder %s17, 0
    %p76 = por %p74, %p75
    %p77 = scmp.ne.s32.totalorder %s63, %s64
    %p78 = scmp.eq.s32.totalorder %s18, 1
    %p79 = por %p77, %p78
    %p81 = scmp.ne.s32.totalorder %s64, %s80
    %p82 = scmp.eq.s32.totalorder %s18, 0
    %p83 = por %p81, %p82
    %s84 = ssub.s32 %s20, %s27
    %p85 = scmp.eq.s32.totalorder %s84, 0
    %s87 = sadd.s32 %s86, 1
    %s88 = scalar_select %p85, %s86, %s87
    %p91 = pneg %p85
    %p92 = scmp.eq.s32.totalorder %s12, 1
    %p93 = por %p91, %p92
    %p94 = scmp.ne.s32.totalorder %s86, %s89
    %p95 = scmp.eq.s32.totalorder %s12, 0
    %p96 = por %p94, %p95
    %p97 = scmp.ne.s32.totalorder %s86, %s89
    %p98 = scmp.eq.s32.totalorder %s17, 1
    %p99 = por %p97, %p98
    %p100 = scmp.ne.s32.totalorder %s89, %s90
    %p101 = scmp.eq.s32.totalorder %s17, 0
    %p102 = por %p100, %p101
    %p103 = scmp.ne.s32.totalorder %s89, %s90
    %p104 = scmp.eq.s32.totalorder %s18, 1
    %p105 = por %p103, %p104
    %p107 = scmp.ne.s32.totalorder %s90, %s106
    %p108 = scmp.eq.s32.totalorder %s18, 0
    %p109 = por %p107, %p108
    %s110 = ssub.s32 %s19, %s31
    %s111 = ssub.s32 %s20, %s27
    %s112 = sor.u32 %s110, %s111
    %p113 = scmp.eq.s32.totalorder %s112, 0
    %s115 = sadd.s32 %s114, 1
    %s116 = scalar_select %p113, %s114, %s115
    %p119 = pneg %p113
    %p120 = scmp.eq.s32.totalorder %s12, 1
    %p121 = por %p119, %p120
    %p122 = scmp.ne.s32.totalorder %s114, %s117
    %p123 = scmp.eq.s32.totalorder %s12, 0
    %p124 = por %p122, %p123
    %p125 = scmp.ne.s32.totalorder %s114, %s117
    %p126 = scmp.eq.s32.totalorder %s17, 1
    %p127 = por %p125, %p126
    %p128 = scmp.ne.s32.totalorder %s117, %s118
    %p129 = scmp.eq.s32.totalorder %s17, 0
    %p130 = por %p128, %p129
    %p131 = scmp.ne.s32.totalorder %s117, %s118
    %p132 = scmp.eq.s32.totalorder %s18, 1
    %p133 = por %p131, %p132
    %p135 = scmp.ne.s32.totalorder %s118, %s134
    %p136 = scmp.eq.s32.totalorder %s18, 0
    %p137 = por %p135, %p136
    %s138 = ssub.s32 %s19, %s31
    %s139 = ssub.s32 %s20, %s27
    %s140 = sor.u32 %s138, %s139
    %p141 = scmp.eq.s32.totalorder %s140, 0
    %s143 = sadd.s32 %s142, 1
    %s144 = scalar_select %p141, %s142, %s143
    %p147 = pneg %p141
    %p148 = scmp.eq.s32.totalorder %s12, 1
    %p149 = por %p147, %p148
    %p150 = scmp.ne.s32.totalorder %s142, %s145
    %p151 = scmp.eq.s32.totalorder %s12, 0
    %p152 = por %p150, %p151
    %p153 = scmp.ne.s32.totalorder %s142, %s145
    %p154 = scmp.eq.s32.totalorder %s17, 1
    %p155 = por %p153, %p154
    %p156 = scmp.ne.s32.totalorder %s145, %s146
    %p157 = scmp.eq.s32.totalorder %s17, 0
    %p158 = por %p156, %p157
    %p159 = scmp.ne.s32.totalorder %s145, %s146
    %p160 = scmp.eq.s32.totalorder %s18, 1
    %p161 = por %p159, %p160
    %p163 = scmp.ne.s32.totalorder %s146, %s162
    %p164 = scmp.eq.s32.totalorder %s18, 0
    %p165 = por %p163, %p164
    %s166 = ssub.s32 %s19, %s31
    %s167 = ssub.s32 %s20, %s27
    %s168 = sor.u32 %s166, %s167
    %p169 = scmp.eq.s32.totalorder %s168, 0
    %s171 = sadd.s32 %s170, 1
    %s172 = scalar_select %p169, %s170, %s171
    %p175 = pneg %p169
    %p176 = scmp.eq.s32.totalorder %s12, 1
    %p177 = por %p175, %p176
    %p178 = scmp.ne.s32.totalorder %s170, %s173
    %p179 = scmp.eq.s32.totalorder %s12, 0
    %p180 = por %p178, %p179
    %p181 = scmp.ne.s32.totalorder %s170, %s173
    %p182 = scmp.eq.s32.totalorder %s17, 1
    %p183 = por %p181, %p182
    %p184 = scmp.ne.s32.totalorder %s173, %s174
    %p185 = scmp.eq.s32.totalorder %s17, 0
    %p186 = por %p184, %p185
    %p187 = scmp.ne.s32.totalorder %s173, %s174
    %p188 = scmp.eq.s32.totalorder %s18, 1
    %p189 = por %p187, %p188
    %p191 = scmp.ne.s32.totalorder %s174, %s190
    %p192 = scmp.eq.s32.totalorder %s18, 0
    %p193 = por %p191, %p192
    %p194 = scmp.le.s32.totalorder 1, %s12
    %p195 = scmp.lt.s32.totalorder %s12, 3
    %p196 = pnand %p194, %p195
    %p197 = pneg %p196
    // Predicated region
    $region9: #{encoder_forward.6} parent=5 // pred_check
      _
    $region10: #{encoder_forward.6} parent=5 // pred_check_branch
      %199 = sbr.rel (%p196) target = $region12
    $region11: #{encoder_forward.6} parent=5 // pred_region
      %s200 = ssub.s32 %s12, 1
      // Predicated region
      $region13: #{encoder_forward.6} parent=11 // pred_check
        %p201 = pneg %p76
      $region14: #{encoder_forward.6} parent=11 // pred_check_branch
        %203 = sbr.rel (%p201) target = $region16
      $region15: #{encoder_forward.6} parent=11 // pred_region
        %p204 = scmp.lt.s32.totalorder %s22, 0
        %s205 = scalar_select %p204, %s22, 0
        %s206 = smul.addr %s205, 4
        %s207 = scalar_lea.vmem %s1, %s206
      $region16: #{encoder_forward.6} parent=11 // pred_fallthru
        _
      // Predicated region
      $region17: #{encoder_forward.6} parent=11 // pred_check
        %p208 = pneg %p102
      $region18: #{encoder_forward.6} parent=11 // pred_check_branch
        %210 = sbr.rel (%p208) target = $region20
      $region19: #{encoder_forward.6} parent=11 // pred_region
        %p211 = scmp.lt.s32.totalorder %s22, 0
        %s212 = scalar_select %p211, %s22, 0
        %s213 = scalar_lea.vmem %s2, %s212
      $region20: #{encoder_forward.6} parent=11 // pred_fallthru
        _
    $region12: #{encoder_forward.6} parent=5 // pred_fallthru
      _
    %p214 = scmp.lt.s32.totalorder %s12, 2
    // Predicated region
    $region21: #{encoder_forward.6} parent=5 // pred_check
      %p215 = pneg %p214
    $region22: #{encoder_forward.6} parent=5 // pred_check_branch
      %217 = sbr.rel (%p215) target = $region24
    $region23: #{encoder_forward.6} parent=5 // pred_region
      // Predicated region
      $region25: #{encoder_forward.6} parent=23 // pred_check
        %p218 = pneg %p44
      $region26: #{encoder_forward.6} parent=23 // pred_check_branch
        %220 = sbr.rel (%p218) target = $region28
      $region27: #{encoder_forward.6} parent=23 // pred_region
        %s221 = smul.u32 8, %s19
        %p222 = scmp.lt.s32.totalorder %s221, 15
        %s223 = scalar_select %p222, %s221, 15
        %s224 = smul.addr %s223, 4
        %s225 = smul.addr %s224, 4
        %s226 = scalar_lea.vmem %s0, %s225
        %s227 = smul.u32 8, %s19
      $region28: #{encoder_forward.6} parent=23 // pred_fallthru
        _
    $region24: #{encoder_forward.6} parent=5 // pred_fallthru
      _
    %p228 = scmp.le.s32.totalorder 1, %s12
    %p229 = scmp.lt.s32.totalorder %s12, 3
    %p230 = pnand %p228, %p229
    %p231 = pneg %p230
    // Predicated region
    $region29: #{encoder_forward.6} parent=5 // pred_check
      _
    $region30: #{encoder_forward.6} parent=5 // pred_check_branch
      %233 = sbr.rel (%p230) target = $region32
    $region31: #{encoder_forward.6} parent=5 // pred_region
      %s234 = ssub.s32 %s12, 1
      %s235 = smul.u32 8, %s21
      %p236 = scmp.lt.s32.totalorder %s235, 15
      %s237 = scalar_select %p236, %s235, 15
      %s238 = smul.addr %s237, 4
      %s239 = smul.addr %s238, 4
      %s240 = scalar_lea.vmem %s0, %s239
      %p241 = pneg %p50
      %p242 = pneg %p47
      %p243 = scmp.lt.s32.totalorder %s22, 0
      %s244 = scalar_select %p243, %s22, 0
      %s245 = smul.addr %s244, 4
      %s246 = scalar_lea.vmem %s1, %s245
      %p247 = pneg %p76
      %p248 = pneg %p73
      %p249 = scmp.lt.s32.totalorder %s22, 0
      %s250 = scalar_select %p249, %s22, 0
      %s251 = scalar_lea.vmem %s2, %s250
      %p252 = pneg %p102
      %p253 = pneg %p99
      %p254 = pneg %p130
      %p255 = pneg %p127
      %s256 = smul.u32 8, %s21
      %p257 = scmp.lt.s32.totalorder %s256, 15
      %s258 = scalar_select %p257, %s256, 15
      %p259 = scmp.lt.s32.totalorder %s22, 0
      %s260 = scalar_select %p259, %s22, 0
      %s261 = sadd.s32 %s260, %s258
      %s262 = smul.addr %s261, 4
      %s263 = scalar_lea.vmem %s3, %s262
      %p264 = pneg %p158
      %p265 = pneg %p155
      %p266 = scmp.lt.s32.totalorder %s21, 1
      %s267 = scalar_select %p266, %s21, 1
      %p268 = scmp.lt.s32.totalorder %s22, 0
      %s269 = scalar_select %p268, %s22, 0
      %s270 = sadd.s32 %s269, %s267
      %s271 = scalar_lea.vmem %s4, %s270
      %p272 = pneg %p186
      %p273 = pneg %p183
      %p274 = scmp.lt.s32.totalorder %s21, 1
      %s275 = scalar_select %p274, %s21, 1
      %p276 = scmp.lt.s32.totalorder %s22, 0
      %s277 = scalar_select %p276, %s22, 0
      %s278 = sadd.s32 %s277, %s275
      %s279 = scalar_lea.vmem %s5, %s278
      %s280 = smul.u32 8, %s21
      %p281 = scmp.lt.s32.totalorder %s280, 15
      %s282 = scalar_select %p281, %s280, 15
      %s283 = smul.addr %s282, 4
      %s284 = smul.addr %s283, 4
      %s285 = scalar_lea.vmem %s0, %s284
      %s286 = smul.u32 8, %s21
      %p287 = scmp.lt.s32.totalorder %s22, 0
      %s288 = scalar_select %p287, %s22, 0
      %s289 = smul.addr %s288, 4
      %s290 = scalar_lea.vmem %s1, %s289
      %p291 = scmp.lt.s32.totalorder %s22, 0
      %s292 = scalar_select %p291, %s22, 0
      %s293 = scalar_lea.vmem %s2, %s292
      %s294 = smul.u32 8, %s21
      %p295 = scmp.lt.s32.totalorder %s294, 15
      %s296 = scalar_select %p295, %s294, 15
      %p297 = scmp.lt.s32.totalorder %s22, 0
      %s298 = scalar_select %p297, %s22, 0
      %s299 = sadd.s32 %s298, %s296
      %s300 = smul.addr %s299, 4
      %s301 = scalar_lea.vmem %s3, %s300
      %s302 = smul.u32 8, %s21
      %p303 = scmp.lt.s32.totalorder %s21, 1
      %s304 = scalar_select %p303, %s21, 1
      %p305 = scmp.lt.s32.totalorder %s22, 0
      %s306 = scalar_select %p305, %s22, 0
      %s307 = sadd.s32 %s306, %s304
      %s308 = scalar_lea.vmem %s4, %s307
      %p309 = scmp.lt.s32.totalorder %s21, 1
      %s310 = scalar_select %p309, %s21, 1
      %p311 = scmp.lt.s32.totalorder %s22, 0
      %s312 = scalar_select %p311, %s22, 0
      %s313 = sadd.s32 %s312, %s310
      %s314 = scalar_lea.vmem %s5, %s313
      %v316 = vld [vmem:[%s285] sm:$0xff]
      %v317 = vld [vmem:[%s285 + $0x8] sm:$0xff]
      %v318 = vld [vmem:[%s285 + $0x10] sm:$0xff]
      %v319 = vld [vmem:[%s285 + $0x18] sm:$0xff]
      %v320 = vld [vmem:[%s285 + $0x20] sm:$0xff]
      %v321 = vld [vmem:[%s285 + $0x28] sm:$0xff]
      %v322 = vld [vmem:[%s285 + $0x30] sm:$0xff]
      %v323 = vld [vmem:[%s285 + $0x38] sm:$0xff]
      %v324 = vld [vmem:[%s285 + $0x40] sm:$0xff]
      %v325 = vld [vmem:[%s285 + $0x48] sm:$0xff]
      %v326 = vld [vmem:[%s285 + $0x50] sm:$0xff]
      %v327 = vld [vmem:[%s285 + $0x58] sm:$0xff]
      %v328 = vld [vmem:[%s285 + $0x60] sm:$0xff]
      %v329 = vld [vmem:[%s285 + $0x68] sm:$0xff]
      %v330 = vld [vmem:[%s285 + $0x70] sm:$0xff]
      %v331 = vld [vmem:[%s285 + $0x78] sm:$0xff]
      %v332 = vld [vmem:[%s290] sm:$0xf]
      %v333 = vld [vmem:[%s290 + $0x4] sm:$0xf]
      %v334 = vld [vmem:[%s290 + $0x8] sm:$0xf]
      %v335 = vld [vmem:[%s290 + $0xc] sm:$0xf]
      %v336 = vld [vmem:[%s290 + $0x10] sm:$0xf]
      %v337 = vld [vmem:[%s290 + $0x14] sm:$0xf]
      %v338 = vld [vmem:[%s290 + $0x18] sm:$0xf]
      %v339 = vld [vmem:[%s290 + $0x1c] sm:$0xf]
      %v340 = vld [vmem:[%s290 + $0x20] sm:$0xf]
      %v341 = vld [vmem:[%s290 + $0x24] sm:$0xf]
      %v342 = vld [vmem:[%s290 + $0x28] sm:$0xf]
      %v343 = vld [vmem:[%s290 + $0x2c] sm:$0xf]
      %v344 = vld [vmem:[%s290 + $0x30] sm:$0xf]
      %v345 = vld [vmem:[%s290 + $0x34] sm:$0xf]
      %v346 = vld [vmem:[%s290 + $0x38] sm:$0xf]
      %v347 = vld [vmem:[%s290 + $0x3c] sm:$0xf]
      %v348 = vld [vmem:[%s290 + $0x40] sm:$0xf]
      %v349 = vld [vmem:[%s290 + $0x44] sm:$0xf]
      %v350 = vld [vmem:[%s290 + $0x48] sm:$0xf]
      %v351 = vld [vmem:[%s290 + $0x4c] sm:$0xf]
      %v352 = vld [vmem:[%s290 + $0x50] sm:$0xf]
      %v353 = vld [vmem:[%s290 + $0x54] sm:$0xf]
      %v354 = vld [vmem:[%s290 + $0x58] sm:$0xf]
      %v355 = vld [vmem:[%s290 + $0x5c] sm:$0xf]
      %v356 = vld [vmem:[%s290 + $0x60] sm:$0xf]
      %v357 = vld [vmem:[%s290 + $0x64] sm:$0xf]
      %v358 = vld [vmem:[%s290 + $0x68] sm:$0xf]
      %v359 = vld [vmem:[%s290 + $0x6c] sm:$0xf]
      %v360 = vld [vmem:[%s290 + $0x70] sm:$0xf]
      %v361 = vld [vmem:[%s290 + $0x74] sm:$0xf]
      %v362 = vld [vmem:[%s290 + $0x78] sm:$0xf]
      %v363 = vld [vmem:[%s290 + $0x7c] sm:$0xf]
      %v364 = vld [vmem:[%s290 + $0x80] sm:$0xf]
      %v365 = vld [vmem:[%s290 + $0x84] sm:$0xf]
      %v366 = vld [vmem:[%s290 + $0x88] sm:$0xf]
      %v367 = vld [vmem:[%s290 + $0x8c] sm:$0xf]
      %v368 = vld [vmem:[%s290 + $0x90] sm:$0xf]
      %v369 = vld [vmem:[%s290 + $0x94] sm:$0xf]
      %v370 = vld [vmem:[%s290 + $0x98] sm:$0xf]
      %v371 = vld [vmem:[%s290 + $0x9c] sm:$0xf]
      %v372 = vld [vmem:[%s290 + $0xa0] sm:$0xf]
      %v373 = vld [vmem:[%s290 + $0xa4] sm:$0xf]
      %v374 = vld [vmem:[%s290 + $0xa8] sm:$0xf]
      %v375 = vld [vmem:[%s290 + $0xac] sm:$0xf]
      %v376 = vld [vmem:[%s290 + $0xb0] sm:$0xf]
      %v377 = vld [vmem:[%s290 + $0xb4] sm:$0xf]
      %v378 = vld [vmem:[%s290 + $0xb8] sm:$0xf]
      %v379 = vld [vmem:[%s290 + $0xbc] sm:$0xf]
      %v380 = vld [vmem:[%s290 + $0xc0] sm:$0xf]
      %v381 = vld [vmem:[%s290 + $0xc4] sm:$0xf]
      %v382 = vld [vmem:[%s293] sm:$0x1]
      %v384 = vlaneseq
      %v385 = vshrl.u32 %v384, 7
      %v386 = vsub.s32 0, %v385
      %v387 = vrot.slane %v382, %v386
      %v405 = vunpack.c.l.b16 %v316
      %v406 = vunpack.c.h.b16 %v316
      %v407 = vunpack.c.l.b16 %v317
      %v408 = vunpack.c.h.b16 %v317
      %v409 = vunpack.c.l.b16 %v318
      %v410 = vunpack.c.h.b16 %v318
      %v411 = vunpack.c.l.b16 %v319
      %v412 = vunpack.c.h.b16 %v319
      %v413 = vunpack.c.l.b16 %v320
      %v414 = vunpack.c.h.b16 %v320
      %v415 = vunpack.c.l.b16 %v321
      %v416 = vunpack.c.h.b16 %v321
      %v417 = vunpack.c.l.b16 %v322
      %v418 = vunpack.c.h.b16 %v322
      %v419 = vunpack.c.l.b16 %v323
      %v420 = vunpack.c.h.b16 %v323
      %v421 = vunpack.c.l.b16 %v324
      %v422 = vunpack.c.h.b16 %v324
      %v423 = vunpack.c.l.b16 %v325
      %v424 = vunpack.c.h.b16 %v325
      %v425 = vunpack.c.l.b16 %v326
      %v426 = vunpack.c.h.b16 %v326
      %v427 = vunpack.c.l.b16 %v327
      %v428 = vunpack.c.h.b16 %v327
      %v429 = vunpack.c.l.b16 %v328
      %v430 = vunpack.c.h.b16 %v328
      %v431 = vunpack.c.l.b16 %v329
      %v432 = vunpack.c.h.b16 %v329
      %v433 = vunpack.c.l.b16 %v330
      %v434 = vunpack.c.h.b16 %v330
      %v435 = vunpack.c.l.b16 %v331
      %v436 = vunpack.c.h.b16 %v331
      %v437 = vpack.c.b16 %v409, %v405
      %v438 = vpack.c.b16 %v410, %v406
      %v439 = vpack.c.b16 %v411, %v407
      %v440 = vpack.c.b16 %v412, %v408
      %v441 = vpack.c.b16 %v417, %v413
      %v442 = vpack.c.b16 %v418, %v414
      %v443 = vpack.c.b16 %v419, %v415
      %v444 = vpack.c.b16 %v420, %v416
      %v445 = vpack.c.b16 %v425, %v421
      %v446 = vpack.c.b16 %v426, %v422
      %v447 = vpack.c.b16 %v427, %v423
      %v448 = vpack.c.b16 %v428, %v424
      %v449 = vpack.c.b16 %v433, %v429
      %v450 = vpack.c.b16 %v434, %v430
      %v451 = vpack.c.b16 %v435, %v431
      %v452 = vpack.c.b16 %v436, %v432
      %v515 = vunpack.c.l.b16 %v332
      %v516 = vunpack.c.l.b16 %v333
      %v517 = vunpack.c.l.b16 %v334
      %v518 = vunpack.c.l.b16 %v335
      %v519 = vunpack.c.l.b16 %v336
      %v520 = vunpack.c.l.b16 %v337
      %v521 = vunpack.c.l.b16 %v338
      %v522 = vunpack.c.l.b16 %v339
      %v523 = vunpack.c.l.b16 %v340
      %v524 = vunpack.c.l.b16 %v341
      %v525 = vunpack.c.l.b16 %v342
      %v526 = vunpack.c.l.b16 %v343
      %v527 = vunpack.c.l.b16 %v344
      %v528 = vunpack.c.l.b16 %v345
      %v529 = vunpack.c.l.b16 %v346
      %v530 = vunpack.c.l.b16 %v347
      %v531 = vunpack.c.l.b16 %v348
      %v532 = vunpack.c.l.b16 %v349
      %v533 = vunpack.c.l.b16 %v350
      %v534 = vunpack.c.l.b16 %v351
      %v535 = vunpack.c.l.b16 %v352
      %v536 = vunpack.c.l.b16 %v353
      %v537 = vunpack.c.l.b16 %v354
      %v538 = vunpack.c.l.b16 %v355
      %v539 = vunpack.c.l.b16 %v356
      %v540 = vunpack.c.l.b16 %v357
      %v541 = vunpack.c.l.b16 %v358
      %v542 = vunpack.c.l.b16 %v359
      %v543 = vunpack.c.l.b16 %v360
      %v544 = vunpack.c.l.b16 %v361
      %v545 = vunpack.c.l.b16 %v362
      %v546 = vunpack.c.l.b16 %v363
      %v547 = vunpack.c.l.b16 %v364
      %v548 = vunpack.c.l.b16 %v365
      %v549 = vunpack.c.l.b16 %v366
      %v550 = vunpack.c.l.b16 %v367
      %v551 = vunpack.c.l.b16 %v368
      %v552 = vunpack.c.l.b16 %v369
      %v553 = vunpack.c.l.b16 %v370
      %v554 = vunpack.c.l.b16 %v371
      %v555 = vunpack.c.l.b16 %v372
      %v556 = vunpack.c.l.b16 %v373
      %v557 = vunpack.c.l.b16 %v374
      %v558 = vunpack.c.l.b16 %v375
      %v559 = vunpack.c.l.b16 %v376
      %v560 = vunpack.c.l.b16 %v377
      %v561 = vunpack.c.l.b16 %v378
      %v562 = vunpack.c.l.b16 %v379
      %v563 = vunpack.c.l.b16 %v380
      %v564 = vunpack.c.l.b16 %v381
      %v565 = vpack.c.b16 %v516, %v515
      %v566 = vpack.c.b16 %v518, %v517
      %v567 = vpack.c.b16 %v520, %v519
      %v568 = vpack.c.b16 %v522, %v521
      %v569 = vpack.c.b16 %v524, %v523
      %v570 = vpack.c.b16 %v526, %v525
      %v571 = vpack.c.b16 %v528, %v527
      %v572 = vpack.c.b16 %v530, %v529
      %v573 = vpack.c.b16 %v532, %v531
      %v574 = vpack.c.b16 %v534, %v533
      %v575 = vpack.c.b16 %v536, %v535
      %v576 = vpack.c.b16 %v538, %v537
      %v577 = vpack.c.b16 %v540, %v539
      %v578 = vpack.c.b16 %v542, %v541
      %v579 = vpack.c.b16 %v544, %v543
      %v580 = vpack.c.b16 %v546, %v545
      %v581 = vpack.c.b16 %v548, %v547
      %v582 = vpack.c.b16 %v550, %v549
      %v583 = vpack.c.b16 %v552, %v551
      %v584 = vpack.c.b16 %v554, %v553
      %v585 = vpack.c.b16 %v556, %v555
      %v586 = vpack.c.b16 %v558, %v557
      %v587 = vpack.c.b16 %v560, %v559
      %v588 = vpack.c.b16 %v562, %v561
      %v589 = vpack.c.b16 %v564, %v563
      %vm615 = vcmask 130048
      %v617 = vsel %vm615, %v440, 0
      %v620 = vsel %vm615, %v444, 0
      %v623 = vsel %vm615, %v448, 0
      %v626 = vsel %vm615, %v452, 0
      %628 = vmatprep.subr.bf16.mxu0 0
      %629 = vmatpush1.bf16.msra.mxu0 %v565
      %630 = vmatprep.subr.bf16.mxu0 0
      %631 = vmatpush1.bf16.msra.mxu0 %v566
      %632 = vmatprep.subr.bf16.mxu0 0
      %633 = vmatpush1.bf16.msra.mxu0 %v567
      %634 = vmatprep.subr.bf16.mxu0 0
      %635 = vmatpush1.bf16.msra.mxu0 %v568
      %636 = vmatprep.subr.bf16.mxu0 0
      %637 = vmatpush1.bf16.msra.mxu0 %v569
      %638 = vmatprep.subr.bf16.mxu0 0
      %639 = vmatpush1.bf16.msra.mxu0 %v570
      %640 = vmatprep.subr.bf16.mxu0 0
      %641 = vmatpush1.bf16.msra.mxu0 %v571
      %642 = vmatprep.subr.bf16.mxu0 0
      %643 = vmatpush1.bf16.msra.mxu0 %v572
      %644 = vmatprep.subr.bf16.mxu0 0
      %645 = vmatpush1.bf16.msra.mxu0 %v573
      %646 = vmatprep.subr.bf16.mxu0 0
      %647 = vmatpush1.bf16.msra.mxu0 %v574
      %648 = vmatprep.subr.bf16.mxu0 0
      %649 = vmatpush1.bf16.msra.mxu0 %v575
      %650 = vmatprep.subr.bf16.mxu0 0
      %651 = vmatpush1.bf16.msra.mxu0 %v576
      %652 = vmatprep.subr.bf16.mxu0 0
      %653 = vmatpush1.bf16.msra.mxu0 %v577
      %654 = vmatprep.subr.bf16.mxu0 0
      %655 = vmatpush1.bf16.msra.mxu0 %v578
      %656 = vmatprep.subr.bf16.mxu0 0
      %657 = vmatpush1.bf16.msra.mxu0 %v579
      %658 = vmatprep.subr.bf16.mxu0 0
      %659 = vmatpush1.bf16.msra.mxu0 %v580
      %660 = vmatprep.mubr.bf16.mxu0 %v438
      %661 = vmatmul.mubr.bf16.gmra.mrb[0].mxu0 %v437
      %v662 = vpop.f32.mrb[0].mxu0
      %v663 = vadd.f32 %v387, %v662
      %v664 = vpop.f32.mrb[0].mxu0
      %v665 = vpop.f32.mrb[0].mxu0
      %v666 = vadd.f32 %v387, %v665
      %v667 = vpop.f32.mrb[0].mxu0
      %668 = vmatprep.mubr.bf16.mxu0 %v442
      %669 = vmatmul.mubr.bf16.gmra.mrb[0].mxu0 %v441
      %v670 = vpop.f32.mrb[0].mxu0
      %v671 = vadd.f32 %v387, %v670
      %v672 = vpop.f32.mrb[0].mxu0
      %v673 = vpop.f32.mrb[0].mxu0
      %v674 = vadd.f32 %v387, %v673
      %v675 = vpop.f32.mrb[0].mxu0
      %676 = vmatprep.mubr.bf16.mxu0 %v446
      %677 = vmatmul.mubr.bf16.gmra.mrb[0].mxu0 %v445
      %v678 = vpop.f32.mrb[0].mxu0
      %v679 = vadd.f32 %v387, %v678
      %v680 = vpop.f32.mrb[0].mxu0
      %v681 = vpop.f32.mrb[0].mxu0
      %v682 = vadd.f32 %v387, %v681
      %v683 = vpop.f32.mrb[0].mxu0
      %684 = vmatprep.mubr.bf16.mxu0 %v450
      %685 = vmatmul.mubr.bf16.gmra.mrb[0].mxu0 %v449
      %v686 = vpop.f32.mrb[0].mxu0
      %v687 = vadd.f32 %v387, %v686
      %v688 = vpop.f32.mrb[0].mxu0
      %v689 = vpop.f32.mrb[0].mxu0
      %v690 = vadd.f32 %v387, %v689
      %v691 = vpop.f32.mrb[0].mxu0
      %692 = vdwg.mxu0
      %693 = vmatprep.subr.bf16.mxu0 0
      %694 = vmatpush1.bf16.msra.mxu0 %v581
      %695 = vmatprep.subr.bf16.mxu0 0
      %696 = vmatpush1.bf16.msra.mxu0 %v582
      %697 = vmatprep.subr.bf16.mxu0 0
      %698 = vmatpush1.bf16.msra.mxu0 %v583
      %699 = vmatprep.subr.bf16.mxu0 0
      %700 = vmatpush1.bf16.msra.mxu0 %v584
      %701 = vmatprep.subr.bf16.mxu0 0
      %702 = vmatpush1.bf16.msra.mxu0 %v585
      %703 = vmatprep.subr.bf16.mxu0 0
      %704 = vmatpush1.bf16.msra.mxu0 %v586
      %705 = vmatprep.subr.bf16.mxu0 0
      %706 = vmatpush1.bf16.msra.mxu0 %v587
      %707 = vmatprep.subr.bf16.mxu0 0
      %708 = vmatpush1.bf16.msra.mxu0 %v588
      %709 = vmatprep.subr.bf16.mxu0 0
      %710 = vmatpush1.bf16.msra.mxu0 %v589
      %711 = vmatprep.subr.bf16.mxu0 0
      %712 = vmatpush1.bf16.msra.mxu0 0
      %713 = vmatprep.subr.bf16.mxu0 0
      %714 = vmatpush1.bf16.msra.mxu0 0
      %715 = vmatprep.subr.bf16.mxu0 0
      %716 = vmatpush1.bf16.msra.mxu0 0
      %717 = vmatprep.subr.bf16.mxu0 0
      %718 = vmatpush1.bf16.msra.mxu0 0
      %719 = vmatprep.subr.bf16.mxu0 0
      %720 = vmatpush1.bf16.msra.mxu0 0
      %721 = vmatprep.subr.bf16.mxu0 0
      %722 = vmatpush1.bf16.msra.mxu0 0
      %723 = vmatprep.subr.bf16.mxu0 0
      %724 = vmatpush1.bf16.msra.mxu0 0
      %725 = vmatprep.mubr.bf16.mxu0 %v617
      %726 = vmatmul.mubr.bf16.gmra.mrb[0].mxu0 %v439
      %v727 = vpop.f32.mrb[0].mxu0
      %v728 = vadd.f32 %v663, %v727
      %v729 = vpop.f32.mrb[0].mxu0
      %v730 = vpop.f32.mrb[0].mxu0
      %v731 = vadd.f32 %v666, %v730
      %v732 = vpop.f32.mrb[0].mxu0
      %733 = vmatprep.mubr.bf16.mxu0 %v620
      %734 = vmatmul.mubr.bf16.gmra.mrb[0].mxu0 %v443
      %v735 = vpop.f32.mrb[0].mxu0
      %v736 = vadd.f32 %v671, %v735
      %v737 = vpop.f32.mrb[0].mxu0
      %v738 = vpop.f32.mrb[0].mxu0
      %v739 = vadd.f32 %v674, %v738
      %v740 = vpop.f32.mrb[0].mxu0
      %741 = vmatprep.mubr.bf16.mxu0 %v623
      %742 = vmatmul.mubr.bf16.gmra.mrb[0].mxu0 %v447
      %v743 = vpop.f32.mrb[0].mxu0
      %v744 = vadd.f32 %v679, %v743
      %v745 = vpop.f32.mrb[0].mxu0
      %v746 = vpop.f32.mrb[0].mxu0
      %v747 = vadd.f32 %v682, %v746
      %v748 = vpop.f32.mrb[0].mxu0
      %749 = vmatprep.mubr.bf16.mxu0 %v626
      %750 = vmatmul.mubr.bf16.gmra.mrb[0].mxu0 %v451
      %v751 = vpop.f32.mrb[0].mxu0
      %v752 = vadd.f32 %v687, %v751
      %v753 = vpop.f32.mrb[0].mxu0
      %v754 = vpop.f32.mrb[0].mxu0
      %v755 = vadd.f32 %v690, %v754
      %v756 = vpop.f32.mrb[0].mxu0
      %757 = vdwg.mxu0
      %v758 = vpack.c.bf16 %v731, %v728
      %v759 = vpack.c.bf16 %v739, %v736
      %v760 = vpack.c.bf16 %v747, %v744
      %v761 = vpack.c.bf16 %v755, %v752
      %v766 = vunpack.c.l.b16 %v758
      %v767 = vunpack.c.h.b16 %v758
      %v768 = vunpack.c.l.b16 %v759
      %v769 = vunpack.c.h.b16 %v759
      %v770 = vunpack.c.l.b16 %v760
      %v771 = vunpack.c.h.b16 %v760
      %v772 = vunpack.c.l.b16 %v761
      %v773 = vunpack.c.h.b16 %v761
      %v774 = vpack.c.b16 %v766, %v766
      %v775 = vpack.c.b16 %v767, %v767
      %v776 = vpack.c.b16 %v768, %v768
      %v777 = vpack.c.b16 %v769, %v769
      %v778 = vpack.c.b16 %v770, %v770
      %v779 = vpack.c.b16 %v771, %v771
      %v780 = vpack.c.b16 %v772, %v772
      %v781 = vpack.c.b16 %v773, %v773
      %790 = vst [vmem:[%s301] sm:$0xf] %v774
      %791 = vst [vmem:[%s301 + $0x4] sm:$0xf] %v775
      %792 = vst [vmem:[%s301 + $0x8] sm:$0xf] %v776
      %793 = vst [vmem:[%s301 + $0xc] sm:$0xf] %v777
      %794 = vst [vmem:[%s301 + $0x10] sm:$0xf] %v778
      %795 = vst [vmem:[%s301 + $0x14] sm:$0xf] %v779
      %796 = vst [vmem:[%s301 + $0x18] sm:$0xf] %v780
      %797 = vst [vmem:[%s301 + $0x1c] sm:$0xf] %v781
      %v798 = vadd.f32 %v728, %v731
      %v799 = vadd.f32 %v798, %v736
      %v800 = vadd.f32 %v799, %v739
      %v801 = vadd.f32 %v800, %v744
      %v802 = vadd.f32 %v801, %v747
      %v803 = vadd.f32 %v802, %v752
      %v804 = vadd.f32 %v803, %v755
      %v805 = vrot.slane %v804, 4
      %v806 = vadd.f32 %v804, %v805
      %v807 = vrot.slane %v806, 2
      %v808 = vadd.f32 %v806, %v807
      %v809 = vrot.slane %v808, 1
      %v810 = vadd.f32 %v808, %v809
      %811 = vst [vmem:[%s308] sm:$0x1] %v810
      %v812 = vmul.f32 %v728, %v728
      %v813 = vmul.f32 %v731, %v731
      %v814 = vmul.f32 %v736, %v736
      %v815 = vmul.f32 %v739, %v739
      %v816 = vmul.f32 %v744, %v744
      %v817 = vmul.f32 %v747, %v747
      %v818 = vmul.f32 %v752, %v752
      %v819 = vmul.f32 %v755, %v755
      %v820 = vadd.f32 %v812, %v813
      %v821 = vadd.f32 %v820, %v814
      %v822 = vadd.f32 %v821, %v815
      %v823 = vadd.f32 %v822, %v816
      %v824 = vadd.f32 %v823, %v817
      %v825 = vadd.f32 %v824, %v818
      %v826 = vadd.f32 %v825, %v819
      %v827 = vrot.slane %v826, 4
      %v828 = vadd.f32 %v826, %v827
      %v829 = vrot.slane %v828, 2
      %v830 = vadd.f32 %v828, %v829
      %v831 = vrot.slane %v830, 1
      %v832 = vadd.f32 %v830, %v831
      %833 = vst [vmem:[%s314] sm:$0x1] %v832
      %s834 = smul.u32 8, %s21
      %p835 = scmp.lt.s32.totalorder %s834, 15
      %s836 = scalar_select %p835, %s834, 15
      %p837 = scmp.lt.s32.totalorder %s22, 0
      %s838 = scalar_select %p837, %s22, 0
      %s839 = sadd.s32 %s838, %s836
      %s840 = smul.addr %s839, 4
      %s841 = scalar_lea.vmem %s3, %s840
      %p842 = scmp.lt.s32.totalorder %s21, 1
      %s843 = scalar_select %p842, %s21, 1
      %p844 = scmp.lt.s32.totalorder %s22, 0
      %s845 = scalar_select %p844, %s22, 0
      %s846 = sadd.s32 %s845, %s843
      %s847 = scalar_lea.vmem %s4, %s846
      %p848 = scmp.lt.s32.totalorder %s21, 1
      %s849 = scalar_select %p848, %s21, 1
      %p850 = scmp.lt.s32.totalorder %s22, 0
      %s851 = scalar_select %p850, %s22, 0
      %s852 = sadd.s32 %s851, %s849
      %s853 = scalar_lea.vmem %s5, %s852
      // Predicated region
      $region33: #{encoder_forward.6} parent=31 // pred_check
        %p854 = pneg %p127
      $region34: #{encoder_forward.6} parent=31 // pred_check_branch
        %856 = sbr.rel (%p854) target = $region36
      $region35: #{encoder_forward.6} parent=31 // pred_region
        %s857 = smul.u32 8, %s21
      $region36: #{encoder_forward.6} parent=31 // pred_fallthru
        _
      // Predicated region
      $region37: #{encoder_forward.6} parent=31 // pred_check
        %p858 = pneg %p155
      $region38: #{encoder_forward.6} parent=31 // pred_check_branch
        %860 = sbr.rel (%p858) target = $region40
      $region39: #{encoder_forward.6} parent=31 // pred_region
        _
      $region40: #{encoder_forward.6} parent=31 // pred_fallthru
        _
      // Predicated region
      $region41: #{encoder_forward.6} parent=31 // pred_check
        %p861 = pneg %p183
      $region42: #{encoder_forward.6} parent=31 // pred_check_branch
        %863 = sbr.rel (%p861) target = $region44
      $region43: #{encoder_forward.6} parent=31 // pred_region
        _
      $region44: #{encoder_forward.6} parent=31 // pred_fallthru
        _
    $region32: #{encoder_forward.6} parent=5 // pred_fallthru
      _
    %p864 = scmp.le.s32.totalorder 2, %s12
    // Predicated region
    $region45: #{encoder_forward.6} parent=5 // pred_check
      %p865 = pneg %p864
    $region46: #{encoder_forward.6} parent=5 // pred_check_branch
      %867 = sbr.rel (%p865) target = $region48
    $region47: #{encoder_forward.6} parent=5 // pred_region
      %s868 = ssub.s32 %s12, 2
      // Predicated region
      $region49: #{encoder_forward.6} parent=47 // pred_check
        %p869 = pneg %p133
      $region50: #{encoder_forward.6} parent=47 // pred_check_branch
        %871 = sbr.rel (%p869) target = $region52
      $region51: #{encoder_forward.6} parent=47 // pred_region
        %s872 = smul.u32 8, %s23
        %p873 = scmp.lt.s32.totalorder %s872, 15
        %s874 = scalar_select %p873, %s872, 15
        %p875 = scmp.lt.s32.totalorder %s24, 0
        %s876 = scalar_select %p875, %s24, 0
        %s877 = sadd.s32 %s876, %s874
        %s878 = smul.addr %s877, 4
        %s879 = scalar_lea.vmem %s3, %s878
      $region52: #{encoder_forward.6} parent=47 // pred_fallthru
        _
      // Predicated region
      $region53: #{encoder_forward.6} parent=47 // pred_check
        %p880 = pneg %p161
      $region54: #{encoder_forward.6} parent=47 // pred_check_branch
        %882 = sbr.rel (%p880) target = $region56
      $region55: #{encoder_forward.6} parent=47 // pred_region
        %p883 = scmp.lt.s32.totalorder %s23, 1
        %s884 = scalar_select %p883, %s23, 1
        %p885 = scmp.lt.s32.totalorder %s24, 0
        %s886 = scalar_select %p885, %s24, 0
        %s887 = sadd.s32 %s886, %s884
        %s888 = scalar_lea.vmem %s4, %s887
      $region56: #{encoder_forward.6} parent=47 // pred_fallthru
        _
      // Predicated region
      $region57: #{encoder_forward.6} parent=47 // pred_check
        %p889 = pneg %p189
      $region58: #{encoder_forward.6} parent=47 // pred_check_branch
        %891 = sbr.rel (%p889) target = $region60
      $region59: #{encoder_forward.6} parent=47 // pred_region
        %p892 = scmp.lt.s32.totalorder %s23, 1
        %s893 = scalar_select %p892, %s23, 1
        %p894 = scmp.lt.s32.totalorder %s24, 0
        %s895 = scalar_select %p894, %s24, 0
        %s896 = sadd.s32 %s895, %s893
        %s897 = scalar_lea.vmem %s5, %s896
      $region60: #{encoder_forward.6} parent=47 // pred_fallthru
        _
    $region48: #{encoder_forward.6} parent=5 // pred_fallthru
      _
  $region6: #{encoder_forward.6} parent=0 // loop_footer
    %s16 = sadd.s32 1, %s12
  $region7: #{encoder_forward.6} parent=0 // loop_footer_branch
    %11 = sbr.rel target = $region3
  $region8: #{encoder_forward.6} parent=0 // loop_exit
    _

// kernel: encoder_forward.7
$region0: #{encoder_forward.7}
  #allocation0 [shape = 'u32[]', space=smem, size = 0x4, offset = 0x4, fixed_abs, tag = 'smem constant byte address 0x4 - core index']
  #allocation1 [shape = 'u32[144,128]{1,0:T(1,128)}', space=vmem, size = 0x12000, scoped, tag = 'internal scratch']
  #allocation2 [shape = 'f32[2,2048]{1,0:T(2,128)}', space=vmem, size = 0x4000, scoped, tag = 'scratch operand']
  %s0 = inlined_call_operand.hbm [shape: bf16[2,2048], index: 0, kind: input, shape index: {}]
  %s1 = inlined_call_operand.vmem [shape: bf16[2,2048,2048], index: 1, kind: input, shape index: {}]
  %s2 = inlined_call_operand.hbm [shape: f32[2,1,2048], index: 2, kind: input, shape index: {}]
  %s3 = inlined_call_operand.hbm [shape: f32[2,1,2048], index: 3, kind: input, shape index: {}]
  %s4 = inlined_call_operand.hbm [shape: f32[2,1,2048], index: 4, kind: input, shape index: {}]
  %s5 = inlined_call_operand.hbm [shape: bf16[2,2048,128], index: 5, kind: input, shape index: {}]
  %s6 = inlined_call_operand.hbm [shape: f32[2,1,128], index: 6, kind: input, shape index: {}]
  %s7 = inlined_call_operand.vmem [shape: f32[2,2,128], index: 7, kind: output, shape index: {}]
  %s8 = sld [smem:[#allocation0]]
  $region93: #{encoder_forward.7} parent=0
    _
  %s10 = ssub.s32 1, %s8
  %s11 = scalar_select 0, %s10, %s8
  $region1: #{encoder_forward.7} parent=0
    #allocation3 [shape = 'u8[4096]{0}', space=vmem, size = 0x1000, scoped, tag = 'input window, operand 0']
    #allocation4 [shape = 's32[2]{0}', space=sflag, size = 0x8, scoped, tag = 'scoped memory for encoder_forward.7']
    #allocation5 [shape = 'u8[16384]{0}', space=vmem, size = 0x4000, scoped, tag = 'input window, operand 2']
    #allocation6 [shape = 's32[2]{0}', space=sflag, size = 0x8, scoped, tag = 'scoped memory for encoder_forward.7']
    #allocation7 [shape = 'u8[16384]{0}', space=vmem, size = 0x4000, scoped, tag = 'input window, operand 3']
    #allocation8 [shape = 'u8[16384]{0}', space=vmem, size = 0x4000, scoped, tag = 'input window, operand 4']
    #allocation9 [shape = 's32[2]{0}', space=sflag, size = 0x8, scoped, tag = 'scoped memory for encoder_forward.7']
    #allocation10 [shape = 'u8[1048576]{0}', space=vmem, size = 0x100000, scoped, tag = 'input window, operand 5']
    #allocation11 [shape = 'u8[1024]{0}', space=vmem, size = 0x400, scoped, tag = 'input window, operand 6']
    #allocation12 [shape = 's32[2]{0}', space=sflag, size = 0x8, scoped, tag = 'scoped memory for encoder_forward.7']
    %12 = vsyncpa [#allocation4], 0
    %s13 = scalar_lea.sflag [#allocation4], 1
    %14 = vsyncpa %s13, 0
    %15 = vsyncpa [#allocation6], 0
    %s16 = scalar_lea.sflag [#allocation6], 1
    %17 = vsyncpa %s16, 0
    %18 = vsyncpa [#allocation9], 0
    %s19 = scalar_lea.sflag [#allocation9], 1
    %20 = vsyncpa %s19, 0
    %21 = vsyncpa [#allocation12], 0
    %s22 = scalar_lea.sflag [#allocation12], 1
    %23 = vsyncpa %s22, 0
    loop: start=0, step=1, limit=10
    $region2: #{encoder_forward.7} parent=1 // loop_pre_header
      _
    $region3: #{encoder_forward.7} parent=1 // loop_header
      %s25 = sphi 0, %s29
      %p26 = scmp.ge.s32.totalorder %s25, 10
      %s32 = sphi 0, %s44
      %s33 = sphi 0, %s40
      %s34 = sphi 0, %s32
      %s35 = sphi 0, %s33
      %s36 = sphi 0, %s34
      %s37 = sphi 0, %s35
      %s47 = sphi 0, %s49
      %s50 = sphi 0, %s47
      %s51 = sphi 0, %s50
      %s67 = sphi 0, %s51
      %s75 = sphi 0, %s77
      %s78 = sphi 0, %s75
      %s79 = sphi 0, %s78
      %s95 = sphi 0, %s79
      %s101 = sphi 0, %s103
      %s104 = sphi 0, %s101
      %s105 = sphi 0, %s104
      %s121 = sphi 0, %s105
      %s127 = sphi 0, %s129
      %s130 = sphi 0, %s127
      %s131 = sphi 0, %s130
      %s147 = sphi 0, %s131
      %s153 = sphi 0, %s155
      %s156 = sphi 0, %s153
      %s157 = sphi 0, %s156
      %s173 = sphi 0, %s157
      %s179 = sphi 0, %s181
      %s182 = sphi 0, %s179
      %s183 = sphi 0, %s182
      %s199 = sphi 0, %s183
      %s205 = sphi 0, %s207
      %s208 = sphi 0, %s205
      %s209 = sphi 0, %s208
      %s225 = sphi 0, %s209
      %s231 = sphi 0, %s233
      %s234 = sphi 0, %s231
      %s235 = sphi 0, %s234
      %s251 = sphi 0, %s235
    $region4: #{encoder_forward.7} parent=1 // loop_header_branch
      %28 = sbr.rel (%p26) target = $region8
    $region5: #{encoder_forward.7} parent=1 // loop_body
      %s30 = ssub.s32 %s25, 1
      %s31 = ssub.s32 %s25, 2
      %s38 = sadd.s32 1, %s33
      %p39 = scmp.ge.s32.totalorder %s38, 4
      %s40 = scalar_select %p39, 0, %s38
      %s41 = sadd.s32 1, %s32
      %s42 = scalar_select %p39, %s41, %s32
      %p43 = scmp.ge.s32.totalorder %s42, 2
      %s44 = scalar_select %p43, 0, %s42
      %s45 = ssub.s32 %s33, %s40
      %p46 = scmp.eq.s32.totalorder %s45, 0
      %s48 = sadd.s32 %s47, 1
      %s49 = scalar_select %p46, %s47, %s48
      %p52 = pneg %p46
      %p53 = scmp.eq.s32.totalorder %s25, 7
      %p54 = por %p52, %p53
      %p55 = scmp.ne.s32.totalorder %s47, %s50
      %p56 = scmp.eq.s32.totalorder %s25, 0
      %p57 = por %p55, %p56
      %p58 = scmp.ne.s32.totalorder %s47, %s50
      %p59 = scmp.eq.s32.totalorder %s30, 7
      %p60 = por %p58, %p59
      %p61 = scmp.ne.s32.totalorder %s50, %s51
      %p62 = scmp.eq.s32.totalorder %s30, 0
      %p63 = por %p61, %p62
      %p64 = scmp.ne.s32.totalorder %s50, %s51
      %p65 = scmp.eq.s32.totalorder %s31, 7
      %p66 = por %p64, %p65
      %p68 = scmp.ne.s32.totalorder %s51, %s67
      %p69 = scmp.eq.s32.totalorder %s31, 0
      %p70 = por %p68, %p69
      %s71 = ssub.s32 %s32, %s44
      %s72 = ssub.s32 %s33, %s40
      %s73 = sor.u32 %s71, %s72
      %p74 = scmp.eq.s32.totalorder %s73, 0
      %s76 = sadd.s32 %s75, 1
      %s77 = scalar_select %p74, %s75, %s76
      %p80 = pneg %p74
      %p81 = scmp.eq.s32.totalorder %s25, 7
      %p82 = por %p80, %p81
      %p83 = scmp.ne.s32.totalorder %s75, %s78
      %p84 = scmp.eq.s32.totalorder %s25, 0
      %p85 = por %p83, %p84
      %p86 = scmp.ne.s32.totalorder %s75, %s78
      %p87 = scmp.eq.s32.totalorder %s30, 7
      %p88 = por %p86, %p87
      %p89 = scmp.ne.s32.totalorder %s78, %s79
      %p90 = scmp.eq.s32.totalorder %s30, 0
      %p91 = por %p89, %p90
      %p92 = scmp.ne.s32.totalorder %s78, %s79
      %p93 = scmp.eq.s32.totalorder %s31, 7
      %p94 = por %p92, %p93
      %p96 = scmp.ne.s32.totalorder %s79, %s95
      %p97 = scmp.eq.s32.totalorder %s31, 0
      %p98 = por %p96, %p97
      %s99 = ssub.s32 %s32, %s44
      %p100 = scmp.eq.s32.totalorder %s99, 0
      %s102 = sadd.s32 %s101, 1
      %s103 = scalar_select %p100, %s101, %s102
      %p106 = pneg %p100
      %p107 = scmp.eq.s32.totalorder %s25, 7
      %p108 = por %p106, %p107
      %p109 = scmp.ne.s32.totalorder %s101, %s104
      %p110 = scmp.eq.s32.totalorder %s25, 0
      %p111 = por %p109, %p110
      %p112 = scmp.ne.s32.totalorder %s101, %s104
      %p113 = scmp.eq.s32.totalorder %s30, 7
      %p114 = por %p112, %p113
      %p115 = scmp.ne.s32.totalorder %s104, %s105
      %p116 = scmp.eq.s32.totalorder %s30, 0
      %p117 = por %p115, %p116
      %p118 = scmp.ne.s32.totalorder %s104, %s105
      %p119 = scmp.eq.s32.totalorder %s31, 7
      %p120 = por %p118, %p119
      %p122 = scmp.ne.s32.totalorder %s105, %s121
      %p123 = scmp.eq.s32.totalorder %s31, 0
      %p124 = por %p122, %p123
      %s125 = ssub.s32 %s32, %s44
      %p126 = scmp.eq.s32.totalorder %s125, 0
      %s128 = sadd.s32 %s127, 1
      %s129 = scalar_select %p126, %s127, %s128
      %p132 = pneg %p126
      %p133 = scmp.eq.s32.totalorder %s25, 7
      %p134 = por %p132, %p133
      %p135 = scmp.ne.s32.totalorder %s127, %s130
      %p136 = scmp.eq.s32.totalorder %s25, 0
      %p137 = por %p135, %p136
      %p138 = scmp.ne.s32.totalorder %s127, %s130
      %p139 = scmp.eq.s32.totalorder %s30, 7
      %p140 = por %p138, %p139
      %p141 = scmp.ne.s32.totalorder %s130, %s131
      %p142 = scmp.eq.s32.totalorder %s30, 0
      %p143 = por %p141, %p142
      %p144 = scmp.ne.s32.totalorder %s130, %s131
      %p145 = scmp.eq.s32.totalorder %s31, 7
      %p146 = por %p144, %p145
      %p148 = scmp.ne.s32.totalorder %s131, %s147
      %p149 = scmp.eq.s32.totalorder %s31, 0
      %p150 = por %p148, %p149
      %s151 = ssub.s32 %s32, %s44
      %p152 = scmp.eq.s32.totalorder %s151, 0
      %s154 = sadd.s32 %s153, 1
      %s155 = scalar_select %p152, %s153, %s154
      %p158 = pneg %p152
      %p159 = scmp.eq.s32.totalorder %s25, 7
      %p160 = por %p158, %p159
      %p161 = scmp.ne.s32.totalorder %s153, %s156
      %p162 = scmp.eq.s32.totalorder %s25, 0
      %p163 = por %p161, %p162
      %p164 = scmp.ne.s32.totalorder %s153, %s156
      %p165 = scmp.eq.s32.totalorder %s30, 7
      %p166 = por %p164, %p165
      %p167 = scmp.ne.s32.totalorder %s156, %s157
      %p168 = scmp.eq.s32.totalorder %s30, 0
      %p169 = por %p167, %p168
      %p170 = scmp.ne.s32.totalorder %s156, %s157
      %p171 = scmp.eq.s32.totalorder %s31, 7
      %p172 = por %p170, %p171
      %p174 = scmp.ne.s32.totalorder %s157, %s173
      %p175 = scmp.eq.s32.totalorder %s31, 0
      %p176 = por %p174, %p175
      %s177 = ssub.s32 %s32, %s44
      %p178 = scmp.eq.s32.totalorder %s177, 0
      %s180 = sadd.s32 %s179, 1
      %s181 = scalar_select %p178, %s179, %s180
      %p184 = pneg %p178
      %p185 = scmp.eq.s32.totalorder %s25, 7
      %p186 = por %p184, %p185
      %p187 = scmp.ne.s32.totalorder %s179, %s182
      %p188 = scmp.eq.s32.totalorder %s25, 0
      %p189 = por %p187, %p188
      %p190 = scmp.ne.s32.totalorder %s179, %s182
      %p191 = scmp.eq.s32.totalorder %s30, 7
      %p192 = por %p190, %p191
      %p193 = scmp.ne.s32.totalorder %s182, %s183
      %p194 = scmp.eq.s32.totalorder %s30, 0
      %p195 = por %p193, %p194
      %p196 = scmp.ne.s32.totalorder %s182, %s183
      %p197 = scmp.eq.s32.totalorder %s31, 7
      %p198 = por %p196, %p197
      %p200 = scmp.ne.s32.totalorder %s183, %s199
      %p201 = scmp.eq.s32.totalorder %s31, 0
      %p202 = por %p200, %p201
      %s203 = ssub.s32 %s32, %s44
      %p204 = scmp.eq.s32.totalorder %s203, 0
      %s206 = sadd.s32 %s205, 1
      %s207 = scalar_select %p204, %s205, %s206
      %p210 = pneg %p204
      %p211 = scmp.eq.s32.totalorder %s25, 7
      %p212 = por %p210, %p211
      %p213 = scmp.ne.s32.totalorder %s205, %s208
      %p214 = scmp.eq.s32.totalorder %s25, 0
      %p215 = por %p213, %p214
      %p216 = scmp.ne.s32.totalorder %s205, %s208
      %p217 = scmp.eq.s32.totalorder %s30, 7
      %p218 = por %p216, %p217
      %p219 = scmp.ne.s32.totalorder %s208, %s209
      %p220 = scmp.eq.s32.totalorder %s30, 0
      %p221 = por %p219, %p220
      %p222 = scmp.ne.s32.totalorder %s208, %s209
      %p223 = scmp.eq.s32.totalorder %s31, 7
      %p224 = por %p222, %p223
      %p226 = scmp.ne.s32.totalorder %s209, %s225
      %p227 = scmp.eq.s32.totalorder %s31, 0
      %p228 = por %p226, %p227
      %s229 = ssub.s32 %s32, %s44
      %p230 = scmp.eq.s32.totalorder %s229, 0
      %s232 = sadd.s32 %s231, 1
      %s233 = scalar_select %p230, %s231, %s232
      %p236 = pneg %p230
      %p237 = scmp.eq.s32.totalorder %s25, 7
      %p238 = por %p236, %p237
      %p239 = scmp.ne.s32.totalorder %s231, %s234
      %p240 = scmp.eq.s32.totalorder %s25, 0
      %p241 = por %p239, %p240
      %p242 = scmp.ne.s32.totalorder %s231, %s234
      %p243 = scmp.eq.s32.totalorder %s30, 7
      %p244 = por %p242, %p243
      %p245 = scmp.ne.s32.totalorder %s234, %s235
      %p246 = scmp.eq.s32.totalorder %s30, 0
      %p247 = por %p245, %p246
      %p248 = scmp.ne.s32.totalorder %s234, %s235
      %p249 = scmp.eq.s32.totalorder %s31, 7
      %p250 = por %p248, %p249
      %p252 = scmp.ne.s32.totalorder %s235, %s251
      %p253 = scmp.eq.s32.totalorder %s31, 0
      %p254 = por %p252, %p253
      %p255 = scmp.le.s32.totalorder 1, %s25
      %p256 = scmp.lt.s32.totalorder %s25, 9
      %p257 = pnand %p255, %p256
      %p258 = pneg %p257
      // Predicated region
      $region9: #{encoder_forward.7} parent=5 // pred_check
        _
      $region10: #{encoder_forward.7} parent=5 // pred_check_branch
        %260 = sbr.rel (%p257) target = $region12
      $region11: #{encoder_forward.7} parent=5 // pred_region
        %s261 = ssub.s32 %s25, 1
      $region12: #{encoder_forward.7} parent=5 // pred_fallthru
        _
      %p262 = scmp.lt.s32.totalorder %s25, 8
      // Predicated region
      $region13: #{encoder_forward.7} parent=5 // pred_check
        %p263 = pneg %p262
      $region14: #{encoder_forward.7} parent=5 // pred_check_branch
        %265 = sbr.rel (%p263) target = $region16
      $region15: #{encoder_forward.7} parent=5 // pred_region
        // Predicated region
        $region17: #{encoder_forward.7} parent=15 // pred_check
          %p266 = pneg %p57
        $region18: #{encoder_forward.7} parent=15 // pred_check_branch
          %268 = sbr.rel (%p266) target = $region20
        $region19: #{encoder_forward.7} parent=15 // pred_region
          %s269 = sand.u32 %s47, 1
          %s270 = scalar_lea.sflag [#allocation4], %s269
          %s271 = sand.u32 %s47, 1
          %s272 = smul.addr %s271, 4
          %s273 = scalar_lea.vmem [#allocation3], %s272
          %s274 = smul.u32 4, %s33
          %s276 = ssub.s32 64, 64
          %277 = vsyncadd %s270, %s276
          %s278 = smul.addr %s274, 16
          %s279 = scalar_lea.hbm %s0, %s278
          %s281 = sshll.u32 %s273, 4
          %s282 = int_to_ptr.vmem [resolvable:$true] %s281
          %284 = dma.hbm_to_vmem [thread:$0]  %s279, 64, %s282, %s270
        $region20: #{encoder_forward.7} parent=15 // pred_fallthru
          _
        // Predicated region
        $region21: #{encoder_forward.7} parent=15 // pred_check
          %p285 = pneg %p85
        $region22: #{encoder_forward.7} parent=15 // pred_check_branch
          %287 = sbr.rel (%p285) target = $region24
        $region23: #{encoder_forward.7} parent=15 // pred_region
          %s288 = smul.u32 64, %s33
          %p289 = scmp.lt.s32.totalorder %s32, 1
          %s290 = scalar_select %p289, %s32, 1
          %p291 = scmp.lt.s32.totalorder %s288, 255
          %s292 = scalar_select %p291, %s288, 255
          %s293 = smul.addr %s292, 16
          %s294 = smul.addr %s290, 4096
          %s295 = sadd.s32 %s293, %s294
          %s296 = smul.addr %s295, 4
          %s297 = scalar_lea.vmem %s1, %s296
          %s298 = smul.u32 64, %s33
        $region24: #{encoder_forward.7} parent=15 // pred_fallthru
          _
        // Predicated region
        $region25: #{encoder_forward.7} parent=15 // pred_check
          %p299 = pneg %p111
        $region26: #{encoder_forward.7} parent=15 // pred_check_branch
          %301 = sbr.rel (%p299) target = $region28
        $region27: #{encoder_forward.7} parent=15 // pred_region
          %s302 = sand.u32 %s25, 1
          %s303 = scalar_lea.sflag [#allocation6], %s302
          %s304 = sand.u32 %s101, 1
          %s305 = smul.addr %s304, 16
          %s306 = scalar_lea.vmem [#allocation5], %s305
          %s308 = ssub.s32 256, 256
          %309 = vsyncadd %s303, %s308
          %s310 = smul.addr %s32, 16
          %s311 = smul.addr %s310, 16
          %s312 = scalar_lea.hbm %s2, %s311
          %s314 = sshll.u32 %s306, 4
          %s315 = int_to_ptr.vmem [resolvable:$true] %s314
          %317 = dma.hbm_to_vmem [thread:$0]  %s312, 256, %s315, %s303
        $region28: #{encoder_forward.7} parent=15 // pred_fallthru
          _
        // Predicated region
        $region29: #{encoder_forward.7} parent=15 // pred_check
          %p318 = pneg %p137
        $region30: #{encoder_forward.7} parent=15 // pred_check_branch
          %320 = sbr.rel (%p318) target = $region32
        $region31: #{encoder_forward.7} parent=15 // pred_region
          %s321 = sand.u32 %s25, 1
          %s322 = scalar_lea.sflag [#allocation6], %s321
          %s323 = sand.u32 %s127, 1
          %s324 = smul.addr %s323, 16
          %s325 = scalar_lea.vmem [#allocation7], %s324
          %s327 = ssub.s32 256, 256
          %328 = vsyncadd %s322, %s327
          %s329 = smul.addr %s32, 16
          %s330 = smul.addr %s329, 16
          %s331 = scalar_lea.hbm %s3, %s330
          %s333 = sshll.u32 %s325, 4
          %s334 = int_to_ptr.vmem [resolvable:$true] %s333
          %336 = dma.hbm_to_vmem [thread:$0]  %s331, 256, %s334, %s322
        $region32: #{encoder_forward.7} parent=15 // pred_fallthru
          _
        // Predicated region
        $region33: #{encoder_forward.7} parent=15 // pred_check
          %p337 = pneg %p163
        $region34: #{encoder_forward.7} parent=15 // pred_check_branch
          %339 = sbr.rel (%p337) target = $region36
        $region35: #{encoder_forward.7} parent=15 // pred_region
          %s340 = sand.u32 %s25, 1
          %s341 = scalar_lea.sflag [#allocation9], %s340
          %s342 = sand.u32 %s153, 1
          %s343 = smul.addr %s342, 16
          %s344 = scalar_lea.vmem [#allocation8], %s343
          %s346 = ssub.s32 256, 256
          %347 = vsyncadd %s341, %s346
          %s348 = smul.addr %s32, 16
          %s349 = smul.addr %s348, 16
          %s350 = scalar_lea.hbm %s4, %s349
          %s352 = sshll.u32 %s344, 4
          %s353 = int_to_ptr.vmem [resolvable:$true] %s352
          %355 = dma.hbm_to_vmem [thread:$0]  %s350, 256, %s353, %s341
        $region36: #{encoder_forward.7} parent=15 // pred_fallthru
          _
        // Predicated region
        $region37: #{encoder_forward.7} parent=15 // pred_check
          %p356 = pneg %p189
        $region38: #{encoder_forward.7} parent=15 // pred_check_branch
          %358 = sbr.rel (%p356) target = $region40
        $region39: #{encoder_forward.7} parent=15 // pred_region
          %s359 = sand.u32 %s25, 1
          %s360 = scalar_lea.sflag [#allocation9], %s359
          %s361 = sand.u32 %s179, 1
          %s362 = smul.addr %s361, 1024
          %s363 = scalar_lea.vmem [#allocation10], %s362
          %s365 = ssub.s32 16384, 16384
          %366 = vsyncadd %s360, %s365
          %s367 = smul.addr %s32, 256
          %s368 = smul.addr %s367, 64
          %s369 = scalar_lea.hbm %s5, %s368
          %s370 = sshll.u32 %s363, 4
          %s371 = int_to_ptr.vmem [resolvable:$true] %s370
          %376 = dma.hbm_to_vmem [thread:$0]  %s369, 16384, %s371, %s360, 64, 64, 4
        $region40: #{encoder_forward.7} parent=15 // pred_fallthru
          _
        // Predicated region
        $region41: #{encoder_forward.7} parent=15 // pred_check
          %p377 = pneg %p215
        $region42: #{encoder_forward.7} parent=15 // pred_check_branch
          %379 = sbr.rel (%p377) target = $region44
        $region43: #{encoder_forward.7} parent=15 // pred_region
          %s380 = sand.u32 %s205, 1
          %s381 = scalar_lea.sflag [#allocation12], %s380
          %s382 = sand.u32 %s205, 1
          %s383 = scalar_lea.vmem [#allocation11], %s382
          %s385 = ssub.s32 16, 16
          %386 = vsyncadd %s381, %s385
          %s387 = smul.addr %s32, 16
          %s388 = scalar_lea.hbm %s6, %s387
          %s390 = sshll.u32 %s383, 4
          %s391 = int_to_ptr.vmem [resolvable:$true] %s390
          %393 = dma.hbm_to_vmem [thread:$0]  %s388, 16, %s391, %s381
        $region44: #{encoder_forward.7} parent=15 // pred_fallthru
          _
      $region16: #{encoder_forward.7} parent=5 // pred_fallthru
        _
      %p394 = scmp.le.s32.totalorder 1, %s25
      %p395 = scmp.lt.s32.totalorder %s25, 9
      %p396 = pnand %p394, %p395
      %p397 = pneg %p396
      // Predicated region
      $region45: #{encoder_forward.7} parent=5 // pred_check
        _
      $region46: #{encoder_forward.7} parent=5 // pred_check_branch
        %399 = sbr.rel (%p396) target = $region48
      $region47: #{encoder_forward.7} parent=5 // pred_region
        %s400 = ssub.s32 %s25, 1
        %s401 = sand.u32 %s50, 1
        %s402 = scalar_lea.sflag [#allocation4], %s401
        %s403 = sand.u32 %s50, 1
        %s404 = smul.addr %s403, 4
        %s405 = scalar_lea.vmem [#allocation3], %s404
        // Predicated region
        $region49: #{encoder_forward.7} parent=47 // pred_check
          %p406 = pneg %p63
        $region50: #{encoder_forward.7} parent=47 // pred_check_branch
          %408 = sbr.rel (%p406) target = $region52
        $region51: #{encoder_forward.7} parent=47 // pred_region
          %409 = dma.done %s402, 64
        $region52: #{encoder_forward.7} parent=47 // pred_fallthru
          _
        %s410 = sand.u32 %s30, 1
        %s411 = scalar_lea.sflag [#allocation6], %s410
        %s412 = sand.u32 %s104, 1
        %s413 = smul.addr %s412, 16
        %s414 = scalar_lea.vmem [#allocation5], %s413
        // Predicated region
        $region53: #{encoder_forward.7} parent=47 // pred_check
          %p415 = pneg %p117
        $region54: #{encoder_forward.7} parent=47 // pred_check_branch
          %417 = sbr.rel (%p415) target = $region56
        $region55: #{encoder_forward.7} parent=47 // pred_region
          %418 = dma.done %s411, 256
        $region56: #{encoder_forward.7} parent=47 // pred_fallthru
          _
        %s419 = sand.u32 %s30, 1
        %s420 = scalar_lea.sflag [#allocation6], %s419
        %s421 = sand.u32 %s130, 1
        %s422 = smul.addr %s421, 16
        %s423 = scalar_lea.vmem [#allocation7], %s422
        // Predicated region
        $region57: #{encoder_forward.7} parent=47 // pred_check
          %p424 = pneg %p143
        $region58: #{encoder_forward.7} parent=47 // pred_check_branch
          %426 = sbr.rel (%p424) target = $region60
        $region59: #{encoder_forward.7} parent=47 // pred_region
          %427 = dma.done %s420, 256
        $region60: #{encoder_forward.7} parent=47 // pred_fallthru
          _
        %s428 = sand.u32 %s30, 1
        %s429 = scalar_lea.sflag [#allocation9], %s428
        %s430 = sand.u32 %s156, 1
        %s431 = smul.addr %s430, 16
        %s432 = scalar_lea.vmem [#allocation8], %s431
        // Predicated region
        $region61: #{encoder_forward.7} parent=47 // pred_check
          %p433 = pneg %p169
        $region62: #{encoder_forward.7} parent=47 // pred_check_branch
          %435 = sbr.rel (%p433) target = $region64
        $region63: #{encoder_forward.7} parent=47 // pred_region
          %436 = dma.done %s429, 256
        $region64: #{encoder_forward.7} parent=47 // pred_fallthru
          _
        %s437 = sand.u32 %s30, 1
        %s438 = scalar_lea.sflag [#allocation9], %s437
        %s439 = sand.u32 %s182, 1
        %s440 = smul.addr %s439, 1024
        %s441 = scalar_lea.vmem [#allocation10], %s440
        // Predicated region
        $region65: #{encoder_forward.7} parent=47 // pred_check
          %p442 = pneg %p195
        $region66: #{encoder_forward.7} parent=47 // pred_check_branch
          %444 = sbr.rel (%p442) target = $region68
        $region67: #{encoder_forward.7} parent=47 // pred_region
          %445 = dma.done %s438, 16384
        $region68: #{encoder_forward.7} parent=47 // pred_fallthru
          _
        %s446 = sand.u32 %s208, 1
        %s447 = scalar_lea.sflag [#allocation12], %s446
        %s448 = sand.u32 %s208, 1
        %s449 = scalar_lea.vmem [#allocation11], %s448
        // Predicated region
        $region69: #{encoder_forward.7} parent=47 // pred_check
          %p450 = pneg %p221
        $region70: #{encoder_forward.7} parent=47 // pred_check_branch
          %452 = sbr.rel (%p450) target = $region72
        $region71: #{encoder_forward.7} parent=47 // pred_region
          %453 = dma.done %s447, 16
        $region72: #{encoder_forward.7} parent=47 // pred_fallthru
          _
        %s454 = sand.u32 %s50, 1
        %s455 = scalar_lea.sflag [#allocation4], %s454
        %s456 = sand.u32 %s50, 1
        %s457 = smul.addr %s456, 4
        %s458 = scalar_lea.vmem [#allocation3], %s457
        %p459 = pneg %p63
        %p460 = pneg %p60
        %s461 = smul.u32 64, %s35
        %p462 = scmp.lt.s32.totalorder %s34, 1
        %s463 = scalar_select %p462, %s34, 1
        %p464 = scmp.lt.s32.totalorder %s461, 255
        %s465 = scalar_select %p464, %s461, 255
        %s466 = smul.addr %s465, 16
        %s467 = smul.addr %s463, 4096
        %s468 = sadd.s32 %s466, %s467
        %s469 = smul.addr %s468, 4
        %s470 = scalar_lea.vmem %s1, %s469
        %p471 = pneg %p91
        %p472 = pneg %p88
        %s473 = sand.u32 %s30, 1
        %s474 = scalar_lea.sflag [#allocation6], %s473
        %s475 = sand.u32 %s104, 1
        %s476 = smul.addr %s475, 16
        %s477 = scalar_lea.vmem [#allocation5], %s476
        %p478 = pneg %p117
        %p479 = pneg %p114
        %s480 = sand.u32 %s30, 1
        %s481 = scalar_lea.sflag [#allocation6], %s480
        %s482 = sand.u32 %s130, 1
        %s483 = smul.addr %s482, 16
        %s484 = scalar_lea.vmem [#allocation7], %s483
        %p485 = pneg %p143
        %p486 = pneg %p140
        %s487 = sand.u32 %s30, 1
        %s488 = scalar_lea.sflag [#allocation9], %s487
        %s489 = sand.u32 %s156, 1
        %s490 = smul.addr %s489, 16
        %s491 = scalar_lea.vmem [#allocation8], %s490
        %p492 = pneg %p169
        %p493 = pneg %p166
        %s494 = sand.u32 %s30, 1
        %s495 = scalar_lea.sflag [#allocation9], %s494
        %s496 = sand.u32 %s182, 1
        %s497 = smul.addr %s496, 1024
        %s498 = scalar_lea.vmem [#allocation10], %s497
        %p499 = pneg %p195
        %p500 = pneg %p192
        %s501 = sand.u32 %s208, 1
        %s502 = scalar_lea.sflag [#allocation12], %s501
        %s503 = sand.u32 %s208, 1
        %s504 = scalar_lea.vmem [#allocation11], %s503
        %p505 = pneg %p221
        %p506 = pneg %p218
        %p507 = pneg %p247
        %p508 = pneg %p244
        %p509 = scmp.lt.s32.totalorder %s34, 1
        %s510 = scalar_select %p509, %s34, 1
        %s511 = smul.addr %s510, 2
        %s512 = scalar_lea.vmem %s7, %s511
        %s513 = smul.u32 4, %s35
        %s514 = smul.u32 64, %s35
        %p515 = scmp.lt.s32.totalorder %s34, 1
        %s516 = scalar_select %p515, %s34, 1
        %p517 = scmp.lt.s32.totalorder %s514, 255
        %s518 = scalar_select %p517, %s514, 255
        %s519 = smul.addr %s518, 16
        %s520 = smul.addr %s516, 4096
        %s521 = sadd.s32 %s519, %s520
        %s522 = smul.addr %s521, 4
        %s523 = scalar_lea.vmem %s1, %s522
        %s524 = smul.u32 64, %s35
        %p525 = scmp.lt.s32.totalorder %s34, 1
        %s526 = scalar_select %p525, %s34, 1
        %s527 = smul.addr %s526, 2
        %s528 = scalar_lea.vmem %s7, %s527
        %p530 = scmp.eq.s32.totalorder %s35, 0
        // Predicated region
        $region73: #{encoder_forward.7} parent=47 // pred_check
          %p531 = pneg %p530
        $region74: #{encoder_forward.7} parent=47 // pred_check_branch
          %533 = sbr.rel (%p531) target = $region76
        $region75: #{encoder_forward.7} parent=47 // pred_region
          %534 = vst [vmem:[#allocation2] sm:$0xff] 0.0
          %535 = vst [vmem:[#allocation2 + $0x8] sm:$0xff] 0.0
          %536 = vst [vmem:[#allocation2 + $0x10] sm:$0xff] 0.0
          %537 = vst [vmem:[#allocation2 + $0x18] sm:$0xff] 0.0
        $region76: #{encoder_forward.7} parent=47 // pred_fallthru
          _
        %v538 = vld [vmem:[#allocation2] sm:$0xff]
        %v539 = vld [vmem:[#allocation2 + $0x8] sm:$0xff]
        %v540 = vld [vmem:[#allocation2 + $0x10] sm:$0xff]
        %v541 = vld [vmem:[#allocation2 + $0x18] sm:$0xff]
        %v542 = vld [vmem:[%s405] sm:$0xf]
        %v543 = vld [vmem:[%s523] sm:$0xff]
        %v544 = vld [vmem:[%s523 + $0x8] sm:$0xff]
        %v545 = vld [vmem:[%s523 + $0x10] sm:$0xff]
        %v546 = vld [vmem:[%s523 + $0x18] sm:$0xff]
        %v547 = vld [vmem:[%s523 + $0x20] sm:$0xff]
        %v548 = vld [vmem:[%s523 + $0x28] sm:$0xff]
        %v549 = vld [vmem:[%s523 + $0x30] sm:$0xff]
        %v550 = vld [vmem:[%s523 + $0x38] sm:$0xff]
        %v551 = vld [vmem:[%s523 + $0x40] sm:$0xff]
        %v552 = vld [vmem:[%s523 + $0x48] sm:$0xff]
        %v553 = vld [vmem:[%s523 + $0x50] sm:$0xff]
        %v554 = vld [vmem:[%s523 + $0x58] sm:$0xff]
        %v555 = vld [vmem:[%s523 + $0x60] sm:$0xff]
        %v556 = vld [vmem:[%s523 + $0x68] sm:$0xff]
        %v557 = vld [vmem:[%s523 + $0x70] sm:$0xff]
        %v558 = vld [vmem:[%s523 + $0x78] sm:$0xff]
        %v559 = vld [vmem:[%s523 + $0x80] sm:$0xff]
        %v560 = vld [vmem:[%s523 + $0x88] sm:$0xff]
        %v561 = vld [vmem:[%s523 + $0x90] sm:$0xff]
        %v562 = vld [vmem:[%s523 + $0x98] sm:$0xff]
        %v563 = vld [vmem:[%s523 + $0xa0] sm:$0xff]
        %v564 = vld [vmem:[%s523 + $0xa8] sm:$0xff]
        %v565 = vld [vmem:[%s523 + $0xb0] sm:$0xff]
        %v566 = vld [vmem:[%s523 + $0xb8] sm:$0xff]
        %v567 = vld [vmem:[%s523 + $0xc0] sm:$0xff]
        %v568 = vld [vmem:[%s523 + $0xc8] sm:$0xff]
        %v569 = vld [vmem:[%s523 + $0xd0] sm:$0xff]
        %v570 = vld [vmem:[%s523 + $0xd8] sm:$0xff]
        %v571 = vld [vmem:[%s523 + $0xe0] sm:$0xff]
        %v572 = vld [vmem:[%s523 + $0xe8] sm:$0xff]
        %v573 = vld [vmem:[%s523 + $0xf0] sm:$0xff]
        %v574 = vld [vmem:[%s523 + $0xf8] sm:$0xff]
        %v575 = vld [vmem:[%s523 + $0x100] sm:$0xff]
        %v576 = vld [vmem:[%s523 + $0x108] sm:$0xff]
        %v577 = vld [vmem:[%s523 + $0x110] sm:$0xff]
        %v578 = vld [vmem:[%s523 + $0x118] sm:$0xff]
        %v579 = vld [vmem:[%s523 + $0x120] sm:$0xff]
        %v580 = vld [vmem:[%s523 + $0x128] sm:$0xff]
        %v581 = vld [vmem:[%s523 + $0x130] sm:$0xff]
        %v582 = vld [vmem:[%s523 + $0x138] sm:$0xff]
        %v583 = vld [vmem:[%s523 + $0x140] sm:$0xff]
        %v584 = vld [vmem:[%s523 + $0x148] sm:$0xff]
        %v585 = vld [vmem:[%s523 + $0x150] sm:$0xff]
        %v586 = vld [vmem:[%s523 + $0x158] sm:$0xff]
        %v587 = vld [vmem:[%s523 + $0x160] sm:$0xff]
        %v588 = vld [vmem:[%s523 + $0x168] sm:$0xff]
        %v589 = vld [vmem:[%s523 + $0x170] sm:$0xff]
        %v590 = vld [vmem:[%s523 + $0x178] sm:$0xff]
        %v591 = vld [vmem:[%s523 + $0x180] sm:$0xff]
        %v592 = vld [vmem:[%s523 + $0x188] sm:$0xff]
        %v593 = vld [vmem:[%s523 + $0x190] sm:$0xff]
        %v594 = vld [vmem:[%s523 + $0x198] sm:$0xff]
        %v595 = vld [vmem:[%s523 + $0x1a0] sm:$0xff]
        %v596 = vld [vmem:[%s523 + $0x1a8] sm:$0xff]
        %v597 = vld [vmem:[%s523 + $0x1b0] sm:$0xff]
        %v598 = vld [vmem:[%s523 + $0x1b8] sm:$0xff]
        %v599 = vld [vmem:[%s523 + $0x1c0] sm:$0xff]
        %v600 = vld [vmem:[%s523 + $0x1c8] sm:$0xff]
        %v601 = vld [vmem:[%s523 + $0x1d0] sm:$0xff]
        %v602 = vld [vmem:[%s523 + $0x1d8] sm:$0xff]
        %v603 = vld [vmem:[%s523 + $0x1e0] sm:$0xff]
        %v604 = vld [vmem:[%s523 + $0x1e8] sm:$0xff]
        %v605 = vld [vmem:[%s523 + $0x1f0] sm:$0xff]
        %v606 = vld [vmem:[%s523 + $0x1f8] sm:$0xff]
        %v607 = vld [vmem:[%s523 + $0x200] sm:$0xff]
        %v608 = vld [vmem:[%s523 + $0x208] sm:$0xff]
        %v609 = vld [vmem:[%s523 + $0x210] sm:$0xff]
        %v610 = vld [vmem:[%s523 + $0x218] sm:$0xff]
        %v611 = vld [vmem:[%s523 + $0x220] sm:$0xff]
        %v612 = vld [vmem:[%s523 + $0x228] sm:$0xff]
        %v613 = vld [vmem:[%s523 + $0x230] sm:$0xff]
        %v614 = vld [vmem:[%s523 + $0x238] sm:$0xff]
        %v615 = vld [vmem:[%s523 + $0x240] sm:$0xff]
        %v616 = vld [vmem:[%s523 + $0x248] sm:$0xff]
        %v617 = vld [vmem:[%s523 + $0x250] sm:$0xff]
        %v618 = vld [vmem:[%s523 + $0x258] sm:$0xff]
        %v619 = vld [vmem:[%s523 + $0x260] sm:$0xff]
        %v620 = vld [vmem:[%s523 + $0x268] sm:$0xff]
        %v621 = vld [vmem:[%s523 + $0x270] sm:$0xff]
        %v622 = vld [vmem:[%s523 + $0x278] sm:$0xff]
        %v623 = vld [vmem:[%s523 + $0x280] sm:$0xff]
        %v624 = vld [vmem:[%s523 + $0x288] sm:$0xff]
        %v625 = vld [vmem:[%s523 + $0x290] sm:$0xff]
        %v626 = vld [vmem:[%s523 + $0x298] sm:$0xff]
        %v627 = vld [vmem:[%s523 + $0x2a0] sm:$0xff]
        %v628 = vld [vmem:[%s523 + $0x2a8] sm:$0xff]
        %v629 = vld [vmem:[%s523 + $0x2b0] sm:$0xff]
        %v630 = vld [vmem:[%s523 + $0x2b8] sm:$0xff]
        %v631 = vld [vmem:[%s523 + $0x2c0] sm:$0xff]
        %v632 = vld [vmem:[%s523 + $0x2c8] sm:$0xff]
        %v633 = vld [vmem:[%s523 + $0x2d0] sm:$0xff]
        %v634 = vld [vmem:[%s523 + $0x2d8] sm:$0xff]
        %v635 = vld [vmem:[%s523 + $0x2e0] sm:$0xff]
        %v636 = vld [vmem:[%s523 + $0x2e8] sm:$0xff]
        %v637 = vld [vmem:[%s523 + $0x2f0] sm:$0xff]
        %v638 = vld [vmem:[%s523 + $0x2f8] sm:$0xff]
        %v639 = vld [vmem:[%s523 + $0x300] sm:$0xff]
        %v640 = vld [vmem:[%s523 + $0x308] sm:$0xff]
        %v641 = vld [vmem:[%s523 + $0x310] sm:$0xff]
        %v642 = vld [vmem:[%s523 + $0x318] sm:$0xff]
        %v643 = vld [vmem:[%s523 + $0x320] sm:$0xff]
        %v644 = vld [vmem:[%s523 + $0x328] sm:$0xff]
        %v645 = vld [vmem:[%s523 + $0x330] sm:$0xff]
        %v646 = vld [vmem:[%s523 + $0x338] sm:$0xff]
        %v647 = vld [vmem:[%s523 + $0x340] sm:$0xff]
        %v648 = vld [vmem:[%s523 + $0x348] sm:$0xff]
        %v649 = vld [vmem:[%s523 + $0x350] sm:$0xff]
        %v650 = vld [vmem:[%s523 + $0x358] sm:$0xff]
        %v651 = vld [vmem:[%s523 + $0x360] sm:$0xff]
        %v652 = vld [vmem:[%s523 + $0x368] sm:$0xff]
        %v653 = vld [vmem:[%s523 + $0x370] sm:$0xff]
        %v654 = vld [vmem:[%s523 + $0x378] sm:$0xff]
        %v655 = vld [vmem:[%s523 + $0x380] sm:$0xff]
        %v656 = vld [vmem:[%s523 + $0x388] sm:$0xff]
        %v657 = vld [vmem:[%s523 + $0x390] sm:$0xff]
        %v658 = vld [vmem:[%s523 + $0x398] sm:$0xff]
        %v659 = vld [vmem:[%s523 + $0x3a0] sm:$0xff]
        %v660 = vld [vmem:[%s523 + $0x3a8] sm:$0xff]
        %v661 = vld [vmem:[%s523 + $0x3b0] sm:$0xff]
        %v662 = vld [vmem:[%s523 + $0x3b8] sm:$0xff]
        %v663 = vld [vmem:[%s523 + $0x3c0] sm:$0xff]
        %v664 = vld [vmem:[%s523 + $0x3c8] sm:$0xff]
        %v665 = vld [vmem:[%s523 + $0x3d0] sm:$0xff]
        %v666 = vld [vmem:[%s523 + $0x3d8] sm:$0xff]
        %v667 = vld [vmem:[%s523 + $0x3e0] sm:$0xff]
        %v668 = vld [vmem:[%s523 + $0x3e8] sm:$0xff]
        %v669 = vld [vmem:[%s523 + $0x3f0] sm:$0xff]
        %v670 = vld [vmem:[%s523 + $0x3f8] sm:$0xff]
        %v671 = vld [vmem:[%s523 + $0x400] sm:$0xff]
        %v672 = vld [vmem:[%s523 + $0x408] sm:$0xff]
        %v673 = vld [vmem:[%s523 + $0x410] sm:$0xff]
        %v674 = vld [vmem:[%s523 + $0x418] sm:$0xff]
        %v675 = vld [vmem:[%s523 + $0x420] sm:$0xff]
        %v676 = vld [vmem:[%s523 + $0x428] sm:$0xff]
        %v677 = vld [vmem:[%s523 + $0x430] sm:$0xff]
        %v678 = vld [vmem:[%s523 + $0x438] sm:$0xff]
        %v679 = vld [vmem:[%s523 + $0x440] sm:$0xff]
        %v680 = vld [vmem:[%s523 + $0x448] sm:$0xff]
        %v681 = vld [vmem:[%s523 + $0x450] sm:$0xff]
        %v682 = vld [vmem:[%s523 + $0x458] sm:$0xff]
        %v683 = vld [vmem:[%s523 + $0x460] sm:$0xff]
        %v684 = vld [vmem:[%s523 + $0x468] sm:$0xff]
        %v685 = vld [vmem:[%s523 + $0x470] sm:$0xff]
        %v686 = vld [vmem:[%s523 + $0x478] sm:$0xff]
        %v687 = vld [vmem:[%s523 + $0x480] sm:$0xff]
        %v688 = vld [vmem:[%s523 + $0x488] sm:$0xff]
        %v689 = vld [vmem:[%s523 + $0x490] sm:$0xff]
        %v690 = vld [vmem:[%s523 + $0x498] sm:$0xff]
        %v691 = vld [vmem:[%s523 + $0x4a0] sm:$0xff]
        %v692 = vld [vmem:[%s523 + $0x4a8] sm:$0xff]
        %v693 = vld [vmem:[%s523 + $0x4b0] sm:$0xff]
        %v694 = vld [vmem:[%s523 + $0x4b8] sm:$0xff]
        %v695 = vld [vmem:[%s523 + $0x4c0] sm:$0xff]
        %v696 = vld [vmem:[%s523 + $0x4c8] sm:$0xff]
        %v697 = vld [vmem:[%s523 + $0x4d0] sm:$0xff]
        %v698 = vld [vmem:[%s523 + $0x4d8] sm:$0xff]
        %v699 = vld [vmem:[%s523 + $0x4e0] sm:$0xff]
        %v700 = vld [vmem:[%s523 + $0x4e8] sm:$0xff]
        %v701 = vld [vmem:[%s523 + $0x4f0] sm:$0xff]
        %v702 = vld [vmem:[%s523 + $0x4f8] sm:$0xff]
        %v703 = vld [vmem:[%s523 + $0x500] sm:$0xff]
        %v704 = vld [vmem:[%s523 + $0x508] sm:$0xff]
        %v705 = vld [vmem:[%s523 + $0x510] sm:$0xff]
        %v706 = vld [vmem:[%s523 + $0x518] sm:$0xff]
        %v707 = vld [vmem:[%s523 + $0x520] sm:$0xff]
        %v708 = vld [vmem:[%s523 + $0x528] sm:$0xff]
        %v709 = vld [vmem:[%s523 + $0x530] sm:$0xff]
        %v710 = vld [vmem:[%s523 + $0x538] sm:$0xff]
        %v711 = vld [vmem:[%s523 + $0x540] sm:$0xff]
        %v712 = vld [vmem:[%s523 + $0x548] sm:$0xff]
        %v713 = vld [vmem:[%s523 + $0x550] sm:$0xff]
        %v714 = vld [vmem:[%s523 + $0x558] sm:$0xff]
        %v715 = vld [vmem:[%s523 + $0x560] sm:$0xff]
        %v716 = vld [vmem:[%s523 + $0x568] sm:$0xff]
        %v717 = vld [vmem:[%s523 + $0x570] sm:$0xff]
        %v718 = vld [vmem:[%s523 + $0x578] sm:$0xff]
        %v719 = vld [vmem:[%s523 + $0x580] sm:$0xff]
        %v720 = vld [vmem:[%s523 + $0x588] sm:$0xff]
        %v721 = vld [vmem:[%s523 + $0x590] sm:$0xff]
        %v722 = vld [vmem:[%s523 + $0x598] sm:$0xff]
        %v723 = vld [vmem:[%s523 + $0x5a0] sm:$0xff]
        %v724 = vld [vmem:[%s523 + $0x5a8] sm:$0xff]
        %v725 = vld [vmem:[%s523 + $0x5b0] sm:$0xff]
        %v726 = vld [vmem:[%s523 + $0x5b8] sm:$0xff]
        %v727 = vld [vmem:[%s523 + $0x5c0] sm:$0xff]
        %v728 = vld [vmem:[%s523 + $0x5c8] sm:$0xff]
        %v729 = vld [vmem:[%s523 + $0x5d0] sm:$0xff]
        %v730 = vld [vmem:[%s523 + $0x5d8] sm:$0xff]
        %v731 = vld [vmem:[%s523 + $0x5e0] sm:$0xff]
        %v732 = vld [vmem:[%s523 + $0x5e8] sm:$0xff]
        %v733 = vld [vmem:[%s523 + $0x5f0] sm:$0xff]
        %v734 = vld [vmem:[%s523 + $0x5f8] sm:$0xff]
        %v735 = vld [vmem:[%s523 + $0x600] sm:$0xff]
        %v736 = vld [vmem:[%s523 + $0x608] sm:$0xff]
        %v737 = vld [vmem:[%s523 + $0x610] sm:$0xff]
        %v738 = vld [vmem:[%s523 + $0x618] sm:$0xff]
        %v739 = vld [vmem:[%s523 + $0x620] sm:$0xff]
        %v740 = vld [vmem:[%s523 + $0x628] sm:$0xff]
        %v741 = vld [vmem:[%s523 + $0x630] sm:$0xff]
        %v742 = vld [vmem:[%s523 + $0x638] sm:$0xff]
        %v743 = vld [vmem:[%s523 + $0x640] sm:$0xff]
        %v744 = vld [vmem:[%s523 + $0x648] sm:$0xff]
        %v745 = vld [vmem:[%s523 + $0x650] sm:$0xff]
        %v746 = vld [vmem:[%s523 + $0x658] sm:$0xff]
        %v747 = vld [vmem:[%s523 + $0x660] sm:$0xff]
        %v748 = vld [vmem:[%s523 + $0x668] sm:$0xff]
        %v749 = vld [vmem:[%s523 + $0x670] sm:$0xff]
        %v750 = vld [vmem:[%s523 + $0x678] sm:$0xff]
        %v751 = vld [vmem:[%s523 + $0x680] sm:$0xff]
        %v752 = vld [vmem:[%s523 + $0x688] sm:$0xff]
        %v753 = vld [vmem:[%s523 + $0x690] sm:$0xff]
        %v754 = vld [vmem:[%s523 + $0x698] sm:$0xff]
        %v755 = vld [vmem:[%s523 + $0x6a0] sm:$0xff]
        %v756 = vld [vmem:[%s523 + $0x6a8] sm:$0xff]
        %v757 = vld [vmem:[%s523 + $0x6b0] sm:$0xff]
        %v758 = vld [vmem:[%s523 + $0x6b8] sm:$0xff]
        %v759 = vld [vmem:[%s523 + $0x6c0] sm:$0xff]
        %v760 = vld [vmem:[%s523 + $0x6c8] sm:$0xff]
        %v761 = vld [vmem:[%s523 + $0x6d0] sm:$0xff]
        %v762 = vld [vmem:[%s523 + $0x6d8] sm:$0xff]
        %v763 = vld [vmem:[%s523 + $0x6e0] sm:$0xff]
        %v764 = vld [vmem:[%s523 + $0x6e8] sm:$0xff]
        %v765 = vld [vmem:[%s523 + $0x6f0] sm:$0xff]
        %v766 = vld [vmem:[%s523 + $0x6f8] sm:$0xff]
        %v767 = vld [vmem:[%s523 + $0x700] sm:$0xff]
        %v768 = vld [vmem:[%s523 + $0x708] sm:$0xff]
        %v769 = vld [vmem:[%s523 + $0x710] sm:$0xff]
        %v770 = vld [vmem:[%s523 + $0x718] sm:$0xff]
        %v771 = vld [vmem:[%s523 + $0x720] sm:$0xff]
        %v772 = vld [vmem:[%s523 + $0x728] sm:$0xff]
        %v773 = vld [vmem:[%s523 + $0x730] sm:$0xff]
        %v774 = vld [vmem:[%s523 + $0x738] sm:$0xff]
        %v775 = vld [vmem:[%s523 + $0x740] sm:$0xff]
        %v776 = vld [vmem:[%s523 + $0x748] sm:$0xff]
        %v777 = vld [vmem:[%s523 + $0x750] sm:$0xff]
        %v778 = vld [vmem:[%s523 + $0x758] sm:$0xff]
        %v779 = vld [vmem:[%s523 + $0x760] sm:$0xff]
        %v780 = vld [vmem:[%s523 + $0x768] sm:$0xff]
        %v781 = vld [vmem:[%s523 + $0x770] sm:$0xff]
        %v782 = vld [vmem:[%s523 + $0x778] sm:$0xff]
        %v783 = vld [vmem:[%s523 + $0x780] sm:$0xff]
        %v784 = vld [vmem:[%s523 + $0x788] sm:$0xff]
        %v785 = vld [vmem:[%s523 + $0x790] sm:$0xff]
        %v786 = vld [vmem:[%s523 + $0x798] sm:$0xff]
        %v787 = vld [vmem:[%s523 + $0x7a0] sm:$0xff]
        %v788 = vld [vmem:[%s523 + $0x7a8] sm:$0xff]
        %v789 = vld [vmem:[%s523 + $0x7b0] sm:$0xff]
        %v790 = vld [vmem:[%s523 + $0x7b8] sm:$0xff]
        %v791 = vld [vmem:[%s523 + $0x7c0] sm:$0xff]
        %v792 = vld [vmem:[%s523 + $0x7c8] sm:$0xff]
        %v793 = vld [vmem:[%s523 + $0x7d0] sm:$0xff]
        %v794 = vld [vmem:[%s523 + $0x7d8] sm:$0xff]
        %v795 = vld [vmem:[%s523 + $0x7e0] sm:$0xff]
        %v796 = vld [vmem:[%s523 + $0x7e8] sm:$0xff]
        %v797 = vld [vmem:[%s523 + $0x7f0] sm:$0xff]
        %v798 = vld [vmem:[%s523 + $0x7f8] sm:$0xff]
        %v799 = vld [vmem:[%s523 + $0x800] sm:$0xff]
        %v800 = vld [vmem:[%s523 + $0x808] sm:$0xff]
        %v801 = vld [vmem:[%s523 + $0x810] sm:$0xff]
        %v802 = vld [vmem:[%s523 + $0x818] sm:$0xff]
        %v803 = vld [vmem:[%s523 + $0x820] sm:$0xff]
        %v804 = vld [vmem:[%s523 + $0x828] sm:$0xff]
        %v805 = vld [vmem:[%s523 + $0x830] sm:$0xff]
        %v806 = vld [vmem:[%s523 + $0x838] sm:$0xff]
        %v807 = vld [vmem:[%s523 + $0x840] sm:$0xff]
        %v808 = vld [vmem:[%s523 + $0x848] sm:$0xff]
        %v809 = vld [vmem:[%s523 + $0x850] sm:$0xff]
        %v810 = vld [vmem:[%s523 + $0x858] sm:$0xff]
        %v811 = vld [vmem:[%s523 + $0x860] sm:$0xff]
        %v812 = vld [vmem:[%s523 + $0x868] sm:$0xff]
        %v813 = vld [vmem:[%s523 + $0x870] sm:$0xff]
        %v814 = vld [vmem:[%s523 + $0x878] sm:$0xff]
        %v815 = vld [vmem:[%s523 + $0x880] sm:$0xff]
        %v816 = vld [vmem:[%s523 + $0x888] sm:$0xff]
        %v817 = vld [vmem:[%s523 + $0x890] sm:$0xff]
        %v818 = vld [vmem:[%s523 + $0x898] sm:$0xff]
        %v819 = vld [vmem:[%s523 + $0x8a0] sm:$0xff]
        %v820 = vld [vmem:[%s523 + $0x8a8] sm:$0xff]
        %v821 = vld [vmem:[%s523 + $0x8b0] sm:$0xff]
        %v822 = vld [vmem:[%s523 + $0x8b8] sm:$0xff]
        %v823 = vld [vmem:[%s523 + $0x8c0] sm:$0xff]
        %v824 = vld [vmem:[%s523 + $0x8c8] sm:$0xff]
        %v825 = vld [vmem:[%s523 + $0x8d0] sm:$0xff]
        %v826 = vld [vmem:[%s523 + $0x8d8] sm:$0xff]
        %v827 = vld [vmem:[%s523 + $0x8e0] sm:$0xff]
        %v828 = vld [vmem:[%s523 + $0x8e8] sm:$0xff]
        %v829 = vld [vmem:[%s523 + $0x8f0] sm:$0xff]
        %v830 = vld [vmem:[%s523 + $0x8f8] sm:$0xff]
        %v831 = vld [vmem:[%s523 + $0x900] sm:$0xff]
        %v832 = vld [vmem:[%s523 + $0x908] sm:$0xff]
        %v833 = vld [vmem:[%s523 + $0x910] sm:$0xff]
        %v834 = vld [vmem:[%s523 + $0x918] sm:$0xff]
        %v835 = vld [vmem:[%s523 + $0x920] sm:$0xff]
        %v836 = vld [vmem:[%s523 + $0x928] sm:$0xff]
        %v837 = vld [vmem:[%s523 + $0x930] sm:$0xff]
        %v838 = vld [vmem:[%s523 + $0x938] sm:$0xff]
        %v839 = vld [vmem:[%s523 + $0x940] sm:$0xff]
        %v840 = vld [vmem:[%s523 + $0x948] sm:$0xff]
        %v841 = vld [vmem:[%s523 + $0x950] sm:$0xff]
        %v842 = vld [vmem:[%s523 + $0x958] sm:$0xff]
        %v843 = vld [vmem:[%s523 + $0x960] sm:$0xff]
        %v844 = vld [vmem:[%s523 + $0x968] sm:$0xff]
        %v845 = vld [vmem:[%s523 + $0x970] sm:$0xff]
        %v846 = vld [vmem:[%s523 + $0x978] sm:$0xff]
        %v847 = vld [vmem:[%s523 + $0x980] sm:$0xff]
        %v848 = vld [vmem:[%s523 + $0x988] sm:$0xff]
        %v849 = vld [vmem:[%s523 + $0x990] sm:$0xff]
        %v850 = vld [vmem:[%s523 + $0x998] sm:$0xff]
        %v851 = vld [vmem:[%s523 + $0x9a0] sm:$0xff]
        %v852 = vld [vmem:[%s523 + $0x9a8] sm:$0xff]
        %v853 = vld [vmem:[%s523 + $0x9b0] sm:$0xff]
        %v854 = vld [vmem:[%s523 + $0x9b8] sm:$0xff]
        %v855 = vld [vmem:[%s523 + $0x9c0] sm:$0xff]
        %v856 = vld [vmem:[%s523 + $0x9c8] sm:$0xff]
        %v857 = vld [vmem:[%s523 + $0x9d0] sm:$0xff]
        %v858 = vld [vmem:[%s523 + $0x9d8] sm:$0xff]
        %v859 = vld [vmem:[%s523 + $0x9e0] sm:$0xff]
        %v860 = vld [vmem:[%s523 + $0x9e8] sm:$0xff]
        %v861 = vld [vmem:[%s523 + $0x9f0] sm:$0xff]
        %v862 = vld [vmem:[%s523 + $0x9f8] sm:$0xff]
        %v863 = vld [vmem:[%s523 + $0xa00] sm:$0xff]
        %v864 = vld [vmem:[%s523 + $0xa08] sm:$0xff]
        %v865 = vld [vmem:[%s523 + $0xa10] sm:$0xff]
        %v866 = vld [vmem:[%s523 + $0xa18] sm:$0xff]
        %v867 = vld [vmem:[%s523 + $0xa20] sm:$0xff]
        %v868 = vld [vmem:[%s523 + $0xa28] sm:$0xff]
        %v869 = vld [vmem:[%s523 + $0xa30] sm:$0xff]
        %v870 = vld [vmem:[%s523 + $0xa38] sm:$0xff]
        %v871 = vld [vmem:[%s523 + $0xa40] sm:$0xff]
        %v872 = vld [vmem:[%s523 + $0xa48] sm:$0xff]
        %v873 = vld [vmem:[%s523 + $0xa50] sm:$0xff]
        %v874 = vld [vmem:[%s523 + $0xa58] sm:$0xff]
        %v875 = vld [vmem:[%s523 + $0xa60] sm:$0xff]
        %v876 = vld [vmem:[%s523 + $0xa68] sm:$0xff]
        %v877 = vld [vmem:[%s523 + $0xa70] sm:$0xff]
        %v878 = vld [vmem:[%s523 + $0xa78] sm:$0xff]
        %v879 = vld [vmem:[%s523 + $0xa80] sm:$0xff]
        %v880 = vld [vmem:[%s523 + $0xa88] sm:$0xff]
        %v881 = vld [vmem:[%s523 + $0xa90] sm:$0xff]
        %v882 = vld [vmem:[%s523 + $0xa98] sm:$0xff]
        %v883 = vld [vmem:[%s523 + $0xaa0] sm:$0xff]
        %v884 = vld [vmem:[%s523 + $0xaa8] sm:$0xff]
        %v885 = vld [vmem:[%s523 + $0xab0] sm:$0xff]
        %v886 = vld [vmem:[%s523 + $0xab8] sm:$0xff]
        %v887 = vld [vmem:[%s523 + $0xac0] sm:$0xff]
        %v888 = vld [vmem:[%s523 + $0xac8] sm:$0xff]
        %v889 = vld [vmem:[%s523 + $0xad0] sm:$0xff]
        %v890 = vld [vmem:[%s523 + $0xad8] sm:$0xff]
        %v891 = vld [vmem:[%s523 + $0xae0] sm:$0xff]
        %v892 = vld [vmem:[%s523 + $0xae8] sm:$0xff]
        %v893 = vld [vmem:[%s523 + $0xaf0] sm:$0xff]
        %v894 = vld [vmem:[%s523 + $0xaf8] sm:$0xff]
        %v895 = vld [vmem:[%s523 + $0xb00] sm:$0xff]
        %v896 = vld [vmem:[%s523 + $0xb08] sm:$0xff]
        %v897 = vld [vmem:[%s523 + $0xb10] sm:$0xff]
        %v898 = vld [vmem:[%s523 + $0xb18] sm:$0xff]
        %v899 = vld [vmem:[%s523 + $0xb20] sm:$0xff]
        %v900 = vld [vmem:[%s523 + $0xb28] sm:$0xff]
        %v901 = vld [vmem:[%s523 + $0xb30] sm:$0xff]
        %v902 = vld [vmem:[%s523 + $0xb38] sm:$0xff]
        %v903 = vld [vmem:[%s523 + $0xb40] sm:$0xff]
        %v904 = vld [vmem:[%s523 + $0xb48] sm:$0xff]
        %v905 = vld [vmem:[%s523 + $0xb50] sm:$0xff]
        %v906 = vld [vmem:[%s523 + $0xb58] sm:$0xff]
        %v907 = vld [vmem:[%s523 + $0xb60] sm:$0xff]
        %v908 = vld [vmem:[%s523 + $0xb68] sm:$0xff]
        %v909 = vld [vmem:[%s523 + $0xb70] sm:$0xff]
        %v910 = vld [vmem:[%s523 + $0xb78] sm:$0xff]
        %v911 = vld [vmem:[%s523 + $0xb80] sm:$0xff]
        %v912 = vld [vmem:[%s523 + $0xb88] sm:$0xff]
        %v913 = vld [vmem:[%s523 + $0xb90] sm:$0xff]
        %v914 = vld [vmem:[%s523 + $0xb98] sm:$0xff]
        %v915 = vld [vmem:[%s523 + $0xba0] sm:$0xff]
        %v916 = vld [vmem:[%s523 + $0xba8] sm:$0xff]
        %v917 = vld [vmem:[%s523 + $0xbb0] sm:$0xff]
        %v918 = vld [vmem:[%s523 + $0xbb8] sm:$0xff]
        %v919 = vld [vmem:[%s523 + $0xbc0] sm:$0xff]
        %v920 = vld [vmem:[%s523 + $0xbc8] sm:$0xff]
        %v921 = vld [vmem:[%s523 + $0xbd0] sm:$0xff]
        %v922 = vld [vmem:[%s523 + $0xbd8] sm:$0xff]
        %v923 = vld [vmem:[%s523 + $0xbe0] sm:$0xff]
        %v924 = vld [vmem:[%s523 + $0xbe8] sm:$0xff]
        %v925 = vld [vmem:[%s523 + $0xbf0] sm:$0xff]
        %v926 = vld [vmem:[%s523 + $0xbf8] sm:$0xff]
        %v927 = vld [vmem:[%s523 + $0xc00] sm:$0xff]
        %v928 = vld [vmem:[%s523 + $0xc08] sm:$0xff]
        %v929 = vld [vmem:[%s523 + $0xc10] sm:$0xff]
        %v930 = vld [vmem:[%s523 + $0xc18] sm:$0xff]
        %v931 = vld [vmem:[%s523 + $0xc20] sm:$0xff]
        %v932 = vld [vmem:[%s523 + $0xc28] sm:$0xff]
        %v933 = vld [vmem:[%s523 + $0xc30] sm:$0xff]
        %v934 = vld [vmem:[%s523 + $0xc38] sm:$0xff]
        %v935 = vld [vmem:[%s523 + $0xc40] sm:$0xff]
        %v936 = vld [vmem:[%s523 + $0xc48] sm:$0xff]
        %v937 = vld [vmem:[%s523 + $0xc50] sm:$0xff]
        %v938 = vld [vmem:[%s523 + $0xc58] sm:$0xff]
        %v939 = vld [vmem:[%s523 + $0xc60] sm:$0xff]
        %v940 = vld [vmem:[%s523 + $0xc68] sm:$0xff]
        %v941 = vld [vmem:[%s523 + $0xc70] sm:$0xff]
        %v942 = vld [vmem:[%s523 + $0xc78] sm:$0xff]
        %v943 = vld [vmem:[%s523 + $0xc80] sm:$0xff]
        %v944 = vld [vmem:[%s523 + $0xc88] sm:$0xff]
        %v945 = vld [vmem:[%s523 + $0xc90] sm:$0xff]
        %v946 = vld [vmem:[%s523 + $0xc98] sm:$0xff]
        %v947 = vld [vmem:[%s523 + $0xca0] sm:$0xff]
        %v948 = vld [vmem:[%s523 + $0xca8] sm:$0xff]
        %v949 = vld [vmem:[%s523 + $0xcb0] sm:$0xff]
        %v950 = vld [vmem:[%s523 + $0xcb8] sm:$0xff]
        %v951 = vld [vmem:[%s523 + $0xcc0] sm:$0xff]
        %v952 = vld [vmem:[%s523 + $0xcc8] sm:$0xff]
        %v953 = vld [vmem:[%s523 + $0xcd0] sm:$0xff]
        %v954 = vld [vmem:[%s523 + $0xcd8] sm:$0xff]
        %v955 = vld [vmem:[%s523 + $0xce0] sm:$0xff]
        %v956 = vld [vmem:[%s523 + $0xce8] sm:$0xff]
        %v957 = vld [vmem:[%s523 + $0xcf0] sm:$0xff]
        %v958 = vld [vmem:[%s523 + $0xcf8] sm:$0xff]
        %v959 = vld [vmem:[%s523 + $0xd00] sm:$0xff]
        %v960 = vld [vmem:[%s523 + $0xd08] sm:$0xff]
        %v961 = vld [vmem:[%s523 + $0xd10] sm:$0xff]
        %v962 = vld [vmem:[%s523 + $0xd18] sm:$0xff]
        %v963 = vld [vmem:[%s523 + $0xd20] sm:$0xff]
        %v964 = vld [vmem:[%s523 + $0xd28] sm:$0xff]
        %v965 = vld [vmem:[%s523 + $0xd30] sm:$0xff]
        %v966 = vld [vmem:[%s523 + $0xd38] sm:$0xff]
        %v967 = vld [vmem:[%s523 + $0xd40] sm:$0xff]
        %v968 = vld [vmem:[%s523 + $0xd48] sm:$0xff]
        %v969 = vld [vmem:[%s523 + $0xd50] sm:$0xff]
        %v970 = vld [vmem:[%s523 + $0xd58] sm:$0xff]
        %v971 = vld [vmem:[%s523 + $0xd60] sm:$0xff]
        %v972 = vld [vmem:[%s523 + $0xd68] sm:$0xff]
        %v973 = vld [vmem:[%s523 + $0xd70] sm:$0xff]
        %v974 = vld [vmem:[%s523 + $0xd78] sm:$0xff]
        %v975 = vld [vmem:[%s523 + $0xd80] sm:$0xff]
        %v976 = vld [vmem:[%s523 + $0xd88] sm:$0xff]
        %v977 = vld [vmem:[%s523 + $0xd90] sm:$0xff]
        %v978 = vld [vmem:[%s523 + $0xd98] sm:$0xff]
        %v979 = vld [vmem:[%s523 + $0xda0] sm:$0xff]
        %v980 = vld [vmem:[%s523 + $0xda8] sm:$0xff]
        %v981 = vld [vmem:[%s523 + $0xdb0] sm:$0xff]
        %v982 = vld [vmem:[%s523 + $0xdb8] sm:$0xff]
        %v983 = vld [vmem:[%s523 + $0xdc0] sm:$0xff]
        %v984 = vld [vmem:[%s523 + $0xdc8] sm:$0xff]
        %v985 = vld [vmem:[%s523 + $0xdd0] sm:$0xff]
        %v986 = vld [vmem:[%s523 + $0xdd8] sm:$0xff]
        %v987 = vld [vmem:[%s523 + $0xde0] sm:$0xff]
        %v988 = vld [vmem:[%s523 + $0xde8] sm:$0xff]
        %v989 = vld [vmem:[%s523 + $0xdf0] sm:$0xff]
        %v990 = vld [vmem:[%s523 + $0xdf8] sm:$0xff]
        %v991 = vld [vmem:[%s523 + $0xe00] sm:$0xff]
        %v992 = vld [vmem:[%s523 + $0xe08] sm:$0xff]
        %v993 = vld [vmem:[%s523 + $0xe10] sm:$0xff]
        %v994 = vld [vmem:[%s523 + $0xe18] sm:$0xff]
        %v995 = vld [vmem:[%s523 + $0xe20] sm:$0xff]
        %v996 = vld [vmem:[%s523 + $0xe28] sm:$0xff]
        %v997 = vld [vmem:[%s523 + $0xe30] sm:$0xff]
        %v998 = vld [vmem:[%s523 + $0xe38] sm:$0xff]
        %v999 = vld [vmem:[%s523 + $0xe40] sm:$0xff]
        %v1000 = vld [vmem:[%s523 + $0xe48] sm:$0xff]
        %v1001 = vld [vmem:[%s523 + $0xe50] sm:$0xff]
        %v1002 = vld [vmem:[%s523 + $0xe58] sm:$0xff]
        %v1003 = vld [vmem:[%s523 + $0xe60] sm:$0xff]
        %v1004 = vld [vmem:[%s523 + $0xe68] sm:$0xff]
        %v1005 = vld [vmem:[%s523 + $0xe70] sm:$0xff]
        %v1006 = vld [vmem:[%s523 + $0xe78] sm:$0xff]
        %v1007 = vld [vmem:[%s523 + $0xe80] sm:$0xff]
        %v1008 = vld [vmem:[%s523 + $0xe88] sm:$0xff]
        %v1009 = vld [vmem:[%s523 + $0xe90] sm:$0xff]
        %v1010 = vld [vmem:[%s523 + $0xe98] sm:$0xff]
        %v1011 = vld [vmem:[%s523 + $0xea0] sm:$0xff]
        %v1012 = vld [vmem:[%s523 + $0xea8] sm:$0xff]
        %v1013 = vld [vmem:[%s523 + $0xeb0] sm:$0xff]
        %v1014 = vld [vmem:[%s523 + $0xeb8] sm:$0xff]
        %v1015 = vld [vmem:[%s523 + $0xec0] sm:$0xff]
        %v1016 = vld [vmem:[%s523 + $0xec8] sm:$0xff]
        %v1017 = vld [vmem:[%s523 + $0xed0] sm:$0xff]
        %v1018 = vld [vmem:[%s523 + $0xed8] sm:$0xff]
        %v1019 = vld [vmem:[%s523 + $0xee0] sm:$0xff]
        %v1020 = vld [vmem:[%s523 + $0xee8] sm:$0xff]
        %v1021 = vld [vmem:[%s523 + $0xef0] sm:$0xff]
        %v1022 = vld [vmem:[%s523 + $0xef8] sm:$0xff]
        %v1023 = vld [vmem:[%s523 + $0xf00] sm:$0xff]
        %v1024 = vld [vmem:[%s523 + $0xf08] sm:$0xff]
        %v1025 = vld [vmem:[%s523 + $0xf10] sm:$0xff]
        %v1026 = vld [vmem:[%s523 + $0xf18] sm:$0xff]
        %v1027 = vld [vmem:[%s523 + $0xf20] sm:$0xff]
        %v1028 = vld [vmem:[%s523 + $0xf28] sm:$0xff]
        %v1029 = vld [vmem:[%s523 + $0xf30] sm:$0xff]
        %v1030 = vld [vmem:[%s523 + $0xf38] sm:$0xff]
        %v1031 = vld [vmem:[%s523 + $0xf40] sm:$0xff]
        %v1032 = vld [vmem:[%s523 + $0xf48] sm:$0xff]
        %v1033 = vld [vmem:[%s523 + $0xf50] sm:$0xff]
        %v1034 = vld [vmem:[%s523 + $0xf58] sm:$0xff]
        %v1035 = vld [vmem:[%s523 + $0xf60] sm:$0xff]
        %v1036 = vld [vmem:[%s523 + $0xf68] sm:$0xff]
        %v1037 = vld [vmem:[%s523 + $0xf70] sm:$0xff]
        %v1038 = vld [vmem:[%s523 + $0xf78] sm:$0xff]
        %v1039 = vld [vmem:[%s523 + $0xf80] sm:$0xff]
        %v1040 = vld [vmem:[%s523 + $0xf88] sm:$0xff]
        %v1041 = vld [vmem:[%s523 + $0xf90] sm:$0xff]
        %v1042 = vld [vmem:[%s523 + $0xf98] sm:$0xff]
        %v1043 = vld [vmem:[%s523 + $0xfa0] sm:$0xff]
        %v1044 = vld [vmem:[%s523 + $0xfa8] sm:$0xff]
        %v1045 = vld [vmem:[%s523 + $0xfb0] sm:$0xff]
        %v1046 = vld [vmem:[%s523 + $0xfb8] sm:$0xff]
        %v1047 = vld [vmem:[%s523 + $0xfc0] sm:$0xff]
        %v1048 = vld [vmem:[%s523 + $0xfc8] sm:$0xff]
        %v1049 = vld [vmem:[%s523 + $0xfd0] sm:$0xff]
        %v1050 = vld [vmem:[%s523 + $0xfd8] sm:$0xff]
        %v1051 = vld [vmem:[%s523 + $0xfe0] sm:$0xff]
        %v1052 = vld [vmem:[%s523 + $0xfe8] sm:$0xff]
        %v1053 = vld [vmem:[%s523 + $0xff0] sm:$0xff]
        %v1054 = vld [vmem:[%s523 + $0xff8] sm:$0xff]
        %v1057 = vunpack.c.l.s4 1966171168
        %v1058 = vunpack.c.0.s8 %v1057
        %v1059 = vlaneseq
        %v1060 = vshrl.u32 %v1059, 7
        %v1061 = vsub.s32 %v1058, %v1060
        %v1062 = vrot.slane %v542, %v1061
        %v1063 = vcombine.high %v1062, %v1062
        %v1065 = vunpack.c.l.s4 1966171168
        %v1066 = vunpack.c.0.s8 %v1065
        %v1067 = vlaneseq
        %v1068 = vshrl.u32 %v1067, 7
        %v1069 = vsub.s32 %v1066, %v1068
        %v1070 = vrot.slane %v1062, %v1069
        %v1072 = vunpack.c.l.s4 1966171168
        %v1073 = vunpack.c.0.s8 %v1072
        %v1074 = vlaneseq
        %v1075 = vshrl.u32 %v1074, 7
        %v1076 = vsub.s32 %v1073, %v1075
        %v1077 = vrot.slane %v1063, %v1076
        %v1078 = vcombine.high %v1070, %v1070
        %v1079 = vcombine.high %v1077, %v1077
        %v1596 = vunpack.c.l.b16 %v543
        %v1597 = vunpack.c.h.b16 %v543
        %v1598 = vunpack.c.l.b16 %v544
        %v1599 = vunpack.c.h.b16 %v544
        %v1600 = vunpack.c.l.b16 %v545
        %v1601 = vunpack.c.h.b16 %v545
        %v1602 = vunpack.c.l.b16 %v546
        %v1603 = vunpack.c.h.b16 %v546
        %v1604 = vunpack.c.l.b16 %v547
        %v1605 = vunpack.c.h.b16 %v547
        %v1606 = vunpack.c.l.b16 %v548
        %v1607 = vunpack.c.h.b16 %v548
        %v1608 = vunpack.c.l.b16 %v549
        %v1609 = vunpack.c.h.b16 %v549
        %v1610 = vunpack.c.l.b16 %v550
        %v1611 = vunpack.c.h.b16 %v550
        %v1612 = vunpack.c.l.b16 %v551
        %v1613 = vunpack.c.h.b16 %v551
        %v1614 = vunpack.c.l.b16 %v552
        %v1615 = vunpack.c.h.b16 %v552
        %v1616 = vunpack.c.l.b16 %v553
        %v1617 = vunpack.c.h.b16 %v553
        %v1618 = vunpack.c.l.b16 %v554
        %v1619 = vunpack.c.h.b16 %v554
        %v1620 = vunpack.c.l.b16 %v555
        %v1621 = vunpack.c.h.b16 %v555
        %v1622 = vunpack.c.l.b16 %v556
        %v1623 = vunpack.c.h.b16 %v556
        %v1624 = vunpack.c.l.b16 %v557
        %v1625 = vunpack.c.h.b16 %v557
        %v1626 = vunpack.c.l.b16 %v558
        %v1627 = vunpack.c.h.b16 %v558
        %v1628 = vunpack.c.l.b16 %v559
        %v1629 = vunpack.c.h.b16 %v559
        %v1630 = vunpack.c.l.b16 %v560
        %v1631 = vunpack.c.h.b16 %v560
        %v1632 = vunpack.c.l.b16 %v561
        %v1633 = vunpack.c.h.b16 %v561
        %v1634 = vunpack.c.l.b16 %v562
        %v1635 = vunpack.c.h.b16 %v562
        %v1636 = vunpack.c.l.b16 %v563
        %v1637 = vunpack.c.h.b16 %v563
        %v1638 = vunpack.c.l.b16 %v564
        %v1639 = vunpack.c.h.b16 %v564
        %v1640 = vunpack.c.l.b16 %v565
        %v1641 = vunpack.c.h.b16 %v565
        %v1642 = vunpack.c.l.b16 %v566
        %v1643 = vunpack.c.h.b16 %v566
        %v1644 = vunpack.c.l.b16 %v567
        %v1645 = vunpack.c.h.b16 %v567
        %v1646 = vunpack.c.l.b16 %v568
        %v1647 = vunpack.c.h.b16 %v568
        %v1648 = vunpack.c.l.b16 %v569
        %v1649 = vunpack.c.h.b16 %v569
        %v1650 = vunpack.c.l.b16 %v570
        %v1651 = vunpack.c.h.b16 %v570
        %v1652 = vunpack.c.l.b16 %v571
        %v1653 = vunpack.c.h.b16 %v571
        %v1654 = vunpack.c.l.b16 %v572
        %v1655 = vunpack.c.h.b16 %v572
        %v1656 = vunpack.c.l.b16 %v573
        %v1657 = vunpack.c.h.b16 %v573
        %v1658 = vunpack.c.l.b16 %v574
        %v1659 = vunpack.c.h.b16 %v574
        %v1660 = vunpack.c.l.b16 %v575
        %v1661 = vunpack.c.h.b16 %v575
        %v1662 = vunpack.c.l.b16 %v576
        %v1663 = vunpack.c.h.b16 %v576
        %v1664 = vunpack.c.l.b16 %v577
        %v1665 = vunpack.c.h.b16 %v577
        %v1666 = vunpack.c.l.b16 %v578
        %v1667 = vunpack.c.h.b16 %v578
        %v1668 = vunpack.c.l.b16 %v579
        %v1669 = vunpack.c.h.b16 %v579
        %v1670 = vunpack.c.l.b16 %v580
        %v1671 = vunpack.c.h.b16 %v580
        %v1672 = vunpack.c.l.b16 %v581
        %v1673 = vunpack.c.h.b16 %v581
        %v1674 = vunpack.c.l.b16 %v582
        %v1675 = vunpack.c.h.b16 %v582
        %v1676 = vunpack.c.l.b16 %v583
        %v1677 = vunpack.c.h.b16 %v583
        %v1678 = vunpack.c.l.b16 %v584
        %v1679 = vunpack.c.h.b16 %v584
        %v1680 = vunpack.c.l.b16 %v585
        %v1681 = vunpack.c.h.b16 %v585
        %v1682 = vunpack.c.l.b16 %v586
        %v1683 = vunpack.c.h.b16 %v586
        %v1684 = vunpack.c.l.b16 %v587
        %v1685 = vunpack.c.h.b16 %v587
        %v1686 = vunpack.c.l.b16 %v588
        %v1687 = vunpack.c.h.b16 %v588
        %v1688 = vunpack.c.l.b16 %v589
        %v1689 = vunpack.c.h.b16 %v589
        %v1690 = vunpack.c.l.b16 %v590
        %v1691 = vunpack.c.h.b16 %v590
        %v1692 = vunpack.c.l.b16 %v591
        %v1693 = vunpack.c.h.b16 %v591
        %v1694 = vunpack.c.l.b16 %v592
        %v1695 = vunpack.c.h.b16 %v592
        %v1696 = vunpack.c.l.b16 %v593
        %v1697 = vunpack.c.h.b16 %v593
        %v1698 = vunpack.c.l.b16 %v594
        %v1699 = vunpack.c.h.b16 %v594
        %v1700 = vunpack.c.l.b16 %v595
        %v1701 = vunpack.c.h.b16 %v595
        %v1702 = vunpack.c.l.b16 %v596
        %v1703 = vunpack.c.h.b16 %v596
        %v1704 = vunpack.c.l.b16 %v597
        %v1705 = vunpack.c.h.b16 %v597
        %v1706 = vunpack.c.l.b16 %v598
        %v1707 = vunpack.c.h.b16 %v598
        %v1708 = vunpack.c.l.b16 %v599
        %v1709 = vunpack.c.h.b16 %v599
        %v1710 = vunpack.c.l.b16 %v600
        %v1711 = vunpack.c.h.b16 %v600
        %v1712 = vunpack.c.l.b16 %v601
        %v1713 = vunpack.c.h.b16 %v601
        %v1714 = vunpack.c.l.b16 %v602
        %v1715 = vunpack.c.h.b16 %v602
        %v1716 = vunpack.c.l.b16 %v603
        %v1717 = vunpack.c.h.b16 %v603
        %v1718 = vunpack.c.l.b16 %v604
        %v1719 = vunpack.c.h.b16 %v604
        %v1720 = vunpack.c.l.b16 %v605
        %v1721 = vunpack.c.h.b16 %v605
        %v1722 = vunpack.c.l.b16 %v606
        %v1723 = vunpack.c.h.b16 %v606
        %v1724 = vunpack.c.l.b16 %v607
        %v1725 = vunpack.c.h.b16 %v607
        %v1726 = vunpack.c.l.b16 %v608
        %v1727 = vunpack.c.h.b16 %v608
        %v1728 = vunpack.c.l.b16 %v609
        %v1729 = vunpack.c.h.b16 %v609
        %v1730 = vunpack.c.l.b16 %v610
        %v1731 = vunpack.c.h.b16 %v610
        %v1732 = vunpack.c.l.b16 %v611
        %v1733 = vunpack.c.h.b16 %v611
        %v1734 = vunpack.c.l.b16 %v612
        %v1735 = vunpack.c.h.b16 %v612
        %v1736 = vunpack.c.l.b16 %v613
        %v1737 = vunpack.c.h.b16 %v613
        %v1738 = vunpack.c.l.b16 %v614
        %v1739 = vunpack.c.h.b16 %v614
        %v1740 = vunpack.c.l.b16 %v615
        %v1741 = vunpack.c.h.b16 %v615
        %v1742 = vunpack.c.l.b16 %v616
        %v1743 = vunpack.c.h.b16 %v616
        %v1744 = vunpack.c.l.b16 %v617
        %v1745 = vunpack.c.h.b16 %v617
        %v1746 = vunpack.c.l.b16 %v618
        %v1747 = vunpack.c.h.b16 %v618
        %v1748 = vunpack.c.l.b16 %v619
        %v1749 = vunpack.c.h.b16 %v619
        %v1750 = vunpack.c.l.b16 %v620
        %v1751 = vunpack.c.h.b16 %v620
        %v1752 = vunpack.c.l.b16 %v621
        %v1753 = vunpack.c.h.b16 %v621
        %v1754 = vunpack.c.l.b16 %v622
        %v1755 = vunpack.c.h.b16 %v622
        %v1756 = vunpack.c.l.b16 %v623
        %v1757 = vunpack.c.h.b16 %v623
        %v1758 = vunpack.c.l.b16 %v624
        %v1759 = vunpack.c.h.b16 %v624
        %v1760 = vunpack.c.l.b16 %v625
        %v1761 = vunpack.c.h.b16 %v625
        %v1762 = vunpack.c.l.b16 %v626
        %v1763 = vunpack.c.h.b16 %v626
        %v1764 = vunpack.c.l.b16 %v627
        %v1765 = vunpack.c.h.b16 %v627
        %v1766 = vunpack.c.l.b16 %v628
        %v1767 = vunpack.c.h.b16 %v628
        %v1768 = vunpack.c.l.b16 %v629
        %v1769 = vunpack.c.h.b16 %v629
        %v1770 = vunpack.c.l.b16 %v630
        %v1771 = vunpack.c.h.b16 %v630
        %v1772 = vunpack.c.l.b16 %v631
        %v1773 = vunpack.c.h.b16 %v631
        %v1774 = vunpack.c.l.b16 %v632
        %v1775 = vunpack.c.h.b16 %v632
        %v1776 = vunpack.c.l.b16 %v633
        %v1777 = vunpack.c.h.b16 %v633
        %v1778 = vunpack.c.l.b16 %v634
        %v1779 = vunpack.c.h.b16 %v634
        %v1780 = vunpack.c.l.b16 %v635
        %v1781 = vunpack.c.h.b16 %v635
        %v1782 = vunpack.c.l.b16 %v636
        %v1783 = vunpack.c.h.b16 %v636
        %v1784 = vunpack.c.l.b16 %v637
        %v1785 = vunpack.c.h.b16 %v637
        %v1786 = vunpack.c.l.b16 %v638
        %v1787 = vunpack.c.h.b16 %v638
        %v1788 = vunpack.c.l.b16 %v639
        %v1789 = vunpack.c.h.b16 %v639
        %v1790 = vunpack.c.l.b16 %v640
        %v1791 = vunpack.c.h.b16 %v640
        %v1792 = vunpack.c.l.b16 %v641
        %v1793 = vunpack.c.h.b16 %v641
        %v1794 = vunpack.c.l.b16 %v642
        %v1795 = vunpack.c.h.b16 %v642
        %v1796 = vunpack.c.l.b16 %v643
        %v1797 = vunpack.c.h.b16 %v643
        %v1798 = vunpack.c.l.b16 %v644
        %v1799 = vunpack.c.h.b16 %v644
        %v1800 = vunpack.c.l.b16 %v645
        %v1801 = vunpack.c.h.b16 %v645
        %v1802 = vunpack.c.l.b16 %v646
        %v1803 = vunpack.c.h.b16 %v646
        %v1804 = vunpack.c.l.b16 %v647
        %v1805 = vunpack.c.h.b16 %v647
        %v1806 = vunpack.c.l.b16 %v648
        %v1807 = vunpack.c.h.b16 %v648
        %v1808 = vunpack.c.l.b16 %v649
        %v1809 = vunpack.c.h.b16 %v649
        %v1810 = vunpack.c.l.b16 %v650
        %v1811 = vunpack.c.h.b16 %v650
        %v1812 = vunpack.c.l.b16 %v651
        %v1813 = vunpack.c.h.b16 %v651
        %v1814 = vunpack.c.l.b16 %v652
        %v1815 = vunpack.c.h.b16 %v652
        %v1816 = vunpack.c.l.b16 %v653
        %v1817 = vunpack.c.h.b16 %v653
        %v1818 = vunpack.c.l.b16 %v654
        %v1819 = vunpack.c.h.b16 %v654
        %v1820 = vunpack.c.l.b16 %v655
        %v1821 = vunpack.c.h.b16 %v655
        %v1822 = vunpack.c.l.b16 %v656
        %v1823 = vunpack.c.h.b16 %v656
        %v1824 = vunpack.c.l.b16 %v657
        %v1825 = vunpack.c.h.b16 %v657
        %v1826 = vunpack.c.l.b16 %v658
        %v1827 = vunpack.c.h.b16 %v658
        %v1828 = vunpack.c.l.b16 %v659
        %v1829 = vunpack.c.h.b16 %v659
        %v1830 = vunpack.c.l.b16 %v660
        %v1831 = vunpack.c.h.b16 %v660
        %v1832 = vunpack.c.l.b16 %v661
        %v1833 = vunpack.c.h.b16 %v661
        %v1834 = vunpack.c.l.b16 %v662
        %v1835 = vunpack.c.h.b16 %v662
        %v1836 = vunpack.c.l.b16 %v663
        %v1837 = vunpack.c.h.b16 %v663
        %v1838 = vunpack.c.l.b16 %v664
        %v1839 = vunpack.c.h.b16 %v664
        %v1840 = vunpack.c.l.b16 %v665
        %v1841 = vunpack.c.h.b16 %v665
        %v1842 = vunpack.c.l.b16 %v666
        %v1843 = vunpack.c.h.b16 %v666
        %v1844 = vunpack.c.l.b16 %v667
        %v1845 = vunpack.c.h.b16 %v667
        %v1846 = vunpack.c.l.b16 %v668
        %v1847 = vunpack.c.h.b16 %v668
        %v1848 = vunpack.c.l.b16 %v669
        %v1849 = vunpack.c.h.b16 %v669
        %v1850 = vunpack.c.l.b16 %v670
        %v1851 = vunpack.c.h.b16 %v670
        %v1852 = vunpack.c.l.b16 %v671
        %v1853 = vunpack.c.h.b16 %v671
        %v1854 = vunpack.c.l.b16 %v672
        %v1855 = vunpack.c.h.b16 %v672
        %v1856 = vunpack.c.l.b16 %v673
        %v1857 = vunpack.c.h.b16 %v673
        %v1858 = vunpack.c.l.b16 %v674
        %v1859 = vunpack.c.h.b16 %v674
        %v1860 = vunpack.c.l.b16 %v675
        %v1861 = vunpack.c.h.b16 %v675
        %v1862 = vunpack.c.l.b16 %v676
        %v1863 = vunpack.c.h.b16 %v676
        %v1864 = vunpack.c.l.b16 %v677
        %v1865 = vunpack.c.h.b16 %v677
        %v1866 = vunpack.c.l.b16 %v678
        %v1867 = vunpack.c.h.b16 %v678
        %v1868 = vunpack.c.l.b16 %v679
        %v1869 = vunpack.c.h.b16 %v679
        %v1870 = vunpack.c.l.b16 %v680
        %v1871 = vunpack.c.h.b16 %v680
        %v1872 = vunpack.c.l.b16 %v681
        %v1873 = vunpack.c.h.b16 %v681
        %v1874 = vunpack.c.l.b16 %v682
        %v1875 = vunpack.c.h.b16 %v682
        %v1876 = vunpack.c.l.b16 %v683
        %v1877 = vunpack.c.h.b16 %v683
        %v1878 = vunpack.c.l.b16 %v684
        %v1879 = vunpack.c.h.b16 %v684
        %v1880 = vunpack.c.l.b16 %v685
        %v1881 = vunpack.c.h.b16 %v685
        %v1882 = vunpack.c.l.b16 %v686
        %v1883 = vunpack.c.h.b16 %v686
        %v1884 = vunpack.c.l.b16 %v687
        %v1885 = vunpack.c.h.b16 %v687
        %v1886 = vunpack.c.l.b16 %v688
        %v1887 = vunpack.c.h.b16 %v688
        %v1888 = vunpack.c.l.b16 %v689
        %v1889 = vunpack.c.h.b16 %v689
        %v1890 = vunpack.c.l.b16 %v690
        %v1891 = vunpack.c.h.b16 %v690
        %v1892 = vunpack.c.l.b16 %v691
        %v1893 = vunpack.c.h.b16 %v691
        %v1894 = vunpack.c.l.b16 %v692
        %v1895 = vunpack.c.h.b16 %v692
        %v1896 = vunpack.c.l.b16 %v693
        %v1897 = vunpack.c.h.b16 %v693
        %v1898 = vunpack.c.l.b16 %v694
        %v1899 = vunpack.c.h.b16 %v694
        %v1900 = vunpack.c.l.b16 %v695
        %v1901 = vunpack.c.h.b16 %v695
        %v1902 = vunpack.c.l.b16 %v696
        %v1903 = vunpack.c.h.b16 %v696
        %v1904 = vunpack.c.l.b16 %v697
        %v1905 = vunpack.c.h.b16 %v697
        %v1906 = vunpack.c.l.b16 %v698
        %v1907 = vunpack.c.h.b16 %v698
        %v1908 = vunpack.c.l.b16 %v699
        %v1909 = vunpack.c.h.b16 %v699
        %v1910 = vunpack.c.l.b16 %v700
        %v1911 = vunpack.c.h.b16 %v700
        %v1912 = vunpack.c.l.b16 %v701
        %v1913 = vunpack.c.h.b16 %v701
        %v1914 = vunpack.c.l.b16 %v702
        %v1915 = vunpack.c.h.b16 %v702
        %v1916 = vunpack.c.l.b16 %v703
        %v1917 = vunpack.c.h.b16 %v703
        %v1918 = vunpack.c.l.b16 %v704
        %v1919 = vunpack.c.h.b16 %v704
        %v1920 = vunpack.c.l.b16 %v705
        %v1921 = vunpack.c.h.b16 %v705
        %v1922 = vunpack.c.l.b16 %v706
        %v1923 = vunpack.c.h.b16 %v706
        %v1924 = vunpack.c.l.b16 %v707
        %v1925 = vunpack.c.h.b16 %v707
        %v1926 = vunpack.c.l.b16 %v708
        %v1927 = vunpack.c.h.b16 %v708
        %v1928 = vunpack.c.l.b16 %v709
        %v1929 = vunpack.c.h.b16 %v709
        %v1930 = vunpack.c.l.b16 %v710
        %v1931 = vunpack.c.h.b16 %v710
        %v1932 = vunpack.c.l.b16 %v711
        %v1933 = vunpack.c.h.b16 %v711
        %v1934 = vunpack.c.l.b16 %v712
        %v1935 = vunpack.c.h.b16 %v712
        %v1936 = vunpack.c.l.b16 %v713
        %v1937 = vunpack.c.h.b16 %v713
        %v1938 = vunpack.c.l.b16 %v714
        %v1939 = vunpack.c.h.b16 %v714
        %v1940 = vunpack.c.l.b16 %v715
        %v1941 = vunpack.c.h.b16 %v715
        %v1942 = vunpack.c.l.b16 %v716
        %v1943 = vunpack.c.h.b16 %v716
        %v1944 = vunpack.c.l.b16 %v717
        %v1945 = vunpack.c.h.b16 %v717
        %v1946 = vunpack.c.l.b16 %v718
        %v1947 = vunpack.c.h.b16 %v718
        %v1948 = vunpack.c.l.b16 %v719
        %v1949 = vunpack.c.h.b16 %v719
        %v1950 = vunpack.c.l.b16 %v720
        %v1951 = vunpack.c.h.b16 %v720
        %v1952 = vunpack.c.l.b16 %v721
        %v1953 = vunpack.c.h.b16 %v721
        %v1954 = vunpack.c.l.b16 %v722
        %v1955 = vunpack.c.h.b16 %v722
        %v1956 = vunpack.c.l.b16 %v723
        %v1957 = vunpack.c.h.b16 %v723
        %v1958 = vunpack.c.l.b16 %v724
        %v1959 = vunpack.c.h.b16 %v724
        %v1960 = vunpack.c.l.b16 %v725
        %v1961 = vunpack.c.h.b16 %v725
        %v1962 = vunpack.c.l.b16 %v726
        %v1963 = vunpack.c.h.b16 %v726
        %v1964 = vunpack.c.l.b16 %v727
        %v1965 = vunpack.c.h.b16 %v727
        %v1966 = vunpack.c.l.b16 %v728
        %v1967 = vunpack.c.h.b16 %v728
        %v1968 = vunpack.c.l.b16 %v729
        %v1969 = vunpack.c.h.b16 %v729
        %v1970 = vunpack.c.l.b16 %v730
        %v1971 = vunpack.c.h.b16 %v730
        %v1972 = vunpack.c.l.b16 %v731
        %v1973 = vunpack.c.h.b16 %v731
        %v1974 = vunpack.c.l.b16 %v732
        %v1975 = vunpack.c.h.b16 %v732
        %v1976 = vunpack.c.l.b16 %v733
        %v1977 = vunpack.c.h.b16 %v733
        %v1978 = vunpack.c.l.b16 %v734
        %v1979 = vunpack.c.h.b16 %v734
        %v1980 = vunpack.c.l.b16 %v735
        %v1981 = vunpack.c.h.b16 %v735
        %v1982 = vunpack.c.l.b16 %v736
        %v1983 = vunpack.c.h.b16 %v736
        %v1984 = vunpack.c.l.b16 %v737
        %v1985 = vunpack.c.h.b16 %v737
        %v1986 = vunpack.c.l.b16 %v738
        %v1987 = vunpack.c.h.b16 %v738
        %v1988 = vunpack.c.l.b16 %v739
        %v1989 = vunpack.c.h.b16 %v739
        %v1990 = vunpack.c.l.b16 %v740
        %v1991 = vunpack.c.h.b16 %v740
        %v1992 = vunpack.c.l.b16 %v741
        %v1993 = vunpack.c.h.b16 %v741
        %v1994 = vunpack.c.l.b16 %v742
        %v1995 = vunpack.c.h.b16 %v742
        %v1996 = vunpack.c.l.b16 %v743
        %v1997 = vunpack.c.h.b16 %v743
        %v1998 = vunpack.c.l.b16 %v744
        %v1999 = vunpack.c.h.b16 %v744
        %v2000 = vunpack.c.l.b16 %v745
        %v2001 = vunpack.c.h.b16 %v745
        %v2002 = vunpack.c.l.b16 %v746
        %v2003 = vunpack.c.h.b16 %v746
        %v2004 = vunpack.c.l.b16 %v747
        %v2005 = vunpack.c.h.b16 %v747
        %v2006 = vunpack.c.l.b16 %v748
        %v2007 = vunpack.c.h.b16 %v748
        %v2008 = vunpack.c.l.b16 %v749
        %v2009 = vunpack.c.h.b16 %v749
        %v2010 = vunpack.c.l.b16 %v750
        %v2011 = vunpack.c.h.b16 %v750
        %v2012 = vunpack.c.l.b16 %v751
        %v2013 = vunpack.c.h.b16 %v751
        %v2014 = vunpack.c.l.b16 %v752
        %v2015 = vunpack.c.h.b16 %v752
        %v2016 = vunpack.c.l.b16 %v753
        %v2017 = vunpack.c.h.b16 %v753
        %v2018 = vunpack.c.l.b16 %v754
        %v2019 = vunpack.c.h.b16 %v754
        %v2020 = vunpack.c.l.b16 %v755
        %v2021 = vunpack.c.h.b16 %v755
        %v2022 = vunpack.c.l.b16 %v756
        %v2023 = vunpack.c.h.b16 %v756
        %v2024 = vunpack.c.l.b16 %v757
        %v2025 = vunpack.c.h.b16 %v757
        %v2026 = vunpack.c.l.b16 %v758
        %v2027 = vunpack.c.h.b16 %v758
        %v2028 = vunpack.c.l.b16 %v759
        %v2029 = vunpack.c.h.b16 %v759
        %v2030 = vunpack.c.l.b16 %v760
        %v2031 = vunpack.c.h.b16 %v760
        %v2032 = vunpack.c.l.b16 %v761
        %v2033 = vunpack.c.h.b16 %v761
        %v2034 = vunpack.c.l.b16 %v762
        %v2035 = vunpack.c.h.b16 %v762
        %v2036 = vunpack.c.l.b16 %v763
        %v2037 = vunpack.c.h.b16 %v763
        %v2038 = vunpack.c.l.b16 %v764
        %v2039 = vunpack.c.h.b16 %v764
        %v2040 = vunpack.c.l.b16 %v765
        %v2041 = vunpack.c.h.b16 %v765
        %v2042 = vunpack.c.l.b16 %v766
        %v2043 = vunpack.c.h.b16 %v766
        %v2044 = vunpack.c.l.b16 %v767
        %v2045 = vunpack.c.h.b16 %v767
        %v2046 = vunpack.c.l.b16 %v768
        %v2047 = vunpack.c.h.b16 %v768
        %v2048 = vunpack.c.l.b16 %v769
        %v2049 = vunpack.c.h.b16 %v769
        %v2050 = vunpack.c.l.b16 %v770
        %v2051 = vunpack.c.h.b16 %v770
        %v2052 = vunpack.c.l.b16 %v771
        %v2053 = vunpack.c.h.b16 %v771
        %v2054 = vunpack.c.l.b16 %v772
        %v2055 = vunpack.c.h.b16 %v772
        %v2056 = vunpack.c.l.b16 %v773
        %v2057 = vunpack.c.h.b16 %v773
        %v2058 = vunpack.c.l.b16 %v774
        %v2059 = vunpack.c.h.b16 %v774
        %v2060 = vunpack.c.l.b16 %v775
        %v2061 = vunpack.c.h.b16 %v775
        %v2062 = vunpack.c.l.b16 %v776
        %v2063 = vunpack.c.h.b16 %v776
        %v2064 = vunpack.c.l.b16 %v777
        %v2065 = vunpack.c.h.b16 %v777
        %v2066 = vunpack.c.l.b16 %v778
        %v2067 = vunpack.c.h.b16 %v778
        %v2068 = vunpack.c.l.b16 %v779
        %v2069 = vunpack.c.h.b16 %v779
        %v2070 = vunpack.c.l.b16 %v780
        %v2071 = vunpack.c.h.b16 %v780
        %v2072 = vunpack.c.l.b16 %v781
        %v2073 = vunpack.c.h.b16 %v781
        %v2074 = vunpack.c.l.b16 %v782
        %v2075 = vunpack.c.h.b16 %v782
        %v2076 = vunpack.c.l.b16 %v783
        %v2077 = vunpack.c.h.b16 %v783
        %v2078 = vunpack.c.l.b16 %v784
        %v2079 = vunpack.c.h.b16 %v784
        %v2080 = vunpack.c.l.b16 %v785
        %v2081 = vunpack.c.h.b16 %v785
        %v2082 = vunpack.c.l.b16 %v786
        %v2083 = vunpack.c.h.b16 %v786
        %v2084 = vunpack.c.l.b16 %v787
        %v2085 = vunpack.c.h.b16 %v787
        %v2086 = vunpack.c.l.b16 %v788
        %v2087 = vunpack.c.h.b16 %v788
        %v2088 = vunpack.c.l.b16 %v789
        %v2089 = vunpack.c.h.b16 %v789
        %v2090 = vunpack.c.l.b16 %v790
        %v2091 = vunpack.c.h.b16 %v790
        %v2092 = vunpack.c.l.b16 %v791
        %v2093 = vunpack.c.h.b16 %v791
        %v2094 = vunpack.c.l.b16 %v792
        %v2095 = vunpack.c.h.b16 %v792
        %v2096 = vunpack.c.l.b16 %v793
        %v2097 = vunpack.c.h.b16 %v793
        %v2098 = vunpack.c.l.b16 %v794
        %v2099 = vunpack.c.h.b16 %v794
        %v2100 = vunpack.c.l.b16 %v795
        %v2101 = vunpack.c.h.b16 %v795
        %v2102 = vunpack.c.l.b16 %v796
        %v2103 = vunpack.c.h.b16 %v796
        %v2104 = vunpack.c.l.b16 %v797
        %v2105 = vunpack.c.h.b16 %v797
        %v2106 = vunpack.c.l.b16 %v798
        %v2107 = vunpack.c.h.b16 %v798
        %v2108 = vunpack.c.l.b16 %v799
        %v2109 = vunpack.c.h.b16 %v799
        %v2110 = vunpack.c.l.b16 %v800
        %v2111 = vunpack.c.h.b16 %v800
        %v2112 = vunpack.c.l.b16 %v801
        %v2113 = vunpack.c.h.b16 %v801
        %v2114 = vunpack.c.l.b16 %v802
        %v2115 = vunpack.c.h.b16 %v802
        %v2116 = vunpack.c.l.b16 %v803
        %v2117 = vunpack.c.h.b16 %v803
        %v2118 = vunpack.c.l.b16 %v804
        %v2119 = vunpack.c.h.b16 %v804
        %v2120 = vunpack.c.l.b16 %v805
        %v2121 = vunpack.c.h.b16 %v805
        %v2122 = vunpack.c.l.b16 %v806
        %v2123 = vunpack.c.h.b16 %v806
        %v2124 = vunpack.c.l.b16 %v807
        %v2125 = vunpack.c.h.b16 %v807
        %v2126 = vunpack.c.l.b16 %v808
        %v2127 = vunpack.c.h.b16 %v808
        %v2128 = vunpack.c.l.b16 %v809
        %v2129 = vunpack.c.h.b16 %v809
        %v2130 = vunpack.c.l.b16 %v810
        %v2131 = vunpack.c.h.b16 %v810
        %v2132 = vunpack.c.l.b16 %v811
        %v2133 = vunpack.c.h.b16 %v811
        %v2134 = vunpack.c.l.b16 %v812
        %v2135 = vunpack.c.h.b16 %v812
        %v2136 = vunpack.c.l.b16 %v813
        %v2137 = vunpack.c.h.b16 %v813
        %v2138 = vunpack.c.l.b16 %v814
        %v2139 = vunpack.c.h.b16 %v814
        %v2140 = vunpack.c.l.b16 %v815
        %v2141 = vunpack.c.h.b16 %v815
        %v2142 = vunpack.c.l.b16 %v816
        %v2143 = vunpack.c.h.b16 %v816
        %v2144 = vunpack.c.l.b16 %v817
        %v2145 = vunpack.c.h.b16 %v817
        %v2146 = vunpack.c.l.b16 %v818
        %v2147 = vunpack.c.h.b16 %v818
        %v2148 = vunpack.c.l.b16 %v819
        %v2149 = vunpack.c.h.b16 %v819
        %v2150 = vunpack.c.l.b16 %v820
        %v2151 = vunpack.c.h.b16 %v820
        %v2152 = vunpack.c.l.b16 %v821
        %v2153 = vunpack.c.h.b16 %v821
        %v2154 = vunpack.c.l.b16 %v822
        %v2155 = vunpack.c.h.b16 %v822
        %v2156 = vunpack.c.l.b16 %v823
        %v2157 = vunpack.c.h.b16 %v823
        %v2158 = vunpack.c.l.b16 %v824
        %v2159 = vunpack.c.h.b16 %v824
        %v2160 = vunpack.c.l.b16 %v825
        %v2161 = vunpack.c.h.b16 %v825
        %v2162 = vunpack.c.l.b16 %v826
        %v2163 = vunpack.c.h.b16 %v826
        %v2164 = vunpack.c.l.b16 %v827
        %v2165 = vunpack.c.h.b16 %v827
        %v2166 = vunpack.c.l.b16 %v828
        %v2167 = vunpack.c.h.b16 %v828
        %v2168 = vunpack.c.l.b16 %v829
        %v2169 = vunpack.c.h.b16 %v829
        %v2170 = vunpack.c.l.b16 %v830
        %v2171 = vunpack.c.h.b16 %v830
        %v2172 = vunpack.c.l.b16 %v831
        %v2173 = vunpack.c.h.b16 %v831
        %v2174 = vunpack.c.l.b16 %v832
        %v2175 = vunpack.c.h.b16 %v832
        %v2176 = vunpack.c.l.b16 %v833
        %v2177 = vunpack.c.h.b16 %v833
        %v2178 = vunpack.c.l.b16 %v834
        %v2179 = vunpack.c.h.b16 %v834
        %v2180 = vunpack.c.l.b16 %v835
        %v2181 = vunpack.c.h.b16 %v835
        %v2182 = vunpack.c.l.b16 %v836
        %v2183 = vunpack.c.h.b16 %v836
        %v2184 = vunpack.c.l.b16 %v837
        %v2185 = vunpack.c.h.b16 %v837
        %v2186 = vunpack.c.l.b16 %v838
        %v2187 = vunpack.c.h.b16 %v838
        %v2188 = vunpack.c.l.b16 %v839
        %v2189 = vunpack.c.h.b16 %v839
        %v2190 = vunpack.c.l.b16 %v840
        %v2191 = vunpack.c.h.b16 %v840
        %v2192 = vunpack.c.l.b16 %v841
        %v2193 = vunpack.c.h.b16 %v841
        %v2194 = vunpack.c.l.b16 %v842
        %v2195 = vunpack.c.h.b16 %v842
        %v2196 = vunpack.c.l.b16 %v843
        %v2197 = vunpack.c.h.b16 %v843
        %v2198 = vunpack.c.l.b16 %v844
        %v2199 = vunpack.c.h.b16 %v844
        %v2200 = vunpack.c.l.b16 %v845
        %v2201 = vunpack.c.h.b16 %v845
        %v2202 = vunpack.c.l.b16 %v846
        %v2203 = vunpack.c.h.b16 %v846
        %v2204 = vunpack.c.l.b16 %v847
        %v2205 = vunpack.c.h.b16 %v847
        %v2206 = vunpack.c.l.b16 %v848
        %v2207 = vunpack.c.h.b16 %v848
        %v2208 = vunpack.c.l.b16 %v849
        %v2209 = vunpack.c.h.b16 %v849
        %v2210 = vunpack.c.l.b16 %v850
        %v2211 = vunpack.c.h.b16 %v850
        %v2212 = vunpack.c.l.b16 %v851
        %v2213 = vunpack.c.h.b16 %v851
        %v2214 = vunpack.c.l.b16 %v852
        %v2215 = vunpack.c.h.b16 %v852
        %v2216 = vunpack.c.l.b16 %v853
        %v2217 = vunpack.c.h.b16 %v853
        %v2218 = vunpack.c.l.b16 %v854
        %v2219 = vunpack.c.h.b16 %v854
        %v2220 = vunpack.c.l.b16 %v855
        %v2221 = vunpack.c.h.b16 %v855
        %v2222 = vunpack.c.l.b16 %v856
        %v2223 = vunpack.c.h.b16 %v856
        %v2224 = vunpack.c.l.b16 %v857
        %v2225 = vunpack.c.h.b16 %v857
        %v2226 = vunpack.c.l.b16 %v858
        %v2227 = vunpack.c.h.b16 %v858
        %v2228 = vunpack.c.l.b16 %v859
        %v2229 = vunpack.c.h.b16 %v859
        %v2230 = vunpack.c.l.b16 %v860
        %v2231 = vunpack.c.h.b16 %v860
        %v2232 = vunpack.c.l.b16 %v861
        %v2233 = vunpack.c.h.b16 %v861
        %v2234 = vunpack.c.l.b16 %v862
        %v2235 = vunpack.c.h.b16 %v862
        %v2236 = vunpack.c.l.b16 %v863
        %v2237 = vunpack.c.h.b16 %v863
        %v2238 = vunpack.c.l.b16 %v864
        %v2239 = vunpack.c.h.b16 %v864
        %v2240 = vunpack.c.l.b16 %v865
        %v2241 = vunpack.c.h.b16 %v865
        %v2242 = vunpack.c.l.b16 %v866
        %v2243 = vunpack.c.h.b16 %v866
        %v2244 = vunpack.c.l.b16 %v867
        %v2245 = vunpack.c.h.b16 %v867
        %v2246 = vunpack.c.l.b16 %v868
        %v2247 = vunpack.c.h.b16 %v868
        %v2248 = vunpack.c.l.b16 %v869
        %v2249 = vunpack.c.h.b16 %v869
        %v2250 = vunpack.c.l.b16 %v870
        %v2251 = vunpack.c.h.b16 %v870
        %v2252 = vunpack.c.l.b16 %v871
        %v2253 = vunpack.c.h.b16 %v871
        %v2254 = vunpack.c.l.b16 %v872
        %v2255 = vunpack.c.h.b16 %v872
        %v2256 = vunpack.c.l.b16 %v873
        %v2257 = vunpack.c.h.b16 %v873
        %v2258 = vunpack.c.l.b16 %v874
        %v2259 = vunpack.c.h.b16 %v874
        %v2260 = vunpack.c.l.b16 %v875
        %v2261 = vunpack.c.h.b16 %v875
        %v2262 = vunpack.c.l.b16 %v876
        %v2263 = vunpack.c.h.b16 %v876
        %v2264 = vunpack.c.l.b16 %v877
        %v2265 = vunpack.c.h.b16 %v877
        %v2266 = vunpack.c.l.b16 %v878
        %v2267 = vunpack.c.h.b16 %v878
        %v2268 = vunpack.c.l.b16 %v879
        %v2269 = vunpack.c.h.b16 %v879
        %v2270 = vunpack.c.l.b16 %v880
        %v2271 = vunpack.c.h.b16 %v880
        %v2272 = vunpack.c.l.b16 %v881
        %v2273 = vunpack.c.h.b16 %v881
        %v2274 = vunpack.c.l.b16 %v882
        %v2275 = vunpack.c.h.b16 %v882
        %v2276 = vunpack.c.l.b16 %v883
        %v2277 = vunpack.c.h.b16 %v883
        %v2278 = vunpack.c.l.b16 %v884
        %v2279 = vunpack.c.h.b16 %v884
        %v2280 = vunpack.c.l.b16 %v885
        %v2281 = vunpack.c.h.b16 %v885
        %v2282 = vunpack.c.l.b16 %v886
        %v2283 = vunpack.c.h.b16 %v886
        %v2284 = vunpack.c.l.b16 %v887
        %v2285 = vunpack.c.h.b16 %v887
        %v2286 = vunpack.c.l.b16 %v888
        %v2287 = vunpack.c.h.b16 %v888
        %v2288 = vunpack.c.l.b16 %v889
        %v2289 = vunpack.c.h.b16 %v889
        %v2290 = vunpack.c.l.b16 %v890
        %v2291 = vunpack.c.h.b16 %v890
        %v2292 = vunpack.c.l.b16 %v891
        %v2293 = vunpack.c.h.b16 %v891
        %v2294 = vunpack.c.l.b16 %v892
        %v2295 = vunpack.c.h.b16 %v892
        %v2296 = vunpack.c.l.b16 %v893
        %v2297 = vunpack.c.h.b16 %v893
        %v2298 = vunpack.c.l.b16 %v894
        %v2299 = vunpack.c.h.b16 %v894
        %v2300 = vunpack.c.l.b16 %v895
        %v2301 = vunpack.c.h.b16 %v895
        %v2302 = vunpack.c.l.b16 %v896
        %v2303 = vunpack.c.h.b16 %v896
        %v2304 = vunpack.c.l.b16 %v897
        %v2305 = vunpack.c.h.b16 %v897
        %v2306 = vunpack.c.l.b16 %v898
        %v2307 = vunpack.c.h.b16 %v898
        %v2308 = vunpack.c.l.b16 %v899
        %v2309 = vunpack.c.h.b16 %v899
        %v2310 = vunpack.c.l.b16 %v900
        %v2311 = vunpack.c.h.b16 %v900
        %v2312 = vunpack.c.l.b16 %v901
        %v2313 = vunpack.c.h.b16 %v901
        %v2314 = vunpack.c.l.b16 %v902
        %v2315 = vunpack.c.h.b16 %v902
        %v2316 = vunpack.c.l.b16 %v903
        %v2317 = vunpack.c.h.b16 %v903
        %v2318 = vunpack.c.l.b16 %v904
        %v2319 = vunpack.c.h.b16 %v904
        %v2320 = vunpack.c.l.b16 %v905
        %v2321 = vunpack.c.h.b16 %v905
        %v2322 = vunpack.c.l.b16 %v906
        %v2323 = vunpack.c.h.b16 %v906
        %v2324 = vunpack.c.l.b16 %v907
        %v2325 = vunpack.c.h.b16 %v907
        %v2326 = vunpack.c.l.b16 %v908
        %v2327 = vunpack.c.h.b16 %v908
        %v2328 = vunpack.c.l.b16 %v909
        %v2329 = vunpack.c.h.b16 %v909
        %v2330 = vunpack.c.l.b16 %v910
        %v2331 = vunpack.c.h.b16 %v910
        %v2332 = vunpack.c.l.b16 %v911
        %v2333 = vunpack.c.h.b16 %v911
        %v2334 = vunpack.c.l.b16 %v912
        %v2335 = vunpack.c.h.b16 %v912
        %v2336 = vunpack.c.l.b16 %v913
        %v2337 = vunpack.c.h.b16 %v913
        %v2338 = vunpack.c.l.b16 %v914
        %v2339 = vunpack.c.h.b16 %v914
        %v2340 = vunpack.c.l.b16 %v915
        %v2341 = vunpack.c.h.b16 %v915
        %v2342 = vunpack.c.l.b16 %v916
        %v2343 = vunpack.c.h.b16 %v916
        %v2344 = vunpack.c.l.b16 %v917
        %v2345 = vunpack.c.h.b16 %v917
        %v2346 = vunpack.c.l.b16 %v918
        %v2347 = vunpack.c.h.b16 %v918
        %v2348 = vunpack.c.l.b16 %v919
        %v2349 = vunpack.c.h.b16 %v919
        %v2350 = vunpack.c.l.b16 %v920
        %v2351 = vunpack.c.h.b16 %v920
        %v2352 = vunpack.c.l.b16 %v921
        %v2353 = vunpack.c.h.b16 %v921
        %v2354 = vunpack.c.l.b16 %v922
        %v2355 = vunpack.c.h.b16 %v922
        %v2356 = vunpack.c.l.b16 %v923
        %v2357 = vunpack.c.h.b16 %v923
        %v2358 = vunpack.c.l.b16 %v924
        %v2359 = vunpack.c.h.b16 %v924
        %v2360 = vunpack.c.l.b16 %v925
        %v2361 = vunpack.c.h.b16 %v925
        %v2362 = vunpack.c.l.b16 %v926
        %v2363 = vunpack.c.h.b16 %v926
        %v2364 = vunpack.c.l.b16 %v927
        %v2365 = vunpack.c.h.b16 %v927
        %v2366 = vunpack.c.l.b16 %v928
        %v2367 = vunpack.c.h.b16 %v928
        %v2368 = vunpack.c.l.b16 %v929
        %v2369 = vunpack.c.h.b16 %v929
        %v2370 = vunpack.c.l.b16 %v930
        %v2371 = vunpack.c.h.b16 %v930
        %v2372 = vunpack.c.l.b16 %v931
        %v2373 = vunpack.c.h.b16 %v931
        %v2374 = vunpack.c.l.b16 %v932
        %v2375 = vunpack.c.h.b16 %v932
        %v2376 = vunpack.c.l.b16 %v933
        %v2377 = vunpack.c.h.b16 %v933
        %v2378 = vunpack.c.l.b16 %v934
        %v2379 = vunpack.c.h.b16 %v934
        %v2380 = vunpack.c.l.b16 %v935
        %v2381 = vunpack.c.h.b16 %v935
        %v2382 = vunpack.c.l.b16 %v936
        %v2383 = vunpack.c.h.b16 %v936
        %v2384 = vunpack.c.l.b16 %v937
        %v2385 = vunpack.c.h.b16 %v937
        %v2386 = vunpack.c.l.b16 %v938
        %v2387 = vunpack.c.h.b16 %v938
        %v2388 = vunpack.c.l.b16 %v939
        %v2389 = vunpack.c.h.b16 %v939
        %v2390 = vunpack.c.l.b16 %v940
        %v2391 = vunpack.c.h.b16 %v940
        %v2392 = vunpack.c.l.b16 %v941
        %v2393 = vunpack.c.h.b16 %v941
        %v2394 = vunpack.c.l.b16 %v942
        %v2395 = vunpack.c.h.b16 %v942
        %v2396 = vunpack.c.l.b16 %v943
        %v2397 = vunpack.c.h.b16 %v943
        %v2398 = vunpack.c.l.b16 %v944
        %v2399 = vunpack.c.h.b16 %v944
        %v2400 = vunpack.c.l.b16 %v945
        %v2401 = vunpack.c.h.b16 %v945
        %v2402 = vunpack.c.l.b16 %v946
        %v2403 = vunpack.c.h.b16 %v946
        %v2404 = vunpack.c.l.b16 %v947
        %v2405 = vunpack.c.h.b16 %v947
        %v2406 = vunpack.c.l.b16 %v948
        %v2407 = vunpack.c.h.b16 %v948
        %v2408 = vunpack.c.l.b16 %v949
        %v2409 = vunpack.c.h.b16 %v949
        %v2410 = vunpack.c.l.b16 %v950
        %v2411 = vunpack.c.h.b16 %v950
        %v2412 = vunpack.c.l.b16 %v951
        %v2413 = vunpack.c.h.b16 %v951
        %v2414 = vunpack.c.l.b16 %v952
        %v2415 = vunpack.c.h.b16 %v952
        %v2416 = vunpack.c.l.b16 %v953
        %v2417 = vunpack.c.h.b16 %v953
        %v2418 = vunpack.c.l.b16 %v954
        %v2419 = vunpack.c.h.b16 %v954
        %v2420 = vunpack.c.l.b16 %v955
        %v2421 = vunpack.c.h.b16 %v955
        %v2422 = vunpack.c.l.b16 %v956
        %v2423 = vunpack.c.h.b16 %v956
        %v2424 = vunpack.c.l.b16 %v957
        %v2425 = vunpack.c.h.b16 %v957
        %v2426 = vunpack.c.l.b16 %v958
        %v2427 = vunpack.c.h.b16 %v958
        %v2428 = vunpack.c.l.b16 %v959
        %v2429 = vunpack.c.h.b16 %v959
        %v2430 = vunpack.c.l.b16 %v960
        %v2431 = vunpack.c.h.b16 %v960
        %v2432 = vunpack.c.l.b16 %v961
        %v2433 = vunpack.c.h.b16 %v961
        %v2434 = vunpack.c.l.b16 %v962
        %v2435 = vunpack.c.h.b16 %v962
        %v2436 = vunpack.c.l.b16 %v963
        %v2437 = vunpack.c.h.b16 %v963
        %v2438 = vunpack.c.l.b16 %v964
        %v2439 = vunpack.c.h.b16 %v964
        %v2440 = vunpack.c.l.b16 %v965
        %v2441 = vunpack.c.h.b16 %v965
        %v2442 = vunpack.c.l.b16 %v966
        %v2443 = vunpack.c.h.b16 %v966
        %v2444 = vunpack.c.l.b16 %v967
        %v2445 = vunpack.c.h.b16 %v967
        %v2446 = vunpack.c.l.b16 %v968
        %v2447 = vunpack.c.h.b16 %v968
        %v2448 = vunpack.c.l.b16 %v969
        %v2449 = vunpack.c.h.b16 %v969
        %v2450 = vunpack.c.l.b16 %v970
        %v2451 = vunpack.c.h.b16 %v970
        %v2452 = vunpack.c.l.b16 %v971
        %v2453 = vunpack.c.h.b16 %v971
        %v2454 = vunpack.c.l.b16 %v972
        %v2455 = vunpack.c.h.b16 %v972
        %v2456 = vunpack.c.l.b16 %v973
        %v2457 = vunpack.c.h.b16 %v973
        %v2458 = vunpack.c.l.b16 %v974
        %v2459 = vunpack.c.h.b16 %v974
        %v2460 = vunpack.c.l.b16 %v975
        %v2461 = vunpack.c.h.b16 %v975
        %v2462 = vunpack.c.l.b16 %v976
        %v2463 = vunpack.c.h.b16 %v976
        %v2464 = vunpack.c.l.b16 %v977
        %v2465 = vunpack.c.h.b16 %v977
        %v2466 = vunpack.c.l.b16 %v978
        %v2467 = vunpack.c.h.b16 %v978
        %v2468 = vunpack.c.l.b16 %v979
        %v2469 = vunpack.c.h.b16 %v979
        %v2470 = vunpack.c.l.b16 %v980
        %v2471 = vunpack.c.h.b16 %v980
        %v2472 = vunpack.c.l.b16 %v981
        %v2473 = vunpack.c.h.b16 %v981
        %v2474 = vunpack.c.l.b16 %v982
        %v2475 = vunpack.c.h.b16 %v982
        %v2476 = vunpack.c.l.b16 %v983
        %v2477 = vunpack.c.h.b16 %v983
        %v2478 = vunpack.c.l.b16 %v984
        %v2479 = vunpack.c.h.b16 %v984
        %v2480 = vunpack.c.l.b16 %v985
        %v2481 = vunpack.c.h.b16 %v985
        %v2482 = vunpack.c.l.b16 %v986
        %v2483 = vunpack.c.h.b16 %v986
        %v2484 = vunpack.c.l.b16 %v987
        %v2485 = vunpack.c.h.b16 %v987
        %v2486 = vunpack.c.l.b16 %v988
        %v2487 = vunpack.c.h.b16 %v988
        %v2488 = vunpack.c.l.b16 %v989
        %v2489 = vunpack.c.h.b16 %v989
        %v2490 = vunpack.c.l.b16 %v990
        %v2491 = vunpack.c.h.b16 %v990
        %v2492 = vunpack.c.l.b16 %v991
        %v2493 = vunpack.c.h.b16 %v991
        %v2494 = vunpack.c.l.b16 %v992
        %v2495 = vunpack.c.h.b16 %v992
        %v2496 = vunpack.c.l.b16 %v993
        %v2497 = vunpack.c.h.b16 %v993
        %v2498 = vunpack.c.l.b16 %v994
        %v2499 = vunpack.c.h.b16 %v994
        %v2500 = vunpack.c.l.b16 %v995
        %v2501 = vunpack.c.h.b16 %v995
        %v2502 = vunpack.c.l.b16 %v996
        %v2503 = vunpack.c.h.b16 %v996
        %v2504 = vunpack.c.l.b16 %v997
        %v2505 = vunpack.c.h.b16 %v997
        %v2506 = vunpack.c.l.b16 %v998
        %v2507 = vunpack.c.h.b16 %v998
        %v2508 = vunpack.c.l.b16 %v999
        %v2509 = vunpack.c.h.b16 %v999
        %v2510 = vunpack.c.l.b16 %v1000
        %v2511 = vunpack.c.h.b16 %v1000
        %v2512 = vunpack.c.l.b16 %v1001
        %v2513 = vunpack.c.h.b16 %v1001
        %v2514 = vunpack.c.l.b16 %v1002
        %v2515 = vunpack.c.h.b16 %v1002
        %v2516 = vunpack.c.l.b16 %v1003
        %v2517 = vunpack.c.h.b16 %v1003
        %v2518 = vunpack.c.l.b16 %v1004
        %v2519 = vunpack.c.h.b16 %v1004
        %v2520 = vunpack.c.l.b16 %v1005
        %v2521 = vunpack.c.h.b16 %v1005
        %v2522 = vunpack.c.l.b16 %v1006
        %v2523 = vunpack.c.h.b16 %v1006
        %v2524 = vunpack.c.l.b16 %v1007
        %v2525 = vunpack.c.h.b16 %v1007
        %v2526 = vunpack.c.l.b16 %v1008
        %v2527 = vunpack.c.h.b16 %v1008
        %v2528 = vunpack.c.l.b16 %v1009
        %v2529 = vunpack.c.h.b16 %v1009
        %v2530 = vunpack.c.l.b16 %v1010
        %v2531 = vunpack.c.h.b16 %v1010
        %v2532 = vunpack.c.l.b16 %v1011
        %v2533 = vunpack.c.h.b16 %v1011
        %v2534 = vunpack.c.l.b16 %v1012
        %v2535 = vunpack.c.h.b16 %v1012
        %v2536 = vunpack.c.l.b16 %v1013
        %v2537 = vunpack.c.h.b16 %v1013
        %v2538 = vunpack.c.l.b16 %v1014
        %v2539 = vunpack.c.h.b16 %v1014
        %v2540 = vunpack.c.l.b16 %v1015
        %v2541 = vunpack.c.h.b16 %v1015
        %v2542 = vunpack.c.l.b16 %v1016
        %v2543 = vunpack.c.h.b16 %v1016
        %v2544 = vunpack.c.l.b16 %v1017
        %v2545 = vunpack.c.h.b16 %v1017
        %v2546 = vunpack.c.l.b16 %v1018
        %v2547 = vunpack.c.h.b16 %v1018
        %v2548 = vunpack.c.l.b16 %v1019
        %v2549 = vunpack.c.h.b16 %v1019
        %v2550 = vunpack.c.l.b16 %v1020
        %v2551 = vunpack.c.h.b16 %v1020
        %v2552 = vunpack.c.l.b16 %v1021
        %v2553 = vunpack.c.h.b16 %v1021
        %v2554 = vunpack.c.l.b16 %v1022
        %v2555 = vunpack.c.h.b16 %v1022
        %v2556 = vunpack.c.l.b16 %v1023
        %v2557 = vunpack.c.h.b16 %v1023
        %v2558 = vunpack.c.l.b16 %v1024
        %v2559 = vunpack.c.h.b16 %v1024
        %v2560 = vunpack.c.l.b16 %v1025
        %v2561 = vunpack.c.h.b16 %v1025
        %v2562 = vunpack.c.l.b16 %v1026
        %v2563 = vunpack.c.h.b16 %v1026
        %v2564 = vunpack.c.l.b16 %v1027
        %v2565 = vunpack.c.h.b16 %v1027
        %v2566 = vunpack.c.l.b16 %v1028
        %v2567 = vunpack.c.h.b16 %v1028
        %v2568 = vunpack.c.l.b16 %v1029
        %v2569 = vunpack.c.h.b16 %v1029
        %v2570 = vunpack.c.l.b16 %v1030
        %v2571 = vunpack.c.h.b16 %v1030
        %v2572 = vunpack.c.l.b16 %v1031
        %v2573 = vunpack.c.h.b16 %v1031
        %v2574 = vunpack.c.l.b16 %v1032
        %v2575 = vunpack.c.h.b16 %v1032
        %v2576 = vunpack.c.l.b16 %v1033
        %v2577 = vunpack.c.h.b16 %v1033
        %v2578 = vunpack.c.l.b16 %v1034
        %v2579 = vunpack.c.h.b16 %v1034
        %v2580 = vunpack.c.l.b16 %v1035
        %v2581 = vunpack.c.h.b16 %v1035
        %v2582 = vunpack.c.l.b16 %v1036
        %v2583 = vunpack.c.h.b16 %v1036
        %v2584 = vunpack.c.l.b16 %v1037
        %v2585 = vunpack.c.h.b16 %v1037
        %v2586 = vunpack.c.l.b16 %v1038
        %v2587 = vunpack.c.h.b16 %v1038
        %v2588 = vunpack.c.l.b16 %v1039
        %v2589 = vunpack.c.h.b16 %v1039
        %v2590 = vunpack.c.l.b16 %v1040
        %v2591 = vunpack.c.h.b16 %v1040
        %v2592 = vunpack.c.l.b16 %v1041
        %v2593 = vunpack.c.h.b16 %v1041
        %v2594 = vunpack.c.l.b16 %v1042
        %v2595 = vunpack.c.h.b16 %v1042
        %v2596 = vunpack.c.l.b16 %v1043
        %v2597 = vunpack.c.h.b16 %v1043
        %v2598 = vunpack.c.l.b16 %v1044
        %v2599 = vunpack.c.h.b16 %v1044
        %v2600 = vunpack.c.l.b16 %v1045
        %v2601 = vunpack.c.h.b16 %v1045
        %v2602 = vunpack.c.l.b16 %v1046
        %v2603 = vunpack.c.h.b16 %v1046
        %v2604 = vunpack.c.l.b16 %v1047
        %v2605 = vunpack.c.h.b16 %v1047
        %v2606 = vunpack.c.l.b16 %v1048
        %v2607 = vunpack.c.h.b16 %v1048
        %v2608 = vunpack.c.l.b16 %v1049
        %v2609 = vunpack.c.h.b16 %v1049
        %v2610 = vunpack.c.l.b16 %v1050
        %v2611 = vunpack.c.h.b16 %v1050
        %v2612 = vunpack.c.l.b16 %v1051
        %v2613 = vunpack.c.h.b16 %v1051
        %v2614 = vunpack.c.l.b16 %v1052
        %v2615 = vunpack.c.h.b16 %v1052
        %v2616 = vunpack.c.l.b16 %v1053
        %v2617 = vunpack.c.h.b16 %v1053
        %v2618 = vunpack.c.l.b16 %v1054
        %v2619 = vunpack.c.h.b16 %v1054
        %v2620 = vpack.c.b16 %v1612, %v1596
        %v2621 = vpack.c.b16 %v1613, %v1597
        %v2622 = vpack.c.b16 %v1614, %v1598
        %v2623 = vpack.c.b16 %v1615, %v1599
        %v2624 = vpack.c.b16 %v1616, %v1600
        %v2625 = vpack.c.b16 %v1617, %v1601
        %v2626 = vpack.c.b16 %v1618, %v1602
        %v2627 = vpack.c.b16 %v1619, %v1603
        %v2628 = vpack.c.b16 %v1620, %v1604
        %v2629 = vpack.c.b16 %v1621, %v1605
        %v2630 = vpack.c.b16 %v1622, %v1606
        %v2631 = vpack.c.b16 %v1623, %v1607
        %v2632 = vpack.c.b16 %v1624, %v1608
        %v2633 = vpack.c.b16 %v1625, %v1609
        %v2634 = vpack.c.b16 %v1626, %v1610
        %v2635 = vpack.c.b16 %v1627, %v1611
        %v2636 = vpack.c.b16 %v1644, %v1628
        %v2637 = vpack.c.b16 %v1645, %v1629
        %v2638 = vpack.c.b16 %v1646, %v1630
        %v2639 = vpack.c.b16 %v1647, %v1631
        %v2640 = vpack.c.b16 %v1648, %v1632
        %v2641 = vpack.c.b16 %v1649, %v1633
        %v2642 = vpack.c.b16 %v1650, %v1634
        %v2643 = vpack.c.b16 %v1651, %v1635
        %v2644 = vpack.c.b16 %v1652, %v1636
        %v2645 = vpack.c.b16 %v1653, %v1637
        %v2646 = vpack.c.b16 %v1654, %v1638
        %v2647 = vpack.c.b16 %v1655, %v1639
        %v2648 = vpack.c.b16 %v1656, %v1640
        %v2649 = vpack.c.b16 %v1657, %v1641
        %v2650 = vpack.c.b16 %v1658, %v1642
        %v2651 = vpack.c.b16 %v1659, %v1643
        %v2652 = vpack.c.b16 %v1676, %v1660
        %v2653 = vpack.c.b16 %v1677, %v1661
        %v2654 = vpack.c.b16 %v1678, %v1662
        %v2655 = vpack.c.b16 %v1679, %v1663
        %v2656 = vpack.c.b16 %v1680, %v1664
        %v2657 = vpack.c.b16 %v1681, %v1665
        %v2658 = vpack.c.b16 %v1682, %v1666
        %v2659 = vpack.c.b16 %v1683, %v1667
        %v2660 = vpack.c.b16 %v1684, %v1668
        %v2661 = vpack.c.b16 %v1685, %v1669
        %v2662 = vpack.c.b16 %v1686, %v1670
        %v2663 = vpack.c.b16 %v1687, %v1671
        %v2664 = vpack.c.b16 %v1688, %v1672
        %v2665 = vpack.c.b16 %v1689, %v1673
        %v2666 = vpack.c.b16 %v1690, %v1674
        %v2667 = vpack.c.b16 %v1691, %v1675
        %v2668 = vpack.c.b16 %v1708, %v1692
        %v2669 = vpack.c.b16 %v1709, %v1693
        %v2670 = vpack.c.b16 %v1710, %v1694
        %v2671 = vpack.c.b16 %v1711, %v1695
        %v2672 = vpack.c.b16 %v1712, %v1696
        %v2673 = vpack.c.b16 %v1713, %v1697
        %v2674 = vpack.c.b16 %v1714, %v1698
        %v2675 = vpack.c.b16 %v1715, %v1699
        %v2676 = vpack.c.b16 %v1716, %v1700
        %v2677 = vpack.c.b16 %v1717, %v1701
        %v2678 = vpack.c.b16 %v1718, %v1702
        %v2679 = vpack.c.b16 %v1719, %v1703
        %v2680 = vpack.c.b16 %v1720, %v1704
        %v2681 = vpack.c.b16 %v1721, %v1705
        %v2682 = vpack.c.b16 %v1722, %v1706
        %v2683 = vpack.c.b16 %v1723, %v1707
        %v2684 = vpack.c.b16 %v1740, %v1724
        %v2685 = vpack.c.b16 %v1741, %v1725
        %v2686 = vpack.c.b16 %v1742, %v1726
        %v2687 = vpack.c.b16 %v1743, %v1727
        %v2688 = vpack.c.b16 %v1744, %v1728
        %v2689 = vpack.c.b16 %v1745, %v1729
        %v2690 = vpack.c.b16 %v1746, %v1730
        %v2691 = vpack.c.b16 %v1747, %v1731
        %v2692 = vpack.c.b16 %v1748, %v1732
        %v2693 = vpack.c.b16 %v1749, %v1733
        %v2694 = vpack.c.b16 %v1750, %v1734
        %v2695 = vpack.c.b16 %v1751, %v1735
        %v2696 = vpack.c.b16 %v1752, %v1736
        %v2697 = vpack.c.b16 %v1753, %v1737
        %v2698 = vpack.c.b16 %v1754, %v1738
        %v2699 = vpack.c.b16 %v1755, %v1739
        %v2700 = vpack.c.b16 %v1772, %v1756
        %v2701 = vpack.c.b16 %v1773, %v1757
        %v2702 = vpack.c.b16 %v1774, %v1758
        %v2703 = vpack.c.b16 %v1775, %v1759
        %v2704 = vpack.c.b16 %v1776, %v1760
        %v2705 = vpack.c.b16 %v1777, %v1761
        %v2706 = vpack.c.b16 %v1778, %v1762
        %v2707 = vpack.c.b16 %v1779, %v1763
        %v2708 = vpack.c.b16 %v1780, %v1764
        %v2709 = vpack.c.b16 %v1781, %v1765
        %v2710 = vpack.c.b16 %v1782, %v1766
        %v2711 = vpack.c.b16 %v1783, %v1767
        %v2712 = vpack.c.b16 %v1784, %v1768
        %v2713 = vpack.c.b16 %v1785, %v1769
        %v2714 = vpack.c.b16 %v1786, %v1770
        %v2715 = vpack.c.b16 %v1787, %v1771
        %v2716 = vpack.c.b16 %v1804, %v1788
        %v2717 = vpack.c.b16 %v1805, %v1789
        %v2718 = vpack.c.b16 %v1806, %v1790
        %v2719 = vpack.c.b16 %v1807, %v1791
        %v2720 = vpack.c.b16 %v1808, %v1792
        %v2721 = vpack.c.b16 %v1809, %v1793
        %v2722 = vpack.c.b16 %v1810, %v1794
        %v2723 = vpack.c.b16 %v1811, %v1795
        %v2724 = vpack.c.b16 %v1812, %v1796
        %v2725 = vpack.c.b16 %v1813, %v1797
        %v2726 = vpack.c.b16 %v1814, %v1798
        %v2727 = vpack.c.b16 %v1815, %v1799
        %v2728 = vpack.c.b16 %v1816, %v1800
        %v2729 = vpack.c.b16 %v1817, %v1801
        %v2730 = vpack.c.b16 %v1818, %v1802
        %v2731 = vpack.c.b16 %v1819, %v1803
        %v2732 = vpack.c.b16 %v1836, %v1820
        %v2733 = vpack.c.b16 %v1837, %v1821
        %v2734 = vpack.c.b16 %v1838, %v1822
        %v2735 = vpack.c.b16 %v1839, %v1823
        %v2736 = vpack.c.b16 %v1840, %v1824
        %v2737 = vpack.c.b16 %v1841, %v1825
        %v2738 = vpack.c.b16 %v1842, %v1826
        %v2739 = vpack.c.b16 %v1843, %v1827
        %v2740 = vpack.c.b16 %v1844, %v1828
        %v2741 = vpack.c.b16 %v1845, %v1829
        %v2742 = vpack.c.b16 %v1846, %v1830
        %v2743 = vpack.c.b16 %v1847, %v1831
        %v2744 = vpack.c.b16 %v1848, %v1832
        %v2745 = vpack.c.b16 %v1849, %v1833
        %v2746 = vpack.c.b16 %v1850, %v1834
        %v2747 = vpack.c.b16 %v1851, %v1835
        %v2748 = vpack.c.b16 %v1868, %v1852
        %v2749 = vpack.c.b16 %v1869, %v1853
        %v2750 = vpack.c.b16 %v1870, %v1854
        %v2751 = vpack.c.b16 %v1871, %v1855
        %v2752 = vpack.c.b16 %v1872, %v1856
        %v2753 = vpack.c.b16 %v1873, %v1857
        %v2754 = vpack.c.b16 %v1874, %v1858
        %v2755 = vpack.c.b16 %v1875, %v1859
        %v2756 = vpack.c.b16 %v1876, %v1860
        %v2757 = vpack.c.b16 %v1877, %v1861
        %v2758 = vpack.c.b16 %v1878, %v1862
        %v2759 = vpack.c.b16 %v1879, %v1863
        %v2760 = vpack.c.b16 %v1880, %v1864
        %v2761 = vpack.c.b16 %v1881, %v1865
        %v2762 = vpack.c.b16 %v1882, %v1866
        %v2763 = vpack.c.b16 %v1883, %v1867
        %v2764 = vpack.c.b16 %v1900, %v1884
        %v2765 = vpack.c.b16 %v1901, %v1885
        %v2766 = vpack.c.b16 %v1902, %v1886
        %v2767 = vpack.c.b16 %v1903, %v1887
        %v2768 = vpack.c.b16 %v1904, %v1888
        %v2769 = vpack.c.b16 %v1905, %v1889
        %v2770 = vpack.c.b16 %v1906, %v1890
        %v2771 = vpack.c.b16 %v1907, %v1891
        %v2772 = vpack.c.b16 %v1908, %v1892
        %v2773 = vpack.c.b16 %v1909, %v1893
        %v2774 = vpack.c.b16 %v1910, %v1894
        %v2775 = vpack.c.b16 %v1911, %v1895
        %v2776 = vpack.c.b16 %v1912, %v1896
        %v2777 = vpack.c.b16 %v1913, %v1897
        %v2778 = vpack.c.b16 %v1914, %v1898
        %v2779 = vpack.c.b16 %v1915, %v1899
        %v2780 = vpack.c.b16 %v1932, %v1916
        %v2781 = vpack.c.b16 %v1933, %v1917
        %v2782 = vpack.c.b16 %v1934, %v1918
        %v2783 = vpack.c.b16 %v1935, %v1919
        %v2784 = vpack.c.b16 %v1936, %v1920
        %v2785 = vpack.c.b16 %v1937, %v1921
        %v2786 = vpack.c.b16 %v1938, %v1922
        %v2787 = vpack.c.b16 %v1939, %v1923
        %v2788 = vpack.c.b16 %v1940, %v1924
        %v2789 = vpack.c.b16 %v1941, %v1925
        %v2790 = vpack.c.b16 %v1942, %v1926
        %v2791 = vpack.c.b16 %v1943, %v1927
        %v2792 = vpack.c.b16 %v1944, %v1928
        %v2793 = vpack.c.b16 %v1945, %v1929
        %v2794 = vpack.c.b16 %v1946, %v1930
        %v2795 = vpack.c.b16 %v1947, %v1931
        %v2796 = vpack.c.b16 %v1964, %v1948
        %v2797 = vpack.c.b16 %v1965, %v1949
        %v2798 = vpack.c.b16 %v1966, %v1950
        %v2799 = vpack.c.b16 %v1967, %v1951
        %v2800 = vpack.c.b16 %v1968, %v1952
        %v2801 = vpack.c.b16 %v1969, %v1953
        %v2802 = vpack.c.b16 %v1970, %v1954
        %v2803 = vpack.c.b16 %v1971, %v1955
        %v2804 = vpack.c.b16 %v1972, %v1956
        %v2805 = vpack.c.b16 %v1973, %v1957
        %v2806 = vpack.c.b16 %v1974, %v1958
        %v2807 = vpack.c.b16 %v1975, %v1959
        %v2808 = vpack.c.b16 %v1976, %v1960
        %v2809 = vpack.c.b16 %v1977, %v1961
        %v2810 = vpack.c.b16 %v1978, %v1962
        %v2811 = vpack.c.b16 %v1979, %v1963
        %v2812 = vpack.c.b16 %v1996, %v1980
        %v2813 = vpack.c.b16 %v1997, %v1981
        %v2814 = vpack.c.b16 %v1998, %v1982
        %v2815 = vpack.c.b16 %v1999, %v1983
        %v2816 = vpack.c.b16 %v2000, %v1984
        %v2817 = vpack.c.b16 %v2001, %v1985
        %v2818 = vpack.c.b16 %v2002, %v1986
        %v2819 = vpack.c.b16 %v2003, %v1987
        %v2820 = vpack.c.b16 %v2004, %v1988
        %v2821 = vpack.c.b16 %v2005, %v1989
        %v2822 = vpack.c.b16 %v2006, %v1990
        %v2823 = vpack.c.b16 %v2007, %v1991
        %v2824 = vpack.c.b16 %v2008, %v1992
        %v2825 = vpack.c.b16 %v2009, %v1993
        %v2826 = vpack.c.b16 %v2010, %v1994
        %v2827 = vpack.c.b16 %v2011, %v1995
        %v2828 = vpack.c.b16 %v2028, %v2012
        %v2829 = vpack.c.b16 %v2029, %v2013
        %v2830 = vpack.c.b16 %v2030, %v2014
        %v2831 = vpack.c.b16 %v2031, %v2015
        %v2832 = vpack.c.b16 %v2032, %v2016
        %v2833 = vpack.c.b16 %v2033, %v2017
        %v2834 = vpack.c.b16 %v2034, %v2018
        %v2835 = vpack.c.b16 %v2035, %v2019
        %v2836 = vpack.c.b16 %v2036, %v2020
        %v2837 = vpack.c.b16 %v2037, %v2021
        %v2838 = vpack.c.b16 %v2038, %v2022
        %v2839 = vpack.c.b16 %v2039, %v2023
        %v2840 = vpack.c.b16 %v2040, %v2024
        %v2841 = vpack.c.b16 %v2041, %v2025
        %v2842 = vpack.c.b16 %v2042, %v2026
        %v2843 = vpack.c.b16 %v2043, %v2027
        %v2844 = vpack.c.b16 %v2060, %v2044
        %v2845 = vpack.c.b16 %v2061, %v2045
        %v2846 = vpack.c.b16 %v2062, %v2046
        %v2847 = vpack.c.b16 %v2063, %v2047
        %v2848 = vpack.c.b16 %v2064, %v2048
        %v2849 = vpack.c.b16 %v2065, %v2049
        %v2850 = vpack.c.b16 %v2066, %v2050
        %v2851 = vpack.c.b16 %v2067, %v2051
        %v2852 = vpack.c.b16 %v2068, %v2052
        %v2853 = vpack.c.b16 %v2069, %v2053
        %v2854 = vpack.c.b16 %v2070, %v2054
        %v2855 = vpack.c.b16 %v2071, %v2055
        %v2856 = vpack.c.b16 %v2072, %v2056
        %v2857 = vpack.c.b16 %v2073, %v2057
        %v2858 = vpack.c.b16 %v2074, %v2058
        %v2859 = vpack.c.b16 %v2075, %v2059
        %v2860 = vpack.c.b16 %v2092, %v2076
        %v2861 = vpack.c.b16 %v2093, %v2077
        %v2862 = vpack.c.b16 %v2094, %v2078
        %v2863 = vpack.c.b16 %v2095, %v2079
        %v2864 = vpack.c.b16 %v2096, %v2080
        %v2865 = vpack.c.b16 %v2097, %v2081
        %v2866 = vpack.c.b16 %v2098, %v2082
        %v2867 = vpack.c.b16 %v2099, %v2083
        %v2868 = vpack.c.b16 %v2100, %v2084
        %v2869 = vpack.c.b16 %v2101, %v2085
        %v2870 = vpack.c.b16 %v2102, %v2086
        %v2871 = vpack.c.b16 %v2103, %v2087
        %v2872 = vpack.c.b16 %v2104, %v2088
        %v2873 = vpack.c.b16 %v2105, %v2089
        %v2874 = vpack.c.b16 %v2106, %v2090
        %v2875 = vpack.c.b16 %v2107, %v2091
        %v2876 = vpack.c.b16 %v2124, %v2108
        %v2877 = vpack.c.b16 %v2125, %v2109
        %v2878 = vpack.c.b16 %v2126, %v2110
        %v2879 = vpack.c.b16 %v2127, %v2111
        %v2880 = vpack.c.b16 %v2128, %v2112
        %v2881 = vpack.c.b16 %v2129, %v2113
        %v2882 = vpack.c.b16 %v2130, %v2114
        %v2883 = vpack.c.b16 %v2131, %v2115
        %v2884 = vpack.c.b16 %v2132, %v2116
        %v2885 = vpack.c.b16 %v2133, %v2117
        %v2886 = vpack.c.b16 %v2134, %v2118
        %v2887 = vpack.c.b16 %v2135, %v2119
        %v2888 = vpack.c.b16 %v2136, %v2120
        %v2889 = vpack.c.b16 %v2137, %v2121
        %v2890 = vpack.c.b16 %v2138, %v2122
        %v2891 = vpack.c.b16 %v2139, %v2123
        %v2892 = vpack.c.b16 %v2156, %v2140
        %v2893 = vpack.c.b16 %v2157, %v2141
        %v2894 = vpack.c.b16 %v2158, %v2142
        %v2895 = vpack.c.b16 %v2159, %v2143
        %v2896 = vpack.c.b16 %v2160, %v2144
        %v2897 = vpack.c.b16 %v2161, %v2145
        %v2898 = vpack.c.b16 %v2162, %v2146
        %v2899 = vpack.c.b16 %v2163, %v2147
        %v2900 = vpack.c.b16 %v2164, %v2148
        %v2901 = vpack.c.b16 %v2165, %v2149
        %v2902 = vpack.c.b16 %v2166, %v2150
        %v2903 = vpack.c.b16 %v2167, %v2151
        %v2904 = vpack.c.b16 %v2168, %v2152
        %v2905 = vpack.c.b16 %v2169, %v2153
        %v2906 = vpack.c.b16 %v2170, %v2154
        %v2907 = vpack.c.b16 %v2171, %v2155
        %v2908 = vpack.c.b16 %v2188, %v2172
        %v2909 = vpack.c.b16 %v2189, %v2173
        %v2910 = vpack.c.b16 %v2190, %v2174
        %v2911 = vpack.c.b16 %v2191, %v2175
        %v2912 = vpack.c.b16 %v2192, %v2176
        %v2913 = vpack.c.b16 %v2193, %v2177
        %v2914 = vpack.c.b16 %v2194, %v2178
        %v2915 = vpack.c.b16 %v2195, %v2179
        %v2916 = vpack.c.b16 %v2196, %v2180
        %v2917 = vpack.c.b16 %v2197, %v2181
        %v2918 = vpack.c.b16 %v2198, %v2182
        %v2919 = vpack.c.b16 %v2199, %v2183
        %v2920 = vpack.c.b16 %v2200, %v2184
        %v2921 = vpack.c.b16 %v2201, %v2185
        %v2922 = vpack.c.b16 %v2202, %v2186
        %v2923 = vpack.c.b16 %v2203, %v2187
        %v2924 = vpack.c.b16 %v2220, %v2204
        %v2925 = vpack.c.b16 %v2221, %v2205
        %v2926 = vpack.c.b16 %v2222, %v2206
        %v2927 = vpack.c.b16 %v2223, %v2207
        %v2928 = vpack.c.b16 %v2224, %v2208
        %v2929 = vpack.c.b16 %v2225, %v2209
        %v2930 = vpack.c.b16 %v2226, %v2210
        %v2931 = vpack.c.b16 %v2227, %v2211
        %v2932 = vpack.c.b16 %v2228, %v2212
        %v2933 = vpack.c.b16 %v2229, %v2213
        %v2934 = vpack.c.b16 %v2230, %v2214
        %v2935 = vpack.c.b16 %v2231, %v2215
        %v2936 = vpack.c.b16 %v2232, %v2216
        %v2937 = vpack.c.b16 %v2233, %v2217
        %v2938 = vpack.c.b16 %v2234, %v2218
        %v2939 = vpack.c.b16 %v2235, %v2219
        %v2940 = vpack.c.b16 %v2252, %v2236
        %v2941 = vpack.c.b16 %v2253, %v2237
        %v2942 = vpack.c.b16 %v2254, %v2238
        %v2943 = vpack.c.b16 %v2255, %v2239
        %v2944 = vpack.c.b16 %v2256, %v2240
        %v2945 = vpack.c.b16 %v2257, %v2241
        %v2946 = vpack.c.b16 %v2258, %v2242
        %v2947 = vpack.c.b16 %v2259, %v2243
        %v2948 = vpack.c.b16 %v2260, %v2244
        %v2949 = vpack.c.b16 %v2261, %v2245
        %v2950 = vpack.c.b16 %v2262, %v2246
        %v2951 = vpack.c.b16 %v2263, %v2247
        %v2952 = vpack.c.b16 %v2264, %v2248
        %v2953 = vpack.c.b16 %v2265, %v2249
        %v2954 = vpack.c.b16 %v2266, %v2250
        %v2955 = vpack.c.b16 %v2267, %v2251
        %v2956 = vpack.c.b16 %v2284, %v2268
        %v2957 = vpack.c.b16 %v2285, %v2269
        %v2958 = vpack.c.b16 %v2286, %v2270
        %v2959 = vpack.c.b16 %v2287, %v2271
        %v2960 = vpack.c.b16 %v2288, %v2272
        %v2961 = vpack.c.b16 %v2289, %v2273
        %v2962 = vpack.c.b16 %v2290, %v2274
        %v2963 = vpack.c.b16 %v2291, %v2275
        %v2964 = vpack.c.b16 %v2292, %v2276
        %v2965 = vpack.c.b16 %v2293, %v2277
        %v2966 = vpack.c.b16 %v2294, %v2278
        %v2967 = vpack.c.b16 %v2295, %v2279
        %v2968 = vpack.c.b16 %v2296, %v2280
        %v2969 = vpack.c.b16 %v2297, %v2281
        %v2970 = vpack.c.b16 %v2298, %v2282
        %v2971 = vpack.c.b16 %v2299, %v2283
        %v2972 = vpack.c.b16 %v2316, %v2300
        %v2973 = vpack.c.b16 %v2317, %v2301
        %v2974 = vpack.c.b16 %v2318, %v2302
        %v2975 = vpack.c.b16 %v2319, %v2303
        %v2976 = vpack.c.b16 %v2320, %v2304
        %v2977 = vpack.c.b16 %v2321, %v2305
        %v2978 = vpack.c.b16 %v2322, %v2306
        %v2979 = vpack.c.b16 %v2323, %v2307
        %v2980 = vpack.c.b16 %v2324, %v2308
        %v2981 = vpack.c.b16 %v2325, %v2309
        %v2982 = vpack.c.b16 %v2326, %v2310
        %v2983 = vpack.c.b16 %v2327, %v2311
        %v2984 = vpack.c.b16 %v2328, %v2312
        %v2985 = vpack.c.b16 %v2329, %v2313
        %v2986 = vpack.c.b16 %v2330, %v2314
        %v2987 = vpack.c.b16 %v2331, %v2315
        %v2988 = vpack.c.b16 %v2348, %v2332
        %v2989 = vpack.c.b16 %v2349, %v2333
        %v2990 = vpack.c.b16 %v2350, %v2334
        %v2991 = vpack.c.b16 %v2351, %v2335
        %v2992 = vpack.c.b16 %v2352, %v2336
        %v2993 = vpack.c.b16 %v2353, %v2337
        %v2994 = vpack.c.b16 %v2354, %v2338
        %v2995 = vpack.c.b16 %v2355, %v2339
        %v2996 = vpack.c.b16 %v2356, %v2340
        %v2997 = vpack.c.b16 %v2357, %v2341
        %v2998 = vpack.c.b16 %v2358, %v2342
        %v2999 = vpack.c.b16 %v2359, %v2343
        %v3000 = vpack.c.b16 %v2360, %v2344
        %v3001 = vpack.c.b16 %v2361, %v2345
        %v3002 = vpack.c.b16 %v2362, %v2346
        %v3003 = vpack.c.b16 %v2363, %v2347
        %v3004 = vpack.c.b16 %v2380, %v2364
        %v3005 = vpack.c.b16 %v2381, %v2365
        %v3006 = vpack.c.b16 %v2382, %v2366
        %v3007 = vpack.c.b16 %v2383, %v2367
        %v3008 = vpack.c.b16 %v2384, %v2368
        %v3009 = vpack.c.b16 %v2385, %v2369
        %v3010 = vpack.c.b16 %v2386, %v2370
        %v3011 = vpack.c.b16 %v2387, %v2371
        %v3012 = vpack.c.b16 %v2388, %v2372
        %v3013 = vpack.c.b16 %v2389, %v2373
        %v3014 = vpack.c.b16 %v2390, %v2374
        %v3015 = vpack.c.b16 %v2391, %v2375
        %v3016 = vpack.c.b16 %v2392, %v2376
        %v3017 = vpack.c.b16 %v2393, %v2377
        %v3018 = vpack.c.b16 %v2394, %v2378
        %v3019 = vpack.c.b16 %v2395, %v2379
        %v3020 = vpack.c.b16 %v2412, %v2396
        %v3021 = vpack.c.b16 %v2413, %v2397
        %v3022 = vpack.c.b16 %v2414, %v2398
        %v3023 = vpack.c.b16 %v2415, %v2399
        %v3024 = vpack.c.b16 %v2416, %v2400
        %v3025 = vpack.c.b16 %v2417, %v2401
        %v3026 = vpack.c.b16 %v2418, %v2402
        %v3027 = vpack.c.b16 %v2419, %v2403
        %v3028 = vpack.c.b16 %v2420, %v2404
        %v3029 = vpack.c.b16 %v2421, %v2405
        %v3030 = vpack.c.b16 %v2422, %v2406
        %v3031 = vpack.c.b16 %v2423, %v2407
        %v3032 = vpack.c.b16 %v2424, %v2408
        %v3033 = vpack.c.b16 %v2425, %v2409
        %v3034 = vpack.c.b16 %v2426, %v2410
        %v3035 = vpack.c.b16 %v2427, %v2411
        %v3036 = vpack.c.b16 %v2444, %v2428
        %v3037 = vpack.c.b16 %v2445, %v2429
        %v3038 = vpack.c.b16 %v2446, %v2430
        %v3039 = vpack.c.b16 %v2447, %v2431
        %v3040 = vpack.c.b16 %v2448, %v2432
        %v3041 = vpack.c.b16 %v2449, %v2433
        %v3042 = vpack.c.b16 %v2450, %v2434
        %v3043 = vpack.c.b16 %v2451, %v2435
        %v3044 = vpack.c.b16 %v2452, %v2436
        %v3045 = vpack.c.b16 %v2453, %v2437
        %v3046 = vpack.c.b16 %v2454, %v2438
        %v3047 = vpack.c.b16 %v2455, %v2439
        %v3048 = vpack.c.b16 %v2456, %v2440
        %v3049 = vpack.c.b16 %v2457, %v2441
        %v3050 = vpack.c.b16 %v2458, %v2442
        %v3051 = vpack.c.b16 %v2459, %v2443
        %v3052 = vpack.c.b16 %v2476, %v2460
        %v3053 = vpack.c.b16 %v2477, %v2461
        %v3054 = vpack.c.b16 %v2478, %v2462
        %v3055 = vpack.c.b16 %v2479, %v2463
        %v3056 = vpack.c.b16 %v2480, %v2464
        %v3057 = vpack.c.b16 %v2481, %v2465
        %v3058 = vpack.c.b16 %v2482, %v2466
        %v3059 = vpack.c.b16 %v2483, %v2467
        %v3060 = vpack.c.b16 %v2484, %v2468
        %v3061 = vpack.c.b16 %v2485, %v2469
        %v3062 = vpack.c.b16 %v2486, %v2470
        %v3063 = vpack.c.b16 %v2487, %v2471
        %v3064 = vpack.c.b16 %v2488, %v2472
        %v3065 = vpack.c.b16 %v2489, %v2473
        %v3066 = vpack.c.b16 %v2490, %v2474
        %v3067 = vpack.c.b16 %v2491, %v2475
        %v3068 = vpack.c.b16 %v2508, %v2492
        %v3069 = vpack.c.b16 %v2509, %v2493
        %v3070 = vpack.c.b16 %v2510, %v2494
        %v3071 = vpack.c.b16 %v2511, %v2495
        %v3072 = vpack.c.b16 %v2512, %v2496
        %v3073 = vpack.c.b16 %v2513, %v2497
        %v3074 = vpack.c.b16 %v2514, %v2498
        %v3075 = vpack.c.b16 %v2515, %v2499
        %v3076 = vpack.c.b16 %v2516, %v2500
        %v3077 = vpack.c.b16 %v2517, %v2501
        %v3078 = vpack.c.b16 %v2518, %v2502
        %v3079 = vpack.c.b16 %v2519, %v2503
        %v3080 = vpack.c.b16 %v2520, %v2504
        %v3081 = vpack.c.b16 %v2521, %v2505
        %v3082 = vpack.c.b16 %v2522, %v2506
        %v3083 = vpack.c.b16 %v2523, %v2507
        %v3084 = vpack.c.b16 %v2540, %v2524
        %v3085 = vpack.c.b16 %v2541, %v2525
        %v3086 = vpack.c.b16 %v2542, %v2526
        %v3087 = vpack.c.b16 %v2543, %v2527
        %v3088 = vpack.c.b16 %v2544, %v2528
        %v3089 = vpack.c.b16 %v2545, %v2529
        %v3090 = vpack.c.b16 %v2546, %v2530
        %v3091 = vpack.c.b16 %v2547, %v2531
        %v3092 = vpack.c.b16 %v2548, %v2532
        %v3093 = vpack.c.b16 %v2549, %v2533
        %v3094 = vpack.c.b16 %v2550, %v2534
        %v3095 = vpack.c.b16 %v2551, %v2535
        %v3096 = vpack.c.b16 %v2552, %v2536
        %v3097 = vpack.c.b16 %v2553, %v2537
        %v3098 = vpack.c.b16 %v2554, %v2538
        %v3099 = vpack.c.b16 %v2555, %v2539
        %v3100 = vpack.c.b16 %v2572, %v2556
        %v3101 = vpack.c.b16 %v2573, %v2557
        %v3102 = vpack.c.b16 %v2574, %v2558
        %v3103 = vpack.c.b16 %v2575, %v2559
        %v3104 = vpack.c.b16 %v2576, %v2560
        %v3105 = vpack.c.b16 %v2577, %v2561
        %v3106 = vpack.c.b16 %v2578, %v2562
        %v3107 = vpack.c.b16 %v2579, %v2563
        %v3108 = vpack.c.b16 %v2580, %v2564
        %v3109 = vpack.c.b16 %v2581, %v2565
        %v3110 = vpack.c.b16 %v2582, %v2566
        %v3111 = vpack.c.b16 %v2583, %v2567
        %v3112 = vpack.c.b16 %v2584, %v2568
        %v3113 = vpack.c.b16 %v2585, %v2569
        %v3114 = vpack.c.b16 %v2586, %v2570
        %v3115 = vpack.c.b16 %v2587, %v2571
        %v3116 = vpack.c.b16 %v2604, %v2588
        %v3117 = vpack.c.b16 %v2605, %v2589
        %v3118 = vpack.c.b16 %v2606, %v2590
        %v3119 = vpack.c.b16 %v2607, %v2591
        %v3120 = vpack.c.b16 %v2608, %v2592
        %v3121 = vpack.c.b16 %v2609, %v2593
        %v3122 = vpack.c.b16 %v2610, %v2594
        %v3123 = vpack.c.b16 %v2611, %v2595
        %v3124 = vpack.c.b16 %v2612, %v2596
        %v3125 = vpack.c.b16 %v2613, %v2597
        %v3126 = vpack.c.b16 %v2614, %v2598
        %v3127 = vpack.c.b16 %v2615, %v2599
        %v3128 = vpack.c.b16 %v2616, %v2600
        %v3129 = vpack.c.b16 %v2617, %v2601
        %v3130 = vpack.c.b16 %v2618, %v2602
        %v3131 = vpack.c.b16 %v2619, %v2603
        %3644 = vmatprep.subr.bf16.mxu0 %v2621
        %3645 = vmatpush1.bf16.msra.mxu0 %v2620
        %3646 = vmatprep.subr.bf16.mxu0 %v2637
        %3647 = vmatpush1.bf16.msra.mxu0 %v2636
        %3648 = vmatprep.subr.bf16.mxu0 %v2653
        %3649 = vmatpush1.bf16.msra.mxu0 %v2652
        %3650 = vmatprep.subr.bf16.mxu0 %v2669
        %3651 = vmatpush1.bf16.msra.mxu0 %v2668
        %3652 = vmatprep.subr.bf16.mxu0 %v2685
        %3653 = vmatpush1.bf16.msra.mxu0 %v2684
        %3654 = vmatprep.subr.bf16.mxu0 %v2701
        %3655 = vmatpush1.bf16.msra.mxu0 %v2700
        %3656 = vmatprep.subr.bf16.mxu0 %v2717
        %3657 = vmatpush1.bf16.msra.mxu0 %v2716
        %3658 = vmatprep.subr.bf16.mxu0 %v2733
        %3659 = vmatpush1.bf16.msra.mxu0 %v2732
        %3660 = vmatprep.subr.bf16.mxu0 %v2749
        %3661 = vmatpush1.bf16.msra.mxu0 %v2748
        %3662 = vmatprep.subr.bf16.mxu0 %v2765
        %3663 = vmatpush1.bf16.msra.mxu0 %v2764
        %3664 = vmatprep.subr.bf16.mxu0 %v2781
        %3665 = vmatpush1.bf16.msra.mxu0 %v2780
        %3666 = vmatprep.subr.bf16.mxu0 %v2797
        %3667 = vmatpush1.bf16.msra.mxu0 %v2796
        %3668 = vmatprep.subr.bf16.mxu0 %v2813
        %3669 = vmatpush1.bf16.msra.mxu0 %v2812
        %3670 = vmatprep.subr.bf16.mxu0 %v2829
        %3671 = vmatpush1.bf16.msra.mxu0 %v2828
        %3672 = vmatprep.subr.bf16.mxu0 %v2845
        %3673 = vmatpush1.bf16.msra.mxu0 %v2844
        %3674 = vmatprep.subr.bf16.mxu0 %v2861
        %3675 = vmatpush1.bf16.msra.mxu0 %v2860
        %3676 = vmatprep.mubr.bf16.mxu0 %v1077
        %3677 = vmatmul.mubr.bf16.gmra.mrb[0].mxu0 %v1070
        %v3678 = vpop.f32.mrb[0].mxu0
        %v3679 = vadd.f32 0.0, %v3678
        %v3680 = vpop.f32.mrb[0].mxu0
        %v3681 = vadd.f32 0.0, %v3680
        %v3682 = vpop.f32.mrb[0].mxu0
        %v3683 = vpop.f32.mrb[0].mxu0
        %3684 = vdwg.mxu0
        %3685 = vmatprep.subr.bf16.mxu0 %v2877
        %3686 = vmatpush1.bf16.msra.mxu0 %v2876
        %3687 = vmatprep.subr.bf16.mxu0 %v2893
        %3688 = vmatpush1.bf16.msra.mxu0 %v2892
        %3689 = vmatprep.subr.bf16.mxu0 %v2909
        %3690 = vmatpush1.bf16.msra.mxu0 %v2908
        %3691 = vmatprep.subr.bf16.mxu0 %v2925
        %3692 = vmatpush1.bf16.msra.mxu0 %v2924
        %3693 = vmatprep.subr.bf16.mxu0 %v2941
        %3694 = vmatpush1.bf16.msra.mxu0 %v2940
        %3695 = vmatprep.subr.bf16.mxu0 %v2957
        %3696 = vmatpush1.bf16.msra.mxu0 %v2956
        %3697 = vmatprep.subr.bf16.mxu0 %v2973
        %3698 = vmatpush1.bf16.msra.mxu0 %v2972
        %3699 = vmatprep.subr.bf16.mxu0 %v2989
        %3700 = vmatpush1.bf16.msra.mxu0 %v2988
        %3701 = vmatprep.subr.bf16.mxu0 %v3005
        %3702 = vmatpush1.bf16.msra.mxu0 %v3004
        %3703 = vmatprep.subr.bf16.mxu0 %v3021
        %3704 = vmatpush1.bf16.msra.mxu0 %v3020
        %3705 = vmatprep.subr.bf16.mxu0 %v3037
        %3706 = vmatpush1.bf16.msra.mxu0 %v3036
        %3707 = vmatprep.subr.bf16.mxu0 %v3053
        %3708 = vmatpush1.bf16.msra.mxu0 %v3052
        %3709 = vmatprep.subr.bf16.mxu0 %v3069
        %3710 = vmatpush1.bf16.msra.mxu0 %v3068
        %3711 = vmatprep.subr.bf16.mxu0 %v3085
        %3712 = vmatpush1.bf16.msra.mxu0 %v3084
        %3713 = vmatprep.subr.bf16.mxu0 %v3101
        %3714 = vmatpush1.bf16.msra.mxu0 %v3100
        %3715 = vmatprep.subr.bf16.mxu0 %v3117
        %3716 = vmatpush1.bf16.msra.mxu0 %v3116
        %3717 = vmatprep.mubr.bf16.mxu0 %v1079
        %3718 = vmatmul.mubr.bf16.gmra.mrb[0].mxu0 %v1078
        %v3719 = vpop.f32.mrb[0].mxu0
        %v3720 = vadd.f32 %v3679, %v3719
        %v3721 = vpop.f32.mrb[0].mxu0
        %v3722 = vadd.f32 %v3681, %v3721
        %v3723 = vpop.f32.mrb[0].mxu0
        %v3724 = vpop.f32.mrb[0].mxu0
        %3725 = vdwg.mxu0
        %3726 = vmatprep.subr.bf16.mxu0 %v2623
        %3727 = vmatpush1.bf16.msra.mxu0 %v2622
        %3728 = vmatprep.subr.bf16.mxu0 %v2639
        %3729 = vmatpush1.bf16.msra.mxu0 %v2638
        %3730 = vmatprep.subr.bf16.mxu0 %v2655
        %3731 = vmatpush1.bf16.msra.mxu0 %v2654
        %3732 = vmatprep.subr.bf16.mxu0 %v2671
        %3733 = vmatpush1.bf16.msra.mxu0 %v2670
        %3734 = vmatprep.subr.bf16.mxu0 %v2687
        %3735 = vmatpush1.bf16.msra.mxu0 %v2686
        %3736 = vmatprep.subr.bf16.mxu0 %v2703
        %3737 = vmatpush1.bf16.msra.mxu0 %v2702
        %3738 = vmatprep.subr.bf16.mxu0 %v2719
        %3739 = vmatpush1.bf16.msra.mxu0 %v2718
        %3740 = vmatprep.subr.bf16.mxu0 %v2735
        %3741 = vmatpush1.bf16.msra.mxu0 %v2734
        %3742 = vmatprep.subr.bf16.mxu0 %v2751
        %3743 = vmatpush1.bf16.msra.mxu0 %v2750
        %3744 = vmatprep.subr.bf16.mxu0 %v2767
        %3745 = vmatpush1.bf16.msra.mxu0 %v2766
        %3746 = vmatprep.subr.bf16.mxu0 %v2783
        %3747 = vmatpush1.bf16.msra.mxu0 %v2782
        %3748 = vmatprep.subr.bf16.mxu0 %v2799
        %3749 = vmatpush1.bf16.msra.mxu0 %v2798
        %3750 = vmatprep.subr.bf16.mxu0 %v2815
        %3751 = vmatpush1.bf16.msra.mxu0 %v2814
        %3752 = vmatprep.subr.bf16.mxu0 %v2831
        %3753 = vmatpush1.bf16.msra.mxu0 %v2830
        %3754 = vmatprep.subr.bf16.mxu0 %v2847
        %3755 = vmatpush1.bf16.msra.mxu0 %v2846
        %3756 = vmatprep.subr.bf16.mxu0 %v2863
        %3757 = vmatpush1.bf16.msra.mxu0 %v2862
        %3758 = vmatprep.mubr.bf16.mxu0 %v1077
        %3759 = vmatmul.mubr.bf16.gmra.mrb[0].mxu0 %v1070
        %v3760 = vpop.f32.mrb[0].mxu0
        %v3761 = vadd.f32 0.0, %v3760
        %v3762 = vpop.f32.mrb[0].mxu0
        %v3763 = vadd.f32 0.0, %v3762
        %v3764 = vpop.f32.mrb[0].mxu0
        %v3765 = vpop.f32.mrb[0].mxu0
        %3766 = vdwg.mxu0
        %3767 = vmatprep.subr.bf16.mxu0 %v2879
        %3768 = vmatpush1.bf16.msra.mxu0 %v2878
        %3769 = vmatprep.subr.bf16.mxu0 %v2895
        %3770 = vmatpush1.bf16.msra.mxu0 %v2894
        %3771 = vmatprep.subr.bf16.mxu0 %v2911
        %3772 = vmatpush1.bf16.msra.mxu0 %v2910
        %3773 = vmatprep.subr.bf16.mxu0 %v2927
        %3774 = vmatpush1.bf16.msra.mxu0 %v2926
        %3775 = vmatprep.subr.bf16.mxu0 %v2943
        %3776 = vmatpush1.bf16.msra.mxu0 %v2942
        %3777 = vmatprep.subr.bf16.mxu0 %v2959
        %3778 = vmatpush1.bf16.msra.mxu0 %v2958
        %3779 = vmatprep.subr.bf16.mxu0 %v2975
        %3780 = vmatpush1.bf16.msra.mxu0 %v2974
        %3781 = vmatprep.subr.bf16.mxu0 %v2991
        %3782 = vmatpush1.bf16.msra.mxu0 %v2990
        %3783 = vmatprep.subr.bf16.mxu0 %v3007
        %3784 = vmatpush1.bf16.msra.mxu0 %v3006
        %3785 = vmatprep.subr.bf16.mxu0 %v3023
        %3786 = vmatpush1.bf16.msra.mxu0 %v3022
        %3787 = vmatprep.subr.bf16.mxu0 %v3039
        %3788 = vmatpush1.bf16.msra.mxu0 %v3038
        %3789 = vmatprep.subr.bf16.mxu0 %v3055
        %3790 = vmatpush1.bf16.msra.mxu0 %v3054
        %3791 = vmatprep.subr.bf16.mxu0 %v3071
        %3792 = vmatpush1.bf16.msra.mxu0 %v3070
        %3793 = vmatprep.subr.bf16.mxu0 %v3087
        %3794 = vmatpush1.bf16.msra.mxu0 %v3086
        %3795 = vmatprep.subr.bf16.mxu0 %v3103
        %3796 = vmatpush1.bf16.msra.mxu0 %v3102
        %3797 = vmatprep.subr.bf16.mxu0 %v3119
        %3798 = vmatpush1.bf16.msra.mxu0 %v3118
        %3799 = vmatprep.mubr.bf16.mxu0 %v1079
        %3800 = vmatmul.mubr.bf16.gmra.mrb[0].mxu0 %v1078
        %v3801 = vpop.f32.mrb[0].mxu0
        %v3802 = vadd.f32 %v3761, %v3801
        %v3803 = vpop.f32.mrb[0].mxu0
        %v3804 = vadd.f32 %v3763, %v3803
        %v3805 = vpop.f32.mrb[0].mxu0
        %v3806 = vpop.f32.mrb[0].mxu0
        %3807 = vdwg.mxu0
        %3808 = vmatprep.subr.bf16.mxu0 %v2625
        %3809 = vmatpush1.bf16.msra.mxu0 %v2624
        %3810 = vmatprep.subr.bf16.mxu0 %v2641
        %3811 = vmatpush1.bf16.msra.mxu0 %v2640
        %3812 = vmatprep.subr.bf16.mxu0 %v2657
        %3813 = vmatpush1.bf16.msra.mxu0 %v2656
        %3814 = vmatprep.subr.bf16.mxu0 %v2673
        %3815 = vmatpush1.bf16.msra.mxu0 %v2672
        %3816 = vmatprep.subr.bf16.mxu0 %v2689
        %3817 = vmatpush1.bf16.msra.mxu0 %v2688
        %3818 = vmatprep.subr.bf16.mxu0 %v2705
        %3819 = vmatpush1.bf16.msra.mxu0 %v2704
        %3820 = vmatprep.subr.bf16.mxu0 %v2721
        %3821 = vmatpush1.bf16.msra.mxu0 %v2720
        %3822 = vmatprep.subr.bf16.mxu0 %v2737
        %3823 = vmatpush1.bf16.msra.mxu0 %v2736
        %3824 = vmatprep.subr.bf16.mxu0 %v2753
        %3825 = vmatpush1.bf16.msra.mxu0 %v2752
        %3826 = vmatprep.subr.bf16.mxu0 %v2769
        %3827 = vmatpush1.bf16.msra.mxu0 %v2768
        %3828 = vmatprep.subr.bf16.mxu0 %v2785
        %3829 = vmatpush1.bf16.msra.mxu0 %v2784
        %3830 = vmatprep.subr.bf16.mxu0 %v2801
        %3831 = vmatpush1.bf16.msra.mxu0 %v2800
        %3832 = vmatprep.subr.bf16.mxu0 %v2817
        %3833 = vmatpush1.bf16.msra.mxu0 %v2816
        %3834 = vmatprep.subr.bf16.mxu0 %v2833
        %3835 = vmatpush1.bf16.msra.mxu0 %v2832
        %3836 = vmatprep.subr.bf16.mxu0 %v2849
        %3837 = vmatpush1.bf16.msra.mxu0 %v2848
        %3838 = vmatprep.subr.bf16.mxu0 %v2865
        %3839 = vmatpush1.bf16.msra.mxu0 %v2864
        %3840 = vmatprep.mubr.bf16.mxu0 %v1077
        %3841 = vmatmul.mubr.bf16.gmra.mrb[0].mxu0 %v1070
        %v3842 = vpop.f32.mrb[0].mxu0
        %v3843 = vadd.f32 0.0, %v3842
        %v3844 = vpop.f32.mrb[0].mxu0
        %v3845 = vadd.f32 0.0, %v3844
        %v3846 = vpop.f32.mrb[0].mxu0
        %v3847 = vpop.f32.mrb[0].mxu0
        %3848 = vdwg.mxu0
        %3849 = vmatprep.subr.bf16.mxu0 %v2881
        %3850 = vmatpush1.bf16.msra.mxu0 %v2880
        %3851 = vmatprep.subr.bf16.mxu0 %v2897
        %3852 = vmatpush1.bf16.msra.mxu0 %v2896
        %3853 = vmatprep.subr.bf16.mxu0 %v2913
        %3854 = vmatpush1.bf16.msra.mxu0 %v2912
        %3855 = vmatprep.subr.bf16.mxu0 %v2929
        %3856 = vmatpush1.bf16.msra.mxu0 %v2928
        %3857 = vmatprep.subr.bf16.mxu0 %v2945
        %3858 = vmatpush1.bf16.msra.mxu0 %v2944
        %3859 = vmatprep.subr.bf16.mxu0 %v2961
        %3860 = vmatpush1.bf16.msra.mxu0 %v2960
        %3861 = vmatprep.subr.bf16.mxu0 %v2977
        %3862 = vmatpush1.bf16.msra.mxu0 %v2976
        %3863 = vmatprep.subr.bf16.mxu0 %v2993
        %3864 = vmatpush1.bf16.msra.mxu0 %v2992
        %3865 = vmatprep.subr.bf16.mxu0 %v3009
        %3866 = vmatpush1.bf16.msra.mxu0 %v3008
        %3867 = vmatprep.subr.bf16.mxu0 %v3025
        %3868 = vmatpush1.bf16.msra.mxu0 %v3024
        %3869 = vmatprep.subr.bf16.mxu0 %v3041
        %3870 = vmatpush1.bf16.msra.mxu0 %v3040
        %3871 = vmatprep.subr.bf16.mxu0 %v3057
        %3872 = vmatpush1.bf16.msra.mxu0 %v3056
        %3873 = vmatprep.subr.bf16.mxu0 %v3073
        %3874 = vmatpush1.bf16.msra.mxu0 %v3072
        %3875 = vmatprep.subr.bf16.mxu0 %v3089
        %3876 = vmatpush1.bf16.msra.mxu0 %v3088
        %3877 = vmatprep.subr.bf16.mxu0 %v3105
        %3878 = vmatpush1.bf16.msra.mxu0 %v3104
        %3879 = vmatprep.subr.bf16.mxu0 %v3121
        %3880 = vmatpush1.bf16.msra.mxu0 %v3120
        %3881 = vmatprep.mubr.bf16.mxu0 %v1079
        %3882 = vmatmul.mubr.bf16.gmra.mrb[0].mxu0 %v1078
        %v3883 = vpop.f32.mrb[0].mxu0
        %v3884 = vadd.f32 %v3843, %v3883
        %v3885 = vpop.f32.mrb[0].mxu0
        %v3886 = vadd.f32 %v3845, %v3885
        %v3887 = vpop.f32.mrb[0].mxu0
        %v3888 = vpop.f32.mrb[0].mxu0
        %3889 = vdwg.mxu0
        %3890 = vmatprep.subr.bf16.mxu0 %v2627
        %3891 = vmatpush1.bf16.msra.mxu0 %v2626
        %3892 = vmatprep.subr.bf16.mxu0 %v2643
        %3893 = vmatpush1.bf16.msra.mxu0 %v2642
        %3894 = vmatprep.subr.bf16.mxu0 %v2659
        %3895 = vmatpush1.bf16.msra.mxu0 %v2658
        %3896 = vmatprep.subr.bf16.mxu0 %v2675
        %3897 = vmatpush1.bf16.msra.mxu0 %v2674
        %3898 = vmatprep.subr.bf16.mxu0 %v2691
        %3899 = vmatpush1.bf16.msra.mxu0 %v2690
        %3900 = vmatprep.subr.bf16.mxu0 %v2707
        %3901 = vmatpush1.bf16.msra.mxu0 %v2706
        %3902 = vmatprep.subr.bf16.mxu0 %v2723
        %3903 = vmatpush1.bf16.msra.mxu0 %v2722
        %3904 = vmatprep.subr.bf16.mxu0 %v2739
        %3905 = vmatpush1.bf16.msra.mxu0 %v2738
        %3906 = vmatprep.subr.bf16.mxu0 %v2755
        %3907 = vmatpush1.bf16.msra.mxu0 %v2754
        %3908 = vmatprep.subr.bf16.mxu0 %v2771
        %3909 = vmatpush1.bf16.msra.mxu0 %v2770
        %3910 = vmatprep.subr.bf16.mxu0 %v2787
        %3911 = vmatpush1.bf16.msra.mxu0 %v2786
        %3912 = vmatprep.subr.bf16.mxu0 %v2803
        %3913 = vmatpush1.bf16.msra.mxu0 %v2802
        %3914 = vmatprep.subr.bf16.mxu0 %v2819
        %3915 = vmatpush1.bf16.msra.mxu0 %v2818
        %3916 = vmatprep.subr.bf16.mxu0 %v2835
        %3917 = vmatpush1.bf16.msra.mxu0 %v2834
        %3918 = vmatprep.subr.bf16.mxu0 %v2851
        %3919 = vmatpush1.bf16.msra.mxu0 %v2850
        %3920 = vmatprep.subr.bf16.mxu0 %v2867
        %3921 = vmatpush1.bf16.msra.mxu0 %v2866
        %3922 = vmatprep.mubr.bf16.mxu0 %v1077
        %3923 = vmatmul.mubr.bf16.gmra.mrb[0].mxu0 %v1070
        %v3924 = vpop.f32.mrb[0].mxu0
        %v3925 = vadd.f32 0.0, %v3924
        %v3926 = vpop.f32.mrb[0].mxu0
        %v3927 = vadd.f32 0.0, %v3926
        %v3928 = vpop.f32.mrb[0].mxu0
        %v3929 = vpop.f32.mrb[0].mxu0
        %3930 = vdwg.mxu0
        %3931 = vmatprep.subr.bf16.mxu0 %v2883
        %3932 = vmatpush1.bf16.msra.mxu0 %v2882
        %3933 = vmatprep.subr.bf16.mxu0 %v2899
        %3934 = vmatpush1.bf16.msra.mxu0 %v2898
        %3935 = vmatprep.subr.bf16.mxu0 %v2915
        %3936 = vmatpush1.bf16.msra.mxu0 %v2914
        %3937 = vmatprep.subr.bf16.mxu0 %v2931
        %3938 = vmatpush1.bf16.msra.mxu0 %v2930
        %3939 = vmatprep.subr.bf16.mxu0 %v2947
        %3940 = vmatpush1.bf16.msra.mxu0 %v2946
        %3941 = vmatprep.subr.bf16.mxu0 %v2963
        %3942 = vmatpush1.bf16.msra.mxu0 %v2962
        %3943 = vmatprep.subr.bf16.mxu0 %v2979
        %3944 = vmatpush1.bf16.msra.mxu0 %v2978
        %3945 = vmatprep.subr.bf16.mxu0 %v2995
        %3946 = vmatpush1.bf16.msra.mxu0 %v2994
        %3947 = vmatprep.subr.bf16.mxu0 %v3011
        %3948 = vmatpush1.bf16.msra.mxu0 %v3010
        %3949 = vmatprep.subr.bf16.mxu0 %v3027
        %3950 = vmatpush1.bf16.msra.mxu0 %v3026
        %3951 = vmatprep.subr.bf16.mxu0 %v3043
        %3952 = vmatpush1.bf16.msra.mxu0 %v3042
        %3953 = vmatprep.subr.bf16.mxu0 %v3059
        %3954 = vmatpush1.bf16.msra.mxu0 %v3058
        %3955 = vmatprep.subr.bf16.mxu0 %v3075
        %3956 = vmatpush1.bf16.msra.mxu0 %v3074
        %3957 = vmatprep.subr.bf16.mxu0 %v3091
        %3958 = vmatpush1.bf16.msra.mxu0 %v3090
        %3959 = vmatprep.subr.bf16.mxu0 %v3107
        %3960 = vmatpush1.bf16.msra.mxu0 %v3106
        %3961 = vmatprep.subr.bf16.mxu0 %v3123
        %3962 = vmatpush1.bf16.msra.mxu0 %v3122
        %3963 = vmatprep.mubr.bf16.mxu0 %v1079
        %3964 = vmatmul.mubr.bf16.gmra.mrb[0].mxu0 %v1078
        %v3965 = vpop.f32.mrb[0].mxu0
        %v3966 = vadd.f32 %v3925, %v3965
        %v3967 = vpop.f32.mrb[0].mxu0
        %v3968 = vadd.f32 %v3927, %v3967
        %v3969 = vpop.f32.mrb[0].mxu0
        %v3970 = vpop.f32.mrb[0].mxu0
        %3971 = vdwg.mxu0
        %3972 = vmatprep.subr.bf16.mxu0 %v2629
        %3973 = vmatpush1.bf16.msra.mxu0 %v2628
        %3974 = vmatprep.subr.bf16.mxu0 %v2645
        %3975 = vmatpush1.bf16.msra.mxu0 %v2644
        %3976 = vmatprep.subr.bf16.mxu0 %v2661
        %3977 = vmatpush1.bf16.msra.mxu0 %v2660
        %3978 = vmatprep.subr.bf16.mxu0 %v2677
        %3979 = vmatpush1.bf16.msra.mxu0 %v2676
        %3980 = vmatprep.subr.bf16.mxu0 %v2693
        %3981 = vmatpush1.bf16.msra.mxu0 %v2692
        %3982 = vmatprep.subr.bf16.mxu0 %v2709
        %3983 = vmatpush1.bf16.msra.mxu0 %v2708
        %3984 = vmatprep.subr.bf16.mxu0 %v2725
        %3985 = vmatpush1.bf16.msra.mxu0 %v2724
        %3986 = vmatprep.subr.bf16.mxu0 %v2741
        %3987 = vmatpush1.bf16.msra.mxu0 %v2740
        %3988 = vmatprep.subr.bf16.mxu0 %v2757
        %3989 = vmatpush1.bf16.msra.mxu0 %v2756
        %3990 = vmatprep.subr.bf16.mxu0 %v2773
        %3991 = vmatpush1.bf16.msra.mxu0 %v2772
        %3992 = vmatprep.subr.bf16.mxu0 %v2789
        %3993 = vmatpush1.bf16.msra.mxu0 %v2788
        %3994 = vmatprep.subr.bf16.mxu0 %v2805
        %3995 = vmatpush1.bf16.msra.mxu0 %v2804
        %3996 = vmatprep.subr.bf16.mxu0 %v2821
        %3997 = vmatpush1.bf16.msra.mxu0 %v2820
        %3998 = vmatprep.subr.bf16.mxu0 %v2837
        %3999 = vmatpush1.bf16.msra.mxu0 %v2836
        %4000 = vmatprep.subr.bf16.mxu0 %v2853
        %4001 = vmatpush1.bf16.msra.mxu0 %v2852
        %4002 = vmatprep.subr.bf16.mxu0 %v2869
        %4003 = vmatpush1.bf16.msra.mxu0 %v2868
        %4004 = vmatprep.mubr.bf16.mxu0 %v1077
        %4005 = vmatmul.mubr.bf16.gmra.mrb[0].mxu0 %v1070
        %v4006 = vpop.f32.mrb[0].mxu0
        %v4007 = vadd.f32 0.0, %v4006
        %v4008 = vpop.f32.mrb[0].mxu0
        %v4009 = vadd.f32 0.0, %v4008
        %v4010 = vpop.f32.mrb[0].mxu0
        %v4011 = vpop.f32.mrb[0].mxu0
        %4012 = vdwg.mxu0
        %4013 = vmatprep.subr.bf16.mxu0 %v2885
        %4014 = vmatpush1.bf16.msra.mxu0 %v2884
        %4015 = vmatprep.subr.bf16.mxu0 %v2901
        %4016 = vmatpush1.bf16.msra.mxu0 %v2900
        %4017 = vmatprep.subr.bf16.mxu0 %v2917
        %4018 = vmatpush1.bf16.msra.mxu0 %v2916
        %4019 = vmatprep.subr.bf16.mxu0 %v2933
        %4020 = vmatpush1.bf16.msra.mxu0 %v2932
        %4021 = vmatprep.subr.bf16.mxu0 %v2949
        %4022 = vmatpush1.bf16.msra.mxu0 %v2948
        %4023 = vmatprep.subr.bf16.mxu0 %v2965
        %4024 = vmatpush1.bf16.msra.mxu0 %v2964
        %4025 = vmatprep.subr.bf16.mxu0 %v2981
        %4026 = vmatpush1.bf16.msra.mxu0 %v2980
        %4027 = vmatprep.subr.bf16.mxu0 %v2997
        %4028 = vmatpush1.bf16.msra.mxu0 %v2996
        %4029 = vmatprep.subr.bf16.mxu0 %v3013
        %4030 = vmatpush1.bf16.msra.mxu0 %v3012
        %4031 = vmatprep.subr.bf16.mxu0 %v3029
        %4032 = vmatpush1.bf16.msra.mxu0 %v3028
        %4033 = vmatprep.subr.bf16.mxu0 %v3045
        %4034 = vmatpush1.bf16.msra.mxu0 %v3044
        %4035 = vmatprep.subr.bf16.mxu0 %v3061
        %4036 = vmatpush1.bf16.msra.mxu0 %v3060
        %4037 = vmatprep.subr.bf16.mxu0 %v3077
        %4038 = vmatpush1.bf16.msra.mxu0 %v3076
        %4039 = vmatprep.subr.bf16.mxu0 %v3093
        %4040 = vmatpush1.bf16.msra.mxu0 %v3092
        %4041 = vmatprep.subr.bf16.mxu0 %v3109
        %4042 = vmatpush1.bf16.msra.mxu0 %v3108
        %4043 = vmatprep.subr.bf16.mxu0 %v3125
        %4044 = vmatpush1.bf16.msra.mxu0 %v3124
        %4045 = vmatprep.mubr.bf16.mxu0 %v1079
        %4046 = vmatmul.mubr.bf16.gmra.mrb[0].mxu0 %v1078
        %v4047 = vpop.f32.mrb[0].mxu0
        %v4048 = vadd.f32 %v4007, %v4047
        %v4049 = vpop.f32.mrb[0].mxu0
        %v4050 = vadd.f32 %v4009, %v4049
        %v4051 = vpop.f32.mrb[0].mxu0
        %v4052 = vpop.f32.mrb[0].mxu0
        %4053 = vdwg.mxu0
        %4054 = vmatprep.subr.bf16.mxu0 %v2631
        %4055 = vmatpush1.bf16.msra.mxu0 %v2630
        %4056 = vmatprep.subr.bf16.mxu0 %v2647
        %4057 = vmatpush1.bf16.msra.mxu0 %v2646
        %4058 = vmatprep.subr.bf16.mxu0 %v2663
        %4059 = vmatpush1.bf16.msra.mxu0 %v2662
        %4060 = vmatprep.subr.bf16.mxu0 %v2679
        %4061 = vmatpush1.bf16.msra.mxu0 %v2678
        %4062 = vmatprep.subr.bf16.mxu0 %v2695
        %4063 = vmatpush1.bf16.msra.mxu0 %v2694
        %4064 = vmatprep.subr.bf16.mxu0 %v2711
        %4065 = vmatpush1.bf16.msra.mxu0 %v2710
        %4066 = vmatprep.subr.bf16.mxu0 %v2727
        %4067 = vmatpush1.bf16.msra.mxu0 %v2726
        %4068 = vmatprep.subr.bf16.mxu0 %v2743
        %4069 = vmatpush1.bf16.msra.mxu0 %v2742
        %4070 = vmatprep.subr.bf16.mxu0 %v2759
        %4071 = vmatpush1.bf16.msra.mxu0 %v2758
        %4072 = vmatprep.subr.bf16.mxu0 %v2775
        %4073 = vmatpush1.bf16.msra.mxu0 %v2774
        %4074 = vmatprep.subr.bf16.mxu0 %v2791
        %4075 = vmatpush1.bf16.msra.mxu0 %v2790
        %4076 = vmatprep.subr.bf16.mxu0 %v2807
        %4077 = vmatpush1.bf16.msra.mxu0 %v2806
        %4078 = vmatprep.subr.bf16.mxu0 %v2823
        %4079 = vmatpush1.bf16.msra.mxu0 %v2822
        %4080 = vmatprep.subr.bf16.mxu0 %v2839
        %4081 = vmatpush1.bf16.msra.mxu0 %v2838
        %4082 = vmatprep.subr.bf16.mxu0 %v2855
        %4083 = vmatpush1.bf16.msra.mxu0 %v2854
        %4084 = vmatprep.subr.bf16.mxu0 %v2871
        %4085 = vmatpush1.bf16.msra.mxu0 %v2870
        %4086 = vmatprep.mubr.bf16.mxu0 %v1077
        %4087 = vmatmul.mubr.bf16.gmra.mrb[0].mxu0 %v1070
        %v4088 = vpop.f32.mrb[0].mxu0
        %v4089 = vadd.f32 0.0, %v4088
        %v4090 = vpop.f32.mrb[0].mxu0
        %v4091 = vadd.f32 0.0, %v4090
        %v4092 = vpop.f32.mrb[0].mxu0
        %v4093 = vpop.f32.mrb[0].mxu0
        %4094 = vdwg.mxu0
        %4095 = vmatprep.subr.bf16.mxu0 %v2887
        %4096 = vmatpush1.bf16.msra.mxu0 %v2886
        %4097 = vmatprep.subr.bf16.mxu0 %v2903
        %4098 = vmatpush1.bf16.msra.mxu0 %v2902
        %4099 = vmatprep.subr.bf16.mxu0 %v2919
        %4100 = vmatpush1.bf16.msra.mxu0 %v2918
        %4101 = vmatprep.subr.bf16.mxu0 %v2935
        %4102 = vmatpush1.bf16.msra.mxu0 %v2934
        %4103 = vmatprep.subr.bf16.mxu0 %v2951
        %4104 = vmatpush1.bf16.msra.mxu0 %v2950
        %4105 = vmatprep.subr.bf16.mxu0 %v2967
        %4106 = vmatpush1.bf16.msra.mxu0 %v2966
        %4107 = vmatprep.subr.bf16.mxu0 %v2983
        %4108 = vmatpush1.bf16.msra.mxu0 %v2982
        %4109 = vmatprep.subr.bf16.mxu0 %v2999
        %4110 = vmatpush1.bf16.msra.mxu0 %v2998
        %4111 = vmatprep.subr.bf16.mxu0 %v3015
        %4112 = vmatpush1.bf16.msra.mxu0 %v3014
        %4113 = vmatprep.subr.bf16.mxu0 %v3031
        %4114 = vmatpush1.bf16.msra.mxu0 %v3030
        %4115 = vmatprep.subr.bf16.mxu0 %v3047
        %4116 = vmatpush1.bf16.msra.mxu0 %v3046
        %4117 = vmatprep.subr.bf16.mxu0 %v3063
        %4118 = vmatpush1.bf16.msra.mxu0 %v3062
        %4119 = vmatprep.subr.bf16.mxu0 %v3079
        %4120 = vmatpush1.bf16.msra.mxu0 %v3078
        %4121 = vmatprep.subr.bf16.mxu0 %v3095
        %4122 = vmatpush1.bf16.msra.mxu0 %v3094
        %4123 = vmatprep.subr.bf16.mxu0 %v3111
        %4124 = vmatpush1.bf16.msra.mxu0 %v3110
        %4125 = vmatprep.subr.bf16.mxu0 %v3127
        %4126 = vmatpush1.bf16.msra.mxu0 %v3126
        %4127 = vmatprep.mubr.bf16.mxu0 %v1079
        %4128 = vmatmul.mubr.bf16.gmra.mrb[0].mxu0 %v1078
        %v4129 = vpop.f32.mrb[0].mxu0
        %v4130 = vadd.f32 %v4089, %v4129
        %v4131 = vpop.f32.mrb[0].mxu0
        %v4132 = vadd.f32 %v4091, %v4131
        %v4133 = vpop.f32.mrb[0].mxu0
        %v4134 = vpop.f32.mrb[0].mxu0
        %4135 = vdwg.mxu0
        %4136 = vmatprep.subr.bf16.mxu0 %v2633
        %4137 = vmatpush1.bf16.msra.mxu0 %v2632
        %4138 = vmatprep.subr.bf16.mxu0 %v2649
        %4139 = vmatpush1.bf16.msra.mxu0 %v2648
        %4140 = vmatprep.subr.bf16.mxu0 %v2665
        %4141 = vmatpush1.bf16.msra.mxu0 %v2664
        %4142 = vmatprep.subr.bf16.mxu0 %v2681
        %4143 = vmatpush1.bf16.msra.mxu0 %v2680
        %4144 = vmatprep.subr.bf16.mxu0 %v2697
        %4145 = vmatpush1.bf16.msra.mxu0 %v2696
        %4146 = vmatprep.subr.bf16.mxu0 %v2713
        %4147 = vmatpush1.bf16.msra.mxu0 %v2712
        %4148 = vmatprep.subr.bf16.mxu0 %v2729
        %4149 = vmatpush1.bf16.msra.mxu0 %v2728
        %4150 = vmatprep.subr.bf16.mxu0 %v2745
        %4151 = vmatpush1.bf16.msra.mxu0 %v2744
        %4152 = vmatprep.subr.bf16.mxu0 %v2761
        %4153 = vmatpush1.bf16.msra.mxu0 %v2760
        %4154 = vmatprep.subr.bf16.mxu0 %v2777
        %4155 = vmatpush1.bf16.msra.mxu0 %v2776
        %4156 = vmatprep.subr.bf16.mxu0 %v2793
        %4157 = vmatpush1.bf16.msra.mxu0 %v2792
        %4158 = vmatprep.subr.bf16.mxu0 %v2809
        %4159 = vmatpush1.bf16.msra.mxu0 %v2808
        %4160 = vmatprep.subr.bf16.mxu0 %v2825
        %4161 = vmatpush1.bf16.msra.mxu0 %v2824
        %4162 = vmatprep.subr.bf16.mxu0 %v2841
        %4163 = vmatpush1.bf16.msra.mxu0 %v2840
        %4164 = vmatprep.subr.bf16.mxu0 %v2857
        %4165 = vmatpush1.bf16.msra.mxu0 %v2856
        %4166 = vmatprep.subr.bf16.mxu0 %v2873
        %4167 = vmatpush1.bf16.msra.mxu0 %v2872
        %4168 = vmatprep.mubr.bf16.mxu0 %v1077
        %4169 = vmatmul.mubr.bf16.gmra.mrb[0].mxu0 %v1070
        %v4170 = vpop.f32.mrb[0].mxu0
        %v4171 = vadd.f32 0.0, %v4170
        %v4172 = vpop.f32.mrb[0].mxu0
        %v4173 = vadd.f32 0.0, %v4172
        %v4174 = vpop.f32.mrb[0].mxu0
        %v4175 = vpop.f32.mrb[0].mxu0
        %4176 = vdwg.mxu0
        %4177 = vmatprep.subr.bf16.mxu0 %v2889
        %4178 = vmatpush1.bf16.msra.mxu0 %v2888
        %4179 = vmatprep.subr.bf16.mxu0 %v2905
        %4180 = vmatpush1.bf16.msra.mxu0 %v2904
        %4181 = vmatprep.subr.bf16.mxu0 %v2921
        %4182 = vmatpush1.bf16.msra.mxu0 %v2920
        %4183 = vmatprep.subr.bf16.mxu0 %v2937
        %4184 = vmatpush1.bf16.msra.mxu0 %v2936
        %4185 = vmatprep.subr.bf16.mxu0 %v2953
        %4186 = vmatpush1.bf16.msra.mxu0 %v2952
        %4187 = vmatprep.subr.bf16.mxu0 %v2969
        %4188 = vmatpush1.bf16.msra.mxu0 %v2968
        %4189 = vmatprep.subr.bf16.mxu0 %v2985
        %4190 = vmatpush1.bf16.msra.mxu0 %v2984
        %4191 = vmatprep.subr.bf16.mxu0 %v3001
        %4192 = vmatpush1.bf16.msra.mxu0 %v3000
        %4193 = vmatprep.subr.bf16.mxu0 %v3017
        %4194 = vmatpush1.bf16.msra.mxu0 %v3016
        %4195 = vmatprep.subr.bf16.mxu0 %v3033
        %4196 = vmatpush1.bf16.msra.mxu0 %v3032
        %4197 = vmatprep.subr.bf16.mxu0 %v3049
        %4198 = vmatpush1.bf16.msra.mxu0 %v3048
        %4199 = vmatprep.subr.bf16.mxu0 %v3065
        %4200 = vmatpush1.bf16.msra.mxu0 %v3064
        %4201 = vmatprep.subr.bf16.mxu0 %v3081
        %4202 = vmatpush1.bf16.msra.mxu0 %v3080
        %4203 = vmatprep.subr.bf16.mxu0 %v3097
        %4204 = vmatpush1.bf16.msra.mxu0 %v3096
        %4205 = vmatprep.subr.bf16.mxu0 %v3113
        %4206 = vmatpush1.bf16.msra.mxu0 %v3112
        %4207 = vmatprep.subr.bf16.mxu0 %v3129
        %4208 = vmatpush1.bf16.msra.mxu0 %v3128
        %4209 = vmatprep.mubr.bf16.mxu0 %v1079
        %4210 = vmatmul.mubr.bf16.gmra.mrb[0].mxu0 %v1078
        %v4211 = vpop.f32.mrb[0].mxu0
        %v4212 = vadd.f32 %v4171, %v4211
        %v4213 = vpop.f32.mrb[0].mxu0
        %v4214 = vadd.f32 %v4173, %v4213
        %v4215 = vpop.f32.mrb[0].mxu0
        %v4216 = vpop.f32.mrb[0].mxu0
        %4217 = vdwg.mxu0
        %4218 = vmatprep.subr.bf16.mxu0 %v2635
        %4219 = vmatpush1.bf16.msra.mxu0 %v2634
        %4220 = vmatprep.subr.bf16.mxu0 %v2651
        %4221 = vmatpush1.bf16.msra.mxu0 %v2650
        %4222 = vmatprep.subr.bf16.mxu0 %v2667
        %4223 = vmatpush1.bf16.msra.mxu0 %v2666
        %4224 = vmatprep.subr.bf16.mxu0 %v2683
        %4225 = vmatpush1.bf16.msra.mxu0 %v2682
        %4226 = vmatprep.subr.bf16.mxu0 %v2699
        %4227 = vmatpush1.bf16.msra.mxu0 %v2698
        %4228 = vmatprep.subr.bf16.mxu0 %v2715
        %4229 = vmatpush1.bf16.msra.mxu0 %v2714
        %4230 = vmatprep.subr.bf16.mxu0 %v2731
        %4231 = vmatpush1.bf16.msra.mxu0 %v2730
        %4232 = vmatprep.subr.bf16.mxu0 %v2747
        %4233 = vmatpush1.bf16.msra.mxu0 %v2746
        %4234 = vmatprep.subr.bf16.mxu0 %v2763
        %4235 = vmatpush1.bf16.msra.mxu0 %v2762
        %4236 = vmatprep.subr.bf16.mxu0 %v2779
        %4237 = vmatpush1.bf16.msra.mxu0 %v2778
        %4238 = vmatprep.subr.bf16.mxu0 %v2795
        %4239 = vmatpush1.bf16.msra.mxu0 %v2794
        %4240 = vmatprep.subr.bf16.mxu0 %v2811
        %4241 = vmatpush1.bf16.msra.mxu0 %v2810
        %4242 = vmatprep.subr.bf16.mxu0 %v2827
        %4243 = vmatpush1.bf16.msra.mxu0 %v2826
        %4244 = vmatprep.subr.bf16.mxu0 %v2843
        %4245 = vmatpush1.bf16.msra.mxu0 %v2842
        %4246 = vmatprep.subr.bf16.mxu0 %v2859
        %4247 = vmatpush1.bf16.msra.mxu0 %v2858
        %4248 = vmatprep.subr.bf16.mxu0 %v2875
        %4249 = vmatpush1.bf16.msra.mxu0 %v2874
        %4250 = vmatprep.mubr.bf16.mxu0 %v1077
        %4251 = vmatmul.mubr.bf16.gmra.mrb[0].mxu0 %v1070
        %v4252 = vpop.f32.mrb[0].mxu0
        %v4253 = vadd.f32 0.0, %v4252
        %v4254 = vpop.f32.mrb[0].mxu0
        %v4255 = vadd.f32 0.0, %v4254
        %v4256 = vpop.f32.mrb[0].mxu0
        %v4257 = vpop.f32.mrb[0].mxu0
        %4258 = vdwg.mxu0
        %4259 = vmatprep.subr.bf16.mxu0 %v2891
        %4260 = vmatpush1.bf16.msra.mxu0 %v2890
        %4261 = vmatprep.subr.bf16.mxu0 %v2907
        %4262 = vmatpush1.bf16.msra.mxu0 %v2906
        %4263 = vmatprep.subr.bf16.mxu0 %v2923
        %4264 = vmatpush1.bf16.msra.mxu0 %v2922
        %4265 = vmatprep.subr.bf16.mxu0 %v2939
        %4266 = vmatpush1.bf16.msra.mxu0 %v2938
        %4267 = vmatprep.subr.bf16.mxu0 %v2955
        %4268 = vmatpush1.bf16.msra.mxu0 %v2954
        %4269 = vmatprep.subr.bf16.mxu0 %v2971
        %4270 = vmatpush1.bf16.msra.mxu0 %v2970
        %4271 = vmatprep.subr.bf16.mxu0 %v2987
        %4272 = vmatpush1.bf16.msra.mxu0 %v2986
        %4273 = vmatprep.subr.bf16.mxu0 %v3003
        %4274 = vmatpush1.bf16.msra.mxu0 %v3002
        %4275 = vmatprep.subr.bf16.mxu0 %v3019
        %4276 = vmatpush1.bf16.msra.mxu0 %v3018
        %4277 = vmatprep.subr.bf16.mxu0 %v3035
        %4278 = vmatpush1.bf16.msra.mxu0 %v3034
        %4279 = vmatprep.subr.bf16.mxu0 %v3051
        %4280 = vmatpush1.bf16.msra.mxu0 %v3050
        %4281 = vmatprep.subr.bf16.mxu0 %v3067
        %4282 = vmatpush1.bf16.msra.mxu0 %v3066
        %4283 = vmatprep.subr.bf16.mxu0 %v3083
        %4284 = vmatpush1.bf16.msra.mxu0 %v3082
        %4285 = vmatprep.subr.bf16.mxu0 %v3099
        %4286 = vmatpush1.bf16.msra.mxu0 %v3098
        %4287 = vmatprep.subr.bf16.mxu0 %v3115
        %4288 = vmatpush1.bf16.msra.mxu0 %v3114
        %4289 = vmatprep.subr.bf16.mxu0 %v3131
        %4290 = vmatpush1.bf16.msra.mxu0 %v3130
        %4291 = vmatprep.mubr.bf16.mxu0 %v1079
        %4292 = vmatmul.mubr.bf16.gmra.mrb[0].mxu0 %v1078
        %v4293 = vpop.f32.mrb[0].mxu0
        %v4294 = vadd.f32 %v4253, %v4293
        %v4295 = vpop.f32.mrb[0].mxu0
        %v4296 = vadd.f32 %v4255, %v4295
        %v4297 = vpop.f32.mrb[0].mxu0
        %v4298 = vpop.f32.mrb[0].mxu0
        %4299 = vdwg.mxu0
        %v4316 = vcombine.low %v3720, %v3722
        %v4317 = vcombine.low %v3802, %v3804
        %v4319 = vunpack.c.l.s4 1983009808
        %v4320 = vunpack.c.0.s8 %v4319
        %v4321 = vlaneseq
        %v4322 = vshrl.u32 %v4321, 7
        %v4323 = vsub.s32 %v4320, %v4322
        %v4324 = vrot.slane %v4316, %v4323
        %v4326 = vunpack.c.l.s4 1983009808
        %v4327 = vunpack.c.0.s8 %v4326
        %v4328 = vlaneseq
        %v4329 = vshrl.u32 %v4328, 7
        %v4330 = vsub.s32 %v4327, %v4329
        %v4331 = vrot.slane %v4317, %v4330
        %v4332 = vcombine.low %v4324, %v4331
        %v4333 = vcombine.low %v3884, %v3886
        %v4334 = vcombine.low %v3966, %v3968
        %v4336 = vunpack.c.l.s4 1983009808
        %v4337 = vunpack.c.0.s8 %v4336
        %v4338 = vlaneseq
        %v4339 = vshrl.u32 %v4338, 7
        %v4340 = vsub.s32 %v4337, %v4339
        %v4341 = vrot.slane %v4333, %v4340
        %v4343 = vunpack.c.l.s4 1983009808
        %v4344 = vunpack.c.0.s8 %v4343
        %v4345 = vlaneseq
        %v4346 = vshrl.u32 %v4345, 7
        %v4347 = vsub.s32 %v4344, %v4346
        %v4348 = vrot.slane %v4334, %v4347
        %v4349 = vcombine.low %v4341, %v4348
        %v4350 = vcombine.low %v4048, %v4050
        %v4351 = vcombine.low %v4130, %v4132
        %v4353 = vunpack.c.l.s4 1983009808
        %v4354 = vunpack.c.0.s8 %v4353
        %v4355 = vlaneseq
        %v4356 = vshrl.u32 %v4355, 7
        %v4357 = vsub.s32 %v4354, %v4356
        %v4358 = vrot.slane %v4350, %v4357
        %v4360 = vunpack.c.l.s4 1983009808
        %v4361 = vunpack.c.0.s8 %v4360
        %v4362 = vlaneseq
        %v4363 = vshrl.u32 %v4362, 7
        %v4364 = vsub.s32 %v4361, %v4363
        %v4365 = vrot.slane %v4351, %v4364
        %v4366 = vcombine.low %v4358, %v4365
        %v4367 = vcombine.low %v4212, %v4214
        %v4368 = vcombine.low %v4294, %v4296
        %v4370 = vunpack.c.l.s4 1983009808
        %v4371 = vunpack.c.0.s8 %v4370
        %v4372 = vlaneseq
        %v4373 = vshrl.u32 %v4372, 7
        %v4374 = vsub.s32 %v4371, %v4373
        %v4375 = vrot.slane %v4367, %v4374
        %v4377 = vunpack.c.l.s4 1983009808
        %v4378 = vunpack.c.0.s8 %v4377
        %v4379 = vlaneseq
        %v4380 = vshrl.u32 %v4379, 7
        %v4381 = vsub.s32 %v4378, %v4380
        %v4382 = vrot.slane %v4368, %v4381
        %v4383 = vcombine.low %v4375, %v4382
        %v4388 = vadd.f32 %v538, %v4332
        %v4389 = vadd.f32 %v539, %v4349
        %v4390 = vadd.f32 %v540, %v4366
        %v4391 = vadd.f32 %v541, %v4383
        %4392 = vst [vmem:[#allocation2] sm:$0xff] %v4388
        %4393 = vst [vmem:[#allocation2 + $0x8] sm:$0xff] %v4389
        %4394 = vst [vmem:[#allocation2 + $0x10] sm:$0xff] %v4390
        %4395 = vst [vmem:[#allocation2 + $0x18] sm:$0xff] %v4391
        %p4396 = scmp.eq.s32.totalorder %s35, 3
        // Predicated region
        $region77: #{encoder_forward.7} parent=47 // pred_check
          %p4397 = pneg %p4396
        $region78: #{encoder_forward.7} parent=47 // pred_check_branch
          %4399 = sbr.rel (%p4397) target = $region80
        $region79: #{encoder_forward.7} parent=47 // pred_region
          %v4400 = vld [vmem:[#allocation2] sm:$0xff]
          %v4401 = vld [vmem:[#allocation2 + $0x8] sm:$0xff]
          %v4402 = vld [vmem:[#allocation2 + $0x10] sm:$0xff]
          %v4403 = vld [vmem:[#allocation2 + $0x18] sm:$0xff]
          %v4404 = vld [vmem:[%s414] sm:$0xff]
          %v4405 = vld [vmem:[%s414 + $0x8] sm:$0xff]
          %v4408 = vlaneseq
          %v4409 = vshrl.u32 %v4408, 7
          %v4410 = vsub.s32 0, %v4409
          %v4411 = vrot.slane %v4404, %v4410
          %v4412 = vlaneseq
          %v4413 = vshrl.u32 %v4412, 7
          %v4414 = vsub.s32 1, %v4413
          %v4415 = vrot.slane %v4404, %v4414
          %v4416 = vlaneseq
          %v4417 = vshrl.u32 %v4416, 7
          %v4418 = vsub.s32 2, %v4417
          %v4419 = vrot.slane %v4404, %v4418
          %v4420 = vlaneseq
          %v4421 = vshrl.u32 %v4420, 7
          %v4422 = vsub.s32 3, %v4421
          %v4423 = vrot.slane %v4404, %v4422
          %v4424 = vlaneseq
          %v4425 = vshrl.u32 %v4424, 7
          %v4426 = vsub.s32 4, %v4425
          %v4427 = vrot.slane %v4404, %v4426
          %v4428 = vlaneseq
          %v4429 = vshrl.u32 %v4428, 7
          %v4430 = vsub.s32 5, %v4429
          %v4431 = vrot.slane %v4404, %v4430
          %v4432 = vlaneseq
          %v4433 = vshrl.u32 %v4432, 7
          %v4434 = vsub.s32 6, %v4433
          %v4435 = vrot.slane %v4404, %v4434
          %v4436 = vlaneseq
          %v4437 = vshrl.u32 %v4436, 7
          %v4438 = vsub.s32 7, %v4437
          %v4439 = vrot.slane %v4404, %v4438
          %v4440 = vlaneseq
          %v4441 = vshrl.u32 %v4440, 7
          %v4442 = vsub.s32 0, %v4441
          %v4443 = vrot.slane %v4405, %v4442
          %v4444 = vlaneseq
          %v4445 = vshrl.u32 %v4444, 7
          %v4446 = vsub.s32 1, %v4445
          %v4447 = vrot.slane %v4405, %v4446
          %v4448 = vlaneseq
          %v4449 = vshrl.u32 %v4448, 7
          %v4450 = vsub.s32 2, %v4449
          %v4451 = vrot.slane %v4405, %v4450
          %v4452 = vlaneseq
          %v4453 = vshrl.u32 %v4452, 7
          %v4454 = vsub.s32 3, %v4453
          %v4455 = vrot.slane %v4405, %v4454
          %v4456 = vlaneseq
          %v4457 = vshrl.u32 %v4456, 7
          %v4458 = vsub.s32 4, %v4457
          %v4459 = vrot.slane %v4405, %v4458
          %v4460 = vlaneseq
          %v4461 = vshrl.u32 %v4460, 7
          %v4462 = vsub.s32 5, %v4461
          %v4463 = vrot.slane %v4405, %v4462
          %v4464 = vlaneseq
          %v4465 = vshrl.u32 %v4464, 7
          %v4466 = vsub.s32 6, %v4465
          %v4467 = vrot.slane %v4405, %v4466
          %v4468 = vlaneseq
          %v4469 = vshrl.u32 %v4468, 7
          %v4470 = vsub.s32 7, %v4469
          %v4471 = vrot.slane %v4405, %v4470
          %v4472 = vcombine.low %v4411, %v4415
          %v4473 = vcombine.low %v4419, %v4423
          %v4475 = vunpack.c.l.s4 1983009808
          %v4476 = vunpack.c.0.s8 %v4475
          %v4477 = vlaneseq
          %v4478 = vshrl.u32 %v4477, 7
          %v4479 = vsub.s32 %v4476, %v4478
          %v4480 = vrot.slane %v4472, %v4479
          %v4482 = vunpack.c.l.s4 1983009808
          %v4483 = vunpack.c.0.s8 %v4482
          %v4484 = vlaneseq
          %v4485 = vshrl.u32 %v4484, 7
          %v4486 = vsub.s32 %v4483, %v4485
          %v4487 = vrot.slane %v4473, %v4486
          %v4488 = vcombine.low %v4480, %v4487
          %v4489 = vcombine.low %v4427, %v4431
          %v4490 = vcombine.low %v4435, %v4439
          %v4492 = vunpack.c.l.s4 1983009808
          %v4493 = vunpack.c.0.s8 %v4492
          %v4494 = vlaneseq
          %v4495 = vshrl.u32 %v4494, 7
          %v4496 = vsub.s32 %v4493, %v4495
          %v4497 = vrot.slane %v4489, %v4496
          %v4499 = vunpack.c.l.s4 1983009808
          %v4500 = vunpack.c.0.s8 %v4499
          %v4501 = vlaneseq
          %v4502 = vshrl.u32 %v4501, 7
          %v4503 = vsub.s32 %v4500, %v4502
          %v4504 = vrot.slane %v4490, %v4503
          %v4505 = vcombine.low %v4497, %v4504
          %v4506 = vcombine.low %v4443, %v4447
          %v4507 = vcombine.low %v4451, %v4455
          %v4509 = vunpack.c.l.s4 1983009808
          %v4510 = vunpack.c.0.s8 %v4509
          %v4511 = vlaneseq
          %v4512 = vshrl.u32 %v4511, 7
          %v4513 = vsub.s32 %v4510, %v4512
          %v4514 = vrot.slane %v4506, %v4513
          %v4516 = vunpack.c.l.s4 1983009808
          %v4517 = vunpack.c.0.s8 %v4516
          %v4518 = vlaneseq
          %v4519 = vshrl.u32 %v4518, 7
          %v4520 = vsub.s32 %v4517, %v4519
          %v4521 = vrot.slane %v4507, %v4520
          %v4522 = vcombine.low %v4514, %v4521
          %v4523 = vcombine.low %v4459, %v4463
          %v4524 = vcombine.low %v4467, %v4471
          %v4526 = vunpack.c.l.s4 1983009808
          %v4527 = vunpack.c.0.s8 %v4526
          %v4528 = vlaneseq
          %v4529 = vshrl.u32 %v4528, 7
          %v4530 = vsub.s32 %v4527, %v4529
          %v4531 = vrot.slane %v4523, %v4530
          %v4533 = vunpack.c.l.s4 1983009808
          %v4534 = vunpack.c.0.s8 %v4533
          %v4535 = vlaneseq
          %v4536 = vshrl.u32 %v4535, 7
          %v4537 = vsub.s32 %v4534, %v4536
          %v4538 = vrot.slane %v4524, %v4537
          %v4539 = vcombine.low %v4531, %v4538
          %v4544 = vadd.f32 %v4400, %v4488
          %v4545 = vadd.f32 %v4401, %v4505
          %v4546 = vadd.f32 %v4402, %v4522
          %v4547 = vadd.f32 %v4403, %v4539
          %v4552 = vcombine.high %v4544, %v4544
          %v4554 = vunpack.c.l.s4 1983009808
          %v4555 = vunpack.c.0.s8 %v4554
          %v4556 = vlaneseq
          %v4557 = vshrl.u32 %v4556, 7
          %v4558 = vsub.s32 %v4555, %v4557
          %v4559 = vrot.slane %v4544, %v4558
          %v4561 = vunpack.c.l.s4 1983009808
          %v4562 = vunpack.c.0.s8 %v4561
          %v4563 = vlaneseq
          %v4564 = vshrl.u32 %v4563, 7
          %v4565 = vsub.s32 %v4562, %v4564
          %v4566 = vrot.slane %v4552, %v4565
          %v4567 = vcombine.high %v4559, %v4559
          %v4568 = vcombine.high %v4566, %v4566
          %v4569 = vcombine.high %v4545, %v4545
          %v4571 = vunpack.c.l.s4 1983009808
          %v4572 = vunpack.c.0.s8 %v4571
          %v4573 = vlaneseq
          %v4574 = vshrl.u32 %v4573, 7
          %v4575 = vsub.s32 %v4572, %v4574
          %v4576 = vrot.slane %v4545, %v4575
          %v4578 = vunpack.c.l.s4 1983009808
          %v4579 = vunpack.c.0.s8 %v4578
          %v4580 = vlaneseq
          %v4581 = vshrl.u32 %v4580, 7
          %v4582 = vsub.s32 %v4579, %v4581
          %v4583 = vrot.slane %v4569, %v4582
          %v4584 = vcombine.high %v4576, %v4576
          %v4585 = vcombine.high %v4583, %v4583
          %v4586 = vcombine.high %v4546, %v4546
          %v4588 = vunpack.c.l.s4 1983009808
          %v4589 = vunpack.c.0.s8 %v4588
          %v4590 = vlaneseq
          %v4591 = vshrl.u32 %v4590, 7
          %v4592 = vsub.s32 %v4589, %v4591
          %v4593 = vrot.slane %v4546, %v4592
          %v4595 = vunpack.c.l.s4 1983009808
          %v4596 = vunpack.c.0.s8 %v4595
          %v4597 = vlaneseq
          %v4598 = vshrl.u32 %v4597, 7
          %v4599 = vsub.s32 %v4596, %v4598
          %v4600 = vrot.slane %v4586, %v4599
          %v4601 = vcombine.high %v4593, %v4593
          %v4602 = vcombine.high %v4600, %v4600
          %v4603 = vcombine.high %v4547, %v4547
          %v4605 = vunpack.c.l.s4 1983009808
          %v4606 = vunpack.c.0.s8 %v4605
          %v4607 = vlaneseq
          %v4608 = vshrl.u32 %v4607, 7
          %v4609 = vsub.s32 %v4606, %v4608
          %v4610 = vrot.slane %v4547, %v4609
          %v4612 = vunpack.c.l.s4 1983009808
          %v4613 = vunpack.c.0.s8 %v4612
          %v4614 = vlaneseq
          %v4615 = vshrl.u32 %v4614, 7
          %v4616 = vsub.s32 %v4613, %v4615
          %v4617 = vrot.slane %v4603, %v4616
          %v4618 = vcombine.high %v4610, %v4610
          %v4619 = vcombine.high %v4617, %v4617
          %vm4636 = vcmask 1041408
          %v4637 = vsel %vm4636, %v4559, 0.0
          %v4638 = vrot.slane %v4637, 4
          %v4639 = vadd.f32 %v4637, %v4638
          %v4640 = vrot.slane %v4639, 2
          %v4641 = vadd.f32 %v4639, %v4640
          %v4642 = vrot.slane %v4641, 1
          %v4643 = vadd.f32 %v4641, %v4642
          %v4644 = vsel %vm4636, %v4567, 0.0
          %v4645 = vrot.slane %v4644, 4
          %v4646 = vadd.f32 %v4644, %v4645
          %v4647 = vrot.slane %v4646, 2
          %v4648 = vadd.f32 %v4646, %v4647
          %v4649 = vrot.slane %v4648, 1
          %v4650 = vadd.f32 %v4648, %v4649
          %v4651 = vsel %vm4636, %v4566, 0.0
          %v4652 = vrot.slane %v4651, 4
          %v4653 = vadd.f32 %v4651, %v4652
          %v4654 = vrot.slane %v4653, 2
          %v4655 = vadd.f32 %v4653, %v4654
          %v4656 = vrot.slane %v4655, 1
          %v4657 = vadd.f32 %v4655, %v4656
          %v4658 = vsel %vm4636, %v4568, 0.0
          %v4659 = vrot.slane %v4658, 4
          %v4660 = vadd.f32 %v4658, %v4659
          %v4661 = vrot.slane %v4660, 2
          %v4662 = vadd.f32 %v4660, %v4661
          %v4663 = vrot.slane %v4662, 1
          %v4664 = vadd.f32 %v4662, %v4663
          %v4665 = vsel %vm4636, %v4576, 0.0
          %v4666 = vrot.slane %v4665, 4
          %v4667 = vadd.f32 %v4665, %v4666
          %v4668 = vrot.slane %v4667, 2
          %v4669 = vadd.f32 %v4667, %v4668
          %v4670 = vrot.slane %v4669, 1
          %v4671 = vadd.f32 %v4669, %v4670
          %v4672 = vsel %vm4636, %v4584, 0.0
          %v4673 = vrot.slane %v4672, 4
          %v4674 = vadd.f32 %v4672, %v4673
          %v4675 = vrot.slane %v4674, 2
          %v4676 = vadd.f32 %v4674, %v4675
          %v4677 = vrot.slane %v4676, 1
          %v4678 = vadd.f32 %v4676, %v4677
          %v4679 = vsel %vm4636, %v4583, 0.0
          %v4680 = vrot.slane %v4679, 4
          %v4681 = vadd.f32 %v4679, %v4680
          %v4682 = vrot.slane %v4681, 2
          %v4683 = vadd.f32 %v4681, %v4682
          %v4684 = vrot.slane %v4683, 1
          %v4685 = vadd.f32 %v4683, %v4684
          %v4686 = vsel %vm4636, %v4585, 0.0
          %v4687 = vrot.slane %v4686, 4
          %v4688 = vadd.f32 %v4686, %v4687
          %v4689 = vrot.slane %v4688, 2
          %v4690 = vadd.f32 %v4688, %v4689
          %v4691 = vrot.slane %v4690, 1
          %v4692 = vadd.f32 %v4690, %v4691
          %v4693 = vsel %vm4636, %v4593, 0.0
          %v4694 = vrot.slane %v4693, 4
          %v4695 = vadd.f32 %v4693, %v4694
          %v4696 = vrot.slane %v4695, 2
          %v4697 = vadd.f32 %v4695, %v4696
          %v4698 = vrot.slane %v4697, 1
          %v4699 = vadd.f32 %v4697, %v4698
          %v4700 = vsel %vm4636, %v4601, 0.0
          %v4701 = vrot.slane %v4700, 4
          %v4702 = vadd.f32 %v4700, %v4701
          %v4703 = vrot.slane %v4702, 2
          %v4704 = vadd.f32 %v4702, %v4703
          %v4705 = vrot.slane %v4704, 1
          %v4706 = vadd.f32 %v4704, %v4705
          %v4707 = vsel %vm4636, %v4600, 0.0
          %v4708 = vrot.slane %v4707, 4
          %v4709 = vadd.f32 %v4707, %v4708
          %v4710 = vrot.slane %v4709, 2
          %v4711 = vadd.f32 %v4709, %v4710
          %v4712 = vrot.slane %v4711, 1
          %v4713 = vadd.f32 %v4711, %v4712
          %v4714 = vsel %vm4636, %v4602, 0.0
          %v4715 = vrot.slane %v4714, 4
          %v4716 = vadd.f32 %v4714, %v4715
          %v4717 = vrot.slane %v4716, 2
          %v4718 = vadd.f32 %v4716, %v4717
          %v4719 = vrot.slane %v4718, 1
          %v4720 = vadd.f32 %v4718, %v4719
          %v4721 = vsel %vm4636, %v4610, 0.0
          %v4722 = vrot.slane %v4721, 4
          %v4723 = vadd.f32 %v4721, %v4722
          %v4724 = vrot.slane %v4723, 2
          %v4725 = vadd.f32 %v4723, %v4724
          %v4726 = vrot.slane %v4725, 1
          %v4727 = vadd.f32 %v4725, %v4726
          %v4728 = vsel %vm4636, %v4618, 0.0
          %v4729 = vrot.slane %v4728, 4
          %v4730 = vadd.f32 %v4728, %v4729
          %v4731 = vrot.slane %v4730, 2
          %v4732 = vadd.f32 %v4730, %v4731
          %v4733 = vrot.slane %v4732, 1
          %v4734 = vadd.f32 %v4732, %v4733
          %v4735 = vsel %vm4636, %v4617, 0.0
          %v4736 = vrot.slane %v4735, 4
          %v4737 = vadd.f32 %v4735, %v4736
          %v4738 = vrot.slane %v4737, 2
          %v4739 = vadd.f32 %v4737, %v4738
          %v4740 = vrot.slane %v4739, 1
          %v4741 = vadd.f32 %v4739, %v4740
          %v4742 = vsel %vm4636, %v4619, 0.0
          %v4743 = vrot.slane %v4742, 4
          %v4744 = vadd.f32 %v4742, %v4743
          %v4745 = vrot.slane %v4744, 2
          %v4746 = vadd.f32 %v4744, %v4745
          %v4747 = vrot.slane %v4746, 1
          %v4748 = vadd.f32 %v4746, %v4747
          %v4749 = vrcp.pop 2.0
          %v4750 = vmul.f32 %v4643, %v4749
          %v4751 = vmul.f32 %v4650, %v4749
          %v4752 = vmul.f32 %v4657, %v4749
          %v4753 = vmul.f32 %v4664, %v4749
          %v4754 = vmul.f32 %v4671, %v4749
          %v4755 = vmul.f32 %v4678, %v4749
          %v4756 = vmul.f32 %v4685, %v4749
          %v4757 = vmul.f32 %v4692, %v4749
          %v4758 = vmul.f32 %v4699, %v4749
          %v4759 = vmul.f32 %v4706, %v4749
          %v4760 = vmul.f32 %v4713, %v4749
          %v4761 = vmul.f32 %v4720, %v4749
          %v4762 = vmul.f32 %v4727, %v4749
          %v4763 = vmul.f32 %v4734, %v4749
          %v4764 = vmul.f32 %v4741, %v4749
          %v4765 = vmul.f32 %v4748, %v4749
          %v4782 = vcombine.low %v4750, %v4751
          %v4783 = vcombine.low %v4752, %v4753
          %v4785 = vunpack.c.l.s4 1983009808
          %v4786 = vunpack.c.0.s8 %v4785
          %v4787 = vlaneseq
          %v4788 = vshrl.u32 %v4787, 7
          %v4789 = vsub.s32 %v4786, %v4788
          %v4790 = vrot.slane %v4782, %v4789
          %v4792 = vunpack.c.l.s4 1983009808
          %v4793 = vunpack.c.0.s8 %v4792
          %v4794 = vlaneseq
          %v4795 = vshrl.u32 %v4794, 7
          %v4796 = vsub.s32 %v4793, %v4795
          %v4797 = vrot.slane %v4783, %v4796
          %v4798 = vcombine.low %v4790, %v4797
          %v4799 = vcombine.low %v4754, %v4755
          %v4800 = vcombine.low %v4756, %v4757
          %v4802 = vunpack.c.l.s4 1983009808
          %v4803 = vunpack.c.0.s8 %v4802
          %v4804 = vlaneseq
          %v4805 = vshrl.u32 %v4804, 7
          %v4806 = vsub.s32 %v4803, %v4805
          %v4807 = vrot.slane %v4799, %v4806
          %v4809 = vunpack.c.l.s4 1983009808
          %v4810 = vunpack.c.0.s8 %v4809
          %v4811 = vlaneseq
          %v4812 = vshrl.u32 %v4811, 7
          %v4813 = vsub.s32 %v4810, %v4812
          %v4814 = vrot.slane %v4800, %v4813
          %v4815 = vcombine.low %v4807, %v4814
          %v4816 = vcombine.low %v4758, %v4759
          %v4817 = vcombine.low %v4760, %v4761
          %v4819 = vunpack.c.l.s4 1983009808
          %v4820 = vunpack.c.0.s8 %v4819
          %v4821 = vlaneseq
          %v4822 = vshrl.u32 %v4821, 7
          %v4823 = vsub.s32 %v4820, %v4822
          %v4824 = vrot.slane %v4816, %v4823
          %v4826 = vunpack.c.l.s4 1983009808
          %v4827 = vunpack.c.0.s8 %v4826
          %v4828 = vlaneseq
          %v4829 = vshrl.u32 %v4828, 7
          %v4830 = vsub.s32 %v4827, %v4829
          %v4831 = vrot.slane %v4817, %v4830
          %v4832 = vcombine.low %v4824, %v4831
          %v4833 = vcombine.low %v4762, %v4763
          %v4834 = vcombine.low %v4764, %v4765
          %v4836 = vunpack.c.l.s4 1983009808
          %v4837 = vunpack.c.0.s8 %v4836
          %v4838 = vlaneseq
          %v4839 = vshrl.u32 %v4838, 7
          %v4840 = vsub.s32 %v4837, %v4839
          %v4841 = vrot.slane %v4833, %v4840
          %v4843 = vunpack.c.l.s4 1983009808
          %v4844 = vunpack.c.0.s8 %v4843
          %v4845 = vlaneseq
          %v4846 = vshrl.u32 %v4845, 7
          %v4847 = vsub.s32 %v4844, %v4846
          %v4848 = vrot.slane %v4834, %v4847
          %v4849 = vcombine.low %v4841, %v4848
          %v4854 = vsub.f32 %v4544, %v4798
          %v4855 = vsub.f32 %v4545, %v4815
          %v4856 = vsub.f32 %v4546, %v4832
          %v4857 = vsub.f32 %v4547, %v4849
          %v4858 = vmul.f32 %v4854, %v4854
          %v4859 = vmul.f32 %v4855, %v4855
          %v4860 = vmul.f32 %v4856, %v4856
          %v4861 = vmul.f32 %v4857, %v4857
          %v4866 = vcombine.high %v4858, %v4858
          %v4868 = vunpack.c.l.s4 1983009808
          %v4869 = vunpack.c.0.s8 %v4868
          %v4870 = vlaneseq
          %v4871 = vshrl.u32 %v4870, 7
          %v4872 = vsub.s32 %v4869, %v4871
          %v4873 = vrot.slane %v4858, %v4872
          %v4875 = vunpack.c.l.s4 1983009808
          %v4876 = vunpack.c.0.s8 %v4875
          %v4877 = vlaneseq
          %v4878 = vshrl.u32 %v4877, 7
          %v4879 = vsub.s32 %v4876, %v4878
          %v4880 = vrot.slane %v4866, %v4879
          %v4881 = vcombine.high %v4873, %v4873
          %v4882 = vcombine.high %v4880, %v4880
          %v4883 = vcombine.high %v4859, %v4859
          %v4885 = vunpack.c.l.s4 1983009808
          %v4886 = vunpack.c.0.s8 %v4885
          %v4887 = vlaneseq
          %v4888 = vshrl.u32 %v4887, 7
          %v4889 = vsub.s32 %v4886, %v4888
          %v4890 = vrot.slane %v4859, %v4889
          %v4892 = vunpack.c.l.s4 1983009808
          %v4893 = vunpack.c.0.s8 %v4892
          %v4894 = vlaneseq
          %v4895 = vshrl.u32 %v4894, 7
          %v4896 = vsub.s32 %v4893, %v4895
          %v4897 = vrot.slane %v4883, %v4896
          %v4898 = vcombine.high %v4890, %v4890
          %v4899 = vcombine.high %v4897, %v4897
          %v4900 = vcombine.high %v4860, %v4860
          %v4902 = vunpack.c.l.s4 1983009808
          %v4903 = vunpack.c.0.s8 %v4902
          %v4904 = vlaneseq
          %v4905 = vshrl.u32 %v4904, 7
          %v4906 = vsub.s32 %v4903, %v4905
          %v4907 = vrot.slane %v4860, %v4906
          %v4909 = vunpack.c.l.s4 1983009808
          %v4910 = vunpack.c.0.s8 %v4909
          %v4911 = vlaneseq
          %v4912 = vshrl.u32 %v4911, 7
          %v4913 = vsub.s32 %v4910, %v4912
          %v4914 = vrot.slane %v4900, %v4913
          %v4915 = vcombine.high %v4907, %v4907
          %v4916 = vcombine.high %v4914, %v4914
          %v4917 = vcombine.high %v4861, %v4861
          %v4919 = vunpack.c.l.s4 1983009808
          %v4920 = vunpack.c.0.s8 %v4919
          %v4921 = vlaneseq
          %v4922 = vshrl.u32 %v4921, 7
          %v4923 = vsub.s32 %v4920, %v4922
          %v4924 = vrot.slane %v4861, %v4923
          %v4926 = vunpack.c.l.s4 1983009808
          %v4927 = vunpack.c.0.s8 %v4926
          %v4928 = vlaneseq
          %v4929 = vshrl.u32 %v4928, 7
          %v4930 = vsub.s32 %v4927, %v4929
          %v4931 = vrot.slane %v4917, %v4930
          %v4932 = vcombine.high %v4924, %v4924
          %v4933 = vcombine.high %v4931, %v4931
          %v4950 = vsel %vm4636, %v4873, 0.0
          %v4951 = vrot.slane %v4950, 4
          %v4952 = vadd.f32 %v4950, %v4951
          %v4953 = vrot.slane %v4952, 2
          %v4954 = vadd.f32 %v4952, %v4953
          %v4955 = vrot.slane %v4954, 1
          %v4956 = vadd.f32 %v4954, %v4955
          %v4957 = vsel %vm4636, %v4881, 0.0
          %v4958 = vrot.slane %v4957, 4
          %v4959 = vadd.f32 %v4957, %v4958
          %v4960 = vrot.slane %v4959, 2
          %v4961 = vadd.f32 %v4959, %v4960
          %v4962 = vrot.slane %v4961, 1
          %v4963 = vadd.f32 %v4961, %v4962
          %v4964 = vsel %vm4636, %v4880, 0.0
          %v4965 = vrot.slane %v4964, 4
          %v4966 = vadd.f32 %v4964, %v4965
          %v4967 = vrot.slane %v4966, 2
          %v4968 = vadd.f32 %v4966, %v4967
          %v4969 = vrot.slane %v4968, 1
          %v4970 = vadd.f32 %v4968, %v4969
          %v4971 = vsel %vm4636, %v4882, 0.0
          %v4972 = vrot.slane %v4971, 4
          %v4973 = vadd.f32 %v4971, %v4972
          %v4974 = vrot.slane %v4973, 2
          %v4975 = vadd.f32 %v4973, %v4974
          %v4976 = vrot.slane %v4975, 1
          %v4977 = vadd.f32 %v4975, %v4976
          %v4978 = vsel %vm4636, %v4890, 0.0
          %v4979 = vrot.slane %v4978, 4
          %v4980 = vadd.f32 %v4978, %v4979
          %v4981 = vrot.slane %v4980, 2
          %v4982 = vadd.f32 %v4980, %v4981
          %v4983 = vrot.slane %v4982, 1
          %v4984 = vadd.f32 %v4982, %v4983
          %v4985 = vsel %vm4636, %v4898, 0.0
          %v4986 = vrot.slane %v4985, 4
          %v4987 = vadd.f32 %v4985, %v4986
          %v4988 = vrot.slane %v4987, 2
          %v4989 = vadd.f32 %v4987, %v4988
          %v4990 = vrot.slane %v4989, 1
          %v4991 = vadd.f32 %v4989, %v4990
          %v4992 = vsel %vm4636, %v4897, 0.0
          %v4993 = vrot.slane %v4992, 4
          %v4994 = vadd.f32 %v4992, %v4993
          %v4995 = vrot.slane %v4994, 2
          %v4996 = vadd.f32 %v4994, %v4995
          %v4997 = vrot.slane %v4996, 1
          %v4998 = vadd.f32 %v4996, %v4997
          %v4999 = vsel %vm4636, %v4899, 0.0
          %v5000 = vrot.slane %v4999, 4
          %v5001 = vadd.f32 %v4999, %v5000
          %v5002 = vrot.slane %v5001, 2
          %v5003 = vadd.f32 %v5001, %v5002
          %v5004 = vrot.slane %v5003, 1
          %v5005 = vadd.f32 %v5003, %v5004
          %v5006 = vsel %vm4636, %v4907, 0.0
          %v5007 = vrot.slane %v5006, 4
          %v5008 = vadd.f32 %v5006, %v5007
          %v5009 = vrot.slane %v5008, 2
          %v5010 = vadd.f32 %v5008, %v5009
          %v5011 = vrot.slane %v5010, 1
          %v5012 = vadd.f32 %v5010, %v5011
          %v5013 = vsel %vm4636, %v4915, 0.0
          %v5014 = vrot.slane %v5013, 4
          %v5015 = vadd.f32 %v5013, %v5014
          %v5016 = vrot.slane %v5015, 2
          %v5017 = vadd.f32 %v5015, %v5016
          %v5018 = vrot.slane %v5017, 1
          %v5019 = vadd.f32 %v5017, %v5018
          %v5020 = vsel %vm4636, %v4914, 0.0
          %v5021 = vrot.slane %v5020, 4
          %v5022 = vadd.f32 %v5020, %v5021
          %v5023 = vrot.slane %v5022, 2
          %v5024 = vadd.f32 %v5022, %v5023
          %v5025 = vrot.slane %v5024, 1
          %v5026 = vadd.f32 %v5024, %v5025
          %v5027 = vsel %vm4636, %v4916, 0.0
          %v5028 = vrot.slane %v5027, 4
          %v5029 = vadd.f32 %v5027, %v5028
          %v5030 = vrot.slane %v5029, 2
          %v5031 = vadd.f32 %v5029, %v5030
          %v5032 = vrot.slane %v5031, 1
          %v5033 = vadd.f32 %v5031, %v5032
          %v5034 = vsel %vm4636, %v4924, 0.0
          %v5035 = vrot.slane %v5034, 4
          %v5036 = vadd.f32 %v5034, %v5035
          %v5037 = vrot.slane %v5036, 2
          %v5038 = vadd.f32 %v5036, %v5037
          %v5039 = vrot.slane %v5038, 1
          %v5040 = vadd.f32 %v5038, %v5039
          %v5041 = vsel %vm4636, %v4932, 0.0
          %v5042 = vrot.slane %v5041, 4
          %v5043 = vadd.f32 %v5041, %v5042
          %v5044 = vrot.slane %v5043, 2
          %v5045 = vadd.f32 %v5043, %v5044
          %v5046 = vrot.slane %v5045, 1
          %v5047 = vadd.f32 %v5045, %v5046
          %v5048 = vsel %vm4636, %v4931, 0.0
          %v5049 = vrot.slane %v5048, 4
          %v5050 = vadd.f32 %v5048, %v5049
          %v5051 = vrot.slane %v5050, 2
          %v5052 = vadd.f32 %v5050, %v5051
          %v5053 = vrot.slane %v5052, 1
          %v5054 = vadd.f32 %v5052, %v5053
          %v5055 = vsel %vm4636, %v4933, 0.0
          %v5056 = vrot.slane %v5055, 4
          %v5057 = vadd.f32 %v5055, %v5056
          %v5058 = vrot.slane %v5057, 2
          %v5059 = vadd.f32 %v5057, %v5058
          %v5060 = vrot.slane %v5059, 1
          %v5061 = vadd.f32 %v5059, %v5060
          %v5062 = vmul.f32 %v4956, %v4749
          %v5063 = vmul.f32 %v4963, %v4749
          %v5064 = vmul.f32 %v4970, %v4749
          %v5065 = vmul.f32 %v4977, %v4749
          %v5066 = vmul.f32 %v4984, %v4749
          %v5067 = vmul.f32 %v4991, %v4749
          %v5068 = vmul.f32 %v4998, %v4749
          %v5069 = vmul.f32 %v5005, %v4749
          %v5070 = vmul.f32 %v5012, %v4749
          %v5071 = vmul.f32 %v5019, %v4749
          %v5072 = vmul.f32 %v5026, %v4749
          %v5073 = vmul.f32 %v5033, %v4749
          %v5074 = vmul.f32 %v5040, %v4749
          %v5075 = vmul.f32 %v5047, %v4749
          %v5076 = vmul.f32 %v5054, %v4749
          %v5077 = vmul.f32 %v5061, %v4749
          %v5078 = vld [vmem:[%s423] sm:$0xff]
          %v5079 = vld [vmem:[%s423 + $0x8] sm:$0xff]
          %v5080 = vadd.f32 %v5062, 1e-05
          %v5081 = vadd.f32 %v5063, 1e-05
          %v5082 = vadd.f32 %v5064, 1e-05
          %v5083 = vadd.f32 %v5065, 1e-05
          %v5084 = vadd.f32 %v5066, 1e-05
          %v5085 = vadd.f32 %v5067, 1e-05
          %v5086 = vadd.f32 %v5068, 1e-05
          %v5087 = vadd.f32 %v5069, 1e-05
          %v5088 = vadd.f32 %v5070, 1e-05
          %v5089 = vadd.f32 %v5071, 1e-05
          %v5090 = vadd.f32 %v5072, 1e-05
          %v5091 = vadd.f32 %v5073, 1e-05
          %v5092 = vadd.f32 %v5074, 1e-05
          %v5093 = vadd.f32 %v5075, 1e-05
          %v5094 = vadd.f32 %v5076, 1e-05
          %v5095 = vadd.f32 %v5077, 1e-05
          %v5096 = vrsqrt.pop %v5080
          %v5097 = vrsqrt.pop %v5081
          %v5098 = vrsqrt.pop %v5082
          %v5099 = vrsqrt.pop %v5083
          %v5100 = vrsqrt.pop %v5084
          %v5101 = vrsqrt.pop %v5085
          %v5102 = vrsqrt.pop %v5086
          %v5103 = vrsqrt.pop %v5087
          %v5104 = vrsqrt.pop %v5088
          %v5105 = vrsqrt.pop %v5089
          %v5106 = vrsqrt.pop %v5090
          %v5107 = vrsqrt.pop %v5091
          %v5108 = vrsqrt.pop %v5092
          %v5109 = vrsqrt.pop %v5093
          %v5110 = vrsqrt.pop %v5094
          %v5111 = vrsqrt.pop %v5095
          %v5128 = vcombine.low %v5096, %v5097
          %v5129 = vcombine.low %v5098, %v5099
          %v5130 = vcombine.low %v5100, %v5101
          %v5131 = vcombine.low %v5102, %v5103
          %v5133 = vunpack.c.l.s4 1966171168
          %v5134 = vunpack.c.0.s8 %v5133
          %v5135 = vlaneseq
          %v5136 = vshrl.u32 %v5135, 7
          %v5137 = vsub.s32 %v5134, %v5136
          %v5138 = vrot.slane %v5128, %v5137
          %v5140 = vunpack.c.l.s4 1966171168
          %v5141 = vunpack.c.0.s8 %v5140
          %v5142 = vlaneseq
          %v5143 = vshrl.u32 %v5142, 7
          %v5144 = vsub.s32 %v5141, %v5143
          %v5145 = vrot.slane %v5129, %v5144
          %v5147 = vunpack.c.l.s4 1966171168
          %v5148 = vunpack.c.0.s8 %v5147
          %v5149 = vlaneseq
          %v5150 = vshrl.u32 %v5149, 7
          %v5151 = vsub.s32 %v5148, %v5150
          %v5152 = vrot.slane %v5130, %v5151
          %v5154 = vunpack.c.l.s4 1966171168
          %v5155 = vunpack.c.0.s8 %v5154
          %v5156 = vlaneseq
          %v5157 = vshrl.u32 %v5156, 7
          %v5158 = vsub.s32 %v5155, %v5157
          %v5159 = vrot.slane %v5131, %v5158
          %v5160 = vcombine.low %v5138, %v5145
          %v5161 = vcombine.low %v5152, %v5159
          %v5163 = vunpack.c.l.s4 1966171168
          %v5164 = vunpack.c.0.s8 %v5163
          %v5165 = vlaneseq
          %v5166 = vshrl.u32 %v5165, 7
          %v5167 = vsub.s32 %v5164, %v5166
          %v5168 = vrot.slane %v5160, %v5167
          %v5170 = vunpack.c.l.s4 1966171168
          %v5171 = vunpack.c.0.s8 %v5170
          %v5172 = vlaneseq
          %v5173 = vshrl.u32 %v5172, 7
          %v5174 = vsub.s32 %v5171, %v5173
          %v5175 = vrot.slane %v5161, %v5174
          %v5176 = vcombine.low %v5168, %v5175
          %v5177 = vcombine.low %v5104, %v5105
          %v5178 = vcombine.low %v5106, %v5107
          %v5179 = vcombine.low %v5108, %v5109
          %v5180 = vcombine.low %v5110, %v5111
          %v5182 = vunpack.c.l.s4 1966171168
          %v5183 = vunpack.c.0.s8 %v5182
          %v5184 = vlaneseq
          %v5185 = vshrl.u32 %v5184, 7
          %v5186 = vsub.s32 %v5183, %v5185
          %v5187 = vrot.slane %v5177, %v5186
          %v5189 = vunpack.c.l.s4 1966171168
          %v5190 = vunpack.c.0.s8 %v5189
          %v5191 = vlaneseq
          %v5192 = vshrl.u32 %v5191, 7
          %v5193 = vsub.s32 %v5190, %v5192
          %v5194 = vrot.slane %v5178, %v5193
          %v5196 = vunpack.c.l.s4 1966171168
          %v5197 = vunpack.c.0.s8 %v5196
          %v5198 = vlaneseq
          %v5199 = vshrl.u32 %v5198, 7
          %v5200 = vsub.s32 %v5197, %v5199
          %v5201 = vrot.slane %v5179, %v5200
          %v5203 = vunpack.c.l.s4 1966171168
          %v5204 = vunpack.c.0.s8 %v5203
          %v5205 = vlaneseq
          %v5206 = vshrl.u32 %v5205, 7
          %v5207 = vsub.s32 %v5204, %v5206
          %v5208 = vrot.slane %v5180, %v5207
          %v5209 = vcombine.low %v5187, %v5194
          %v5210 = vcombine.low %v5201, %v5208
          %v5212 = vunpack.c.l.s4 1966171168
          %v5213 = vunpack.c.0.s8 %v5212
          %v5214 = vlaneseq
          %v5215 = vshrl.u32 %v5214, 7
          %v5216 = vsub.s32 %v5213, %v5215
          %v5217 = vrot.slane %v5209, %v5216
          %v5219 = vunpack.c.l.s4 1966171168
          %v5220 = vunpack.c.0.s8 %v5219
          %v5221 = vlaneseq
          %v5222 = vshrl.u32 %v5221, 7
          %v5223 = vsub.s32 %v5220, %v5222
          %v5224 = vrot.slane %v5210, %v5223
          %v5225 = vcombine.low %v5217, %v5224
          %v5228 = vmul.f32 %v5078, %v5176
          %v5229 = vmul.f32 %v5079, %v5225
          %v5230 = vld [vmem:[%s432] sm:$0xff]
          %v5231 = vld [vmem:[%s432 + $0x8] sm:$0xff]
          %v5234 = vlaneseq
          %v5235 = vshrl.u32 %v5234, 7
          %v5236 = vsub.s32 0, %v5235
          %v5237 = vrot.slane %v5228, %v5236
          %v5238 = vlaneseq
          %v5239 = vshrl.u32 %v5238, 7
          %v5240 = vsub.s32 1, %v5239
          %v5241 = vrot.slane %v5228, %v5240
          %v5242 = vlaneseq
          %v5243 = vshrl.u32 %v5242, 7
          %v5244 = vsub.s32 2, %v5243
          %v5245 = vrot.slane %v5228, %v5244
          %v5246 = vlaneseq
          %v5247 = vshrl.u32 %v5246, 7
          %v5248 = vsub.s32 3, %v5247
          %v5249 = vrot.slane %v5228, %v5248
          %v5250 = vlaneseq
          %v5251 = vshrl.u32 %v5250, 7
          %v5252 = vsub.s32 4, %v5251
          %v5253 = vrot.slane %v5228, %v5252
          %v5254 = vlaneseq
          %v5255 = vshrl.u32 %v5254, 7
          %v5256 = vsub.s32 5, %v5255
          %v5257 = vrot.slane %v5228, %v5256
          %v5258 = vlaneseq
          %v5259 = vshrl.u32 %v5258, 7
          %v5260 = vsub.s32 6, %v5259
          %v5261 = vrot.slane %v5228, %v5260
          %v5262 = vlaneseq
          %v5263 = vshrl.u32 %v5262, 7
          %v5264 = vsub.s32 7, %v5263
          %v5265 = vrot.slane %v5228, %v5264
          %v5266 = vlaneseq
          %v5267 = vshrl.u32 %v5266, 7
          %v5268 = vsub.s32 0, %v5267
          %v5269 = vrot.slane %v5229, %v5268
          %v5270 = vlaneseq
          %v5271 = vshrl.u32 %v5270, 7
          %v5272 = vsub.s32 1, %v5271
          %v5273 = vrot.slane %v5229, %v5272
          %v5274 = vlaneseq
          %v5275 = vshrl.u32 %v5274, 7
          %v5276 = vsub.s32 2, %v5275
          %v5277 = vrot.slane %v5229, %v5276
          %v5278 = vlaneseq
          %v5279 = vshrl.u32 %v5278, 7
          %v5280 = vsub.s32 3, %v5279
          %v5281 = vrot.slane %v5229, %v5280
          %v5282 = vlaneseq
          %v5283 = vshrl.u32 %v5282, 7
          %v5284 = vsub.s32 4, %v5283
          %v5285 = vrot.slane %v5229, %v5284
          %v5286 = vlaneseq
          %v5287 = vshrl.u32 %v5286, 7
          %v5288 = vsub.s32 5, %v5287
          %v5289 = vrot.slane %v5229, %v5288
          %v5290 = vlaneseq
          %v5291 = vshrl.u32 %v5290, 7
          %v5292 = vsub.s32 6, %v5291
          %v5293 = vrot.slane %v5229, %v5292
          %v5294 = vlaneseq
          %v5295 = vshrl.u32 %v5294, 7
          %v5296 = vsub.s32 7, %v5295
          %v5297 = vrot.slane %v5229, %v5296
          %v5314 = vmul.f32 %v4750, %v5237
          %v5315 = vmul.f32 %v4751, %v5241
          %v5316 = vmul.f32 %v4752, %v5245
          %v5317 = vmul.f32 %v4753, %v5249
          %v5318 = vmul.f32 %v4754, %v5253
          %v5319 = vmul.f32 %v4755, %v5257
          %v5320 = vmul.f32 %v4756, %v5261
          %v5321 = vmul.f32 %v4757, %v5265
          %v5322 = vmul.f32 %v4758, %v5269
          %v5323 = vmul.f32 %v4759, %v5273
          %v5324 = vmul.f32 %v4760, %v5277
          %v5325 = vmul.f32 %v4761, %v5281
          %v5326 = vmul.f32 %v4762, %v5285
          %v5327 = vmul.f32 %v4763, %v5289
          %v5328 = vmul.f32 %v4764, %v5293
          %v5329 = vmul.f32 %v4765, %v5297
          %v5346 = vcombine.low %v5314, %v5315
          %v5347 = vcombine.low %v5316, %v5317
          %v5348 = vcombine.low %v5318, %v5319
          %v5349 = vcombine.low %v5320, %v5321
          %v5351 = vunpack.c.l.s4 1966171168
          %v5352 = vunpack.c.0.s8 %v5351
          %v5353 = vlaneseq
          %v5354 = vshrl.u32 %v5353, 7
          %v5355 = vsub.s32 %v5352, %v5354
          %v5356 = vrot.slane %v5346, %v5355
          %v5358 = vunpack.c.l.s4 1966171168
          %v5359 = vunpack.c.0.s8 %v5358
          %v5360 = vlaneseq
          %v5361 = vshrl.u32 %v5360, 7
          %v5362 = vsub.s32 %v5359, %v5361
          %v5363 = vrot.slane %v5347, %v5362
          %v5365 = vunpack.c.l.s4 1966171168
          %v5366 = vunpack.c.0.s8 %v5365
          %v5367 = vlaneseq
          %v5368 = vshrl.u32 %v5367, 7
          %v5369 = vsub.s32 %v5366, %v5368
          %v5370 = vrot.slane %v5348, %v5369
          %v5372 = vunpack.c.l.s4 1966171168
          %v5373 = vunpack.c.0.s8 %v5372
          %v5374 = vlaneseq
          %v5375 = vshrl.u32 %v5374, 7
          %v5376 = vsub.s32 %v5373, %v5375
          %v5377 = vrot.slane %v5349, %v5376
          %v5378 = vcombine.low %v5356, %v5363
          %v5379 = vcombine.low %v5370, %v5377
          %v5381 = vunpack.c.l.s4 1966171168
          %v5382 = vunpack.c.0.s8 %v5381
          %v5383 = vlaneseq
          %v5384 = vshrl.u32 %v5383, 7
          %v5385 = vsub.s32 %v5382, %v5384
          %v5386 = vrot.slane %v5378, %v5385
          %v5388 = vunpack.c.l.s4 1966171168
          %v5389 = vunpack.c.0.s8 %v5388
          %v5390 = vlaneseq
          %v5391 = vshrl.u32 %v5390, 7
          %v5392 = vsub.s32 %v5389, %v5391
          %v5393 = vrot.slane %v5379, %v5392
          %v5394 = vcombine.low %v5386, %v5393
          %v5395 = vcombine.low %v5322, %v5323
          %v5396 = vcombine.low %v5324, %v5325
          %v5397 = vcombine.low %v5326, %v5327
          %v5398 = vcombine.low %v5328, %v5329
          %v5400 = vunpack.c.l.s4 1966171168
          %v5401 = vunpack.c.0.s8 %v5400
          %v5402 = vlaneseq
          %v5403 = vshrl.u32 %v5402, 7
          %v5404 = vsub.s32 %v5401, %v5403
          %v5405 = vrot.slane %v5395, %v5404
          %v5407 = vunpack.c.l.s4 1966171168
          %v5408 = vunpack.c.0.s8 %v5407
          %v5409 = vlaneseq
          %v5410 = vshrl.u32 %v5409, 7
          %v5411 = vsub.s32 %v5408, %v5410
          %v5412 = vrot.slane %v5396, %v5411
          %v5414 = vunpack.c.l.s4 1966171168
          %v5415 = vunpack.c.0.s8 %v5414
          %v5416 = vlaneseq
          %v5417 = vshrl.u32 %v5416, 7
          %v5418 = vsub.s32 %v5415, %v5417
          %v5419 = vrot.slane %v5397, %v5418
          %v5421 = vunpack.c.l.s4 1966171168
          %v5422 = vunpack.c.0.s8 %v5421
          %v5423 = vlaneseq
          %v5424 = vshrl.u32 %v5423, 7
          %v5425 = vsub.s32 %v5422, %v5424
          %v5426 = vrot.slane %v5398, %v5425
          %v5427 = vcombine.low %v5405, %v5412
          %v5428 = vcombine.low %v5419, %v5426
          %v5430 = vunpack.c.l.s4 1966171168
          %v5431 = vunpack.c.0.s8 %v5430
          %v5432 = vlaneseq
          %v5433 = vshrl.u32 %v5432, 7
          %v5434 = vsub.s32 %v5431, %v5433
          %v5435 = vrot.slane %v5427, %v5434
          %v5437 = vunpack.c.l.s4 1966171168
          %v5438 = vunpack.c.0.s8 %v5437
          %v5439 = vlaneseq
          %v5440 = vshrl.u32 %v5439, 7
          %v5441 = vsub.s32 %v5438, %v5440
          %v5442 = vrot.slane %v5428, %v5441
          %v5443 = vcombine.low %v5435, %v5442
          %v5446 = vsub.f32 %v5230, %v5394
          %v5447 = vsub.f32 %v5231, %v5443
          %v5448 = vcombine.low %v5237, %v5241
          %v5449 = vcombine.low %v5245, %v5249
          %v5451 = vunpack.c.l.s4 1983009808
          %v5452 = vunpack.c.0.s8 %v5451
          %v5453 = vlaneseq
          %v5454 = vshrl.u32 %v5453, 7
          %v5455 = vsub.s32 %v5452, %v5454
          %v5456 = vrot.slane %v5448, %v5455
          %v5458 = vunpack.c.l.s4 1983009808
          %v5459 = vunpack.c.0.s8 %v5458
          %v5460 = vlaneseq
          %v5461 = vshrl.u32 %v5460, 7
          %v5462 = vsub.s32 %v5459, %v5461
          %v5463 = vrot.slane %v5449, %v5462
          %v5464 = vcombine.low %v5456, %v5463
          %v5465 = vcombine.low %v5253, %v5257
          %v5466 = vcombine.low %v5261, %v5265
          %v5468 = vunpack.c.l.s4 1983009808
          %v5469 = vunpack.c.0.s8 %v5468
          %v5470 = vlaneseq
          %v5471 = vshrl.u32 %v5470, 7
          %v5472 = vsub.s32 %v5469, %v5471
          %v5473 = vrot.slane %v5465, %v5472
          %v5475 = vunpack.c.l.s4 1983009808
          %v5476 = vunpack.c.0.s8 %v5475
          %v5477 = vlaneseq
          %v5478 = vshrl.u32 %v5477, 7
          %v5479 = vsub.s32 %v5476, %v5478
          %v5480 = vrot.slane %v5466, %v5479
          %v5481 = vcombine.low %v5473, %v5480
          %v5482 = vcombine.low %v5269, %v5273
          %v5483 = vcombine.low %v5277, %v5281
          %v5485 = vunpack.c.l.s4 1983009808
          %v5486 = vunpack.c.0.s8 %v5485
          %v5487 = vlaneseq
          %v5488 = vshrl.u32 %v5487, 7
          %v5489 = vsub.s32 %v5486, %v5488
          %v5490 = vrot.slane %v5482, %v5489
          %v5492 = vunpack.c.l.s4 1983009808
          %v5493 = vunpack.c.0.s8 %v5492
          %v5494 = vlaneseq
          %v5495 = vshrl.u32 %v5494, 7
          %v5496 = vsub.s32 %v5493, %v5495
          %v5497 = vrot.slane %v5483, %v5496
          %v5498 = vcombine.low %v5490, %v5497
          %v5499 = vcombine.low %v5285, %v5289
          %v5500 = vcombine.low %v5293, %v5297
          %v5502 = vunpack.c.l.s4 1983009808
          %v5503 = vunpack.c.0.s8 %v5502
          %v5504 = vlaneseq
          %v5505 = vshrl.u32 %v5504, 7
          %v5506 = vsub.s32 %v5503, %v5505
          %v5507 = vrot.slane %v5499, %v5506
          %v5509 = vunpack.c.l.s4 1983009808
          %v5510 = vunpack.c.0.s8 %v5509
          %v5511 = vlaneseq
          %v5512 = vshrl.u32 %v5511, 7
          %v5513 = vsub.s32 %v5510, %v5512
          %v5514 = vrot.slane %v5500, %v5513
          %v5515 = vcombine.low %v5507, %v5514
          %v5520 = vmul.f32 %v4544, %v5464
          %v5521 = vmul.f32 %v4545, %v5481
          %v5522 = vmul.f32 %v4546, %v5498
          %v5523 = vmul.f32 %v4547, %v5515
          %v5526 = vlaneseq
          %v5527 = vshrl.u32 %v5526, 7
          %v5528 = vsub.s32 0, %v5527
          %v5529 = vrot.slane %v5446, %v5528
          %v5530 = vlaneseq
          %v5531 = vshrl.u32 %v5530, 7
          %v5532 = vsub.s32 1, %v5531
          %v5533 = vrot.slane %v5446, %v5532
          %v5534 = vlaneseq
          %v5535 = vshrl.u32 %v5534, 7
          %v5536 = vsub.s32 2, %v5535
          %v5537 = vrot.slane %v5446, %v5536
          %v5538 = vlaneseq
          %v5539 = vshrl.u32 %v5538, 7
          %v5540 = vsub.s32 3, %v5539
          %v5541 = vrot.slane %v5446, %v5540
          %v5542 = vlaneseq
          %v5543 = vshrl.u32 %v5542, 7
          %v5544 = vsub.s32 4, %v5543
          %v5545 = vrot.slane %v5446, %v5544
          %v5546 = vlaneseq
          %v5547 = vshrl.u32 %v5546, 7
          %v5548 = vsub.s32 5, %v5547
          %v5549 = vrot.slane %v5446, %v5548
          %v5550 = vlaneseq
          %v5551 = vshrl.u32 %v5550, 7
          %v5552 = vsub.s32 6, %v5551
          %v5553 = vrot.slane %v5446, %v5552
          %v5554 = vlaneseq
          %v5555 = vshrl.u32 %v5554, 7
          %v5556 = vsub.s32 7, %v5555
          %v5557 = vrot.slane %v5446, %v5556
          %v5558 = vlaneseq
          %v5559 = vshrl.u32 %v5558, 7
          %v5560 = vsub.s32 0, %v5559
          %v5561 = vrot.slane %v5447, %v5560
          %v5562 = vlaneseq
          %v5563 = vshrl.u32 %v5562, 7
          %v5564 = vsub.s32 1, %v5563
          %v5565 = vrot.slane %v5447, %v5564
          %v5566 = vlaneseq
          %v5567 = vshrl.u32 %v5566, 7
          %v5568 = vsub.s32 2, %v5567
          %v5569 = vrot.slane %v5447, %v5568
          %v5570 = vlaneseq
          %v5571 = vshrl.u32 %v5570, 7
          %v5572 = vsub.s32 3, %v5571
          %v5573 = vrot.slane %v5447, %v5572
          %v5574 = vlaneseq
          %v5575 = vshrl.u32 %v5574, 7
          %v5576 = vsub.s32 4, %v5575
          %v5577 = vrot.slane %v5447, %v5576
          %v5578 = vlaneseq
          %v5579 = vshrl.u32 %v5578, 7
          %v5580 = vsub.s32 5, %v5579
          %v5581 = vrot.slane %v5447, %v5580
          %v5582 = vlaneseq
          %v5583 = vshrl.u32 %v5582, 7
          %v5584 = vsub.s32 6, %v5583
          %v5585 = vrot.slane %v5447, %v5584
          %v5586 = vlaneseq
          %v5587 = vshrl.u32 %v5586, 7
          %v5588 = vsub.s32 7, %v5587
          %v5589 = vrot.slane %v5447, %v5588
          %v5590 = vcombine.low %v5529, %v5533
          %v5591 = vcombine.low %v5537, %v5541
          %v5593 = vunpack.c.l.s4 1983009808
          %v5594 = vunpack.c.0.s8 %v5593
          %v5595 = vlaneseq
          %v5596 = vshrl.u32 %v5595, 7
          %v5597 = vsub.s32 %v5594, %v5596
          %v5598 = vrot.slane %v5590, %v5597
          %v5600 = vunpack.c.l.s4 1983009808
          %v5601 = vunpack.c.0.s8 %v5600
          %v5602 = vlaneseq
          %v5603 = vshrl.u32 %v5602, 7
          %v5604 = vsub.s32 %v5601, %v5603
          %v5605 = vrot.slane %v5591, %v5604
          %v5606 = vcombine.low %v5598, %v5605
          %v5607 = vcombine.low %v5545, %v5549
          %v5608 = vcombine.low %v5553, %v5557
          %v5610 = vunpack.c.l.s4 1983009808
          %v5611 = vunpack.c.0.s8 %v5610
          %v5612 = vlaneseq
          %v5613 = vshrl.u32 %v5612, 7
          %v5614 = vsub.s32 %v5611, %v5613
          %v5615 = vrot.slane %v5607, %v5614
          %v5617 = vunpack.c.l.s4 1983009808
          %v5618 = vunpack.c.0.s8 %v5617
          %v5619 = vlaneseq
          %v5620 = vshrl.u32 %v5619, 7
          %v5621 = vsub.s32 %v5618, %v5620
          %v5622 = vrot.slane %v5608, %v5621
          %v5623 = vcombine.low %v5615, %v5622
          %v5624 = vcombine.low %v5561, %v5565
          %v5625 = vcombine.low %v5569, %v5573
          %v5627 = vunpack.c.l.s4 1983009808
          %v5628 = vunpack.c.0.s8 %v5627
          %v5629 = vlaneseq
          %v5630 = vshrl.u32 %v5629, 7
          %v5631 = vsub.s32 %v5628, %v5630
          %v5632 = vrot.slane %v5624, %v5631
          %v5634 = vunpack.c.l.s4 1983009808
          %v5635 = vunpack.c.0.s8 %v5634
          %v5636 = vlaneseq
          %v5637 = vshrl.u32 %v5636, 7
          %v5638 = vsub.s32 %v5635, %v5637
          %v5639 = vrot.slane %v5625, %v5638
          %v5640 = vcombine.low %v5632, %v5639
          %v5641 = vcombine.low %v5577, %v5581
          %v5642 = vcombine.low %v5585, %v5589
          %v5644 = vunpack.c.l.s4 1983009808
          %v5645 = vunpack.c.0.s8 %v5644
          %v5646 = vlaneseq
          %v5647 = vshrl.u32 %v5646, 7
          %v5648 = vsub.s32 %v5645, %v5647
          %v5649 = vrot.slane %v5641, %v5648
          %v5651 = vunpack.c.l.s4 1983009808
          %v5652 = vunpack.c.0.s8 %v5651
          %v5653 = vlaneseq
          %v5654 = vshrl.u32 %v5653, 7
          %v5655 = vsub.s32 %v5652, %v5654
          %v5656 = vrot.slane %v5642, %v5655
          %v5657 = vcombine.low %v5649, %v5656
          %v5662 = vadd.f32 %v5520, %v5606
          %v5663 = vadd.f32 %v5521, %v5623
          %v5664 = vadd.f32 %v5522, %v5640
          %v5665 = vadd.f32 %v5523, %v5657
          %v5666 = vmax.f32 %v5662, 0.0
          %v5667 = vmax.f32 %v5663, 0.0
          %v5668 = vmax.f32 %v5664, 0.0
          %v5669 = vmax.f32 %v5665, 0.0
          %v5674 = vcombine.high %v5666, %v5666
          %v5676 = vunpack.c.l.s4 1983009808
          %v5677 = vunpack.c.0.s8 %v5676
          %v5678 = vlaneseq
          %v5679 = vshrl.u32 %v5678, 7
          %v5680 = vsub.s32 %v5677, %v5679
          %v5681 = vrot.slane %v5666, %v5680
          %v5683 = vunpack.c.l.s4 1983009808
          %v5684 = vunpack.c.0.s8 %v5683
          %v5685 = vlaneseq
          %v5686 = vshrl.u32 %v5685, 7
          %v5687 = vsub.s32 %v5684, %v5686
          %v5688 = vrot.slane %v5674, %v5687
          %v5689 = vcombine.high %v5681, %v5681
          %v5690 = vcombine.high %v5688, %v5688
          %v5691 = vcombine.high %v5667, %v5667
          %v5693 = vunpack.c.l.s4 1983009808
          %v5694 = vunpack.c.0.s8 %v5693
          %v5695 = vlaneseq
          %v5696 = vshrl.u32 %v5695, 7
          %v5697 = vsub.s32 %v5694, %v5696
          %v5698 = vrot.slane %v5667, %v5697
          %v5700 = vunpack.c.l.s4 1983009808
          %v5701 = vunpack.c.0.s8 %v5700
          %v5702 = vlaneseq
          %v5703 = vshrl.u32 %v5702, 7
          %v5704 = vsub.s32 %v5701, %v5703
          %v5705 = vrot.slane %v5691, %v5704
          %v5706 = vcombine.high %v5698, %v5698
          %v5707 = vcombine.high %v5705, %v5705
          %v5708 = vcombine.high %v5668, %v5668
          %v5710 = vunpack.c.l.s4 1983009808
          %v5711 = vunpack.c.0.s8 %v5710
          %v5712 = vlaneseq
          %v5713 = vshrl.u32 %v5712, 7
          %v5714 = vsub.s32 %v5711, %v5713
          %v5715 = vrot.slane %v5668, %v5714
          %v5717 = vunpack.c.l.s4 1983009808
          %v5718 = vunpack.c.0.s8 %v5717
          %v5719 = vlaneseq
          %v5720 = vshrl.u32 %v5719, 7
          %v5721 = vsub.s32 %v5718, %v5720
          %v5722 = vrot.slane %v5708, %v5721
          %v5723 = vcombine.high %v5715, %v5715
          %v5724 = vcombine.high %v5722, %v5722
          %v5725 = vcombine.high %v5669, %v5669
          %v5727 = vunpack.c.l.s4 1983009808
          %v5728 = vunpack.c.0.s8 %v5727
          %v5729 = vlaneseq
          %v5730 = vshrl.u32 %v5729, 7
          %v5731 = vsub.s32 %v5728, %v5730
          %v5732 = vrot.slane %v5669, %v5731
          %v5734 = vunpack.c.l.s4 1983009808
          %v5735 = vunpack.c.0.s8 %v5734
          %v5736 = vlaneseq
          %v5737 = vshrl.u32 %v5736, 7
          %v5738 = vsub.s32 %v5735, %v5737
          %v5739 = vrot.slane %v5725, %v5738
          %v5740 = vcombine.high %v5732, %v5732
          %v5741 = vcombine.high %v5739, %v5739
          %v5758 = vpack.c.bf16 %v5681, %v5681
          %v5759 = vpack.c.bf16 %v5689, %v5689
          %v5760 = vpack.c.bf16 %v5688, %v5688
          %v5761 = vpack.c.bf16 %v5690, %v5690
          %v5762 = vpack.c.bf16 %v5698, %v5698
          %v5763 = vpack.c.bf16 %v5706, %v5706
          %v5764 = vpack.c.bf16 %v5705, %v5705
          %v5765 = vpack.c.bf16 %v5707, %v5707
          %v5766 = vpack.c.bf16 %v5715, %v5715
          %v5767 = vpack.c.bf16 %v5723, %v5723
          %v5768 = vpack.c.bf16 %v5722, %v5722
          %v5769 = vpack.c.bf16 %v5724, %v5724
          %v5770 = vpack.c.bf16 %v5732, %v5732
          %v5771 = vpack.c.bf16 %v5740, %v5740
          %v5772 = vpack.c.bf16 %v5739, %v5739
          %v5773 = vpack.c.bf16 %v5741, %v5741
          %v5774 = vld [vmem:[%s441] sm:$0xf]
          %v5775 = vld [vmem:[%s441 + $0x4] sm:$0xf]
          %v5776 = vld [vmem:[%s441 + $0x8] sm:$0xf]
          %v5777 = vld [vmem:[%s441 + $0xc] sm:$0xf]
          %v5778 = vld [vmem:[%s441 + $0x10] sm:$0xf]
          %v5779 = vld [vmem:[%s441 + $0x14] sm:$0xf]
          %v5780 = vld [vmem:[%s441 + $0x18] sm:$0xf]
          %v5781 = vld [vmem:[%s441 + $0x1c] sm:$0xf]
          %v5782 = vld [vmem:[%s441 + $0x20] sm:$0xf]
          %v5783 = vld [vmem:[%s441 + $0x24] sm:$0xf]
          %v5784 = vld [vmem:[%s441 + $0x28] sm:$0xf]
          %v5785 = vld [vmem:[%s441 + $0x2c] sm:$0xf]
          %v5786 = vld [vmem:[%s441 + $0x30] sm:$0xf]
          %v5787 = vld [vmem:[%s441 + $0x34] sm:$0xf]
          %v5788 = vld [vmem:[%s441 + $0x38] sm:$0xf]
          %v5789 = vld [vmem:[%s441 + $0x3c] sm:$0xf]
          %v5790 = vld [vmem:[%s441 + $0x40] sm:$0xf]
          %v5791 = vld [vmem:[%s441 + $0x44] sm:$0xf]
          %v5792 = vld [vmem:[%s441 + $0x48] sm:$0xf]
          %v5793 = vld [vmem:[%s441 + $0x4c] sm:$0xf]
          %v5794 = vld [vmem:[%s441 + $0x50] sm:$0xf]
          %v5795 = vld [vmem:[%s441 + $0x54] sm:$0xf]
          %v5796 = vld [vmem:[%s441 + $0x58] sm:$0xf]
          %v5797 = vld [vmem:[%s441 + $0x5c] sm:$0xf]
          %v5798 = vld [vmem:[%s441 + $0x60] sm:$0xf]
          %v5799 = vld [vmem:[%s441 + $0x64] sm:$0xf]
          %v5800 = vld [vmem:[%s441 + $0x68] sm:$0xf]
          %v5801 = vld [vmem:[%s441 + $0x6c] sm:$0xf]
          %v5802 = vld [vmem:[%s441 + $0x70] sm:$0xf]
          %v5803 = vld [vmem:[%s441 + $0x74] sm:$0xf]
          %v5804 = vld [vmem:[%s441 + $0x78] sm:$0xf]
          %v5805 = vld [vmem:[%s441 + $0x7c] sm:$0xf]
          %v5806 = vld [vmem:[%s441 + $0x80] sm:$0xf]
          %v5807 = vld [vmem:[%s441 + $0x84] sm:$0xf]
          %v5808 = vld [vmem:[%s441 + $0x88] sm:$0xf]
          %v5809 = vld [vmem:[%s441 + $0x8c] sm:$0xf]
          %v5810 = vld [vmem:[%s441 + $0x90] sm:$0xf]
          %v5811 = vld [vmem:[%s441 + $0x94] sm:$0xf]
          %v5812 = vld [vmem:[%s441 + $0x98] sm:$0xf]
          %v5813 = vld [vmem:[%s441 + $0x9c] sm:$0xf]
          %v5814 = vld [vmem:[%s441 + $0xa0] sm:$0xf]
          %v5815 = vld [vmem:[%s441 + $0xa4] sm:$0xf]
          %v5816 = vld [vmem:[%s441 + $0xa8] sm:$0xf]
          %v5817 = vld [vmem:[%s441 + $0xac] sm:$0xf]
          %v5818 = vld [vmem:[%s441 + $0xb0] sm:$0xf]
          %v5819 = vld [vmem:[%s441 + $0xb4] sm:$0xf]
          %v5820 = vld [vmem:[%s441 + $0xb8] sm:$0xf]
          %v5821 = vld [vmem:[%s441 + $0xbc] sm:$0xf]
          %v5822 = vld [vmem:[%s441 + $0xc0] sm:$0xf]
          %v5823 = vld [vmem:[%s441 + $0xc4] sm:$0xf]
          %v5824 = vld [vmem:[%s441 + $0xc8] sm:$0xf]
          %v5825 = vld [vmem:[%s441 + $0xcc] sm:$0xf]
          %v5826 = vld [vmem:[%s441 + $0xd0] sm:$0xf]
          %v5827 = vld [vmem:[%s441 + $0xd4] sm:$0xf]
          %v5828 = vld [vmem:[%s441 + $0xd8] sm:$0xf]
          %v5829 = vld [vmem:[%s441 + $0xdc] sm:$0xf]
          %v5830 = vld [vmem:[%s441 + $0xe0] sm:$0xf]
          %v5831 = vld [vmem:[%s441 + $0xe4] sm:$0xf]
          %v5832 = vld [vmem:[%s441 + $0xe8] sm:$0xf]
          %v5833 = vld [vmem:[%s441 + $0xec] sm:$0xf]
          %v5834 = vld [vmem:[%s441 + $0xf0] sm:$0xf]
          %v5835 = vld [vmem:[%s441 + $0xf4] sm:$0xf]
          %v5836 = vld [vmem:[%s441 + $0xf8] sm:$0xf]
          %v5837 = vld [vmem:[%s441 + $0xfc] sm:$0xf]
          %v5838 = vld [vmem:[%s441 + $0x100] sm:$0xf]
          %v5839 = vld [vmem:[%s441 + $0x104] sm:$0xf]
          %v5840 = vld [vmem:[%s441 + $0x108] sm:$0xf]
          %v5841 = vld [vmem:[%s441 + $0x10c] sm:$0xf]
          %v5842 = vld [vmem:[%s441 + $0x110] sm:$0xf]
          %v5843 = vld [vmem:[%s441 + $0x114] sm:$0xf]
          %v5844 = vld [vmem:[%s441 + $0x118] sm:$0xf]
          %v5845 = vld [vmem:[%s441 + $0x11c] sm:$0xf]
          %v5846 = vld [vmem:[%s441 + $0x120] sm:$0xf]
          %v5847 = vld [vmem:[%s441 + $0x124] sm:$0xf]
          %v5848 = vld [vmem:[%s441 + $0x128] sm:$0xf]
          %v5849 = vld [vmem:[%s441 + $0x12c] sm:$0xf]
          %v5850 = vld [vmem:[%s441 + $0x130] sm:$0xf]
          %v5851 = vld [vmem:[%s441 + $0x134] sm:$0xf]
          %v5852 = vld [vmem:[%s441 + $0x138] sm:$0xf]
          %v5853 = vld [vmem:[%s441 + $0x13c] sm:$0xf]
          %v5854 = vld [vmem:[%s441 + $0x140] sm:$0xf]
          %v5855 = vld [vmem:[%s441 + $0x144] sm:$0xf]
          %v5856 = vld [vmem:[%s441 + $0x148] sm:$0xf]
          %v5857 = vld [vmem:[%s441 + $0x14c] sm:$0xf]
          %v5858 = vld [vmem:[%s441 + $0x150] sm:$0xf]
          %v5859 = vld [vmem:[%s441 + $0x154] sm:$0xf]
          %v5860 = vld [vmem:[%s441 + $0x158] sm:$0xf]
          %v5861 = vld [vmem:[%s441 + $0x15c] sm:$0xf]
          %v5862 = vld [vmem:[%s441 + $0x160] sm:$0xf]
          %v5863 = vld [vmem:[%s441 + $0x164] sm:$0xf]
          %v5864 = vld [vmem:[%s441 + $0x168] sm:$0xf]
          %v5865 = vld [vmem:[%s441 + $0x16c] sm:$0xf]
          %v5866 = vld [vmem:[%s441 + $0x170] sm:$0xf]
          %v5867 = vld [vmem:[%s441 + $0x174] sm:$0xf]
          %v5868 = vld [vmem:[%s441 + $0x178] sm:$0xf]
          %v5869 = vld [vmem:[%s441 + $0x17c] sm:$0xf]
          %v5870 = vld [vmem:[%s441 + $0x180] sm:$0xf]
          %v5871 = vld [vmem:[%s441 + $0x184] sm:$0xf]
          %v5872 = vld [vmem:[%s441 + $0x188] sm:$0xf]
          %v5873 = vld [vmem:[%s441 + $0x18c] sm:$0xf]
          %v5874 = vld [vmem:[%s441 + $0x190] sm:$0xf]
          %v5875 = vld [vmem:[%s441 + $0x194] sm:$0xf]
          %v5876 = vld [vmem:[%s441 + $0x198] sm:$0xf]
          %v5877 = vld [vmem:[%s441 + $0x19c] sm:$0xf]
          %v5878 = vld [vmem:[%s441 + $0x1a0] sm:$0xf]
          %v5879 = vld [vmem:[%s441 + $0x1a4] sm:$0xf]
          %v5880 = vld [vmem:[%s441 + $0x1a8] sm:$0xf]
          %v5881 = vld [vmem:[%s441 + $0x1ac] sm:$0xf]
          %v5882 = vld [vmem:[%s441 + $0x1b0] sm:$0xf]
          %v5883 = vld [vmem:[%s441 + $0x1b4] sm:$0xf]
          %v5884 = vld [vmem:[%s441 + $0x1b8] sm:$0xf]
          %v5885 = vld [vmem:[%s441 + $0x1bc] sm:$0xf]
          %v5886 = vld [vmem:[%s441 + $0x1c0] sm:$0xf]
          %v5887 = vld [vmem:[%s441 + $0x1c4] sm:$0xf]
          %v5888 = vld [vmem:[%s441 + $0x1c8] sm:$0xf]
          %v5889 = vld [vmem:[%s441 + $0x1cc] sm:$0xf]
          %v5890 = vld [vmem:[%s441 + $0x1d0] sm:$0xf]
          %v5891 = vld [vmem:[%s441 + $0x1d4] sm:$0xf]
          %v5892 = vld [vmem:[%s441 + $0x1d8] sm:$0xf]
          %v5893 = vld [vmem:[%s441 + $0x1dc] sm:$0xf]
          %v5894 = vld [vmem:[%s441 + $0x1e0] sm:$0xf]
          %v5895 = vld [vmem:[%s441 + $0x1e4] sm:$0xf]
          %v5896 = vld [vmem:[%s441 + $0x1e8] sm:$0xf]
          %v5897 = vld [vmem:[%s441 + $0x1ec] sm:$0xf]
          %v5898 = vld [vmem:[%s441 + $0x1f0] sm:$0xf]
          %v5899 = vld [vmem:[%s441 + $0x1f4] sm:$0xf]
          %v5900 = vld [vmem:[%s441 + $0x1f8] sm:$0xf]
          %v5901 = vld [vmem:[%s441 + $0x1fc] sm:$0xf]
          %v5902 = vld [vmem:[%s441 + $0x200] sm:$0xf]
          %v5903 = vld [vmem:[%s441 + $0x204] sm:$0xf]
          %v5904 = vld [vmem:[%s441 + $0x208] sm:$0xf]
          %v5905 = vld [vmem:[%s441 + $0x20c] sm:$0xf]
          %v5906 = vld [vmem:[%s441 + $0x210] sm:$0xf]
          %v5907 = vld [vmem:[%s441 + $0x214] sm:$0xf]
          %v5908 = vld [vmem:[%s441 + $0x218] sm:$0xf]
          %v5909 = vld [vmem:[%s441 + $0x21c] sm:$0xf]
          %v5910 = vld [vmem:[%s441 + $0x220] sm:$0xf]
          %v5911 = vld [vmem:[%s441 + $0x224] sm:$0xf]
          %v5912 = vld [vmem:[%s441 + $0x228] sm:$0xf]
          %v5913 = vld [vmem:[%s441 + $0x22c] sm:$0xf]
          %v5914 = vld [vmem:[%s441 + $0x230] sm:$0xf]
          %v5915 = vld [vmem:[%s441 + $0x234] sm:$0xf]
          %v5916 = vld [vmem:[%s441 + $0x238] sm:$0xf]
          %v5917 = vld [vmem:[%s441 + $0x23c] sm:$0xf]
          %v5918 = vld [vmem:[%s441 + $0x240] sm:$0xf]
          %v5919 = vld [vmem:[%s441 + $0x244] sm:$0xf]
          %v5920 = vld [vmem:[%s441 + $0x248] sm:$0xf]
          %v5921 = vld [vmem:[%s441 + $0x24c] sm:$0xf]
          %v5922 = vld [vmem:[%s441 + $0x250] sm:$0xf]
          %v5923 = vld [vmem:[%s441 + $0x254] sm:$0xf]
          %v5924 = vld [vmem:[%s441 + $0x258] sm:$0xf]
          %v5925 = vld [vmem:[%s441 + $0x25c] sm:$0xf]
          %v5926 = vld [vmem:[%s441 + $0x260] sm:$0xf]
          %v5927 = vld [vmem:[%s441 + $0x264] sm:$0xf]
          %v5928 = vld [vmem:[%s441 + $0x268] sm:$0xf]
          %v5929 = vld [vmem:[%s441 + $0x26c] sm:$0xf]
          %v5930 = vld [vmem:[%s441 + $0x270] sm:$0xf]
          %v5931 = vld [vmem:[%s441 + $0x274] sm:$0xf]
          %v5932 = vld [vmem:[%s441 + $0x278] sm:$0xf]
          %v5933 = vld [vmem:[%s441 + $0x27c] sm:$0xf]
          %v5934 = vld [vmem:[%s441 + $0x280] sm:$0xf]
          %v5935 = vld [vmem:[%s441 + $0x284] sm:$0xf]
          %v5936 = vld [vmem:[%s441 + $0x288] sm:$0xf]
          %v5937 = vld [vmem:[%s441 + $0x28c] sm:$0xf]
          %v5938 = vld [vmem:[%s441 + $0x290] sm:$0xf]
          %v5939 = vld [vmem:[%s441 + $0x294] sm:$0xf]
          %v5940 = vld [vmem:[%s441 + $0x298] sm:$0xf]
          %v5941 = vld [vmem:[%s441 + $0x29c] sm:$0xf]
          %v5942 = vld [vmem:[%s441 + $0x2a0] sm:$0xf]
          %v5943 = vld [vmem:[%s441 + $0x2a4] sm:$0xf]
          %v5944 = vld [vmem:[%s441 + $0x2a8] sm:$0xf]
          %v5945 = vld [vmem:[%s441 + $0x2ac] sm:$0xf]
          %v5946 = vld [vmem:[%s441 + $0x2b0] sm:$0xf]
          %v5947 = vld [vmem:[%s441 + $0x2b4] sm:$0xf]
          %v5948 = vld [vmem:[%s441 + $0x2b8] sm:$0xf]
          %v5949 = vld [vmem:[%s441 + $0x2bc] sm:$0xf]
          %v5950 = vld [vmem:[%s441 + $0x2c0] sm:$0xf]
          %v5951 = vld [vmem:[%s441 + $0x2c4] sm:$0xf]
          %v5952 = vld [vmem:[%s441 + $0x2c8] sm:$0xf]
          %v5953 = vld [vmem:[%s441 + $0x2cc] sm:$0xf]
          %v5954 = vld [vmem:[%s441 + $0x2d0] sm:$0xf]
          %v5955 = vld [vmem:[%s441 + $0x2d4] sm:$0xf]
          %v5956 = vld [vmem:[%s441 + $0x2d8] sm:$0xf]
          %v5957 = vld [vmem:[%s441 + $0x2dc] sm:$0xf]
          %v5958 = vld [vmem:[%s441 + $0x2e0] sm:$0xf]
          %v5959 = vld [vmem:[%s441 + $0x2e4] sm:$0xf]
          %v5960 = vld [vmem:[%s441 + $0x2e8] sm:$0xf]
          %v5961 = vld [vmem:[%s441 + $0x2ec] sm:$0xf]
          %v5962 = vld [vmem:[%s441 + $0x2f0] sm:$0xf]
          %v5963 = vld [vmem:[%s441 + $0x2f4] sm:$0xf]
          %v5964 = vld [vmem:[%s441 + $0x2f8] sm:$0xf]
          %v5965 = vld [vmem:[%s441 + $0x2fc] sm:$0xf]
          %v5966 = vld [vmem:[%s441 + $0x300] sm:$0xf]
          %v5967 = vld [vmem:[%s441 + $0x304] sm:$0xf]
          %v5968 = vld [vmem:[%s441 + $0x308] sm:$0xf]
          %v5969 = vld [vmem:[%s441 + $0x30c] sm:$0xf]
          %v5970 = vld [vmem:[%s441 + $0x310] sm:$0xf]
          %v5971 = vld [vmem:[%s441 + $0x314] sm:$0xf]
          %v5972 = vld [vmem:[%s441 + $0x318] sm:$0xf]
          %v5973 = vld [vmem:[%s441 + $0x31c] sm:$0xf]
          %v5974 = vld [vmem:[%s441 + $0x320] sm:$0xf]
          %v5975 = vld [vmem:[%s441 + $0x324] sm:$0xf]
          %v5976 = vld [vmem:[%s441 + $0x328] sm:$0xf]
          %v5977 = vld [vmem:[%s441 + $0x32c] sm:$0xf]
          %v5978 = vld [vmem:[%s441 + $0x330] sm:$0xf]
          %v5979 = vld [vmem:[%s441 + $0x334] sm:$0xf]
          %v5980 = vld [vmem:[%s441 + $0x338] sm:$0xf]
          %v5981 = vld [vmem:[%s441 + $0x33c] sm:$0xf]
          %v5982 = vld [vmem:[%s441 + $0x340] sm:$0xf]
          %v5983 = vld [vmem:[%s441 + $0x344] sm:$0xf]
          %v5984 = vld [vmem:[%s441 + $0x348] sm:$0xf]
          %v5985 = vld [vmem:[%s441 + $0x34c] sm:$0xf]
          %v5986 = vld [vmem:[%s441 + $0x350] sm:$0xf]
          %v5987 = vld [vmem:[%s441 + $0x354] sm:$0xf]
          %v5988 = vld [vmem:[%s441 + $0x358] sm:$0xf]
          %v5989 = vld [vmem:[%s441 + $0x35c] sm:$0xf]
          %v5990 = vld [vmem:[%s441 + $0x360] sm:$0xf]
          %v5991 = vld [vmem:[%s441 + $0x364] sm:$0xf]
          %v5992 = vld [vmem:[%s441 + $0x368] sm:$0xf]
          %v5993 = vld [vmem:[%s441 + $0x36c] sm:$0xf]
          %v5994 = vld [vmem:[%s441 + $0x370] sm:$0xf]
          %v5995 = vld [vmem:[%s441 + $0x374] sm:$0xf]
          %v5996 = vld [vmem:[%s441 + $0x378] sm:$0xf]
          %v5997 = vld [vmem:[%s441 + $0x37c] sm:$0xf]
          %v5998 = vld [vmem:[%s441 + $0x380] sm:$0xf]
          %v5999 = vld [vmem:[%s441 + $0x384] sm:$0xf]
          %v6000 = vld [vmem:[%s441 + $0x388] sm:$0xf]
          %v6001 = vld [vmem:[%s441 + $0x38c] sm:$0xf]
          %v6002 = vld [vmem:[%s441 + $0x390] sm:$0xf]
          %v6003 = vld [vmem:[%s441 + $0x394] sm:$0xf]
          %v6004 = vld [vmem:[%s441 + $0x398] sm:$0xf]
          %v6005 = vld [vmem:[%s441 + $0x39c] sm:$0xf]
          %v6006 = vld [vmem:[%s441 + $0x3a0] sm:$0xf]
          %v6007 = vld [vmem:[%s441 + $0x3a4] sm:$0xf]
          %v6008 = vld [vmem:[%s441 + $0x3a8] sm:$0xf]
          %v6009 = vld [vmem:[%s441 + $0x3ac] sm:$0xf]
          %v6010 = vld [vmem:[%s441 + $0x3b0] sm:$0xf]
          %v6011 = vld [vmem:[%s441 + $0x3b4] sm:$0xf]
          %v6012 = vld [vmem:[%s441 + $0x3b8] sm:$0xf]
          %v6013 = vld [vmem:[%s441 + $0x3bc] sm:$0xf]
          %v6014 = vld [vmem:[%s441 + $0x3c0] sm:$0xf]
          %v6015 = vld [vmem:[%s441 + $0x3c4] sm:$0xf]
          %v6016 = vld [vmem:[%s441 + $0x3c8] sm:$0xf]
          %v6017 = vld [vmem:[%s441 + $0x3cc] sm:$0xf]
          %v6018 = vld [vmem:[%s441 + $0x3d0] sm:$0xf]
          %v6019 = vld [vmem:[%s441 + $0x3d4] sm:$0xf]
          %v6020 = vld [vmem:[%s441 + $0x3d8] sm:$0xf]
          %v6021 = vld [vmem:[%s441 + $0x3dc] sm:$0xf]
          %v6022 = vld [vmem:[%s441 + $0x3e0] sm:$0xf]
          %v6023 = vld [vmem:[%s441 + $0x3e4] sm:$0xf]
          %v6024 = vld [vmem:[%s441 + $0x3e8] sm:$0xf]
          %v6025 = vld [vmem:[%s441 + $0x3ec] sm:$0xf]
          %v6026 = vld [vmem:[%s441 + $0x3f0] sm:$0xf]
          %v6027 = vld [vmem:[%s441 + $0x3f4] sm:$0xf]
          %v6028 = vld [vmem:[%s441 + $0x3f8] sm:$0xf]
          %v6029 = vld [vmem:[%s441 + $0x3fc] sm:$0xf]
          %v6030 = vld [vmem:[%s449] sm:$0x1]
          %v6032 = vlaneseq
          %v6033 = vshrl.u32 %v6032, 7
          %v6034 = vsub.s32 0, %v6033
          %v6035 = vrot.slane %v6030, %v6034
          %v6293 = vunpack.c.l.b16 %v5774
          %v6294 = vunpack.c.l.b16 %v5775
          %v6295 = vunpack.c.l.b16 %v5776
          %v6296 = vunpack.c.l.b16 %v5777
          %v6297 = vunpack.c.l.b16 %v5778
          %v6298 = vunpack.c.l.b16 %v5779
          %v6299 = vunpack.c.l.b16 %v5780
          %v6300 = vunpack.c.l.b16 %v5781
          %v6301 = vunpack.c.l.b16 %v5782
          %v6302 = vunpack.c.l.b16 %v5783
          %v6303 = vunpack.c.l.b16 %v5784
          %v6304 = vunpack.c.l.b16 %v5785
          %v6305 = vunpack.c.l.b16 %v5786
          %v6306 = vunpack.c.l.b16 %v5787
          %v6307 = vunpack.c.l.b16 %v5788
          %v6308 = vunpack.c.l.b16 %v5789
          %v6309 = vunpack.c.l.b16 %v5790
          %v6310 = vunpack.c.l.b16 %v5791
          %v6311 = vunpack.c.l.b16 %v5792
          %v6312 = vunpack.c.l.b16 %v5793
          %v6313 = vunpack.c.l.b16 %v5794
          %v6314 = vunpack.c.l.b16 %v5795
          %v6315 = vunpack.c.l.b16 %v5796
          %v6316 = vunpack.c.l.b16 %v5797
          %v6317 = vunpack.c.l.b16 %v5798
          %v6318 = vunpack.c.l.b16 %v5799
          %v6319 = vunpack.c.l.b16 %v5800
          %v6320 = vunpack.c.l.b16 %v5801
          %v6321 = vunpack.c.l.b16 %v5802
          %v6322 = vunpack.c.l.b16 %v5803
          %v6323 = vunpack.c.l.b16 %v5804
          %v6324 = vunpack.c.l.b16 %v5805
          %v6325 = vunpack.c.l.b16 %v5806
          %v6326 = vunpack.c.l.b16 %v5807
          %v6327 = vunpack.c.l.b16 %v5808
          %v6328 = vunpack.c.l.b16 %v5809
          %v6329 = vunpack.c.l.b16 %v5810
          %v6330 = vunpack.c.l.b16 %v5811
          %v6331 = vunpack.c.l.b16 %v5812
          %v6332 = vunpack.c.l.b16 %v5813
          %v6333 = vunpack.c.l.b16 %v5814
          %v6334 = vunpack.c.l.b16 %v5815
          %v6335 = vunpack.c.l.b16 %v5816
          %v6336 = vunpack.c.l.b16 %v5817
          %v6337 = vunpack.c.l.b16 %v5818
          %v6338 = vunpack.c.l.b16 %v5819
          %v6339 = vunpack.c.l.b16 %v5820
          %v6340 = vunpack.c.l.b16 %v5821
          %v6341 = vunpack.c.l.b16 %v5822
          %v6342 = vunpack.c.l.b16 %v5823
          %v6343 = vunpack.c.l.b16 %v5824
          %v6344 = vunpack.c.l.b16 %v5825
          %v6345 = vunpack.c.l.b16 %v5826
          %v6346 = vunpack.c.l.b16 %v5827
          %v6347 = vunpack.c.l.b16 %v5828
          %v6348 = vunpack.c.l.b16 %v5829
          %v6349 = vunpack.c.l.b16 %v5830
          %v6350 = vunpack.c.l.b16 %v5831
          %v6351 = vunpack.c.l.b16 %v5832
          %v6352 = vunpack.c.l.b16 %v5833
          %v6353 = vunpack.c.l.b16 %v5834
          %v6354 = vunpack.c.l.b16 %v5835
          %v6355 = vunpack.c.l.b16 %v5836
          %v6356 = vunpack.c.l.b16 %v5837
          %v6357 = vunpack.c.l.b16 %v5838
          %v6358 = vunpack.c.l.b16 %v5839
          %v6359 = vunpack.c.l.b16 %v5840
          %v6360 = vunpack.c.l.b16 %v5841
          %v6361 = vunpack.c.l.b16 %v5842
          %v6362 = vunpack.c.l.b16 %v5843
          %v6363 = vunpack.c.l.b16 %v5844
          %v6364 = vunpack.c.l.b16 %v5845
          %v6365 = vunpack.c.l.b16 %v5846
          %v6366 = vunpack.c.l.b16 %v5847
          %v6367 = vunpack.c.l.b16 %v5848
          %v6368 = vunpack.c.l.b16 %v5849
          %v6369 = vunpack.c.l.b16 %v5850
          %v6370 = vunpack.c.l.b16 %v5851
          %v6371 = vunpack.c.l.b16 %v5852
          %v6372 = vunpack.c.l.b16 %v5853
          %v6373 = vunpack.c.l.b16 %v5854
          %v6374 = vunpack.c.l.b16 %v5855
          %v6375 = vunpack.c.l.b16 %v5856
          %v6376 = vunpack.c.l.b16 %v5857
          %v6377 = vunpack.c.l.b16 %v5858
          %v6378 = vunpack.c.l.b16 %v5859
          %v6379 = vunpack.c.l.b16 %v5860
          %v6380 = vunpack.c.l.b16 %v5861
          %v6381 = vunpack.c.l.b16 %v5862
          %v6382 = vunpack.c.l.b16 %v5863
          %v6383 = vunpack.c.l.b16 %v5864
          %v6384 = vunpack.c.l.b16 %v5865
          %v6385 = vunpack.c.l.b16 %v5866
          %v6386 = vunpack.c.l.b16 %v5867
          %v6387 = vunpack.c.l.b16 %v5868
          %v6388 = vunpack.c.l.b16 %v5869
          %v6389 = vunpack.c.l.b16 %v5870
          %v6390 = vunpack.c.l.b16 %v5871
          %v6391 = vunpack.c.l.b16 %v5872
          %v6392 = vunpack.c.l.b16 %v5873
          %v6393 = vunpack.c.l.b16 %v5874
          %v6394 = vunpack.c.l.b16 %v5875
          %v6395 = vunpack.c.l.b16 %v5876
          %v6396 = vunpack.c.l.b16 %v5877
          %v6397 = vunpack.c.l.b16 %v5878
          %v6398 = vunpack.c.l.b16 %v5879
          %v6399 = vunpack.c.l.b16 %v5880
          %v6400 = vunpack.c.l.b16 %v5881
          %v6401 = vunpack.c.l.b16 %v5882
          %v6402 = vunpack.c.l.b16 %v5883
          %v6403 = vunpack.c.l.b16 %v5884
          %v6404 = vunpack.c.l.b16 %v5885
          %v6405 = vunpack.c.l.b16 %v5886
          %v6406 = vunpack.c.l.b16 %v5887
          %v6407 = vunpack.c.l.b16 %v5888
          %v6408 = vunpack.c.l.b16 %v5889
          %v6409 = vunpack.c.l.b16 %v5890
          %v6410 = vunpack.c.l.b16 %v5891
          %v6411 = vunpack.c.l.b16 %v5892
          %v6412 = vunpack.c.l.b16 %v5893
          %v6413 = vunpack.c.l.b16 %v5894
          %v6414 = vunpack.c.l.b16 %v5895
          %v6415 = vunpack.c.l.b16 %v5896
          %v6416 = vunpack.c.l.b16 %v5897
          %v6417 = vunpack.c.l.b16 %v5898
          %v6418 = vunpack.c.l.b16 %v5899
          %v6419 = vunpack.c.l.b16 %v5900
          %v6420 = vunpack.c.l.b16 %v5901
          %v6421 = vunpack.c.l.b16 %v5902
          %v6422 = vunpack.c.l.b16 %v5903
          %v6423 = vunpack.c.l.b16 %v5904
          %v6424 = vunpack.c.l.b16 %v5905
          %v6425 = vunpack.c.l.b16 %v5906
          %v6426 = vunpack.c.l.b16 %v5907
          %v6427 = vunpack.c.l.b16 %v5908
          %v6428 = vunpack.c.l.b16 %v5909
          %v6429 = vunpack.c.l.b16 %v5910
          %v6430 = vunpack.c.l.b16 %v5911
          %v6431 = vunpack.c.l.b16 %v5912
          %v6432 = vunpack.c.l.b16 %v5913
          %v6433 = vunpack.c.l.b16 %v5914
          %v6434 = vunpack.c.l.b16 %v5915
          %v6435 = vunpack.c.l.b16 %v5916
          %v6436 = vunpack.c.l.b16 %v5917
          %v6437 = vunpack.c.l.b16 %v5918
          %v6438 = vunpack.c.l.b16 %v5919
          %v6439 = vunpack.c.l.b16 %v5920
          %v6440 = vunpack.c.l.b16 %v5921
          %v6441 = vunpack.c.l.b16 %v5922
          %v6442 = vunpack.c.l.b16 %v5923
          %v6443 = vunpack.c.l.b16 %v5924
          %v6444 = vunpack.c.l.b16 %v5925
          %v6445 = vunpack.c.l.b16 %v5926
          %v6446 = vunpack.c.l.b16 %v5927
          %v6447 = vunpack.c.l.b16 %v5928
          %v6448 = vunpack.c.l.b16 %v5929
          %v6449 = vunpack.c.l.b16 %v5930
          %v6450 = vunpack.c.l.b16 %v5931
          %v6451 = vunpack.c.l.b16 %v5932
          %v6452 = vunpack.c.l.b16 %v5933
          %v6453 = vunpack.c.l.b16 %v5934
          %v6454 = vunpack.c.l.b16 %v5935
          %v6455 = vunpack.c.l.b16 %v5936
          %v6456 = vunpack.c.l.b16 %v5937
          %v6457 = vunpack.c.l.b16 %v5938
          %v6458 = vunpack.c.l.b16 %v5939
          %v6459 = vunpack.c.l.b16 %v5940
          %v6460 = vunpack.c.l.b16 %v5941
          %v6461 = vunpack.c.l.b16 %v5942
          %v6462 = vunpack.c.l.b16 %v5943
          %v6463 = vunpack.c.l.b16 %v5944
          %v6464 = vunpack.c.l.b16 %v5945
          %v6465 = vunpack.c.l.b16 %v5946
          %v6466 = vunpack.c.l.b16 %v5947
          %v6467 = vunpack.c.l.b16 %v5948
          %v6468 = vunpack.c.l.b16 %v5949
          %v6469 = vunpack.c.l.b16 %v5950
          %v6470 = vunpack.c.l.b16 %v5951
          %v6471 = vunpack.c.l.b16 %v5952
          %v6472 = vunpack.c.l.b16 %v5953
          %v6473 = vunpack.c.l.b16 %v5954
          %v6474 = vunpack.c.l.b16 %v5955
          %v6475 = vunpack.c.l.b16 %v5956
          %v6476 = vunpack.c.l.b16 %v5957
          %v6477 = vunpack.c.l.b16 %v5958
          %v6478 = vunpack.c.l.b16 %v5959
          %v6479 = vunpack.c.l.b16 %v5960
          %v6480 = vunpack.c.l.b16 %v5961
          %v6481 = vunpack.c.l.b16 %v5962
          %v6482 = vunpack.c.l.b16 %v5963
          %v6483 = vunpack.c.l.b16 %v5964
          %v6484 = vunpack.c.l.b16 %v5965
          %v6485 = vunpack.c.l.b16 %v5966
          %v6486 = vunpack.c.l.b16 %v5967
          %v6487 = vunpack.c.l.b16 %v5968
          %v6488 = vunpack.c.l.b16 %v5969
          %v6489 = vunpack.c.l.b16 %v5970
          %v6490 = vunpack.c.l.b16 %v5971
          %v6491 = vunpack.c.l.b16 %v5972
          %v6492 = vunpack.c.l.b16 %v5973
          %v6493 = vunpack.c.l.b16 %v5974
          %v6494 = vunpack.c.l.b16 %v5975
          %v6495 = vunpack.c.l.b16 %v5976
          %v6496 = vunpack.c.l.b16 %v5977
          %v6497 = vunpack.c.l.b16 %v5978
          %v6498 = vunpack.c.l.b16 %v5979
          %v6499 = vunpack.c.l.b16 %v5980
          %v6500 = vunpack.c.l.b16 %v5981
          %v6501 = vunpack.c.l.b16 %v5982
          %v6502 = vunpack.c.l.b16 %v5983
          %v6503 = vunpack.c.l.b16 %v5984
          %v6504 = vunpack.c.l.b16 %v5985
          %v6505 = vunpack.c.l.b16 %v5986
          %v6506 = vunpack.c.l.b16 %v5987
          %v6507 = vunpack.c.l.b16 %v5988
          %v6508 = vunpack.c.l.b16 %v5989
          %v6509 = vunpack.c.l.b16 %v5990
          %v6510 = vunpack.c.l.b16 %v5991
          %v6511 = vunpack.c.l.b16 %v5992
          %v6512 = vunpack.c.l.b16 %v5993
          %v6513 = vunpack.c.l.b16 %v5994
          %v6514 = vunpack.c.l.b16 %v5995
          %v6515 = vunpack.c.l.b16 %v5996
          %v6516 = vunpack.c.l.b16 %v5997
          %v6517 = vunpack.c.l.b16 %v5998
          %v6518 = vunpack.c.l.b16 %v5999
          %v6519 = vunpack.c.l.b16 %v6000
          %v6520 = vunpack.c.l.b16 %v6001
          %v6521 = vunpack.c.l.b16 %v6002
          %v6522 = vunpack.c.l.b16 %v6003
          %v6523 = vunpack.c.l.b16 %v6004
          %v6524 = vunpack.c.l.b16 %v6005
          %v6525 = vunpack.c.l.b16 %v6006
          %v6526 = vunpack.c.l.b16 %v6007
          %v6527 = vunpack.c.l.b16 %v6008
          %v6528 = vunpack.c.l.b16 %v6009
          %v6529 = vunpack.c.l.b16 %v6010
          %v6530 = vunpack.c.l.b16 %v6011
          %v6531 = vunpack.c.l.b16 %v6012
          %v6532 = vunpack.c.l.b16 %v6013
          %v6533 = vunpack.c.l.b16 %v6014
          %v6534 = vunpack.c.l.b16 %v6015
          %v6535 = vunpack.c.l.b16 %v6016
          %v6536 = vunpack.c.l.b16 %v6017
          %v6537 = vunpack.c.l.b16 %v6018
          %v6538 = vunpack.c.l.b16 %v6019
          %v6539 = vunpack.c.l.b16 %v6020
          %v6540 = vunpack.c.l.b16 %v6021
          %v6541 = vunpack.c.l.b16 %v6022
          %v6542 = vunpack.c.l.b16 %v6023
          %v6543 = vunpack.c.l.b16 %v6024
          %v6544 = vunpack.c.l.b16 %v6025
          %v6545 = vunpack.c.l.b16 %v6026
          %v6546 = vunpack.c.l.b16 %v6027
          %v6547 = vunpack.c.l.b16 %v6028
          %v6548 = vunpack.c.l.b16 %v6029
          %v6549 = vpack.c.b16 %v6294, %v6293
          %v6550 = vpack.c.b16 %v6296, %v6295
          %v6551 = vpack.c.b16 %v6298, %v6297
          %v6552 = vpack.c.b16 %v6300, %v6299
          %v6553 = vpack.c.b16 %v6302, %v6301
          %v6554 = vpack.c.b16 %v6304, %v6303
          %v6555 = vpack.c.b16 %v6306, %v6305
          %v6556 = vpack.c.b16 %v6308, %v6307
          %v6557 = vpack.c.b16 %v6310, %v6309
          %v6558 = vpack.c.b16 %v6312, %v6311
          %v6559 = vpack.c.b16 %v6314, %v6313
          %v6560 = vpack.c.b16 %v6316, %v6315
          %v6561 = vpack.c.b16 %v6318, %v6317
          %v6562 = vpack.c.b16 %v6320, %v6319
          %v6563 = vpack.c.b16 %v6322, %v6321
          %v6564 = vpack.c.b16 %v6324, %v6323
          %v6565 = vpack.c.b16 %v6326, %v6325
          %v6566 = vpack.c.b16 %v6328, %v6327
          %v6567 = vpack.c.b16 %v6330, %v6329
          %v6568 = vpack.c.b16 %v6332, %v6331
          %v6569 = vpack.c.b16 %v6334, %v6333
          %v6570 = vpack.c.b16 %v6336, %v6335
          %v6571 = vpack.c.b16 %v6338, %v6337
          %v6572 = vpack.c.b16 %v6340, %v6339
          %v6573 = vpack.c.b16 %v6342, %v6341
          %v6574 = vpack.c.b16 %v6344, %v6343
          %v6575 = vpack.c.b16 %v6346, %v6345
          %v6576 = vpack.c.b16 %v6348, %v6347
          %v6577 = vpack.c.b16 %v6350, %v6349
          %v6578 = vpack.c.b16 %v6352, %v6351
          %v6579 = vpack.c.b16 %v6354, %v6353
          %v6580 = vpack.c.b16 %v6356, %v6355
          %v6581 = vpack.c.b16 %v6358, %v6357
          %v6582 = vpack.c.b16 %v6360, %v6359
          %v6583 = vpack.c.b16 %v6362, %v6361
          %v6584 = vpack.c.b16 %v6364, %v6363
          %v6585 = vpack.c.b16 %v6366, %v6365
          %v6586 = vpack.c.b16 %v6368, %v6367
          %v6587 = vpack.c.b16 %v6370, %v6369
          %v6588 = vpack.c.b16 %v6372, %v6371
          %v6589 = vpack.c.b16 %v6374, %v6373
          %v6590 = vpack.c.b16 %v6376, %v6375
          %v6591 = vpack.c.b16 %v6378, %v6377
          %v6592 = vpack.c.b16 %v6380, %v6379
          %v6593 = vpack.c.b16 %v6382, %v6381
          %v6594 = vpack.c.b16 %v6384, %v6383
          %v6595 = vpack.c.b16 %v6386, %v6385
          %v6596 = vpack.c.b16 %v6388, %v6387
          %v6597 = vpack.c.b16 %v6390, %v6389
          %v6598 = vpack.c.b16 %v6392, %v6391
          %v6599 = vpack.c.b16 %v6394, %v6393
          %v6600 = vpack.c.b16 %v6396, %v6395
          %v6601 = vpack.c.b16 %v6398, %v6397
          %v6602 = vpack.c.b16 %v6400, %v6399
          %v6603 = vpack.c.b16 %v6402, %v6401
          %v6604 = vpack.c.b16 %v6404, %v6403
          %v6605 = vpack.c.b16 %v6406, %v6405
          %v6606 = vpack.c.b16 %v6408, %v6407
          %v6607 = vpack.c.b16 %v6410, %v6409
          %v6608 = vpack.c.b16 %v6412, %v6411
          %v6609 = vpack.c.b16 %v6414, %v6413
          %v6610 = vpack.c.b16 %v6416, %v6415
          %v6611 = vpack.c.b16 %v6418, %v6417
          %v6612 = vpack.c.b16 %v6420, %v6419
          %v6613 = vpack.c.b16 %v6422, %v6421
          %v6614 = vpack.c.b16 %v6424, %v6423
          %v6615 = vpack.c.b16 %v6426, %v6425
          %v6616 = vpack.c.b16 %v6428, %v6427
          %v6617 = vpack.c.b16 %v6430, %v6429
          %v6618 = vpack.c.b16 %v6432, %v6431
          %v6619 = vpack.c.b16 %v6434, %v6433
          %v6620 = vpack.c.b16 %v6436, %v6435
          %v6621 = vpack.c.b16 %v6438, %v6437
          %v6622 = vpack.c.b16 %v6440, %v6439
          %v6623 = vpack.c.b16 %v6442, %v6441
          %v6624 = vpack.c.b16 %v6444, %v6443
          %v6625 = vpack.c.b16 %v6446, %v6445
          %v6626 = vpack.c.b16 %v6448, %v6447
          %v6627 = vpack.c.b16 %v6450, %v6449
          %v6628 = vpack.c.b16 %v6452, %v6451
          %v6629 = vpack.c.b16 %v6454, %v6453
          %v6630 = vpack.c.b16 %v6456, %v6455
          %v6631 = vpack.c.b16 %v6458, %v6457
          %v6632 = vpack.c.b16 %v6460, %v6459
          %v6633 = vpack.c.b16 %v6462, %v6461
          %v6634 = vpack.c.b16 %v6464, %v6463
          %v6635 = vpack.c.b16 %v6466, %v6465
          %v6636 = vpack.c.b16 %v6468, %v6467
          %v6637 = vpack.c.b16 %v6470, %v6469
          %v6638 = vpack.c.b16 %v6472, %v6471
          %v6639 = vpack.c.b16 %v6474, %v6473
          %v6640 = vpack.c.b16 %v6476, %v6475
          %v6641 = vpack.c.b16 %v6478, %v6477
          %v6642 = vpack.c.b16 %v6480, %v6479
          %v6643 = vpack.c.b16 %v6482, %v6481
          %v6644 = vpack.c.b16 %v6484, %v6483
          %v6645 = vpack.c.b16 %v6486, %v6485
          %v6646 = vpack.c.b16 %v6488, %v6487
          %v6647 = vpack.c.b16 %v6490, %v6489
          %v6648 = vpack.c.b16 %v6492, %v6491
          %v6649 = vpack.c.b16 %v6494, %v6493
          %v6650 = vpack.c.b16 %v6496, %v6495
          %v6651 = vpack.c.b16 %v6498, %v6497
          %v6652 = vpack.c.b16 %v6500, %v6499
          %v6653 = vpack.c.b16 %v6502, %v6501
          %v6654 = vpack.c.b16 %v6504, %v6503
          %v6655 = vpack.c.b16 %v6506, %v6505
          %v6656 = vpack.c.b16 %v6508, %v6507
          %v6657 = vpack.c.b16 %v6510, %v6509
          %v6658 = vpack.c.b16 %v6512, %v6511
          %v6659 = vpack.c.b16 %v6514, %v6513
          %v6660 = vpack.c.b16 %v6516, %v6515
          %v6661 = vpack.c.b16 %v6518, %v6517
          %v6662 = vpack.c.b16 %v6520, %v6519
          %v6663 = vpack.c.b16 %v6522, %v6521
          %v6664 = vpack.c.b16 %v6524, %v6523
          %v6665 = vpack.c.b16 %v6526, %v6525
          %v6666 = vpack.c.b16 %v6528, %v6527
          %v6667 = vpack.c.b16 %v6530, %v6529
          %v6668 = vpack.c.b16 %v6532, %v6531
          %v6669 = vpack.c.b16 %v6534, %v6533
          %v6670 = vpack.c.b16 %v6536, %v6535
          %v6671 = vpack.c.b16 %v6538, %v6537
          %v6672 = vpack.c.b16 %v6540, %v6539
          %v6673 = vpack.c.b16 %v6542, %v6541
          %v6674 = vpack.c.b16 %v6544, %v6543
          %v6675 = vpack.c.b16 %v6546, %v6545
          %v6676 = vpack.c.b16 %v6548, %v6547
          %6805 = vmatprep.subr.bf16.mxu0 0
          %6806 = vmatpush1.bf16.msra.mxu0 %v6549
          %6807 = vmatprep.subr.bf16.mxu0 0
          %6808 = vmatpush1.bf16.msra.mxu0 %v6550
          %6809 = vmatprep.subr.bf16.mxu0 0
          %6810 = vmatpush1.bf16.msra.mxu0 %v6551
          %6811 = vmatprep.subr.bf16.mxu0 0
          %6812 = vmatpush1.bf16.msra.mxu0 %v6552
          %6813 = vmatprep.subr.bf16.mxu0 0
          %6814 = vmatpush1.bf16.msra.mxu0 %v6553
          %6815 = vmatprep.subr.bf16.mxu0 0
          %6816 = vmatpush1.bf16.msra.mxu0 %v6554
          %6817 = vmatprep.subr.bf16.mxu0 0
          %6818 = vmatpush1.bf16.msra.mxu0 %v6555
          %6819 = vmatprep.subr.bf16.mxu0 0
          %6820 = vmatpush1.bf16.msra.mxu0 %v6556
          %6821 = vmatprep.subr.bf16.mxu0 0
          %6822 = vmatpush1.bf16.msra.mxu0 %v6557
          %6823 = vmatprep.subr.bf16.mxu0 0
          %6824 = vmatpush1.bf16.msra.mxu0 %v6558
          %6825 = vmatprep.subr.bf16.mxu0 0
          %6826 = vmatpush1.bf16.msra.mxu0 %v6559
          %6827 = vmatprep.subr.bf16.mxu0 0
          %6828 = vmatpush1.bf16.msra.mxu0 %v6560
          %6829 = vmatprep.subr.bf16.mxu0 0
          %6830 = vmatpush1.bf16.msra.mxu0 %v6561
          %6831 = vmatprep.subr.bf16.mxu0 0
          %6832 = vmatpush1.bf16.msra.mxu0 %v6562
          %6833 = vmatprep.subr.bf16.mxu0 0
          %6834 = vmatpush1.bf16.msra.mxu0 %v6563
          %6835 = vmatprep.subr.bf16.mxu0 0
          %6836 = vmatpush1.bf16.msra.mxu0 %v6564
          %6837 = vmatprep.mubr.bf16.mxu0 %v5759
          %6838 = vmatmul.mubr.bf16.gmra.mrb[0].mxu0 %v5758
          %v6839 = vpop.f32.mrb[0].mxu0
          %v6840 = vadd.f32 %v6035, %v6839
          %v6841 = vpop.f32.mrb[0].mxu0
          %v6842 = vpop.f32.mrb[0].mxu0
          %v6843 = vpop.f32.mrb[0].mxu0
          %6844 = vdwg.mxu0
          %6845 = vmatprep.subr.bf16.mxu0 0
          %6846 = vmatpush1.bf16.msra.mxu0 %v6565
          %6847 = vmatprep.subr.bf16.mxu0 0
          %6848 = vmatpush1.bf16.msra.mxu0 %v6566
          %6849 = vmatprep.subr.bf16.mxu0 0
          %6850 = vmatpush1.bf16.msra.mxu0 %v6567
          %6851 = vmatprep.subr.bf16.mxu0 0
          %6852 = vmatpush1.bf16.msra.mxu0 %v6568
          %6853 = vmatprep.subr.bf16.mxu0 0
          %6854 = vmatpush1.bf16.msra.mxu0 %v6569
          %6855 = vmatprep.subr.bf16.mxu0 0
          %6856 = vmatpush1.bf16.msra.mxu0 %v6570
          %6857 = vmatprep.subr.bf16.mxu0 0
          %6858 = vmatpush1.bf16.msra.mxu0 %v6571
          %6859 = vmatprep.subr.bf16.mxu0 0
          %6860 = vmatpush1.bf16.msra.mxu0 %v6572
          %6861 = vmatprep.subr.bf16.mxu0 0
          %6862 = vmatpush1.bf16.msra.mxu0 %v6573
          %6863 = vmatprep.subr.bf16.mxu0 0
          %6864 = vmatpush1.bf16.msra.mxu0 %v6574
          %6865 = vmatprep.subr.bf16.mxu0 0
          %6866 = vmatpush1.bf16.msra.mxu0 %v6575
          %6867 = vmatprep.subr.bf16.mxu0 0
          %6868 = vmatpush1.bf16.msra.mxu0 %v6576
          %6869 = vmatprep.subr.bf16.mxu0 0
          %6870 = vmatpush1.bf16.msra.mxu0 %v6577
          %6871 = vmatprep.subr.bf16.mxu0 0
          %6872 = vmatpush1.bf16.msra.mxu0 %v6578
          %6873 = vmatprep.subr.bf16.mxu0 0
          %6874 = vmatpush1.bf16.msra.mxu0 %v6579
          %6875 = vmatprep.subr.bf16.mxu0 0
          %6876 = vmatpush1.bf16.msra.mxu0 %v6580
          %6877 = vmatprep.mubr.bf16.mxu0 %v5761
          %6878 = vmatmul.mubr.bf16.gmra.mrb[0].mxu0 %v5760
          %v6879 = vpop.f32.mrb[0].mxu0
          %v6880 = vadd.f32 %v6840, %v6879
          %v6881 = vpop.f32.mrb[0].mxu0
          %v6882 = vpop.f32.mrb[0].mxu0
          %v6883 = vpop.f32.mrb[0].mxu0
          %6884 = vdwg.mxu0
          %6885 = vmatprep.subr.bf16.mxu0 0
          %6886 = vmatpush1.bf16.msra.mxu0 %v6581
          %6887 = vmatprep.subr.bf16.mxu0 0
          %6888 = vmatpush1.bf16.msra.mxu0 %v6582
          %6889 = vmatprep.subr.bf16.mxu0 0
          %6890 = vmatpush1.bf16.msra.mxu0 %v6583
          %6891 = vmatprep.subr.bf16.mxu0 0
          %6892 = vmatpush1.bf16.msra.mxu0 %v6584
          %6893 = vmatprep.subr.bf16.mxu0 0
          %6894 = vmatpush1.bf16.msra.mxu0 %v6585
          %6895 = vmatprep.subr.bf16.mxu0 0
          %6896 = vmatpush1.bf16.msra.mxu0 %v6586
          %6897 = vmatprep.subr.bf16.mxu0 0
          %6898 = vmatpush1.bf16.msra.mxu0 %v6587
          %6899 = vmatprep.subr.bf16.mxu0 0
          %6900 = vmatpush1.bf16.msra.mxu0 %v6588
          %6901 = vmatprep.subr.bf16.mxu0 0
          %6902 = vmatpush1.bf16.msra.mxu0 %v6589
          %6903 = vmatprep.subr.bf16.mxu0 0
          %6904 = vmatpush1.bf16.msra.mxu0 %v6590
          %6905 = vmatprep.subr.bf16.mxu0 0
          %6906 = vmatpush1.bf16.msra.mxu0 %v6591
          %6907 = vmatprep.subr.bf16.mxu0 0
          %6908 = vmatpush1.bf16.msra.mxu0 %v6592
          %6909 = vmatprep.subr.bf16.mxu0 0
          %6910 = vmatpush1.bf16.msra.mxu0 %v6593
          %6911 = vmatprep.subr.bf16.mxu0 0
          %6912 = vmatpush1.bf16.msra.mxu0 %v6594
          %6913 = vmatprep.subr.bf16.mxu0 0
          %6914 = vmatpush1.bf16.msra.mxu0 %v6595
          %6915 = vmatprep.subr.bf16.mxu0 0
          %6916 = vmatpush1.bf16.msra.mxu0 %v6596
          %6917 = vmatprep.mubr.bf16.mxu0 %v5763
          %6918 = vmatmul.mubr.bf16.gmra.mrb[0].mxu0 %v5762
          %v6919 = vpop.f32.mrb[0].mxu0
          %v6920 = vadd.f32 %v6880, %v6919
          %v6921 = vpop.f32.mrb[0].mxu0
          %v6922 = vpop.f32.mrb[0].mxu0
          %v6923 = vpop.f32.mrb[0].mxu0
          %6924 = vdwg.mxu0
          %6925 = vmatprep.subr.bf16.mxu0 0
          %6926 = vmatpush1.bf16.msra.mxu0 %v6597
          %6927 = vmatprep.subr.bf16.mxu0 0
          %6928 = vmatpush1.bf16.msra.mxu0 %v6598
          %6929 = vmatprep.subr.bf16.mxu0 0
          %6930 = vmatpush1.bf16.msra.mxu0 %v6599
          %6931 = vmatprep.subr.bf16.mxu0 0
          %6932 = vmatpush1.bf16.msra.mxu0 %v6600
          %6933 = vmatprep.subr.bf16.mxu0 0
          %6934 = vmatpush1.bf16.msra.mxu0 %v6601
          %6935 = vmatprep.subr.bf16.mxu0 0
          %6936 = vmatpush1.bf16.msra.mxu0 %v6602
          %6937 = vmatprep.subr.bf16.mxu0 0
          %6938 = vmatpush1.bf16.msra.mxu0 %v6603
          %6939 = vmatprep.subr.bf16.mxu0 0
          %6940 = vmatpush1.bf16.msra.mxu0 %v6604
          %6941 = vmatprep.subr.bf16.mxu0 0
          %6942 = vmatpush1.bf16.msra.mxu0 %v6605
          %6943 = vmatprep.subr.bf16.mxu0 0
          %6944 = vmatpush1.bf16.msra.mxu0 %v6606
          %6945 = vmatprep.subr.bf16.mxu0 0
          %6946 = vmatpush1.bf16.msra.mxu0 %v6607
          %6947 = vmatprep.subr.bf16.mxu0 0
          %6948 = vmatpush1.bf16.msra.mxu0 %v6608
          %6949 = vmatprep.subr.bf16.mxu0 0
          %6950 = vmatpush1.bf16.msra.mxu0 %v6609
          %6951 = vmatprep.subr.bf16.mxu0 0
          %6952 = vmatpush1.bf16.msra.mxu0 %v6610
          %6953 = vmatprep.subr.bf16.mxu0 0
          %6954 = vmatpush1.bf16.msra.mxu0 %v6611
          %6955 = vmatprep.subr.bf16.mxu0 0
          %6956 = vmatpush1.bf16.msra.mxu0 %v6612
          %6957 = vmatprep.mubr.bf16.mxu0 %v5765
          %6958 = vmatmul.mubr.bf16.gmra.mrb[0].mxu0 %v5764
          %v6959 = vpop.f32.mrb[0].mxu0
          %v6960 = vadd.f32 %v6920, %v6959
          %v6961 = vpop.f32.mrb[0].mxu0
          %v6962 = vpop.f32.mrb[0].mxu0
          %v6963 = vpop.f32.mrb[0].mxu0
          %6964 = vdwg.mxu0
          %6965 = vmatprep.subr.bf16.mxu0 0
          %6966 = vmatpush1.bf16.msra.mxu0 %v6613
          %6967 = vmatprep.subr.bf16.mxu0 0
          %6968 = vmatpush1.bf16.msra.mxu0 %v6614
          %6969 = vmatprep.subr.bf16.mxu0 0
          %6970 = vmatpush1.bf16.msra.mxu0 %v6615
          %6971 = vmatprep.subr.bf16.mxu0 0
          %6972 = vmatpush1.bf16.msra.mxu0 %v6616
          %6973 = vmatprep.subr.bf16.mxu0 0
          %6974 = vmatpush1.bf16.msra.mxu0 %v6617
          %6975 = vmatprep.subr.bf16.mxu0 0
          %6976 = vmatpush1.bf16.msra.mxu0 %v6618
          %6977 = vmatprep.subr.bf16.mxu0 0
          %6978 = vmatpush1.bf16.msra.mxu0 %v6619
          %6979 = vmatprep.subr.bf16.mxu0 0
          %6980 = vmatpush1.bf16.msra.mxu0 %v6620
          %6981 = vmatprep.subr.bf16.mxu0 0
          %6982 = vmatpush1.bf16.msra.mxu0 %v6621
          %6983 = vmatprep.subr.bf16.mxu0 0
          %6984 = vmatpush1.bf16.msra.mxu0 %v6622
          %6985 = vmatprep.subr.bf16.mxu0 0
          %6986 = vmatpush1.bf16.msra.mxu0 %v6623
          %6987 = vmatprep.subr.bf16.mxu0 0
          %6988 = vmatpush1.bf16.msra.mxu0 %v6624
          %6989 = vmatprep.subr.bf16.mxu0 0
          %6990 = vmatpush1.bf16.msra.mxu0 %v6625
          %6991 = vmatprep.subr.bf16.mxu0 0
          %6992 = vmatpush1.bf16.msra.mxu0 %v6626
          %6993 = vmatprep.subr.bf16.mxu0 0
          %6994 = vmatpush1.bf16.msra.mxu0 %v6627
          %6995 = vmatprep.subr.bf16.mxu0 0
          %6996 = vmatpush1.bf16.msra.mxu0 %v6628
          %6997 = vmatprep.mubr.bf16.mxu0 %v5767
          %6998 = vmatmul.mubr.bf16.gmra.mrb[0].mxu0 %v5766
          %v6999 = vpop.f32.mrb[0].mxu0
          %v7000 = vadd.f32 %v6960, %v6999
          %v7001 = vpop.f32.mrb[0].mxu0
          %v7002 = vpop.f32.mrb[0].mxu0
          %v7003 = vpop.f32.mrb[0].mxu0
          %7004 = vdwg.mxu0
          %7005 = vmatprep.subr.bf16.mxu0 0
          %7006 = vmatpush1.bf16.msra.mxu0 %v6629
          %7007 = vmatprep.subr.bf16.mxu0 0
          %7008 = vmatpush1.bf16.msra.mxu0 %v6630
          %7009 = vmatprep.subr.bf16.mxu0 0
          %7010 = vmatpush1.bf16.msra.mxu0 %v6631
          %7011 = vmatprep.subr.bf16.mxu0 0
          %7012 = vmatpush1.bf16.msra.mxu0 %v6632
          %7013 = vmatprep.subr.bf16.mxu0 0
          %7014 = vmatpush1.bf16.msra.mxu0 %v6633
          %7015 = vmatprep.subr.bf16.mxu0 0
          %7016 = vmatpush1.bf16.msra.mxu0 %v6634
          %7017 = vmatprep.subr.bf16.mxu0 0
          %7018 = vmatpush1.bf16.msra.mxu0 %v6635
          %7019 = vmatprep.subr.bf16.mxu0 0
          %7020 = vmatpush1.bf16.msra.mxu0 %v6636
          %7021 = vmatprep.subr.bf16.mxu0 0
          %7022 = vmatpush1.bf16.msra.mxu0 %v6637
          %7023 = vmatprep.subr.bf16.mxu0 0
          %7024 = vmatpush1.bf16.msra.mxu0 %v6638
          %7025 = vmatprep.subr.bf16.mxu0 0
          %7026 = vmatpush1.bf16.msra.mxu0 %v6639
          %7027 = vmatprep.subr.bf16.mxu0 0
          %7028 = vmatpush1.bf16.msra.mxu0 %v6640
          %7029 = vmatprep.subr.bf16.mxu0 0
          %7030 = vmatpush1.bf16.msra.mxu0 %v6641
          %7031 = vmatprep.subr.bf16.mxu0 0
          %7032 = vmatpush1.bf16.msra.mxu0 %v6642
          %7033 = vmatprep.subr.bf16.mxu0 0
          %7034 = vmatpush1.bf16.msra.mxu0 %v6643
          %7035 = vmatprep.subr.bf16.mxu0 0
          %7036 = vmatpush1.bf16.msra.mxu0 %v6644
          %7037 = vmatprep.mubr.bf16.mxu0 %v5769
          %7038 = vmatmul.mubr.bf16.gmra.mrb[0].mxu0 %v5768
          %v7039 = vpop.f32.mrb[0].mxu0
          %v7040 = vadd.f32 %v7000, %v7039
          %v7041 = vpop.f32.mrb[0].mxu0
          %v7042 = vpop.f32.mrb[0].mxu0
          %v7043 = vpop.f32.mrb[0].mxu0
          %7044 = vdwg.mxu0
          %7045 = vmatprep.subr.bf16.mxu0 0
          %7046 = vmatpush1.bf16.msra.mxu0 %v6645
          %7047 = vmatprep.subr.bf16.mxu0 0
          %7048 = vmatpush1.bf16.msra.mxu0 %v6646
          %7049 = vmatprep.subr.bf16.mxu0 0
          %7050 = vmatpush1.bf16.msra.mxu0 %v6647
          %7051 = vmatprep.subr.bf16.mxu0 0
          %7052 = vmatpush1.bf16.msra.mxu0 %v6648
          %7053 = vmatprep.subr.bf16.mxu0 0
          %7054 = vmatpush1.bf16.msra.mxu0 %v6649
          %7055 = vmatprep.subr.bf16.mxu0 0
          %7056 = vmatpush1.bf16.msra.mxu0 %v6650
          %7057 = vmatprep.subr.bf16.mxu0 0
          %7058 = vmatpush1.bf16.msra.mxu0 %v6651
          %7059 = vmatprep.subr.bf16.mxu0 0
          %7060 = vmatpush1.bf16.msra.mxu0 %v6652
          %7061 = vmatprep.subr.bf16.mxu0 0
          %7062 = vmatpush1.bf16.msra.mxu0 %v6653
          %7063 = vmatprep.subr.bf16.mxu0 0
          %7064 = vmatpush1.bf16.msra.mxu0 %v6654
          %7065 = vmatprep.subr.bf16.mxu0 0
          %7066 = vmatpush1.bf16.msra.mxu0 %v6655
          %7067 = vmatprep.subr.bf16.mxu0 0
          %7068 = vmatpush1.bf16.msra.mxu0 %v6656
          %7069 = vmatprep.subr.bf16.mxu0 0
          %7070 = vmatpush1.bf16.msra.mxu0 %v6657
          %7071 = vmatprep.subr.bf16.mxu0 0
          %7072 = vmatpush1.bf16.msra.mxu0 %v6658
          %7073 = vmatprep.subr.bf16.mxu0 0
          %7074 = vmatpush1.bf16.msra.mxu0 %v6659
          %7075 = vmatprep.subr.bf16.mxu0 0
          %7076 = vmatpush1.bf16.msra.mxu0 %v6660
          %7077 = vmatprep.mubr.bf16.mxu0 %v5771
          %7078 = vmatmul.mubr.bf16.gmra.mrb[0].mxu0 %v5770
          %v7079 = vpop.f32.mrb[0].mxu0
          %v7080 = vadd.f32 %v7040, %v7079
          %v7081 = vpop.f32.mrb[0].mxu0
          %v7082 = vpop.f32.mrb[0].mxu0
          %v7083 = vpop.f32.mrb[0].mxu0
          %7084 = vdwg.mxu0
          %7085 = vmatprep.subr.bf16.mxu0 0
          %7086 = vmatpush1.bf16.msra.mxu0 %v6661
          %7087 = vmatprep.subr.bf16.mxu0 0
          %7088 = vmatpush1.bf16.msra.mxu0 %v6662
          %7089 = vmatprep.subr.bf16.mxu0 0
          %7090 = vmatpush1.bf16.msra.mxu0 %v6663
          %7091 = vmatprep.subr.bf16.mxu0 0
          %7092 = vmatpush1.bf16.msra.mxu0 %v6664
          %7093 = vmatprep.subr.bf16.mxu0 0
          %7094 = vmatpush1.bf16.msra.mxu0 %v6665
          %7095 = vmatprep.subr.bf16.mxu0 0
          %7096 = vmatpush1.bf16.msra.mxu0 %v6666
          %7097 = vmatprep.subr.bf16.mxu0 0
          %7098 = vmatpush1.bf16.msra.mxu0 %v6667
          %7099 = vmatprep.subr.bf16.mxu0 0
          %7100 = vmatpush1.bf16.msra.mxu0 %v6668
          %7101 = vmatprep.subr.bf16.mxu0 0
          %7102 = vmatpush1.bf16.msra.mxu0 %v6669
          %7103 = vmatprep.subr.bf16.mxu0 0
          %7104 = vmatpush1.bf16.msra.mxu0 %v6670
          %7105 = vmatprep.subr.bf16.mxu0 0
          %7106 = vmatpush1.bf16.msra.mxu0 %v6671
          %7107 = vmatprep.subr.bf16.mxu0 0
          %7108 = vmatpush1.bf16.msra.mxu0 %v6672
          %7109 = vmatprep.subr.bf16.mxu0 0
          %7110 = vmatpush1.bf16.msra.mxu0 %v6673
          %7111 = vmatprep.subr.bf16.mxu0 0
          %7112 = vmatpush1.bf16.msra.mxu0 %v6674
          %7113 = vmatprep.subr.bf16.mxu0 0
          %7114 = vmatpush1.bf16.msra.mxu0 %v6675
          %7115 = vmatprep.subr.bf16.mxu0 0
          %7116 = vmatpush1.bf16.msra.mxu0 %v6676
          %7117 = vmatprep.mubr.bf16.mxu0 %v5773
          %7118 = vmatmul.mubr.bf16.gmra.mrb[0].mxu0 %v5772
          %v7119 = vpop.f32.mrb[0].mxu0
          %v7120 = vadd.f32 %v7080, %v7119
          %v7121 = vpop.f32.mrb[0].mxu0
          %v7122 = vpop.f32.mrb[0].mxu0
          %v7123 = vpop.f32.mrb[0].mxu0
          %7124 = vdwg.mxu0
          %7125 = vst [vmem:[%s528] sm:$0x3] %v7120
        $region80: #{encoder_forward.7} parent=47 // pred_fallthru
          _
        %p7126 = scmp.lt.s32.totalorder %s34, 1
        %s7127 = scalar_select %p7126, %s34, 1
        %s7128 = smul.addr %s7127, 2
        %s7129 = scalar_lea.vmem %s7, %s7128
        // Predicated region
        $region81: #{encoder_forward.7} parent=47 // pred_check
          %p7130 = pneg %p244
        $region82: #{encoder_forward.7} parent=47 // pred_check_branch
          %7132 = sbr.rel (%p7130) target = $region84
        $region83: #{encoder_forward.7} parent=47 // pred_region
          _
        $region84: #{encoder_forward.7} parent=47 // pred_fallthru
          _
      $region48: #{encoder_forward.7} parent=5 // pred_fallthru
        _
      %p7133 = scmp.le.s32.totalorder 2, %s25
      // Predicated region
      $region85: #{encoder_forward.7} parent=5 // pred_check
        %p7134 = pneg %p7133
      $region86: #{encoder_forward.7} parent=5 // pred_check_branch
        %7136 = sbr.rel (%p7134) target = $region88
      $region87: #{encoder_forward.7} parent=5 // pred_region
        %s7137 = ssub.s32 %s25, 2
        // Predicated region
        $region89: #{encoder_forward.7} parent=87 // pred_check
          %p7138 = pneg %p250
        $region90: #{encoder_forward.7} parent=87 // pred_check_branch
          %7140 = sbr.rel (%p7138) target = $region92
        $region91: #{encoder_forward.7} parent=87 // pred_region
          %p7141 = scmp.lt.s32.totalorder %s36, 1
          %s7142 = scalar_select %p7141, %s36, 1
          %s7143 = smul.addr %s7142, 2
          %s7144 = scalar_lea.vmem %s7, %s7143
        $region92: #{encoder_forward.7} parent=87 // pred_fallthru
          _
      $region88: #{encoder_forward.7} parent=5 // pred_fallthru
        _
    $region6: #{encoder_forward.7} parent=1 // loop_footer
      %s29 = sadd.s32 1, %s25
    $region7: #{encoder_forward.7} parent=1 // loop_footer_branch
      %24 = sbr.rel target = $region3
    $region8: #{encoder_forward.7} parent=1 // loop_exit
      _
    %7145 = vsyncpa [#allocation4], 1
    %s7146 = scalar_lea.sflag [#allocation4], 1
    %7147 = vsyncpa %s7146, 1
    %7148 = vsyncpa [#allocation6], 1
    %s7149 = scalar_lea.sflag [#allocation6], 1
    %7150 = vsyncpa %s7149, 1
    %7151 = vsyncpa [#allocation9], 1
    %s7152 = scalar_lea.sflag [#allocation9], 1
    %7153 = vsyncpa %s7152, 1
    %7154 = vsyncpa [#allocation12], 1
    %s7155 = scalar_lea.sflag [#allocation12], 1
    %7156 = vsyncpa %s7155, 1

</llo_original>
